<compile_context>
chip_gen: v7x
topology: tpu7x:2x2x1
jax: 0.10.0
libtpu: 0.0.40
codegen_flags: <defaults>
</compile_context>

<pallas_src>
import jax
import jax.numpy as jnp
import numpy as np
from jax.experimental import pallas as pl
from jax.experimental.pallas import tpu as pltpu

WORD_VEC_DIM = 128
CHAR_VEC_DIM = 32
CNN_FILTERS_L = 32
CNN_WINDOW_K = 3
LSTM_FEATURES = 64          # real hidden size H (PyTorch LSTM hidden_size)
LSTM_HP = 128               # lane-padded hidden size (one full vreg per gate)
NUM_TAGS = 45               # len(TAG_TO_IX)
OUT_PAD = 128               # lane-dense logits width


# ----------------------------------------------------------------------------------------
# Fused kernel: char CNN + pool + BiLSTM + hidden2tag
# ----------------------------------------------------------------------------------------
def pos_fused_kernel(word_ref, chpad_ref, convw_ref, convb_ref,
                     wih_word_ref, wih_char_ref, b_cat_ref,
                     whh_f_ref, whh_b_ref,
                     w_out_f_ref, w_out_b_ref, b_out_ref,
                     out_ref,
                     gin_scr, fwd_scr, bwd_scr):
    # word_ref     : (T, 128)       word embeddings
    # chpad_ref    : (T, L+2, 32)   char embeddings, zero-padded along char axis (conv pad=1)
    # convw_ref    : (96, 32)       im2col conv weight, rows ordered k*32 + c
    # convb_ref    : (1, 32)
    # wih_word_ref : (128, 1024)    rows of [Wih_f | Wih_b] for the word-embedding features
    # wih_char_ref : (32, 1024)     rows of [Wih_f | Wih_b] for the char-CNN features
    # b_cat_ref    : (1, 1024)      b_ih + b_hh, fwd||bwd, gate-padded (padded cols = 0)
    # whh_f/whh_b  : (128, 512)     gate-padded recurrent weights (rows 64:128 are zero)
    # w_out_f/b    : (128, 128)     hidden2tag split by direction, zero-padded
    # b_out_ref    : (1, 128)
    # out_ref      : (T, 128)       lane-dense logits (cols 45:128 are zero)
    T, Lp2, C = chpad_ref.shape
    L = Lp2 - 2
    HP = LSTM_HP
    G = 4 * HP  # 512 = padded gate width per direction

    # ---------------- char CNN (single im2col MXU push) + max-pool over char axis -------
    xpad = chpad_ref[...]
    xs3 = jnp.concatenate(
        [xpad[:, k:k + L, :].reshape(T * L, C) for k in range(CNN_WINDOW_K)], axis=1)
    y = (jnp.dot(xs3, convw_ref[...], preferred_element_type=jnp.float32)
         + convb_ref[...])                                        # (T*L, 32)
    char_rep = jnp.max(y.reshape(T, L, CNN_FILTERS_L), axis=1)    # (T, 32)

    # ---------------- hoisted LSTM input projection (fwd||bwd, gate-padded) -------------
    # word_rep = [word_embeds | char_rep]; concat avoided by splitting W_ih over its rows.
    gin_scr[...] = (
        jnp.dot(word_ref[...], wih_word_ref[...], preferred_element_type=jnp.float32)
        + jnp.dot(char_rep, wih_char_ref[...], preferred_element_type=jnp.float32)
        + b_cat_ref[...])                                          # (T, 1024)

    whh_f = whh_f_ref[...]
    whh_b = whh_b_ref[...]

    def gates_to_hc(g, c):
        # PyTorch gate order i, f, g, o; each gate occupies a full 128-lane slot,
        # real values in lanes [0:64], padded lanes stay exactly zero through the
        # recurrence (sigmoid(0)*0 + sigmoid(0)*tanh(0) = 0).
        i = jax.nn.sigmoid(g[:, 0 * HP:1 * HP])
        f = jax.nn.sigmoid(g[:, 1 * HP:2 * HP])
        z = jnp.tanh(g[:, 2 * HP:3 * HP])
        o = jax.nn.sigmoid(g[:, 3 * HP:4 * HP])
        c_new = f * c + i * z
        h_new = o * jnp.tanh(c_new)
        return h_new, c_new

    def step(t, carry):
        hf, cf, hb, cb = carry
        gf = (gin_scr[pl.ds(t, 1), pl.ds(0, G)]
              + jnp.dot(hf, whh_f, preferred_element_type=jnp.float32))
        hf, cf = gates_to_hc(gf, cf)
        fwd_scr[pl.ds(t, 1), :] = hf

        tb = T - 1 - t
        gb = (gin_scr[pl.ds(tb, 1), pl.ds(G, G)]
              + jnp.dot(hb, whh_b, preferred_element_type=jnp.float32))
        hb, cb = gates_to_hc(gb, cb)
        bwd_scr[pl.ds(tb, 1), :] = hb
        return hf, cf, hb, cb

    z0 = jnp.zeros((1, HP), jnp.float32)
    jax.lax.fori_loop(0, T, step, (z0, z0, z0, z0), unroll=T <= 16)

    # ---------------- hidden2tag: split output projection, lane-dense store -------------
    out_ref[...] = (
        jnp.dot(fwd_scr[...], w_out_f_ref[...], preferred_element_type=jnp.float32)
        + jnp.dot(bwd_scr[...], w_out_b_ref[...], preferred_element_type=jnp.float32)
        + b_out_ref[...])


def pos_tagger_fused(word_embeds, char_embeds_padded, params):
    T = word_embeds.shape[0]
    out_pad = pl.pallas_call(
        pos_fused_kernel,
        out_shape=jax.ShapeDtypeStruct((T, OUT_PAD), jnp.float32),
        in_specs=[pl.BlockSpec(memory_space=pltpu.MemorySpace.VMEM)] * 12,
        out_specs=pl.BlockSpec(memory_space=pltpu.MemorySpace.VMEM),
        scratch_shapes=[
            pltpu.VMEM((T, 8 * LSTM_HP), jnp.float32),   # hoisted gates_in, fwd||bwd
            pltpu.VMEM((T, LSTM_HP), jnp.float32),       # forward hidden states
            pltpu.VMEM((T, LSTM_HP), jnp.float32),       # backward hidden states
        ],
    )(word_embeds, char_embeds_padded,
      params["conv_w96"], params["conv_b"],
      params["wih_word"], params["wih_char"], params["b_cat"],
      params["whh_f"], params["whh_b"],
      params["w_out_f"], params["w_out_b"], params["b_out"])
    return out_pad[:, :NUM_TAGS]


# ----------------------------------------------------------------------------------------
# Parameters (deterministic synthetic init; shapes derived from nn.Module __init__,
# pre-transformed into the padded / fused kernel layout)
# ----------------------------------------------------------------------------------------
def init_params(key, word_vocab_len, char_vocab_len):
    H, HP = LSTM_FEATURES, LSTM_HP
    D = WORD_VEC_DIM + CNN_FILTERS_L
    ks = jax.random.split(key, 16)
    s = 0.1

    word_emb = jax.random.normal(ks[0], (word_vocab_len + 1, WORD_VEC_DIM), jnp.float32) * s
    word_emb = word_emb.at[word_vocab_len].set(0.0)          # padding_idx row -> zeros
    char_emb = jax.random.normal(ks[1], (char_vocab_len + 1, CHAR_VEC_DIM), jnp.float32) * s
    char_emb = char_emb.at[char_vocab_len].set(0.0)          # padding_idx row -> zeros

    # Conv1d weight (O, C, K) -> im2col layout (K*C, O)
    conv_w_ock = jax.random.normal(ks[2], (CNN_FILTERS_L, CHAR_VEC_DIM, CNN_WINDOW_K),
                                   jnp.float32) * s
    conv_w96 = jnp.transpose(conv_w_ock, (2, 1, 0)).reshape(
        CNN_WINDOW_K * CHAR_VEC_DIM, CNN_FILTERS_L)
    conv_b = (jax.random.normal(ks[3], (CNN_FILTERS_L,), jnp.float32) * s).reshape(1, -1)

    def pad_gate_cols(w):
        # (rows, 4H) -> (rows, 4HP); gate g's H cols go to [g*HP : g*HP+H] (i,f,g,o order).
        out = jnp.zeros((w.shape[0], 4 * HP), jnp.float32)
        for g in range(4):
            out = out.at[:, g * HP:g * HP + H].set(w[:, g * H:(g + 1) * H])
        return out

    def lstm_dir(k0, k1, k2, k3):
        w_ih = jax.random.normal(k0, (4 * H, D), jnp.float32) * s   # PyTorch layout
        w_hh = jax.random.normal(k1, (4 * H, H), jnp.float32) * s
        b_ih = jax.random.normal(k2, (4 * H,), jnp.float32) * s
        b_hh = jax.random.normal(k3, (4 * H,), jnp.float32) * s
        wih_pad = pad_gate_cols(w_ih.T)                              # (D, 4HP)
        whh_pad = jnp.zeros((HP, 4 * HP), jnp.float32).at[:H, :].set(pad_gate_cols(w_hh.T))
        b_pad = pad_gate_cols((b_ih + b_hh).reshape(1, -1))          # (1, 4HP)
        return wih_pad, whh_pad, b_pad

    wih_f, whh_f, b_f = lstm_dir(ks[4], ks[5], ks[6], ks[7])
    wih_b, whh_b, b_b = lstm_dir(ks[8], ks[9], ks[10], ks[11])

    wih_cat = jnp.concatenate([wih_f, wih_b], axis=1)                # (160, 1024)
    b_cat = jnp.concatenate([b_f, b_b], axis=1)                      # (1, 1024)

    # hidden2tag Linear(2H -> 45), split by direction and lane-padded to 128 columns.
    w_out = jax.random.normal(ks[12], (NUM_TAGS, 2 * H), jnp.float32) * s  # PyTorch layout
    b_out = jax.random.normal(ks[13], (NUM_TAGS,), jnp.float32) * s
    w_out_t = w_out.T                                                # (2H, 45)
    w_out_f = jnp.zeros((HP, OUT_PAD), jnp.float32).at[:H, :NUM_TAGS].set(w_out_t[:H])
    w_out_b = jnp.zeros((HP, OUT_PAD), jnp.float32).at[:H, :NUM_TAGS].set(w_out_t[H:])
    b_out_pad = jnp.zeros((1, OUT_PAD), jnp.float32).at[0, :NUM_TAGS].set(b_out)

    return dict(word_emb=word_emb, char_emb=char_emb,
                conv_w96=conv_w96, conv_b=conv_b,
                wih_word=wih_cat[:WORD_VEC_DIM], wih_char=wih_cat[WORD_VEC_DIM:],
                b_cat=b_cat, whh_f=whh_f, whh_b=whh_b,
                w_out_f=w_out_f, w_out_b=w_out_b, b_out=b_out_pad)


# ----------------------------------------------------------------------------------------
# Forward pass (glue + fused kernel) and a pure-JAX reference for correctness
# ----------------------------------------------------------------------------------------
def pos_forward(word_ids, char_ids, params):
    word_embeds = params["word_emb"][word_ids]                    # (T, 128)
    char_embeds = params["char_emb"][char_ids]                    # (T, L, 32); pad rows -> 0
    xpad = jnp.pad(char_embeds, ((0, 0), (1, 1), (0, 0)))         # Conv1d padding = 1
    return pos_tagger_fused(word_embeds, xpad, params)            # (T, 45)


def pos_forward_ref(word_ids, char_ids, p):
    HP = LSTM_HP
    G = 4 * HP
    T, L = char_ids.shape
    we = p["word_emb"][word_ids]
    ce = p["char_emb"][char_ids]
    xpad = jnp.pad(ce, ((0, 0), (1, 1), (0, 0)))
    xs3 = jnp.concatenate(
        [xpad[:, k:k + L, :].reshape(T * L, CHAR_VEC_DIM) for k in range(CNN_WINDOW_K)],
        axis=1)
    y = xs3 @ p["conv_w96"] + p["conv_b"]
    char_rep = jnp.max(y.reshape(T, L, CNN_FILTERS_L), axis=1)
    gin = we @ p["wih_word"] + char_rep @ p["wih_char"] + p["b_cat"]     # (T, 1024)

    def cell(g, h, c, whh):
        gg = g + h @ whh
        i = jax.nn.sigmoid(gg[:, 0:HP]); f = jax.nn.sigmoid(gg[:, HP:2 * HP])
        z = jnp.tanh(gg[:, 2 * HP:3 * HP]); o = jax.nn.sigmoid(gg[:, 3 * HP:4 * HP])
        c2 = f * c + i * z
        return o * jnp.tanh(c2), c2

    hf = jnp.zeros((1, HP)); cf = jnp.zeros((1, HP))
    hb = jnp.zeros((1, HP)); cb = jnp.zeros((1, HP))
    fwd = [None] * T
    bwd = [None] * T
    for t in range(T):
        hf, cf = cell(gin[t:t + 1, :G], hf, cf, p["whh_f"]); fwd[t] = hf
        tb = T - 1 - t
        hb, cb = cell(gin[tb:tb + 1, G:], hb, cb, p["whh_b"]); bwd[tb] = hb
    fcat = jnp.concatenate(fwd, axis=0)
    bcat = jnp.concatenate(bwd, axis=0)
    out = fcat @ p["w_out_f"] + bcat @ p["w_out_b"] + p["b_out"]
    return out[:, :NUM_TAGS]


if __name__ == "__main__":
    # TODO(synk): string->index preprocessing has no Pallas equivalent; done in Python here.
    word_vocab = {w: i for i, w in enumerate(
        ["the", "quick", "brown", "fox", "jumps", "over", "lazy", "dog", "a", "cat"])}
    char_vocab = {c: i for i, c in enumerate("abcdefghijklmnopqrstuvwxyz")}

    sentence = ["the", "quick", "brown", "fox", "jumps", "over", "lazy", "unicorn"]  # T=8

    word_ids = np.array(
        [word_vocab.get(w, len(word_vocab)) for w in sentence], dtype=np.int32)

    max_len = max(len(w) for w in sentence)                        # pad_sequence semantics
    char_ids = np.full((len(sentence), max_len), len(char_vocab), dtype=np.int32)
    for i, w in enumerate(sentence):
        for j, c in enumerate(w):
            char_ids[i, j] = char_vocab.get(c, len(char_vocab))

    params = init_params(jax.random.PRNGKey(0), len(word_vocab), len(char_vocab))

    word_ids = jnp.asarray(word_ids)
    char_ids = jnp.asarray(char_ids)

    logits = jax.jit(pos_forward)(word_ids, char_ids, params)
    jax.block_until_ready(logits)
    assert logits.shape == (len(sentence), NUM_TAGS)
    assert logits.dtype == jnp.float32

    ref = pos_forward_ref(word_ids, char_ids, params)
    np.testing.assert_allclose(np.asarray(logits), np.asarray(ref), rtol=2e-3, atol=2e-3)

    print("KERNEL_OK")
</pallas_src>

<mosaic_0001>
module attributes {stable_mosaic.version = 11 : i64} {
  func.func @pos_fused_kernel(%arg0: memref<8x128xf32, #tpu.memory_space<vmem>>, %arg1: memref<8x9x32xf32, #tpu.memory_space<vmem>>, %arg2: memref<96x32xf32, #tpu.memory_space<vmem>>, %arg3: memref<1x32xf32, #tpu.memory_space<vmem>>, %arg4: memref<128x1024xf32, #tpu.memory_space<vmem>>, %arg5: memref<32x1024xf32, #tpu.memory_space<vmem>>, %arg6: memref<1x1024xf32, #tpu.memory_space<vmem>>, %arg7: memref<128x512xf32, #tpu.memory_space<vmem>>, %arg8: memref<128x512xf32, #tpu.memory_space<vmem>>, %arg9: memref<128x128xf32, #tpu.memory_space<vmem>>, %arg10: memref<128x128xf32, #tpu.memory_space<vmem>>, %arg11: memref<1x128xf32, #tpu.memory_space<vmem>>, %arg12: memref<8x128xf32, #tpu.memory_space<vmem>>, %arg13: memref<8x1024xf32, #tpu.memory_space<vmem>>, %arg14: memref<8x128xf32, #tpu.memory_space<vmem>>, %arg15: memref<8x128xf32, #tpu.memory_space<vmem>>) attributes {dimension_semantics = [], scalar_prefetch = 0 : i64, scratch_operands = 3 : i64, tpu.core_type = #tpu.core_type<tc>} {
    %c0 = arith.constant 0 : index
    %c0_0 = arith.constant 0 : index
    %c0_1 = arith.constant 0 : index
    %0 = vector.load %arg1[%c0, %c0_0, %c0_1] : memref<8x9x32xf32, #tpu.memory_space<vmem>>, vector<8x9x32xf32>
    %1 = vector.extract_strided_slice %0 {offsets = [0, 0, 0], sizes = [8, 7, 32], strides = [1, 1, 1]} : vector<8x9x32xf32> to vector<8x7x32xf32>
    %2 = vector.shape_cast %1 : vector<8x7x32xf32> to vector<56x32xf32>
    %3 = vector.extract_strided_slice %0 {offsets = [0, 1, 0], sizes = [8, 7, 32], strides = [1, 1, 1]} : vector<8x9x32xf32> to vector<8x7x32xf32>
    %4 = vector.shape_cast %3 : vector<8x7x32xf32> to vector<56x32xf32>
    %5 = vector.extract_strided_slice %0 {offsets = [0, 2, 0], sizes = [8, 7, 32], strides = [1, 1, 1]} : vector<8x9x32xf32> to vector<8x7x32xf32>
    %6 = vector.shape_cast %5 : vector<8x7x32xf32> to vector<56x32xf32>
    %7 = tpu.concatenate %2, %4, %6 in 1 : vector<56x32xf32>, vector<56x32xf32>, vector<56x32xf32> -> vector<56x96xf32>
    %c0_2 = arith.constant 0 : index
    %c0_3 = arith.constant 0 : index
    %8 = vector.load %arg2[%c0_2, %c0_3] : memref<96x32xf32, #tpu.memory_space<vmem>>, vector<96x32xf32>
    %cst = arith.constant dense<0.000000e+00> : vector<56x32xf32>
    %9 = tpu.matmul %7, %8, %cst {dimension_numbers = #tpu.dot_dimension_numbers<[1], [0], [0], [1], [0, 0, 1, 1], [], []>} : vector<56x96xf32>, vector<96x32xf32>, vector<56x32xf32> -> vector<56x32xf32>
    %c0_4 = arith.constant 0 : index
    %c0_5 = arith.constant 0 : index
    %10 = vector.load %arg3[%c0_4, %c0_5] : memref<1x32xf32, #tpu.memory_space<vmem>>, vector<1x32xf32>
    %11 = vector.broadcast %10 : vector<1x32xf32> to vector<56x32xf32>
    %12 = arith.addf %9, %11 : vector<56x32xf32>
    %13 = vector.shape_cast %12 : vector<56x32xf32> to vector<8x7x32xf32>
    %cst_6 = arith.constant dense<0xFF800000> : vector<8x32xf32>
    %14 = vector.multi_reduction <maximumf>, %13, %cst_6 [1] : vector<8x7x32xf32> to vector<8x32xf32>
    %c0_7 = arith.constant 0 : index
    %c0_8 = arith.constant 0 : index
    %15 = vector.load %arg0[%c0_7, %c0_8] : memref<8x128xf32, #tpu.memory_space<vmem>>, vector<8x128xf32>
    %c0_9 = arith.constant 0 : index
    %c0_10 = arith.constant 0 : index
    %16 = vector.load %arg4[%c0_9, %c0_10] : memref<128x1024xf32, #tpu.memory_space<vmem>>, vector<128x1024xf32>
    %cst_11 = arith.constant dense<0.000000e+00> : vector<8x1024xf32>
    %17 = tpu.matmul %15, %16, %cst_11 {dimension_numbers = #tpu.dot_dimension_numbers<[1], [0], [0], [1], [0, 0, 1, 1], [], []>} : vector<8x128xf32>, vector<128x1024xf32>, vector<8x1024xf32> -> vector<8x1024xf32>
    %c0_12 = arith.constant 0 : index
    %c0_13 = arith.constant 0 : index
    %18 = vector.load %arg5[%c0_12, %c0_13] : memref<32x1024xf32, #tpu.memory_space<vmem>>, vector<32x1024xf32>
    %cst_14 = arith.constant dense<0.000000e+00> : vector<8x1024xf32>
    %19 = tpu.matmul %14, %18, %cst_14 {dimension_numbers = #tpu.dot_dimension_numbers<[1], [0], [0], [1], [0, 0, 1, 1], [], []>} : vector<8x32xf32>, vector<32x1024xf32>, vector<8x1024xf32> -> vector<8x1024xf32>
    %20 = arith.addf %17, %19 : vector<8x1024xf32>
    %c0_15 = arith.constant 0 : index
    %c0_16 = arith.constant 0 : index
    %21 = vector.load %arg6[%c0_15, %c0_16] : memref<1x1024xf32, #tpu.memory_space<vmem>>, vector<1x1024xf32>
    %22 = vector.broadcast %21 : vector<1x1024xf32> to vector<8x1024xf32>
    %23 = arith.addf %20, %22 : vector<8x1024xf32>
    %c0_17 = arith.constant 0 : index
    %c0_18 = arith.constant 0 : index
    %24 = vector.load %arg13[%c0_17, %c0_18] : memref<8x1024xf32, #tpu.memory_space<vmem>>, vector<8x1024xf32>
    tpu.vector_store %arg13[%c0_17, %c0_18], %23 {strides = array<i32>} : memref<8x1024xf32, #tpu.memory_space<vmem>>, vector<8x1024xf32>,
    %c0_19 = arith.constant 0 : index
    %c0_20 = arith.constant 0 : index
    %25 = vector.load %arg7[%c0_19, %c0_20] : memref<128x512xf32, #tpu.memory_space<vmem>>, vector<128x512xf32>
    %c0_21 = arith.constant 0 : index
    %c0_22 = arith.constant 0 : index
    %26 = vector.load %arg8[%c0_21, %c0_22] : memref<128x512xf32, #tpu.memory_space<vmem>>, vector<128x512xf32>
    %cst_23 = arith.constant 0.000000e+00 : f32
    %27 = vector.broadcast %cst_23 : f32 to vector<1x128xf32>
    %c0_i32 = arith.constant 0 : i32
    %28 = arith.index_cast %c0_i32 : i32 to index
    %c0_24 = arith.constant 0 : index
    %29 = vector.load %arg13[%28, %c0_24] : memref<8x1024xf32, #tpu.memory_space<vmem>>, vector<1x512xf32>
    %cst_25 = arith.constant dense<0.000000e+00> : vector<1x512xf32>
    %30 = tpu.matmul %27, %25, %cst_25 {dimension_numbers = #tpu.dot_dimension_numbers<[1], [0], [0], [1], [0, 0, 1, 1], [], []>} : vector<1x128xf32>, vector<128x512xf32>, vector<1x512xf32> -> vector<1x512xf32>
    %31 = arith.addf %29, %30 : vector<1x512xf32>
    %32 = vector.extract_strided_slice %31 {offsets = [0, 0], sizes = [1, 128], strides = [1, 1]} : vector<1x512xf32> to vector<1x128xf32>
    %33 = arith.negf %32 : vector<1x128xf32>
    %34 = math.exp %33 : vector<1x128xf32>
    %cst_26 = arith.constant 1.000000e+00 : f32
    %35 = vector.broadcast %cst_26 : f32 to vector<1x128xf32>
    %36 = arith.addf %35, %34 : vector<1x128xf32>
    %37 = arith.divf %35, %36 : vector<1x128xf32>
    %38 = vector.extract_strided_slice %31 {offsets = [0, 128], sizes = [1, 128], strides = [1, 1]} : vector<1x512xf32> to vector<1x128xf32>
    %39 = arith.negf %38 : vector<1x128xf32>
    %40 = math.exp %39 : vector<1x128xf32>
    %cst_27 = arith.constant 1.000000e+00 : f32
    %41 = vector.broadcast %cst_27 : f32 to vector<1x128xf32>
    %42 = arith.addf %41, %40 : vector<1x128xf32>
    %43 = arith.divf %41, %42 : vector<1x128xf32>
    %44 = vector.extract_strided_slice %31 {offsets = [0, 256], sizes = [1, 128], strides = [1, 1]} : vector<1x512xf32> to vector<1x128xf32>
    %45 = math.tanh %44 : vector<1x128xf32>
    %46 = vector.extract_strided_slice %31 {offsets = [0, 384], sizes = [1, 128], strides = [1, 1]} : vector<1x512xf32> to vector<1x128xf32>
    %47 = arith.negf %46 : vector<1x128xf32>
    %48 = math.exp %47 : vector<1x128xf32>
    %cst_28 = arith.constant 1.000000e+00 : f32
    %49 = vector.broadcast %cst_28 : f32 to vector<1x128xf32>
    %50 = arith.addf %49, %48 : vector<1x128xf32>
    %51 = arith.divf %49, %50 : vector<1x128xf32>
    %52 = arith.mulf %43, %27 : vector<1x128xf32>
    %53 = arith.mulf %37, %45 : vector<1x128xf32>
    %54 = arith.addf %52, %53 : vector<1x128xf32>
    %55 = math.tanh %54 : vector<1x128xf32>
    %56 = arith.mulf %51, %55 : vector<1x128xf32>
    %57 = arith.index_cast %c0_i32 : i32 to index
    %c0_29 = arith.constant 0 : index
    %58 = vector.load %arg14[%57, %c0_29] : memref<8x128xf32, #tpu.memory_space<vmem>>, vector<1x128xf32>
    tpu.vector_store %arg14[%57, %c0_29], %56 {strides = array<i32>} : memref<8x128xf32, #tpu.memory_space<vmem>>, vector<1x128xf32>,
    %c7_i32 = arith.constant 7 : i32
    %59 = arith.subi %c7_i32, %c0_i32 : i32
    %60 = arith.index_cast %59 : i32 to index
    %c512 = arith.constant 512 : index
    %61 = vector.load %arg13[%60, %c512] : memref<8x1024xf32, #tpu.memory_space<vmem>>, vector<1x512xf32>
    %cst_30 = arith.constant dense<0.000000e+00> : vector<1x512xf32>
    %62 = tpu.matmul %27, %26, %cst_30 {dimension_numbers = #tpu.dot_dimension_numbers<[1], [0], [0], [1], [0, 0, 1, 1], [], []>} : vector<1x128xf32>, vector<128x512xf32>, vector<1x512xf32> -> vector<1x512xf32>
    %63 = arith.addf %61, %62 : vector<1x512xf32>
    %64 = vector.extract_strided_slice %63 {offsets = [0, 0], sizes = [1, 128], strides = [1, 1]} : vector<1x512xf32> to vector<1x128xf32>
    %65 = arith.negf %64 : vector<1x128xf32>
    %66 = math.exp %65 : vector<1x128xf32>
    %cst_31 = arith.constant 1.000000e+00 : f32
    %67 = vector.broadcast %cst_31 : f32 to vector<1x128xf32>
    %68 = arith.addf %67, %66 : vector<1x128xf32>
    %69 = arith.divf %67, %68 : vector<1x128xf32>
    %70 = vector.extract_strided_slice %63 {offsets = [0, 128], sizes = [1, 128], strides = [1, 1]} : vector<1x512xf32> to vector<1x128xf32>
    %71 = arith.negf %70 : vector<1x128xf32>
    %72 = math.exp %71 : vector<1x128xf32>
    %cst_32 = arith.constant 1.000000e+00 : f32
    %73 = vector.broadcast %cst_32 : f32 to vector<1x128xf32>
    %74 = arith.addf %73, %72 : vector<1x128xf32>
    %75 = arith.divf %73, %74 : vector<1x128xf32>
    %76 = vector.extract_strided_slice %63 {offsets = [0, 256], sizes = [1, 128], strides = [1, 1]} : vector<1x512xf32> to vector<1x128xf32>
    %77 = math.tanh %76 : vector<1x128xf32>
    %78 = vector.extract_strided_slice %63 {offsets = [0, 384], sizes = [1, 128], strides = [1, 1]} : vector<1x512xf32> to vector<1x128xf32>
    %79 = arith.negf %78 : vector<1x128xf32>
    %80 = math.exp %79 : vector<1x128xf32>
    %cst_33 = arith.constant 1.000000e+00 : f32
    %81 = vector.broadcast %cst_33 : f32 to vector<1x128xf32>
    %82 = arith.addf %81, %80 : vector<1x128xf32>
    %83 = arith.divf %81, %82 : vector<1x128xf32>
    %84 = arith.mulf %75, %27 : vector<1x128xf32>
    %85 = arith.mulf %69, %77 : vector<1x128xf32>
    %86 = arith.addf %84, %85 : vector<1x128xf32>
    %87 = math.tanh %86 : vector<1x128xf32>
    %88 = arith.mulf %83, %87 : vector<1x128xf32>
    %89 = arith.index_cast %59 : i32 to index
    %c0_34 = arith.constant 0 : index
    %90 = vector.load %arg15[%89, %c0_34] : memref<8x128xf32, #tpu.memory_space<vmem>>, vector<1x128xf32>
    tpu.vector_store %arg15[%89, %c0_34], %88 {strides = array<i32>} : memref<8x128xf32, #tpu.memory_space<vmem>>, vector<1x128xf32>,
    %c1_i32 = arith.constant 1 : i32
    %91 = arith.index_cast %c1_i32 : i32 to index
    %c0_35 = arith.constant 0 : index
    %92 = vector.load %arg13[%91, %c0_35] : memref<8x1024xf32, #tpu.memory_space<vmem>>, vector<1x512xf32>
    %cst_36 = arith.constant dense<0.000000e+00> : vector<1x512xf32>
    %93 = tpu.matmul %56, %25, %cst_36 {dimension_numbers = #tpu.dot_dimension_numbers<[1], [0], [0], [1], [0, 0, 1, 1], [], []>} : vector<1x128xf32>, vector<128x512xf32>, vector<1x512xf32> -> vector<1x512xf32>
    %94 = arith.addf %92, %93 : vector<1x512xf32>
    %95 = vector.extract_strided_slice %94 {offsets = [0, 0], sizes = [1, 128], strides = [1, 1]} : vector<1x512xf32> to vector<1x128xf32>
    %96 = arith.negf %95 : vector<1x128xf32>
    %97 = math.exp %96 : vector<1x128xf32>
    %cst_37 = arith.constant 1.000000e+00 : f32
    %98 = vector.broadcast %cst_37 : f32 to vector<1x128xf32>
    %99 = arith.addf %98, %97 : vector<1x128xf32>
    %100 = arith.divf %98, %99 : vector<1x128xf32>
    %101 = vector.extract_strided_slice %94 {offsets = [0, 128], sizes = [1, 128], strides = [1, 1]} : vector<1x512xf32> to vector<1x128xf32>
    %102 = arith.negf %101 : vector<1x128xf32>
    %103 = math.exp %102 : vector<1x128xf32>
    %cst_38 = arith.constant 1.000000e+00 : f32
    %104 = vector.broadcast %cst_38 : f32 to vector<1x128xf32>
    %105 = arith.addf %104, %103 : vector<1x128xf32>
    %106 = arith.divf %104, %105 : vector<1x128xf32>
    %107 = vector.extract_strided_slice %94 {offsets = [0, 256], sizes = [1, 128], strides = [1, 1]} : vector<1x512xf32> to vector<1x128xf32>
    %108 = math.tanh %107 : vector<1x128xf32>
    %109 = vector.extract_strided_slice %94 {offsets = [0, 384], sizes = [1, 128], strides = [1, 1]} : vector<1x512xf32> to vector<1x128xf32>
    %110 = arith.negf %109 : vector<1x128xf32>
    %111 = math.exp %110 : vector<1x128xf32>
    %cst_39 = arith.constant 1.000000e+00 : f32
    %112 = vector.broadcast %cst_39 : f32 to vector<1x128xf32>
    %113 = arith.addf %112, %111 : vector<1x128xf32>
    %114 = arith.divf %112, %113 : vector<1x128xf32>
    %115 = arith.mulf %106, %54 : vector<1x128xf32>
    %116 = arith.mulf %100, %108 : vector<1x128xf32>
    %117 = arith.addf %115, %116 : vector<1x128xf32>
    %118 = math.tanh %117 : vector<1x128xf32>
    %119 = arith.mulf %114, %118 : vector<1x128xf32>
    %120 = arith.index_cast %c1_i32 : i32 to index
    %c0_40 = arith.constant 0 : index
    %121 = vector.load %arg14[%120, %c0_40] : memref<8x128xf32, #tpu.memory_space<vmem>>, vector<1x128xf32>
    tpu.vector_store %arg14[%120, %c0_40], %119 {strides = array<i32>} : memref<8x128xf32, #tpu.memory_space<vmem>>, vector<1x128xf32>,
    %c7_i32_41 = arith.constant 7 : i32
    %122 = arith.subi %c7_i32_41, %c1_i32 : i32
    %123 = arith.index_cast %122 : i32 to index
    %c512_42 = arith.constant 512 : index
    %124 = vector.load %arg13[%123, %c512_42] : memref<8x1024xf32, #tpu.memory_space<vmem>>, vector<1x512xf32>
    %cst_43 = arith.constant dense<0.000000e+00> : vector<1x512xf32>
    %125 = tpu.matmul %88, %26, %cst_43 {dimension_numbers = #tpu.dot_dimension_numbers<[1], [0], [0], [1], [0, 0, 1, 1], [], []>} : vector<1x128xf32>, vector<128x512xf32>, vector<1x512xf32> -> vector<1x512xf32>
    %126 = arith.addf %124, %125 : vector<1x512xf32>
    %127 = vector.extract_strided_slice %126 {offsets = [0, 0], sizes = [1, 128], strides = [1, 1]} : vector<1x512xf32> to vector<1x128xf32>
    %128 = arith.negf %127 : vector<1x128xf32>
    %129 = math.exp %128 : vector<1x128xf32>
    %cst_44 = arith.constant 1.000000e+00 : f32
    %130 = vector.broadcast %cst_44 : f32 to vector<1x128xf32>
    %131 = arith.addf %130, %129 : vector<1x128xf32>
    %132 = arith.divf %130, %131 : vector<1x128xf32>
    %133 = vector.extract_strided_slice %126 {offsets = [0, 128], sizes = [1, 128], strides = [1, 1]} : vector<1x512xf32> to vector<1x128xf32>
    %134 = arith.negf %133 : vector<1x128xf32>
    %135 = math.exp %134 : vector<1x128xf32>
    %cst_45 = arith.constant 1.000000e+00 : f32
    %136 = vector.broadcast %cst_45 : f32 to vector<1x128xf32>
    %137 = arith.addf %136, %135 : vector<1x128xf32>
    %138 = arith.divf %136, %137 : vector<1x128xf32>
    %139 = vector.extract_strided_slice %126 {offsets = [0, 256], sizes = [1, 128], strides = [1, 1]} : vector<1x512xf32> to vector<1x128xf32>
    %140 = math.tanh %139 : vector<1x128xf32>
    %141 = vector.extract_strided_slice %126 {offsets = [0, 384], sizes = [1, 128], strides = [1, 1]} : vector<1x512xf32> to vector<1x128xf32>
    %142 = arith.negf %141 : vector<1x128xf32>
    %143 = math.exp %142 : vector<1x128xf32>
    %cst_46 = arith.constant 1.000000e+00 : f32
    %144 = vector.broadcast %cst_46 : f32 to vector<1x128xf32>
    %145 = arith.addf %144, %143 : vector<1x128xf32>
    %146 = arith.divf %144, %145 : vector<1x128xf32>
    %147 = arith.mulf %138, %86 : vector<1x128xf32>
    %148 = arith.mulf %132, %140 : vector<1x128xf32>
    %149 = arith.addf %147, %148 : vector<1x128xf32>
    %150 = math.tanh %149 : vector<1x128xf32>
    %151 = arith.mulf %146, %150 : vector<1x128xf32>
    %152 = arith.index_cast %122 : i32 to index
    %c0_47 = arith.constant 0 : index
    %153 = vector.load %arg15[%152, %c0_47] : memref<8x128xf32, #tpu.memory_space<vmem>>, vector<1x128xf32>
    tpu.vector_store %arg15[%152, %c0_47], %151 {strides = array<i32>} : memref<8x128xf32, #tpu.memory_space<vmem>>, vector<1x128xf32>,
    %c2_i32 = arith.constant 2 : i32
    %154 = arith.index_cast %c2_i32 : i32 to index
    %c0_48 = arith.constant 0 : index
    %155 = vector.load %arg13[%154, %c0_48] : memref<8x1024xf32, #tpu.memory_space<vmem>>, vector<1x512xf32>
    %cst_49 = arith.constant dense<0.000000e+00> : vector<1x512xf32>
    %156 = tpu.matmul %119, %25, %cst_49 {dimension_numbers = #tpu.dot_dimension_numbers<[1], [0], [0], [1], [0, 0, 1, 1], [], []>} : vector<1x128xf32>, vector<128x512xf32>, vector<1x512xf32> -> vector<1x512xf32>
    %157 = arith.addf %155, %156 : vector<1x512xf32>
    %158 = vector.extract_strided_slice %157 {offsets = [0, 0], sizes = [1, 128], strides = [1, 1]} : vector<1x512xf32> to vector<1x128xf32>
    %159 = arith.negf %158 : vector<1x128xf32>
    %160 = math.exp %159 : vector<1x128xf32>
    %cst_50 = arith.constant 1.000000e+00 : f32
    %161 = vector.broadcast %cst_50 : f32 to vector<1x128xf32>
    %162 = arith.addf %161, %160 : vector<1x128xf32>
    %163 = arith.divf %161, %162 : vector<1x128xf32>
    %164 = vector.extract_strided_slice %157 {offsets = [0, 128], sizes = [1, 128], strides = [1, 1]} : vector<1x512xf32> to vector<1x128xf32>
    %165 = arith.negf %164 : vector<1x128xf32>
    %166 = math.exp %165 : vector<1x128xf32>
    %cst_51 = arith.constant 1.000000e+00 : f32
    %167 = vector.broadcast %cst_51 : f32 to vector<1x128xf32>
    %168 = arith.addf %167, %166 : vector<1x128xf32>
    %169 = arith.divf %167, %168 : vector<1x128xf32>
    %170 = vector.extract_strided_slice %157 {offsets = [0, 256], sizes = [1, 128], strides = [1, 1]} : vector<1x512xf32> to vector<1x128xf32>
    %171 = math.tanh %170 : vector<1x128xf32>
    %172 = vector.extract_strided_slice %157 {offsets = [0, 384], sizes = [1, 128], strides = [1, 1]} : vector<1x512xf32> to vector<1x128xf32>
    %173 = arith.negf %172 : vector<1x128xf32>
    %174 = math.exp %173 : vector<1x128xf32>
    %cst_52 = arith.constant 1.000000e+00 : f32
    %175 = vector.broadcast %cst_52 : f32 to vector<1x128xf32>
    %176 = arith.addf %175, %174 : vector<1x128xf32>
    %177 = arith.divf %175, %176 : vector<1x128xf32>
    %178 = arith.mulf %169, %117 : vector<1x128xf32>
    %179 = arith.mulf %163, %171 : vector<1x128xf32>
    %180 = arith.addf %178, %179 : vector<1x128xf32>
    %181 = math.tanh %180 : vector<1x128xf32>
    %182 = arith.mulf %177, %181 : vector<1x128xf32>
    %183 = arith.index_cast %c2_i32 : i32 to index
    %c0_53 = arith.constant 0 : index
    %184 = vector.load %arg14[%183, %c0_53] : memref<8x128xf32, #tpu.memory_space<vmem>>, vector<1x128xf32>
    tpu.vector_store %arg14[%183, %c0_53], %182 {strides = array<i32>} : memref<8x128xf32, #tpu.memory_space<vmem>>, vector<1x128xf32>,
    %c7_i32_54 = arith.constant 7 : i32
    %185 = arith.subi %c7_i32_54, %c2_i32 : i32
    %186 = arith.index_cast %185 : i32 to index
    %c512_55 = arith.constant 512 : index
    %187 = vector.load %arg13[%186, %c512_55] : memref<8x1024xf32, #tpu.memory_space<vmem>>, vector<1x512xf32>
    %cst_56 = arith.constant dense<0.000000e+00> : vector<1x512xf32>
    %188 = tpu.matmul %151, %26, %cst_56 {dimension_numbers = #tpu.dot_dimension_numbers<[1], [0], [0], [1], [0, 0, 1, 1], [], []>} : vector<1x128xf32>, vector<128x512xf32>, vector<1x512xf32> -> vector<1x512xf32>
    %189 = arith.addf %187, %188 : vector<1x512xf32>
    %190 = vector.extract_strided_slice %189 {offsets = [0, 0], sizes = [1, 128], strides = [1, 1]} : vector<1x512xf32> to vector<1x128xf32>
    %191 = arith.negf %190 : vector<1x128xf32>
    %192 = math.exp %191 : vector<1x128xf32>
    %cst_57 = arith.constant 1.000000e+00 : f32
    %193 = vector.broadcast %cst_57 : f32 to vector<1x128xf32>
    %194 = arith.addf %193, %192 : vector<1x128xf32>
    %195 = arith.divf %193, %194 : vector<1x128xf32>
    %196 = vector.extract_strided_slice %189 {offsets = [0, 128], sizes = [1, 128], strides = [1, 1]} : vector<1x512xf32> to vector<1x128xf32>
    %197 = arith.negf %196 : vector<1x128xf32>
    %198 = math.exp %197 : vector<1x128xf32>
    %cst_58 = arith.constant 1.000000e+00 : f32
    %199 = vector.broadcast %cst_58 : f32 to vector<1x128xf32>
    %200 = arith.addf %199, %198 : vector<1x128xf32>
    %201 = arith.divf %199, %200 : vector<1x128xf32>
    %202 = vector.extract_strided_slice %189 {offsets = [0, 256], sizes = [1, 128], strides = [1, 1]} : vector<1x512xf32> to vector<1x128xf32>
    %203 = math.tanh %202 : vector<1x128xf32>
    %204 = vector.extract_strided_slice %189 {offsets = [0, 384], sizes = [1, 128], strides = [1, 1]} : vector<1x512xf32> to vector<1x128xf32>
    %205 = arith.negf %204 : vector<1x128xf32>
    %206 = math.exp %205 : vector<1x128xf32>
    %cst_59 = arith.constant 1.000000e+00 : f32
    %207 = vector.broadcast %cst_59 : f32 to vector<1x128xf32>
    %208 = arith.addf %207, %206 : vector<1x128xf32>
    %209 = arith.divf %207, %208 : vector<1x128xf32>
    %210 = arith.mulf %201, %149 : vector<1x128xf32>
    %211 = arith.mulf %195, %203 : vector<1x128xf32>
    %212 = arith.addf %210, %211 : vector<1x128xf32>
    %213 = math.tanh %212 : vector<1x128xf32>
    %214 = arith.mulf %209, %213 : vector<1x128xf32>
    %215 = arith.index_cast %185 : i32 to index
    %c0_60 = arith.constant 0 : index
    %216 = vector.load %arg15[%215, %c0_60] : memref<8x128xf32, #tpu.memory_space<vmem>>, vector<1x128xf32>
    tpu.vector_store %arg15[%215, %c0_60], %214 {strides = array<i32>} : memref<8x128xf32, #tpu.memory_space<vmem>>, vector<1x128xf32>,
    %c3_i32 = arith.constant 3 : i32
    %217 = arith.index_cast %c3_i32 : i32 to index
    %c0_61 = arith.constant 0 : index
    %218 = vector.load %arg13[%217, %c0_61] : memref<8x1024xf32, #tpu.memory_space<vmem>>, vector<1x512xf32>
    %cst_62 = arith.constant dense<0.000000e+00> : vector<1x512xf32>
    %219 = tpu.matmul %182, %25, %cst_62 {dimension_numbers = #tpu.dot_dimension_numbers<[1], [0], [0], [1], [0, 0, 1, 1], [], []>} : vector<1x128xf32>, vector<128x512xf32>, vector<1x512xf32> -> vector<1x512xf32>
    %220 = arith.addf %218, %219 : vector<1x512xf32>
    %221 = vector.extract_strided_slice %220 {offsets = [0, 0], sizes = [1, 128], strides = [1, 1]} : vector<1x512xf32> to vector<1x128xf32>
    %222 = arith.negf %221 : vector<1x128xf32>
    %223 = math.exp %222 : vector<1x128xf32>
    %cst_63 = arith.constant 1.000000e+00 : f32
    %224 = vector.broadcast %cst_63 : f32 to vector<1x128xf32>
    %225 = arith.addf %224, %223 : vector<1x128xf32>
    %226 = arith.divf %224, %225 : vector<1x128xf32>
    %227 = vector.extract_strided_slice %220 {offsets = [0, 128], sizes = [1, 128], strides = [1, 1]} : vector<1x512xf32> to vector<1x128xf32>
    %228 = arith.negf %227 : vector<1x128xf32>
    %229 = math.exp %228 : vector<1x128xf32>
    %cst_64 = arith.constant 1.000000e+00 : f32
    %230 = vector.broadcast %cst_64 : f32 to vector<1x128xf32>
    %231 = arith.addf %230, %229 : vector<1x128xf32>
    %232 = arith.divf %230, %231 : vector<1x128xf32>
    %233 = vector.extract_strided_slice %220 {offsets = [0, 256], sizes = [1, 128], strides = [1, 1]} : vector<1x512xf32> to vector<1x128xf32>
    %234 = math.tanh %233 : vector<1x128xf32>
    %235 = vector.extract_strided_slice %220 {offsets = [0, 384], sizes = [1, 128], strides = [1, 1]} : vector<1x512xf32> to vector<1x128xf32>
    %236 = arith.negf %235 : vector<1x128xf32>
    %237 = math.exp %236 : vector<1x128xf32>
    %cst_65 = arith.constant 1.000000e+00 : f32
    %238 = vector.broadcast %cst_65 : f32 to vector<1x128xf32>
    %239 = arith.addf %238, %237 : vector<1x128xf32>
    %240 = arith.divf %238, %239 : vector<1x128xf32>
    %241 = arith.mulf %232, %180 : vector<1x128xf32>
    %242 = arith.mulf %226, %234 : vector<1x128xf32>
    %243 = arith.addf %241, %242 : vector<1x128xf32>
    %244 = math.tanh %243 : vector<1x128xf32>
    %245 = arith.mulf %240, %244 : vector<1x128xf32>
    %246 = arith.index_cast %c3_i32 : i32 to index
    %c0_66 = arith.constant 0 : index
    %247 = vector.load %arg14[%246, %c0_66] : memref<8x128xf32, #tpu.memory_space<vmem>>, vector<1x128xf32>
    tpu.vector_store %arg14[%246, %c0_66], %245 {strides = array<i32>} : memref<8x128xf32, #tpu.memory_space<vmem>>, vector<1x128xf32>,
    %c7_i32_67 = arith.constant 7 : i32
    %248 = arith.subi %c7_i32_67, %c3_i32 : i32
    %249 = arith.index_cast %248 : i32 to index
    %c512_68 = arith.constant 512 : index
    %250 = vector.load %arg13[%249, %c512_68] : memref<8x1024xf32, #tpu.memory_space<vmem>>, vector<1x512xf32>
    %cst_69 = arith.constant dense<0.000000e+00> : vector<1x512xf32>
    %251 = tpu.matmul %214, %26, %cst_69 {dimension_numbers = #tpu.dot_dimension_numbers<[1], [0], [0], [1], [0, 0, 1, 1], [], []>} : vector<1x128xf32>, vector<128x512xf32>, vector<1x512xf32> -> vector<1x512xf32>
    %252 = arith.addf %250, %251 : vector<1x512xf32>
    %253 = vector.extract_strided_slice %252 {offsets = [0, 0], sizes = [1, 128], strides = [1, 1]} : vector<1x512xf32> to vector<1x128xf32>
    %254 = arith.negf %253 : vector<1x128xf32>
    %255 = math.exp %254 : vector<1x128xf32>
    %cst_70 = arith.constant 1.000000e+00 : f32
    %256 = vector.broadcast %cst_70 : f32 to vector<1x128xf32>
    %257 = arith.addf %256, %255 : vector<1x128xf32>
    %258 = arith.divf %256, %257 : vector<1x128xf32>
    %259 = vector.extract_strided_slice %252 {offsets = [0, 128], sizes = [1, 128], strides = [1, 1]} : vector<1x512xf32> to vector<1x128xf32>
    %260 = arith.negf %259 : vector<1x128xf32>
    %261 = math.exp %260 : vector<1x128xf32>
    %cst_71 = arith.constant 1.000000e+00 : f32
    %262 = vector.broadcast %cst_71 : f32 to vector<1x128xf32>
    %263 = arith.addf %262, %261 : vector<1x128xf32>
    %264 = arith.divf %262, %263 : vector<1x128xf32>
    %265 = vector.extract_strided_slice %252 {offsets = [0, 256], sizes = [1, 128], strides = [1, 1]} : vector<1x512xf32> to vector<1x128xf32>
    %266 = math.tanh %265 : vector<1x128xf32>
    %267 = vector.extract_strided_slice %252 {offsets = [0, 384], sizes = [1, 128], strides = [1, 1]} : vector<1x512xf32> to vector<1x128xf32>
    %268 = arith.negf %267 : vector<1x128xf32>
    %269 = math.exp %268 : vector<1x128xf32>
    %cst_72 = arith.constant 1.000000e+00 : f32
    %270 = vector.broadcast %cst_72 : f32 to vector<1x128xf32>
    %271 = arith.addf %270, %269 : vector<1x128xf32>
    %272 = arith.divf %270, %271 : vector<1x128xf32>
    %273 = arith.mulf %264, %212 : vector<1x128xf32>
    %274 = arith.mulf %258, %266 : vector<1x128xf32>
    %275 = arith.addf %273, %274 : vector<1x128xf32>
    %276 = math.tanh %275 : vector<1x128xf32>
    %277 = arith.mulf %272, %276 : vector<1x128xf32>
    %278 = arith.index_cast %248 : i32 to index
    %c0_73 = arith.constant 0 : index
    %279 = vector.load %arg15[%278, %c0_73] : memref<8x128xf32, #tpu.memory_space<vmem>>, vector<1x128xf32>
    tpu.vector_store %arg15[%278, %c0_73], %277 {strides = array<i32>} : memref<8x128xf32, #tpu.memory_space<vmem>>, vector<1x128xf32>,
    %c4_i32 = arith.constant 4 : i32
    %280 = arith.index_cast %c4_i32 : i32 to index
    %c0_74 = arith.constant 0 : index
    %281 = vector.load %arg13[%280, %c0_74] : memref<8x1024xf32, #tpu.memory_space<vmem>>, vector<1x512xf32>
    %cst_75 = arith.constant dense<0.000000e+00> : vector<1x512xf32>
    %282 = tpu.matmul %245, %25, %cst_75 {dimension_numbers = #tpu.dot_dimension_numbers<[1], [0], [0], [1], [0, 0, 1, 1], [], []>} : vector<1x128xf32>, vector<128x512xf32>, vector<1x512xf32> -> vector<1x512xf32>
    %283 = arith.addf %281, %282 : vector<1x512xf32>
    %284 = vector.extract_strided_slice %283 {offsets = [0, 0], sizes = [1, 128], strides = [1, 1]} : vector<1x512xf32> to vector<1x128xf32>
    %285 = arith.negf %284 : vector<1x128xf32>
    %286 = math.exp %285 : vector<1x128xf32>
    %cst_76 = arith.constant 1.000000e+00 : f32
    %287 = vector.broadcast %cst_76 : f32 to vector<1x128xf32>
    %288 = arith.addf %287, %286 : vector<1x128xf32>
    %289 = arith.divf %287, %288 : vector<1x128xf32>
    %290 = vector.extract_strided_slice %283 {offsets = [0, 128], sizes = [1, 128], strides = [1, 1]} : vector<1x512xf32> to vector<1x128xf32>
    %291 = arith.negf %290 : vector<1x128xf32>
    %292 = math.exp %291 : vector<1x128xf32>
    %cst_77 = arith.constant 1.000000e+00 : f32
    %293 = vector.broadcast %cst_77 : f32 to vector<1x128xf32>
    %294 = arith.addf %293, %292 : vector<1x128xf32>
    %295 = arith.divf %293, %294 : vector<1x128xf32>
    %296 = vector.extract_strided_slice %283 {offsets = [0, 256], sizes = [1, 128], strides = [1, 1]} : vector<1x512xf32> to vector<1x128xf32>
    %297 = math.tanh %296 : vector<1x128xf32>
    %298 = vector.extract_strided_slice %283 {offsets = [0, 384], sizes = [1, 128], strides = [1, 1]} : vector<1x512xf32> to vector<1x128xf32>
    %299 = arith.negf %298 : vector<1x128xf32>
    %300 = math.exp %299 : vector<1x128xf32>
    %cst_78 = arith.constant 1.000000e+00 : f32
    %301 = vector.broadcast %cst_78 : f32 to vector<1x128xf32>
    %302 = arith.addf %301, %300 : vector<1x128xf32>
    %303 = arith.divf %301, %302 : vector<1x128xf32>
    %304 = arith.mulf %295, %243 : vector<1x128xf32>
    %305 = arith.mulf %289, %297 : vector<1x128xf32>
    %306 = arith.addf %304, %305 : vector<1x128xf32>
    %307 = math.tanh %306 : vector<1x128xf32>
    %308 = arith.mulf %303, %307 : vector<1x128xf32>
    %309 = arith.index_cast %c4_i32 : i32 to index
    %c0_79 = arith.constant 0 : index
    %310 = vector.load %arg14[%309, %c0_79] : memref<8x128xf32, #tpu.memory_space<vmem>>, vector<1x128xf32>
    tpu.vector_store %arg14[%309, %c0_79], %308 {strides = array<i32>} : memref<8x128xf32, #tpu.memory_space<vmem>>, vector<1x128xf32>,
    %c7_i32_80 = arith.constant 7 : i32
    %311 = arith.subi %c7_i32_80, %c4_i32 : i32
    %312 = arith.index_cast %311 : i32 to index
    %c512_81 = arith.constant 512 : index
    %313 = vector.load %arg13[%312, %c512_81] : memref<8x1024xf32, #tpu.memory_space<vmem>>, vector<1x512xf32>
    %cst_82 = arith.constant dense<0.000000e+00> : vector<1x512xf32>
    %314 = tpu.matmul %277, %26, %cst_82 {dimension_numbers = #tpu.dot_dimension_numbers<[1], [0], [0], [1], [0, 0, 1, 1], [], []>} : vector<1x128xf32>, vector<128x512xf32>, vector<1x512xf32> -> vector<1x512xf32>
    %315 = arith.addf %313, %314 : vector<1x512xf32>
    %316 = vector.extract_strided_slice %315 {offsets = [0, 0], sizes = [1, 128], strides = [1, 1]} : vector<1x512xf32> to vector<1x128xf32>
    %317 = arith.negf %316 : vector<1x128xf32>
    %318 = math.exp %317 : vector<1x128xf32>
    %cst_83 = arith.constant 1.000000e+00 : f32
    %319 = vector.broadcast %cst_83 : f32 to vector<1x128xf32>
    %320 = arith.addf %319, %318 : vector<1x128xf32>
    %321 = arith.divf %319, %320 : vector<1x128xf32>
    %322 = vector.extract_strided_slice %315 {offsets = [0, 128], sizes = [1, 128], strides = [1, 1]} : vector<1x512xf32> to vector<1x128xf32>
    %323 = arith.negf %322 : vector<1x128xf32>
    %324 = math.exp %323 : vector<1x128xf32>
    %cst_84 = arith.constant 1.000000e+00 : f32
    %325 = vector.broadcast %cst_84 : f32 to vector<1x128xf32>
    %326 = arith.addf %325, %324 : vector<1x128xf32>
    %327 = arith.divf %325, %326 : vector<1x128xf32>
    %328 = vector.extract_strided_slice %315 {offsets = [0, 256], sizes = [1, 128], strides = [1, 1]} : vector<1x512xf32> to vector<1x128xf32>
    %329 = math.tanh %328 : vector<1x128xf32>
    %330 = vector.extract_strided_slice %315 {offsets = [0, 384], sizes = [1, 128], strides = [1, 1]} : vector<1x512xf32> to vector<1x128xf32>
    %331 = arith.negf %330 : vector<1x128xf32>
    %332 = math.exp %331 : vector<1x128xf32>
    %cst_85 = arith.constant 1.000000e+00 : f32
    %333 = vector.broadcast %cst_85 : f32 to vector<1x128xf32>
    %334 = arith.addf %333, %332 : vector<1x128xf32>
    %335 = arith.divf %333, %334 : vector<1x128xf32>
    %336 = arith.mulf %327, %275 : vector<1x128xf32>
    %337 = arith.mulf %321, %329 : vector<1x128xf32>
    %338 = arith.addf %336, %337 : vector<1x128xf32>
    %339 = math.tanh %338 : vector<1x128xf32>
    %340 = arith.mulf %335, %339 : vector<1x128xf32>
    %341 = arith.index_cast %311 : i32 to index
    %c0_86 = arith.constant 0 : index
    %342 = vector.load %arg15[%341, %c0_86] : memref<8x128xf32, #tpu.memory_space<vmem>>, vector<1x128xf32>
    tpu.vector_store %arg15[%341, %c0_86], %340 {strides = array<i32>} : memref<8x128xf32, #tpu.memory_space<vmem>>, vector<1x128xf32>,
    %c5_i32 = arith.constant 5 : i32
    %343 = arith.index_cast %c5_i32 : i32 to index
    %c0_87 = arith.constant 0 : index
    %344 = vector.load %arg13[%343, %c0_87] : memref<8x1024xf32, #tpu.memory_space<vmem>>, vector<1x512xf32>
    %cst_88 = arith.constant dense<0.000000e+00> : vector<1x512xf32>
    %345 = tpu.matmul %308, %25, %cst_88 {dimension_numbers = #tpu.dot_dimension_numbers<[1], [0], [0], [1], [0, 0, 1, 1], [], []>} : vector<1x128xf32>, vector<128x512xf32>, vector<1x512xf32> -> vector<1x512xf32>
    %346 = arith.addf %344, %345 : vector<1x512xf32>
    %347 = vector.extract_strided_slice %346 {offsets = [0, 0], sizes = [1, 128], strides = [1, 1]} : vector<1x512xf32> to vector<1x128xf32>
    %348 = arith.negf %347 : vector<1x128xf32>
    %349 = math.exp %348 : vector<1x128xf32>
    %cst_89 = arith.constant 1.000000e+00 : f32
    %350 = vector.broadcast %cst_89 : f32 to vector<1x128xf32>
    %351 = arith.addf %350, %349 : vector<1x128xf32>
    %352 = arith.divf %350, %351 : vector<1x128xf32>
    %353 = vector.extract_strided_slice %346 {offsets = [0, 128], sizes = [1, 128], strides = [1, 1]} : vector<1x512xf32> to vector<1x128xf32>
    %354 = arith.negf %353 : vector<1x128xf32>
    %355 = math.exp %354 : vector<1x128xf32>
    %cst_90 = arith.constant 1.000000e+00 : f32
    %356 = vector.broadcast %cst_90 : f32 to vector<1x128xf32>
    %357 = arith.addf %356, %355 : vector<1x128xf32>
    %358 = arith.divf %356, %357 : vector<1x128xf32>
    %359 = vector.extract_strided_slice %346 {offsets = [0, 256], sizes = [1, 128], strides = [1, 1]} : vector<1x512xf32> to vector<1x128xf32>
    %360 = math.tanh %359 : vector<1x128xf32>
    %361 = vector.extract_strided_slice %346 {offsets = [0, 384], sizes = [1, 128], strides = [1, 1]} : vector<1x512xf32> to vector<1x128xf32>
    %362 = arith.negf %361 : vector<1x128xf32>
    %363 = math.exp %362 : vector<1x128xf32>
    %cst_91 = arith.constant 1.000000e+00 : f32
    %364 = vector.broadcast %cst_91 : f32 to vector<1x128xf32>
    %365 = arith.addf %364, %363 : vector<1x128xf32>
    %366 = arith.divf %364, %365 : vector<1x128xf32>
    %367 = arith.mulf %358, %306 : vector<1x128xf32>
    %368 = arith.mulf %352, %360 : vector<1x128xf32>
    %369 = arith.addf %367, %368 : vector<1x128xf32>
    %370 = math.tanh %369 : vector<1x128xf32>
    %371 = arith.mulf %366, %370 : vector<1x128xf32>
    %372 = arith.index_cast %c5_i32 : i32 to index
    %c0_92 = arith.constant 0 : index
    %373 = vector.load %arg14[%372, %c0_92] : memref<8x128xf32, #tpu.memory_space<vmem>>, vector<1x128xf32>
    tpu.vector_store %arg14[%372, %c0_92], %371 {strides = array<i32>} : memref<8x128xf32, #tpu.memory_space<vmem>>, vector<1x128xf32>,
    %c7_i32_93 = arith.constant 7 : i32
    %374 = arith.subi %c7_i32_93, %c5_i32 : i32
    %375 = arith.index_cast %374 : i32 to index
    %c512_94 = arith.constant 512 : index
    %376 = vector.load %arg13[%375, %c512_94] : memref<8x1024xf32, #tpu.memory_space<vmem>>, vector<1x512xf32>
    %cst_95 = arith.constant dense<0.000000e+00> : vector<1x512xf32>
    %377 = tpu.matmul %340, %26, %cst_95 {dimension_numbers = #tpu.dot_dimension_numbers<[1], [0], [0], [1], [0, 0, 1, 1], [], []>} : vector<1x128xf32>, vector<128x512xf32>, vector<1x512xf32> -> vector<1x512xf32>
    %378 = arith.addf %376, %377 : vector<1x512xf32>
    %379 = vector.extract_strided_slice %378 {offsets = [0, 0], sizes = [1, 128], strides = [1, 1]} : vector<1x512xf32> to vector<1x128xf32>
    %380 = arith.negf %379 : vector<1x128xf32>
    %381 = math.exp %380 : vector<1x128xf32>
    %cst_96 = arith.constant 1.000000e+00 : f32
    %382 = vector.broadcast %cst_96 : f32 to vector<1x128xf32>
    %383 = arith.addf %382, %381 : vector<1x128xf32>
    %384 = arith.divf %382, %383 : vector<1x128xf32>
    %385 = vector.extract_strided_slice %378 {offsets = [0, 128], sizes = [1, 128], strides = [1, 1]} : vector<1x512xf32> to vector<1x128xf32>
    %386 = arith.negf %385 : vector<1x128xf32>
    %387 = math.exp %386 : vector<1x128xf32>
    %cst_97 = arith.constant 1.000000e+00 : f32
    %388 = vector.broadcast %cst_97 : f32 to vector<1x128xf32>
    %389 = arith.addf %388, %387 : vector<1x128xf32>
    %390 = arith.divf %388, %389 : vector<1x128xf32>
    %391 = vector.extract_strided_slice %378 {offsets = [0, 256], sizes = [1, 128], strides = [1, 1]} : vector<1x512xf32> to vector<1x128xf32>
    %392 = math.tanh %391 : vector<1x128xf32>
    %393 = vector.extract_strided_slice %378 {offsets = [0, 384], sizes = [1, 128], strides = [1, 1]} : vector<1x512xf32> to vector<1x128xf32>
    %394 = arith.negf %393 : vector<1x128xf32>
    %395 = math.exp %394 : vector<1x128xf32>
    %cst_98 = arith.constant 1.000000e+00 : f32
    %396 = vector.broadcast %cst_98 : f32 to vector<1x128xf32>
    %397 = arith.addf %396, %395 : vector<1x128xf32>
    %398 = arith.divf %396, %397 : vector<1x128xf32>
    %399 = arith.mulf %390, %338 : vector<1x128xf32>
    %400 = arith.mulf %384, %392 : vector<1x128xf32>
    %401 = arith.addf %399, %400 : vector<1x128xf32>
    %402 = math.tanh %401 : vector<1x128xf32>
    %403 = arith.mulf %398, %402 : vector<1x128xf32>
    %404 = arith.index_cast %374 : i32 to index
    %c0_99 = arith.constant 0 : index
    %405 = vector.load %arg15[%404, %c0_99] : memref<8x128xf32, #tpu.memory_space<vmem>>, vector<1x128xf32>
    tpu.vector_store %arg15[%404, %c0_99], %403 {strides = array<i32>} : memref<8x128xf32, #tpu.memory_space<vmem>>, vector<1x128xf32>,
    %c6_i32 = arith.constant 6 : i32
    %406 = arith.index_cast %c6_i32 : i32 to index
    %c0_100 = arith.constant 0 : index
    %407 = vector.load %arg13[%406, %c0_100] : memref<8x1024xf32, #tpu.memory_space<vmem>>, vector<1x512xf32>
    %cst_101 = arith.constant dense<0.000000e+00> : vector<1x512xf32>
    %408 = tpu.matmul %371, %25, %cst_101 {dimension_numbers = #tpu.dot_dimension_numbers<[1], [0], [0], [1], [0, 0, 1, 1], [], []>} : vector<1x128xf32>, vector<128x512xf32>, vector<1x512xf32> -> vector<1x512xf32>
    %409 = arith.addf %407, %408 : vector<1x512xf32>
    %410 = vector.extract_strided_slice %409 {offsets = [0, 0], sizes = [1, 128], strides = [1, 1]} : vector<1x512xf32> to vector<1x128xf32>
    %411 = arith.negf %410 : vector<1x128xf32>
    %412 = math.exp %411 : vector<1x128xf32>
    %cst_102 = arith.constant 1.000000e+00 : f32
    %413 = vector.broadcast %cst_102 : f32 to vector<1x128xf32>
    %414 = arith.addf %413, %412 : vector<1x128xf32>
    %415 = arith.divf %413, %414 : vector<1x128xf32>
    %416 = vector.extract_strided_slice %409 {offsets = [0, 128], sizes = [1, 128], strides = [1, 1]} : vector<1x512xf32> to vector<1x128xf32>
    %417 = arith.negf %416 : vector<1x128xf32>
    %418 = math.exp %417 : vector<1x128xf32>
    %cst_103 = arith.constant 1.000000e+00 : f32
    %419 = vector.broadcast %cst_103 : f32 to vector<1x128xf32>
    %420 = arith.addf %419, %418 : vector<1x128xf32>
    %421 = arith.divf %419, %420 : vector<1x128xf32>
    %422 = vector.extract_strided_slice %409 {offsets = [0, 256], sizes = [1, 128], strides = [1, 1]} : vector<1x512xf32> to vector<1x128xf32>
    %423 = math.tanh %422 : vector<1x128xf32>
    %424 = vector.extract_strided_slice %409 {offsets = [0, 384], sizes = [1, 128], strides = [1, 1]} : vector<1x512xf32> to vector<1x128xf32>
    %425 = arith.negf %424 : vector<1x128xf32>
    %426 = math.exp %425 : vector<1x128xf32>
    %cst_104 = arith.constant 1.000000e+00 : f32
    %427 = vector.broadcast %cst_104 : f32 to vector<1x128xf32>
    %428 = arith.addf %427, %426 : vector<1x128xf32>
    %429 = arith.divf %427, %428 : vector<1x128xf32>
    %430 = arith.mulf %421, %369 : vector<1x128xf32>
    %431 = arith.mulf %415, %423 : vector<1x128xf32>
    %432 = arith.addf %430, %431 : vector<1x128xf32>
    %433 = math.tanh %432 : vector<1x128xf32>
    %434 = arith.mulf %429, %433 : vector<1x128xf32>
    %435 = arith.index_cast %c6_i32 : i32 to index
    %c0_105 = arith.constant 0 : index
    %436 = vector.load %arg14[%435, %c0_105] : memref<8x128xf32, #tpu.memory_space<vmem>>, vector<1x128xf32>
    tpu.vector_store %arg14[%435, %c0_105], %434 {strides = array<i32>} : memref<8x128xf32, #tpu.memory_space<vmem>>, vector<1x128xf32>,
    %c7_i32_106 = arith.constant 7 : i32
    %437 = arith.subi %c7_i32_106, %c6_i32 : i32
    %438 = arith.index_cast %437 : i32 to index
    %c512_107 = arith.constant 512 : index
    %439 = vector.load %arg13[%438, %c512_107] : memref<8x1024xf32, #tpu.memory_space<vmem>>, vector<1x512xf32>
    %cst_108 = arith.constant dense<0.000000e+00> : vector<1x512xf32>
    %440 = tpu.matmul %403, %26, %cst_108 {dimension_numbers = #tpu.dot_dimension_numbers<[1], [0], [0], [1], [0, 0, 1, 1], [], []>} : vector<1x128xf32>, vector<128x512xf32>, vector<1x512xf32> -> vector<1x512xf32>
    %441 = arith.addf %439, %440 : vector<1x512xf32>
    %442 = vector.extract_strided_slice %441 {offsets = [0, 0], sizes = [1, 128], strides = [1, 1]} : vector<1x512xf32> to vector<1x128xf32>
    %443 = arith.negf %442 : vector<1x128xf32>
    %444 = math.exp %443 : vector<1x128xf32>
    %cst_109 = arith.constant 1.000000e+00 : f32
    %445 = vector.broadcast %cst_109 : f32 to vector<1x128xf32>
    %446 = arith.addf %445, %444 : vector<1x128xf32>
    %447 = arith.divf %445, %446 : vector<1x128xf32>
    %448 = vector.extract_strided_slice %441 {offsets = [0, 128], sizes = [1, 128], strides = [1, 1]} : vector<1x512xf32> to vector<1x128xf32>
    %449 = arith.negf %448 : vector<1x128xf32>
    %450 = math.exp %449 : vector<1x128xf32>
    %cst_110 = arith.constant 1.000000e+00 : f32
    %451 = vector.broadcast %cst_110 : f32 to vector<1x128xf32>
    %452 = arith.addf %451, %450 : vector<1x128xf32>
    %453 = arith.divf %451, %452 : vector<1x128xf32>
    %454 = vector.extract_strided_slice %441 {offsets = [0, 256], sizes = [1, 128], strides = [1, 1]} : vector<1x512xf32> to vector<1x128xf32>
    %455 = math.tanh %454 : vector<1x128xf32>
    %456 = vector.extract_strided_slice %441 {offsets = [0, 384], sizes = [1, 128], strides = [1, 1]} : vector<1x512xf32> to vector<1x128xf32>
    %457 = arith.negf %456 : vector<1x128xf32>
    %458 = math.exp %457 : vector<1x128xf32>
    %cst_111 = arith.constant 1.000000e+00 : f32
    %459 = vector.broadcast %cst_111 : f32 to vector<1x128xf32>
    %460 = arith.addf %459, %458 : vector<1x128xf32>
    %461 = arith.divf %459, %460 : vector<1x128xf32>
    %462 = arith.mulf %453, %401 : vector<1x128xf32>
    %463 = arith.mulf %447, %455 : vector<1x128xf32>
    %464 = arith.addf %462, %463 : vector<1x128xf32>
    %465 = math.tanh %464 : vector<1x128xf32>
    %466 = arith.mulf %461, %465 : vector<1x128xf32>
    %467 = arith.index_cast %437 : i32 to index
    %c0_112 = arith.constant 0 : index
    %468 = vector.load %arg15[%467, %c0_112] : memref<8x128xf32, #tpu.memory_space<vmem>>, vector<1x128xf32>
    tpu.vector_store %arg15[%467, %c0_112], %466 {strides = array<i32>} : memref<8x128xf32, #tpu.memory_space<vmem>>, vector<1x128xf32>,
    %c7_i32_113 = arith.constant 7 : i32
    %469 = arith.index_cast %c7_i32_113 : i32 to index
    %c0_114 = arith.constant 0 : index
    %470 = vector.load %arg13[%469, %c0_114] : memref<8x1024xf32, #tpu.memory_space<vmem>>, vector<1x512xf32>
    %cst_115 = arith.constant dense<0.000000e+00> : vector<1x512xf32>
    %471 = tpu.matmul %434, %25, %cst_115 {dimension_numbers = #tpu.dot_dimension_numbers<[1], [0], [0], [1], [0, 0, 1, 1], [], []>} : vector<1x128xf32>, vector<128x512xf32>, vector<1x512xf32> -> vector<1x512xf32>
    %472 = arith.addf %470, %471 : vector<1x512xf32>
    %473 = vector.extract_strided_slice %472 {offsets = [0, 0], sizes = [1, 128], strides = [1, 1]} : vector<1x512xf32> to vector<1x128xf32>
    %474 = arith.negf %473 : vector<1x128xf32>
    %475 = math.exp %474 : vector<1x128xf32>
    %cst_116 = arith.constant 1.000000e+00 : f32
    %476 = vector.broadcast %cst_116 : f32 to vector<1x128xf32>
    %477 = arith.addf %476, %475 : vector<1x128xf32>
    %478 = arith.divf %476, %477 : vector<1x128xf32>
    %479 = vector.extract_strided_slice %472 {offsets = [0, 128], sizes = [1, 128], strides = [1, 1]} : vector<1x512xf32> to vector<1x128xf32>
    %480 = arith.negf %479 : vector<1x128xf32>
    %481 = math.exp %480 : vector<1x128xf32>
    %cst_117 = arith.constant 1.000000e+00 : f32
    %482 = vector.broadcast %cst_117 : f32 to vector<1x128xf32>
    %483 = arith.addf %482, %481 : vector<1x128xf32>
    %484 = arith.divf %482, %483 : vector<1x128xf32>
    %485 = vector.extract_strided_slice %472 {offsets = [0, 256], sizes = [1, 128], strides = [1, 1]} : vector<1x512xf32> to vector<1x128xf32>
    %486 = math.tanh %485 : vector<1x128xf32>
    %487 = vector.extract_strided_slice %472 {offsets = [0, 384], sizes = [1, 128], strides = [1, 1]} : vector<1x512xf32> to vector<1x128xf32>
    %488 = arith.negf %487 : vector<1x128xf32>
    %489 = math.exp %488 : vector<1x128xf32>
    %cst_118 = arith.constant 1.000000e+00 : f32
    %490 = vector.broadcast %cst_118 : f32 to vector<1x128xf32>
    %491 = arith.addf %490, %489 : vector<1x128xf32>
    %492 = arith.divf %490, %491 : vector<1x128xf32>
    %493 = arith.mulf %484, %432 : vector<1x128xf32>
    %494 = arith.mulf %478, %486 : vector<1x128xf32>
    %495 = arith.addf %493, %494 : vector<1x128xf32>
    %496 = math.tanh %495 : vector<1x128xf32>
    %497 = arith.mulf %492, %496 : vector<1x128xf32>
    %498 = arith.index_cast %c7_i32_113 : i32 to index
    %c0_119 = arith.constant 0 : index
    %499 = vector.load %arg14[%498, %c0_119] : memref<8x128xf32, #tpu.memory_space<vmem>>, vector<1x128xf32>
    tpu.vector_store %arg14[%498, %c0_119], %497 {strides = array<i32>} : memref<8x128xf32, #tpu.memory_space<vmem>>, vector<1x128xf32>,
    %c7_i32_120 = arith.constant 7 : i32
    %500 = arith.subi %c7_i32_120, %c7_i32_113 : i32
    %501 = arith.index_cast %500 : i32 to index
    %c512_121 = arith.constant 512 : index
    %502 = vector.load %arg13[%501, %c512_121] : memref<8x1024xf32, #tpu.memory_space<vmem>>, vector<1x512xf32>
    %cst_122 = arith.constant dense<0.000000e+00> : vector<1x512xf32>
    %503 = tpu.matmul %466, %26, %cst_122 {dimension_numbers = #tpu.dot_dimension_numbers<[1], [0], [0], [1], [0, 0, 1, 1], [], []>} : vector<1x128xf32>, vector<128x512xf32>, vector<1x512xf32> -> vector<1x512xf32>
    %504 = arith.addf %502, %503 : vector<1x512xf32>
    %505 = vector.extract_strided_slice %504 {offsets = [0, 0], sizes = [1, 128], strides = [1, 1]} : vector<1x512xf32> to vector<1x128xf32>
    %506 = arith.negf %505 : vector<1x128xf32>
    %507 = math.exp %506 : vector<1x128xf32>
    %cst_123 = arith.constant 1.000000e+00 : f32
    %508 = vector.broadcast %cst_123 : f32 to vector<1x128xf32>
    %509 = arith.addf %508, %507 : vector<1x128xf32>
    %510 = arith.divf %508, %509 : vector<1x128xf32>
    %511 = vector.extract_strided_slice %504 {offsets = [0, 128], sizes = [1, 128], strides = [1, 1]} : vector<1x512xf32> to vector<1x128xf32>
    %512 = arith.negf %511 : vector<1x128xf32>
    %513 = math.exp %512 : vector<1x128xf32>
    %cst_124 = arith.constant 1.000000e+00 : f32
    %514 = vector.broadcast %cst_124 : f32 to vector<1x128xf32>
    %515 = arith.addf %514, %513 : vector<1x128xf32>
    %516 = arith.divf %514, %515 : vector<1x128xf32>
    %517 = vector.extract_strided_slice %504 {offsets = [0, 256], sizes = [1, 128], strides = [1, 1]} : vector<1x512xf32> to vector<1x128xf32>
    %518 = math.tanh %517 : vector<1x128xf32>
    %519 = vector.extract_strided_slice %504 {offsets = [0, 384], sizes = [1, 128], strides = [1, 1]} : vector<1x512xf32> to vector<1x128xf32>
    %520 = arith.negf %519 : vector<1x128xf32>
    %521 = math.exp %520 : vector<1x128xf32>
    %cst_125 = arith.constant 1.000000e+00 : f32
    %522 = vector.broadcast %cst_125 : f32 to vector<1x128xf32>
    %523 = arith.addf %522, %521 : vector<1x128xf32>
    %524 = arith.divf %522, %523 : vector<1x128xf32>
    %525 = arith.mulf %516, %464 : vector<1x128xf32>
    %526 = arith.mulf %510, %518 : vector<1x128xf32>
    %527 = arith.addf %525, %526 : vector<1x128xf32>
    %528 = math.tanh %527 : vector<1x128xf32>
    %529 = arith.mulf %524, %528 : vector<1x128xf32>
    %530 = arith.index_cast %500 : i32 to index
    %c0_126 = arith.constant 0 : index
    %531 = vector.load %arg15[%530, %c0_126] : memref<8x128xf32, #tpu.memory_space<vmem>>, vector<1x128xf32>
    tpu.vector_store %arg15[%530, %c0_126], %529 {strides = array<i32>} : memref<8x128xf32, #tpu.memory_space<vmem>>, vector<1x128xf32>,
    %c8_i32 = arith.constant 8 : i32
    %c0_127 = arith.constant 0 : index
    %c0_128 = arith.constant 0 : index
    %532 = vector.load %arg14[%c0_127, %c0_128] : memref<8x128xf32, #tpu.memory_space<vmem>>, vector<8x128xf32>
    %c0_129 = arith.constant 0 : index
    %c0_130 = arith.constant 0 : index
    %533 = vector.load %arg9[%c0_129, %c0_130] : memref<128x128xf32, #tpu.memory_space<vmem>>, vector<128x128xf32>
    %cst_131 = arith.constant dense<0.000000e+00> : vector<8x128xf32>
    %534 = tpu.matmul %532, %533, %cst_131 {dimension_numbers = #tpu.dot_dimension_numbers<[1], [0], [0], [1], [0, 0, 1, 1], [], []>} : vector<8x128xf32>, vector<128x128xf32>, vector<8x128xf32> -> vector<8x128xf32>
    %c0_132 = arith.constant 0 : index
    %c0_133 = arith.constant 0 : index
    %535 = vector.load %arg15[%c0_132, %c0_133] : memref<8x128xf32, #tpu.memory_space<vmem>>, vector<8x128xf32>
    %c0_134 = arith.constant 0 : index
    %c0_135 = arith.constant 0 : index
    %536 = vector.load %arg10[%c0_134, %c0_135] : memref<128x128xf32, #tpu.memory_space<vmem>>, vector<128x128xf32>
    %cst_136 = arith.constant dense<0.000000e+00> : vector<8x128xf32>
    %537 = tpu.matmul %535, %536, %cst_136 {dimension_numbers = #tpu.dot_dimension_numbers<[1], [0], [0], [1], [0, 0, 1, 1], [], []>} : vector<8x128xf32>, vector<128x128xf32>, vector<8x128xf32> -> vector<8x128xf32>
    %538 = arith.addf %534, %537 : vector<8x128xf32>
    %c0_137 = arith.constant 0 : index
    %c0_138 = arith.constant 0 : index
    %539 = vector.load %arg11[%c0_137, %c0_138] : memref<1x128xf32, #tpu.memory_space<vmem>>, vector<1x128xf32>
    %540 = vector.broadcast %539 : vector<1x128xf32> to vector<8x128xf32>
    %541 = arith.addf %538, %540 : vector<8x128xf32>
    %c0_139 = arith.constant 0 : index
    %c0_140 = arith.constant 0 : index
    %542 = vector.load %arg12[%c0_139, %c0_140] : memref<8x128xf32, #tpu.memory_space<vmem>>, vector<8x128xf32>
    tpu.vector_store %arg12[%c0_139, %c0_140], %541 {strides = array<i32>} : memref<8x128xf32, #tpu.memory_space<vmem>>, vector<8x128xf32>,
    return
  }
}

</mosaic_0001>

<llo_original>
// kernel: pos_forward.1
$region0: #{pos_forward.1}
  #allocation0 [shape = 'u32[]', space=smem, size = 0x4, offset = 0x4, fixed_abs, tag = 'smem constant byte address 0x4 - core index']
  #allocation1 [shape = 'u32[144,128]{1,0:T(1,128)}', space=vmem, size = 0x12000, scoped, tag = 'internal scratch']
  #allocation2 [shape = 'f32[8,1024]{1,0:T(8,128)}', space=vmem, size = 0x8000, scoped, tag = 'scratch operand']
  #allocation3 [shape = 'f32[8,128]{1,0:T(8,128)}', space=vmem, size = 0x1000, scoped, tag = 'scratch operand']
  #allocation4 [shape = 'f32[8,128]{1,0:T(8,128)}', space=vmem, size = 0x1000, scoped, tag = 'scratch operand']
  %s0 = inlined_call_operand.vmem [shape: f32[8,128], index: 0, kind: input, shape index: {}]
  %s1 = inlined_call_operand.vmem [shape: f32[8,9,32], index: 1, kind: input, shape index: {}]
  %s2 = inlined_call_operand.vmem [shape: f32[96,32], index: 2, kind: input, shape index: {}]
  %s3 = inlined_call_operand.vmem [shape: f32[1,32], index: 3, kind: input, shape index: {}]
  %s4 = inlined_call_operand.vmem [shape: f32[128,1024], index: 4, kind: input, shape index: {}]
  %s5 = inlined_call_operand.hbm [shape: f32[32,1024], index: 5, kind: input, shape index: {}]
  %s6 = inlined_call_operand.vmem [shape: f32[1,1024], index: 6, kind: input, shape index: {}]
  %s7 = inlined_call_operand.hbm [shape: f32[128,512], index: 7, kind: input, shape index: {}]
  %s8 = inlined_call_operand.hbm [shape: f32[128,512], index: 8, kind: input, shape index: {}]
  %s9 = inlined_call_operand.vmem [shape: f32[128,128], index: 9, kind: input, shape index: {}]
  %s10 = inlined_call_operand.hbm [shape: f32[128,128], index: 10, kind: input, shape index: {}]
  %s11 = inlined_call_operand.vmem [shape: f32[1,128], index: 11, kind: input, shape index: {}]
  %s12 = inlined_call_operand.hbm [shape: f32[8,128], index: 12, kind: output, shape index: {}]
  %s13 = sld [smem:[#allocation0]]
  $region74: #{pos_forward.1} parent=0
    _
  %s15 = ssub.s32 1, %s13
  %s16 = scalar_select 0, %s15, %s13
  $region1: #{pos_forward.1} parent=0
    #allocation5 [shape = 'u8[131072]{0}', space=vmem, size = 0x20000, scoped, tag = 'input window, operand 5, single buffered']
    #allocation6 [shape = 's32[1]{0}', space=sflag, size = 0x4, scoped, tag = 'scoped memory for pos_forward.1']
    #allocation7 [shape = 's32[1]{0}', space=sflag, size = 0x4, scoped, tag = 'scoped memory for pos_forward.1']
    #allocation8 [shape = 'u8[262144]{0}', space=vmem, size = 0x40000, scoped, tag = 'input window, operand 7, single buffered']
    #allocation9 [shape = 's32[1]{0}', space=sflag, size = 0x4, scoped, tag = 'scoped memory for pos_forward.1']
    #allocation10 [shape = 'u8[262144]{0}', space=vmem, size = 0x40000, scoped, tag = 'input window, operand 8, single buffered']
    #allocation11 [shape = 'u8[65536]{0}', space=vmem, size = 0x10000, scoped, tag = 'input window, operand 10, single buffered']
    #allocation12 [shape = 's32[1]{0}', space=sflag, size = 0x4, scoped, tag = 'scoped memory for pos_forward.1']
    #allocation13 [shape = 'u8[4096]{0}', space=vmem, size = 0x1000, scoped, tag = 'output window, operand 0, single buffered']
    %17 = vsyncpa [#allocation6], 0
    %18 = vsyncpa [#allocation9], 0
    %19 = vsyncpa [#allocation12], 0
    %20 = vsyncpa [#allocation7], 0
    // Predicated region
    $region2: #{pos_forward.1} parent=1 // pred_check
      _
    $region3: #{pos_forward.1} parent=1 // pred_check_branch
      %22 = sbr.rel (0) target = $region5
    $region4: #{pos_forward.1} parent=1 // pred_region
      _
    $region5: #{pos_forward.1} parent=1 // pred_fallthru
      _
    // Predicated region
    $region6: #{pos_forward.1} parent=1 // pred_check
      _
    $region7: #{pos_forward.1} parent=1 // pred_check_branch
      %24 = sbr.rel (0) target = $region9
    $region8: #{pos_forward.1} parent=1 // pred_region
      _
    $region9: #{pos_forward.1} parent=1 // pred_fallthru
      _
    // Predicated region
    $region10: #{pos_forward.1} parent=1 // pred_check
      _
    $region11: #{pos_forward.1} parent=1 // pred_check_branch
      %26 = sbr.rel (0) target = $region13
    $region12: #{pos_forward.1} parent=1 // pred_region
      _
    $region13: #{pos_forward.1} parent=1 // pred_fallthru
      _
    // Predicated region
    $region14: #{pos_forward.1} parent=1 // pred_check
      _
    $region15: #{pos_forward.1} parent=1 // pred_check_branch
      %28 = sbr.rel (0) target = $region17
    $region16: #{pos_forward.1} parent=1 // pred_region
      _
    $region17: #{pos_forward.1} parent=1 // pred_fallthru
      _
    // Predicated region
    $region18: #{pos_forward.1} parent=1 // pred_check
      _
    $region19: #{pos_forward.1} parent=1 // pred_check_branch
      %30 = sbr.rel (0) target = $region21
    $region20: #{pos_forward.1} parent=1 // pred_region
      _
    $region21: #{pos_forward.1} parent=1 // pred_fallthru
      _
    // Predicated region
    $region22: #{pos_forward.1} parent=1 // pred_check
      _
    $region23: #{pos_forward.1} parent=1 // pred_check_branch
      %32 = sbr.rel (0) target = $region25
    $region24: #{pos_forward.1} parent=1 // pred_region
      %s34 = ssub.s32 4096, 4096
      %35 = vsyncadd [#allocation6], %s34
      %s36 = sshll.u32 [#allocation5], 4
      %s37 = int_to_ptr.vmem [resolvable:$true] %s36
      %42 = dma.hbm_to_vmem [thread:$0]  %s5, 4096, %s37, [#allocation6], 1024, 1024, 64
    $region25: #{pos_forward.1} parent=1 // pred_fallthru
      _
    // Predicated region
    $region26: #{pos_forward.1} parent=1 // pred_check
      _
    $region27: #{pos_forward.1} parent=1 // pred_check_branch
      %44 = sbr.rel (0) target = $region29
    $region28: #{pos_forward.1} parent=1 // pred_region
      _
    $region29: #{pos_forward.1} parent=1 // pred_fallthru
      _
    // Predicated region
    $region30: #{pos_forward.1} parent=1 // pred_check
      _
    $region31: #{pos_forward.1} parent=1 // pred_check_branch
      %46 = sbr.rel (0) target = $region33
    $region32: #{pos_forward.1} parent=1 // pred_region
      %s48 = ssub.s32 8192, 8192
      %49 = vsyncadd [#allocation9], %s48
      %s50 = sshll.u32 [#allocation8], 4
      %s51 = int_to_ptr.vmem [resolvable:$true] %s50
      %56 = dma.hbm_to_vmem [thread:$0]  %s7, 8192, %s51, [#allocation9], 512, 512, 32
    $region33: #{pos_forward.1} parent=1 // pred_fallthru
      _
    // Predicated region
    $region34: #{pos_forward.1} parent=1 // pred_check
      _
    $region35: #{pos_forward.1} parent=1 // pred_check_branch
      %58 = sbr.rel (0) target = $region37
    $region36: #{pos_forward.1} parent=1 // pred_region
      %s60 = ssub.s32 8192, 8192
      %61 = vsyncadd [#allocation9], %s60
      %s62 = sshll.u32 [#allocation10], 4
      %s63 = int_to_ptr.vmem [resolvable:$true] %s62
      %68 = dma.hbm_to_vmem [thread:$0]  %s8, 8192, %s63, [#allocation9], 512, 512, 32
    $region37: #{pos_forward.1} parent=1 // pred_fallthru
      _
    // Predicated region
    $region38: #{pos_forward.1} parent=1 // pred_check
      _
    $region39: #{pos_forward.1} parent=1 // pred_check_branch
      %70 = sbr.rel (0) target = $region41
    $region40: #{pos_forward.1} parent=1 // pred_region
      _
    $region41: #{pos_forward.1} parent=1 // pred_fallthru
      _
    // Predicated region
    $region42: #{pos_forward.1} parent=1 // pred_check
      _
    $region43: #{pos_forward.1} parent=1 // pred_check_branch
      %72 = sbr.rel (0) target = $region45
    $region44: #{pos_forward.1} parent=1 // pred_region
      %s74 = ssub.s32 2048, 2048
      %75 = vsyncadd [#allocation12], %s74
      %s76 = sshll.u32 [#allocation11], 4
      %s77 = int_to_ptr.vmem [resolvable:$true] %s76
      %82 = dma.hbm_to_vmem [thread:$0]  %s10, 2048, %s77, [#allocation12], 128, 128, 8
    $region45: #{pos_forward.1} parent=1 // pred_fallthru
      _
    // Predicated region
    $region46: #{pos_forward.1} parent=1 // pred_check
      _
    $region47: #{pos_forward.1} parent=1 // pred_check_branch
      %84 = sbr.rel (0) target = $region49
    $region48: #{pos_forward.1} parent=1 // pred_region
      _
    $region49: #{pos_forward.1} parent=1 // pred_fallthru
      _
    // Predicated region
    $region50: #{pos_forward.1} parent=1 // pred_check
      _
    $region51: #{pos_forward.1} parent=1 // pred_check_branch
      %86 = sbr.rel (0) target = $region53
    $region52: #{pos_forward.1} parent=1 // pred_region
      %87 = dma.done [#allocation6], 4096
    $region53: #{pos_forward.1} parent=1 // pred_fallthru
      _
    // Predicated region
    $region54: #{pos_forward.1} parent=1 // pred_check
      _
    $region55: #{pos_forward.1} parent=1 // pred_check_branch
      %89 = sbr.rel (0) target = $region57
    $region56: #{pos_forward.1} parent=1 // pred_region
      %90 = dma.done [#allocation9], 8192
    $region57: #{pos_forward.1} parent=1 // pred_fallthru
      _
    // Predicated region
    $region58: #{pos_forward.1} parent=1 // pred_check
      _
    $region59: #{pos_forward.1} parent=1 // pred_check_branch
      %92 = sbr.rel (0) target = $region61
    $region60: #{pos_forward.1} parent=1 // pred_region
      %93 = dma.done [#allocation9], 8192
    $region61: #{pos_forward.1} parent=1 // pred_fallthru
      _
    // Predicated region
    $region62: #{pos_forward.1} parent=1 // pred_check
      _
    $region63: #{pos_forward.1} parent=1 // pred_check_branch
      %95 = sbr.rel (0) target = $region65
    $region64: #{pos_forward.1} parent=1 // pred_region
      %96 = dma.done [#allocation12], 2048
    $region65: #{pos_forward.1} parent=1 // pred_fallthru
      _
    %v97 = vld [vmem:[%s1] sm:$0xff]
    %v98 = vld [vmem:[%s1 + $0x8] sm:$0x1]
    %v99 = vld [vmem:[%s1 + $0x10] sm:$0xff]
    %v100 = vld [vmem:[%s1 + $0x18] sm:$0x1]
    %v101 = vld [vmem:[%s1 + $0x20] sm:$0xff]
    %v102 = vld [vmem:[%s1 + $0x28] sm:$0x1]
    %v103 = vld [vmem:[%s1 + $0x30] sm:$0xff]
    %v104 = vld [vmem:[%s1 + $0x38] sm:$0x1]
    %v105 = vld [vmem:[%s1 + $0x40] sm:$0xff]
    %v106 = vld [vmem:[%s1 + $0x48] sm:$0x1]
    %v107 = vld [vmem:[%s1 + $0x50] sm:$0xff]
    %v108 = vld [vmem:[%s1 + $0x58] sm:$0x1]
    %v109 = vld [vmem:[%s1 + $0x60] sm:$0xff]
    %v110 = vld [vmem:[%s1 + $0x68] sm:$0x1]
    %v111 = vld [vmem:[%s1 + $0x70] sm:$0xff]
    %v112 = vld [vmem:[%s1 + $0x78] sm:$0x1]
    %v121 = vcombine.high %v97, %v97
    %v123 = vunpack.c.l.s4 1966171168
    %v124 = vunpack.c.0.s8 %v123
    %v125 = vlaneseq
    %v126 = vshrl.u32 %v125, 7
    %v127 = vsub.s32 %v124, %v126
    %v128 = vrot.slane %v97, %v127
    %v130 = vunpack.c.l.s4 1966171168
    %v131 = vunpack.c.0.s8 %v130
    %v132 = vlaneseq
    %v133 = vshrl.u32 %v132, 7
    %v134 = vsub.s32 %v131, %v133
    %v135 = vrot.slane %v121, %v134
    %v136 = vcombine.high %v128, %v128
    %v137 = vcombine.high %v135, %v135
    %v139 = vunpack.c.l.s4 1966171168
    %v140 = vunpack.c.0.s8 %v139
    %v141 = vlaneseq
    %v142 = vshrl.u32 %v141, 7
    %v143 = vsub.s32 %v140, %v142
    %v144 = vrot.slane %v128, %v143
    %v146 = vunpack.c.l.s4 1966171168
    %v147 = vunpack.c.0.s8 %v146
    %v148 = vlaneseq
    %v149 = vshrl.u32 %v148, 7
    %v150 = vsub.s32 %v147, %v149
    %v151 = vrot.slane %v135, %v150
    %v153 = vunpack.c.l.s4 1966171168
    %v154 = vunpack.c.0.s8 %v153
    %v155 = vlaneseq
    %v156 = vshrl.u32 %v155, 7
    %v157 = vsub.s32 %v154, %v156
    %v158 = vrot.slane %v136, %v157
    %v160 = vunpack.c.l.s4 1966171168
    %v161 = vunpack.c.0.s8 %v160
    %v162 = vlaneseq
    %v163 = vshrl.u32 %v162, 7
    %v164 = vsub.s32 %v161, %v163
    %v165 = vrot.slane %v137, %v164
    %v166 = vcombine.high %v144, %v144
    %v167 = vcombine.high %v151, %v151
    %v168 = vcombine.high %v158, %v158
    %v169 = vcombine.high %v99, %v99
    %v171 = vunpack.c.l.s4 1966171168
    %v172 = vunpack.c.0.s8 %v171
    %v173 = vlaneseq
    %v174 = vshrl.u32 %v173, 7
    %v175 = vsub.s32 %v172, %v174
    %v176 = vrot.slane %v99, %v175
    %v178 = vunpack.c.l.s4 1966171168
    %v179 = vunpack.c.0.s8 %v178
    %v180 = vlaneseq
    %v181 = vshrl.u32 %v180, 7
    %v182 = vsub.s32 %v179, %v181
    %v183 = vrot.slane %v169, %v182
    %v184 = vcombine.high %v176, %v176
    %v185 = vcombine.high %v183, %v183
    %v187 = vunpack.c.l.s4 1966171168
    %v188 = vunpack.c.0.s8 %v187
    %v189 = vlaneseq
    %v190 = vshrl.u32 %v189, 7
    %v191 = vsub.s32 %v188, %v190
    %v192 = vrot.slane %v176, %v191
    %v194 = vunpack.c.l.s4 1966171168
    %v195 = vunpack.c.0.s8 %v194
    %v196 = vlaneseq
    %v197 = vshrl.u32 %v196, 7
    %v198 = vsub.s32 %v195, %v197
    %v199 = vrot.slane %v183, %v198
    %v201 = vunpack.c.l.s4 1966171168
    %v202 = vunpack.c.0.s8 %v201
    %v203 = vlaneseq
    %v204 = vshrl.u32 %v203, 7
    %v205 = vsub.s32 %v202, %v204
    %v206 = vrot.slane %v184, %v205
    %v208 = vunpack.c.l.s4 1966171168
    %v209 = vunpack.c.0.s8 %v208
    %v210 = vlaneseq
    %v211 = vshrl.u32 %v210, 7
    %v212 = vsub.s32 %v209, %v211
    %v213 = vrot.slane %v185, %v212
    %v214 = vcombine.high %v192, %v192
    %v215 = vcombine.high %v199, %v199
    %v216 = vcombine.high %v206, %v206
    %v217 = vcombine.high %v101, %v101
    %v219 = vunpack.c.l.s4 1966171168
    %v220 = vunpack.c.0.s8 %v219
    %v221 = vlaneseq
    %v222 = vshrl.u32 %v221, 7
    %v223 = vsub.s32 %v220, %v222
    %v224 = vrot.slane %v101, %v223
    %v226 = vunpack.c.l.s4 1966171168
    %v227 = vunpack.c.0.s8 %v226
    %v228 = vlaneseq
    %v229 = vshrl.u32 %v228, 7
    %v230 = vsub.s32 %v227, %v229
    %v231 = vrot.slane %v217, %v230
    %v232 = vcombine.high %v224, %v224
    %v233 = vcombine.high %v231, %v231
    %v235 = vunpack.c.l.s4 1966171168
    %v236 = vunpack.c.0.s8 %v235
    %v237 = vlaneseq
    %v238 = vshrl.u32 %v237, 7
    %v239 = vsub.s32 %v236, %v238
    %v240 = vrot.slane %v224, %v239
    %v242 = vunpack.c.l.s4 1966171168
    %v243 = vunpack.c.0.s8 %v242
    %v244 = vlaneseq
    %v245 = vshrl.u32 %v244, 7
    %v246 = vsub.s32 %v243, %v245
    %v247 = vrot.slane %v231, %v246
    %v249 = vunpack.c.l.s4 1966171168
    %v250 = vunpack.c.0.s8 %v249
    %v251 = vlaneseq
    %v252 = vshrl.u32 %v251, 7
    %v253 = vsub.s32 %v250, %v252
    %v254 = vrot.slane %v232, %v253
    %v256 = vunpack.c.l.s4 1966171168
    %v257 = vunpack.c.0.s8 %v256
    %v258 = vlaneseq
    %v259 = vshrl.u32 %v258, 7
    %v260 = vsub.s32 %v257, %v259
    %v261 = vrot.slane %v233, %v260
    %v262 = vcombine.high %v240, %v240
    %v263 = vcombine.high %v247, %v247
    %v264 = vcombine.high %v254, %v254
    %v265 = vcombine.high %v103, %v103
    %v267 = vunpack.c.l.s4 1966171168
    %v268 = vunpack.c.0.s8 %v267
    %v269 = vlaneseq
    %v270 = vshrl.u32 %v269, 7
    %v271 = vsub.s32 %v268, %v270
    %v272 = vrot.slane %v103, %v271
    %v274 = vunpack.c.l.s4 1966171168
    %v275 = vunpack.c.0.s8 %v274
    %v276 = vlaneseq
    %v277 = vshrl.u32 %v276, 7
    %v278 = vsub.s32 %v275, %v277
    %v279 = vrot.slane %v265, %v278
    %v280 = vcombine.high %v272, %v272
    %v281 = vcombine.high %v279, %v279
    %v283 = vunpack.c.l.s4 1966171168
    %v284 = vunpack.c.0.s8 %v283
    %v285 = vlaneseq
    %v286 = vshrl.u32 %v285, 7
    %v287 = vsub.s32 %v284, %v286
    %v288 = vrot.slane %v272, %v287
    %v290 = vunpack.c.l.s4 1966171168
    %v291 = vunpack.c.0.s8 %v290
    %v292 = vlaneseq
    %v293 = vshrl.u32 %v292, 7
    %v294 = vsub.s32 %v291, %v293
    %v295 = vrot.slane %v279, %v294
    %v297 = vunpack.c.l.s4 1966171168
    %v298 = vunpack.c.0.s8 %v297
    %v299 = vlaneseq
    %v300 = vshrl.u32 %v299, 7
    %v301 = vsub.s32 %v298, %v300
    %v302 = vrot.slane %v280, %v301
    %v304 = vunpack.c.l.s4 1966171168
    %v305 = vunpack.c.0.s8 %v304
    %v306 = vlaneseq
    %v307 = vshrl.u32 %v306, 7
    %v308 = vsub.s32 %v305, %v307
    %v309 = vrot.slane %v281, %v308
    %v310 = vcombine.high %v288, %v288
    %v311 = vcombine.high %v295, %v295
    %v312 = vcombine.high %v302, %v302
    %v313 = vcombine.high %v105, %v105
    %v315 = vunpack.c.l.s4 1966171168
    %v316 = vunpack.c.0.s8 %v315
    %v317 = vlaneseq
    %v318 = vshrl.u32 %v317, 7
    %v319 = vsub.s32 %v316, %v318
    %v320 = vrot.slane %v105, %v319
    %v322 = vunpack.c.l.s4 1966171168
    %v323 = vunpack.c.0.s8 %v322
    %v324 = vlaneseq
    %v325 = vshrl.u32 %v324, 7
    %v326 = vsub.s32 %v323, %v325
    %v327 = vrot.slane %v313, %v326
    %v328 = vcombine.high %v320, %v320
    %v329 = vcombine.high %v327, %v327
    %v331 = vunpack.c.l.s4 1966171168
    %v332 = vunpack.c.0.s8 %v331
    %v333 = vlaneseq
    %v334 = vshrl.u32 %v333, 7
    %v335 = vsub.s32 %v332, %v334
    %v336 = vrot.slane %v320, %v335
    %v338 = vunpack.c.l.s4 1966171168
    %v339 = vunpack.c.0.s8 %v338
    %v340 = vlaneseq
    %v341 = vshrl.u32 %v340, 7
    %v342 = vsub.s32 %v339, %v341
    %v343 = vrot.slane %v327, %v342
    %v345 = vunpack.c.l.s4 1966171168
    %v346 = vunpack.c.0.s8 %v345
    %v347 = vlaneseq
    %v348 = vshrl.u32 %v347, 7
    %v349 = vsub.s32 %v346, %v348
    %v350 = vrot.slane %v328, %v349
    %v352 = vunpack.c.l.s4 1966171168
    %v353 = vunpack.c.0.s8 %v352
    %v354 = vlaneseq
    %v355 = vshrl.u32 %v354, 7
    %v356 = vsub.s32 %v353, %v355
    %v357 = vrot.slane %v329, %v356
    %v358 = vcombine.high %v336, %v336
    %v359 = vcombine.high %v343, %v343
    %v360 = vcombine.high %v350, %v350
    %v361 = vcombine.high %v107, %v107
    %v363 = vunpack.c.l.s4 1966171168
    %v364 = vunpack.c.0.s8 %v363
    %v365 = vlaneseq
    %v366 = vshrl.u32 %v365, 7
    %v367 = vsub.s32 %v364, %v366
    %v368 = vrot.slane %v107, %v367
    %v370 = vunpack.c.l.s4 1966171168
    %v371 = vunpack.c.0.s8 %v370
    %v372 = vlaneseq
    %v373 = vshrl.u32 %v372, 7
    %v374 = vsub.s32 %v371, %v373
    %v375 = vrot.slane %v361, %v374
    %v376 = vcombine.high %v368, %v368
    %v377 = vcombine.high %v375, %v375
    %v379 = vunpack.c.l.s4 1966171168
    %v380 = vunpack.c.0.s8 %v379
    %v381 = vlaneseq
    %v382 = vshrl.u32 %v381, 7
    %v383 = vsub.s32 %v380, %v382
    %v384 = vrot.slane %v368, %v383
    %v386 = vunpack.c.l.s4 1966171168
    %v387 = vunpack.c.0.s8 %v386
    %v388 = vlaneseq
    %v389 = vshrl.u32 %v388, 7
    %v390 = vsub.s32 %v387, %v389
    %v391 = vrot.slane %v375, %v390
    %v393 = vunpack.c.l.s4 1966171168
    %v394 = vunpack.c.0.s8 %v393
    %v395 = vlaneseq
    %v396 = vshrl.u32 %v395, 7
    %v397 = vsub.s32 %v394, %v396
    %v398 = vrot.slane %v376, %v397
    %v400 = vunpack.c.l.s4 1966171168
    %v401 = vunpack.c.0.s8 %v400
    %v402 = vlaneseq
    %v403 = vshrl.u32 %v402, 7
    %v404 = vsub.s32 %v401, %v403
    %v405 = vrot.slane %v377, %v404
    %v406 = vcombine.high %v384, %v384
    %v407 = vcombine.high %v391, %v391
    %v408 = vcombine.high %v398, %v398
    %v409 = vcombine.high %v109, %v109
    %v411 = vunpack.c.l.s4 1966171168
    %v412 = vunpack.c.0.s8 %v411
    %v413 = vlaneseq
    %v414 = vshrl.u32 %v413, 7
    %v415 = vsub.s32 %v412, %v414
    %v416 = vrot.slane %v109, %v415
    %v418 = vunpack.c.l.s4 1966171168
    %v419 = vunpack.c.0.s8 %v418
    %v420 = vlaneseq
    %v421 = vshrl.u32 %v420, 7
    %v422 = vsub.s32 %v419, %v421
    %v423 = vrot.slane %v409, %v422
    %v424 = vcombine.high %v416, %v416
    %v425 = vcombine.high %v423, %v423
    %v427 = vunpack.c.l.s4 1966171168
    %v428 = vunpack.c.0.s8 %v427
    %v429 = vlaneseq
    %v430 = vshrl.u32 %v429, 7
    %v431 = vsub.s32 %v428, %v430
    %v432 = vrot.slane %v416, %v431
    %v434 = vunpack.c.l.s4 1966171168
    %v435 = vunpack.c.0.s8 %v434
    %v436 = vlaneseq
    %v437 = vshrl.u32 %v436, 7
    %v438 = vsub.s32 %v435, %v437
    %v439 = vrot.slane %v423, %v438
    %v441 = vunpack.c.l.s4 1966171168
    %v442 = vunpack.c.0.s8 %v441
    %v443 = vlaneseq
    %v444 = vshrl.u32 %v443, 7
    %v445 = vsub.s32 %v442, %v444
    %v446 = vrot.slane %v424, %v445
    %v448 = vunpack.c.l.s4 1966171168
    %v449 = vunpack.c.0.s8 %v448
    %v450 = vlaneseq
    %v451 = vshrl.u32 %v450, 7
    %v452 = vsub.s32 %v449, %v451
    %v453 = vrot.slane %v425, %v452
    %v454 = vcombine.high %v432, %v432
    %v455 = vcombine.high %v439, %v439
    %v456 = vcombine.high %v446, %v446
    %v457 = vcombine.high %v111, %v111
    %v459 = vunpack.c.l.s4 1966171168
    %v460 = vunpack.c.0.s8 %v459
    %v461 = vlaneseq
    %v462 = vshrl.u32 %v461, 7
    %v463 = vsub.s32 %v460, %v462
    %v464 = vrot.slane %v111, %v463
    %v466 = vunpack.c.l.s4 1966171168
    %v467 = vunpack.c.0.s8 %v466
    %v468 = vlaneseq
    %v469 = vshrl.u32 %v468, 7
    %v470 = vsub.s32 %v467, %v469
    %v471 = vrot.slane %v457, %v470
    %v472 = vcombine.high %v464, %v464
    %v473 = vcombine.high %v471, %v471
    %v475 = vunpack.c.l.s4 1966171168
    %v476 = vunpack.c.0.s8 %v475
    %v477 = vlaneseq
    %v478 = vshrl.u32 %v477, 7
    %v479 = vsub.s32 %v476, %v478
    %v480 = vrot.slane %v464, %v479
    %v482 = vunpack.c.l.s4 1966171168
    %v483 = vunpack.c.0.s8 %v482
    %v484 = vlaneseq
    %v485 = vshrl.u32 %v484, 7
    %v486 = vsub.s32 %v483, %v485
    %v487 = vrot.slane %v471, %v486
    %v489 = vunpack.c.l.s4 1966171168
    %v490 = vunpack.c.0.s8 %v489
    %v491 = vlaneseq
    %v492 = vshrl.u32 %v491, 7
    %v493 = vsub.s32 %v490, %v492
    %v494 = vrot.slane %v472, %v493
    %v496 = vunpack.c.l.s4 1966171168
    %v497 = vunpack.c.0.s8 %v496
    %v498 = vlaneseq
    %v499 = vshrl.u32 %v498, 7
    %v500 = vsub.s32 %v497, %v499
    %v501 = vrot.slane %v473, %v500
    %v502 = vcombine.high %v480, %v480
    %v503 = vcombine.high %v487, %v487
    %v504 = vcombine.high %v494, %v494
    %v505 = vcombine.high %v165, %v165
    %v506 = vcombine.high %v213, %v213
    %v507 = vcombine.high %v261, %v261
    %v508 = vcombine.high %v309, %v309
    %v509 = vcombine.high %v357, %v357
    %v510 = vcombine.high %v405, %v405
    %v511 = vcombine.high %v453, %v453
    %v512 = vcombine.high %v501, %v501
    %v522 = vunpack.c.l.s4 1966171168
    %v523 = vunpack.c.0.s8 %v522
    %v524 = vlaneseq
    %v525 = vshrl.u32 %v524, 7
    %v526 = vsub.s32 %v523, %v525
    %v527 = vrot.slane %v98, %v526
    %v529 = vunpack.c.l.s4 1966171168
    %v530 = vunpack.c.0.s8 %v529
    %v531 = vlaneseq
    %v532 = vshrl.u32 %v531, 7
    %v533 = vsub.s32 %v530, %v532
    %v534 = vrot.slane %v527, %v533
    %v536 = vunpack.c.l.s4 1966171168
    %v537 = vunpack.c.0.s8 %v536
    %v538 = vlaneseq
    %v539 = vshrl.u32 %v538, 7
    %v540 = vsub.s32 %v537, %v539
    %v541 = vrot.slane %v100, %v540
    %v543 = vunpack.c.l.s4 1966171168
    %v544 = vunpack.c.0.s8 %v543
    %v545 = vlaneseq
    %v546 = vshrl.u32 %v545, 7
    %v547 = vsub.s32 %v544, %v546
    %v548 = vrot.slane %v541, %v547
    %v550 = vunpack.c.l.s4 1966171168
    %v551 = vunpack.c.0.s8 %v550
    %v552 = vlaneseq
    %v553 = vshrl.u32 %v552, 7
    %v554 = vsub.s32 %v551, %v553
    %v555 = vrot.slane %v102, %v554
    %v557 = vunpack.c.l.s4 1966171168
    %v558 = vunpack.c.0.s8 %v557
    %v559 = vlaneseq
    %v560 = vshrl.u32 %v559, 7
    %v561 = vsub.s32 %v558, %v560
    %v562 = vrot.slane %v555, %v561
    %v564 = vunpack.c.l.s4 1966171168
    %v565 = vunpack.c.0.s8 %v564
    %v566 = vlaneseq
    %v567 = vshrl.u32 %v566, 7
    %v568 = vsub.s32 %v565, %v567
    %v569 = vrot.slane %v104, %v568
    %v571 = vunpack.c.l.s4 1966171168
    %v572 = vunpack.c.0.s8 %v571
    %v573 = vlaneseq
    %v574 = vshrl.u32 %v573, 7
    %v575 = vsub.s32 %v572, %v574
    %v576 = vrot.slane %v569, %v575
    %v578 = vunpack.c.l.s4 1966171168
    %v579 = vunpack.c.0.s8 %v578
    %v580 = vlaneseq
    %v581 = vshrl.u32 %v580, 7
    %v582 = vsub.s32 %v579, %v581
    %v583 = vrot.slane %v106, %v582
    %v585 = vunpack.c.l.s4 1966171168
    %v586 = vunpack.c.0.s8 %v585
    %v587 = vlaneseq
    %v588 = vshrl.u32 %v587, 7
    %v589 = vsub.s32 %v586, %v588
    %v590 = vrot.slane %v583, %v589
    %v592 = vunpack.c.l.s4 1966171168
    %v593 = vunpack.c.0.s8 %v592
    %v594 = vlaneseq
    %v595 = vshrl.u32 %v594, 7
    %v596 = vsub.s32 %v593, %v595
    %v597 = vrot.slane %v108, %v596
    %v599 = vunpack.c.l.s4 1966171168
    %v600 = vunpack.c.0.s8 %v599
    %v601 = vlaneseq
    %v602 = vshrl.u32 %v601, 7
    %v603 = vsub.s32 %v600, %v602
    %v604 = vrot.slane %v597, %v603
    %v606 = vunpack.c.l.s4 1966171168
    %v607 = vunpack.c.0.s8 %v606
    %v608 = vlaneseq
    %v609 = vshrl.u32 %v608, 7
    %v610 = vsub.s32 %v607, %v609
    %v611 = vrot.slane %v110, %v610
    %v613 = vunpack.c.l.s4 1966171168
    %v614 = vunpack.c.0.s8 %v613
    %v615 = vlaneseq
    %v616 = vshrl.u32 %v615, 7
    %v617 = vsub.s32 %v614, %v616
    %v618 = vrot.slane %v611, %v617
    %v620 = vunpack.c.l.s4 1966171168
    %v621 = vunpack.c.0.s8 %v620
    %v622 = vlaneseq
    %v623 = vshrl.u32 %v622, 7
    %v624 = vsub.s32 %v621, %v623
    %v625 = vrot.slane %v112, %v624
    %v627 = vunpack.c.l.s4 1966171168
    %v628 = vunpack.c.0.s8 %v627
    %v629 = vlaneseq
    %v630 = vshrl.u32 %v629, 7
    %v631 = vsub.s32 %v628, %v630
    %v632 = vrot.slane %v625, %v631
    %v633 = vcombine.low %v144, %v158
    %v634 = vcombine.low %v166, %v168
    %v635 = vcombine.low %v151, %v165
    %v636 = vcombine.low %v167, %v192
    %v638 = vunpack.c.l.s4 1966171168
    %v639 = vunpack.c.0.s8 %v638
    %v640 = vlaneseq
    %v641 = vshrl.u32 %v640, 7
    %v642 = vsub.s32 %v639, %v641
    %v643 = vrot.slane %v633, %v642
    %v645 = vunpack.c.l.s4 1966171168
    %v646 = vunpack.c.0.s8 %v645
    %v647 = vlaneseq
    %v648 = vshrl.u32 %v647, 7
    %v649 = vsub.s32 %v646, %v648
    %v650 = vrot.slane %v634, %v649
    %v652 = vunpack.c.l.s4 1966171168
    %v653 = vunpack.c.0.s8 %v652
    %v654 = vlaneseq
    %v655 = vshrl.u32 %v654, 7
    %v656 = vsub.s32 %v653, %v655
    %v657 = vrot.slane %v635, %v656
    %v659 = vunpack.c.l.s4 1966171168
    %v660 = vunpack.c.0.s8 %v659
    %v661 = vlaneseq
    %v662 = vshrl.u32 %v661, 7
    %v663 = vsub.s32 %v660, %v662
    %v664 = vrot.slane %v636, %v663
    %v665 = vcombine.low %v643, %v650
    %v666 = vcombine.low %v657, %v664
    %v668 = vunpack.c.l.s4 1966171168
    %v669 = vunpack.c.0.s8 %v668
    %v670 = vlaneseq
    %v671 = vshrl.u32 %v670, 7
    %v672 = vsub.s32 %v669, %v671
    %v673 = vrot.slane %v665, %v672
    %v675 = vunpack.c.l.s4 1966171168
    %v676 = vunpack.c.0.s8 %v675
    %v677 = vlaneseq
    %v678 = vshrl.u32 %v677, 7
    %v679 = vsub.s32 %v676, %v678
    %v680 = vrot.slane %v666, %v679
    %v681 = vcombine.low %v673, %v680
    %v682 = vcombine.low %v206, %v214
    %v683 = vcombine.low %v216, %v199
    %v684 = vcombine.low %v213, %v215
    %v685 = vcombine.low %v240, %v254
    %v687 = vunpack.c.l.s4 1966171168
    %v688 = vunpack.c.0.s8 %v687
    %v689 = vlaneseq
    %v690 = vshrl.u32 %v689, 7
    %v691 = vsub.s32 %v688, %v690
    %v692 = vrot.slane %v682, %v691
    %v694 = vunpack.c.l.s4 1966171168
    %v695 = vunpack.c.0.s8 %v694
    %v696 = vlaneseq
    %v697 = vshrl.u32 %v696, 7
    %v698 = vsub.s32 %v695, %v697
    %v699 = vrot.slane %v683, %v698
    %v701 = vunpack.c.l.s4 1966171168
    %v702 = vunpack.c.0.s8 %v701
    %v703 = vlaneseq
    %v704 = vshrl.u32 %v703, 7
    %v705 = vsub.s32 %v702, %v704
    %v706 = vrot.slane %v684, %v705
    %v708 = vunpack.c.l.s4 1966171168
    %v709 = vunpack.c.0.s8 %v708
    %v710 = vlaneseq
    %v711 = vshrl.u32 %v710, 7
    %v712 = vsub.s32 %v709, %v711
    %v713 = vrot.slane %v685, %v712
    %v714 = vcombine.low %v692, %v699
    %v715 = vcombine.low %v706, %v713
    %v717 = vunpack.c.l.s4 1966171168
    %v718 = vunpack.c.0.s8 %v717
    %v719 = vlaneseq
    %v720 = vshrl.u32 %v719, 7
    %v721 = vsub.s32 %v718, %v720
    %v722 = vrot.slane %v714, %v721
    %v724 = vunpack.c.l.s4 1966171168
    %v725 = vunpack.c.0.s8 %v724
    %v726 = vlaneseq
    %v727 = vshrl.u32 %v726, 7
    %v728 = vsub.s32 %v725, %v727
    %v729 = vrot.slane %v715, %v728
    %v730 = vcombine.low %v722, %v729
    %v731 = vcombine.low %v262, %v264
    %v732 = vcombine.low %v247, %v261
    %v733 = vcombine.low %v263, %v288
    %v734 = vcombine.low %v302, %v310
    %v736 = vunpack.c.l.s4 1966171168
    %v737 = vunpack.c.0.s8 %v736
    %v738 = vlaneseq
    %v739 = vshrl.u32 %v738, 7
    %v740 = vsub.s32 %v737, %v739
    %v741 = vrot.slane %v731, %v740
    %v743 = vunpack.c.l.s4 1966171168
    %v744 = vunpack.c.0.s8 %v743
    %v745 = vlaneseq
    %v746 = vshrl.u32 %v745, 7
    %v747 = vsub.s32 %v744, %v746
    %v748 = vrot.slane %v732, %v747
    %v750 = vunpack.c.l.s4 1966171168
    %v751 = vunpack.c.0.s8 %v750
    %v752 = vlaneseq
    %v753 = vshrl.u32 %v752, 7
    %v754 = vsub.s32 %v751, %v753
    %v755 = vrot.slane %v733, %v754
    %v757 = vunpack.c.l.s4 1966171168
    %v758 = vunpack.c.0.s8 %v757
    %v759 = vlaneseq
    %v760 = vshrl.u32 %v759, 7
    %v761 = vsub.s32 %v758, %v760
    %v762 = vrot.slane %v734, %v761
    %v763 = vcombine.low %v741, %v748
    %v764 = vcombine.low %v755, %v762
    %v766 = vunpack.c.l.s4 1966171168
    %v767 = vunpack.c.0.s8 %v766
    %v768 = vlaneseq
    %v769 = vshrl.u32 %v768, 7
    %v770 = vsub.s32 %v767, %v769
    %v771 = vrot.slane %v763, %v770
    %v773 = vunpack.c.l.s4 1966171168
    %v774 = vunpack.c.0.s8 %v773
    %v775 = vlaneseq
    %v776 = vshrl.u32 %v775, 7
    %v777 = vsub.s32 %v774, %v776
    %v778 = vrot.slane %v764, %v777
    %v779 = vcombine.low %v771, %v778
    %v780 = vcombine.low %v312, %v295
    %v781 = vcombine.low %v309, %v311
    %v782 = vcombine.low %v336, %v350
    %v783 = vcombine.low %v358, %v360
    %v785 = vunpack.c.l.s4 1966171168
    %v786 = vunpack.c.0.s8 %v785
    %v787 = vlaneseq
    %v788 = vshrl.u32 %v787, 7
    %v789 = vsub.s32 %v786, %v788
    %v790 = vrot.slane %v780, %v789
    %v792 = vunpack.c.l.s4 1966171168
    %v793 = vunpack.c.0.s8 %v792
    %v794 = vlaneseq
    %v795 = vshrl.u32 %v794, 7
    %v796 = vsub.s32 %v793, %v795
    %v797 = vrot.slane %v781, %v796
    %v799 = vunpack.c.l.s4 1966171168
    %v800 = vunpack.c.0.s8 %v799
    %v801 = vlaneseq
    %v802 = vshrl.u32 %v801, 7
    %v803 = vsub.s32 %v800, %v802
    %v804 = vrot.slane %v782, %v803
    %v806 = vunpack.c.l.s4 1966171168
    %v807 = vunpack.c.0.s8 %v806
    %v808 = vlaneseq
    %v809 = vshrl.u32 %v808, 7
    %v810 = vsub.s32 %v807, %v809
    %v811 = vrot.slane %v783, %v810
    %v812 = vcombine.low %v790, %v797
    %v813 = vcombine.low %v804, %v811
    %v815 = vunpack.c.l.s4 1966171168
    %v816 = vunpack.c.0.s8 %v815
    %v817 = vlaneseq
    %v818 = vshrl.u32 %v817, 7
    %v819 = vsub.s32 %v816, %v818
    %v820 = vrot.slane %v812, %v819
    %v822 = vunpack.c.l.s4 1966171168
    %v823 = vunpack.c.0.s8 %v822
    %v824 = vlaneseq
    %v825 = vshrl.u32 %v824, 7
    %v826 = vsub.s32 %v823, %v825
    %v827 = vrot.slane %v813, %v826
    %v828 = vcombine.low %v820, %v827
    %v829 = vcombine.low %v343, %v357
    %v830 = vcombine.low %v359, %v384
    %v831 = vcombine.low %v398, %v406
    %v832 = vcombine.low %v408, %v391
    %v834 = vunpack.c.l.s4 1966171168
    %v835 = vunpack.c.0.s8 %v834
    %v836 = vlaneseq
    %v837 = vshrl.u32 %v836, 7
    %v838 = vsub.s32 %v835, %v837
    %v839 = vrot.slane %v829, %v838
    %v841 = vunpack.c.l.s4 1966171168
    %v842 = vunpack.c.0.s8 %v841
    %v843 = vlaneseq
    %v844 = vshrl.u32 %v843, 7
    %v845 = vsub.s32 %v842, %v844
    %v846 = vrot.slane %v830, %v845
    %v848 = vunpack.c.l.s4 1966171168
    %v849 = vunpack.c.0.s8 %v848
    %v850 = vlaneseq
    %v851 = vshrl.u32 %v850, 7
    %v852 = vsub.s32 %v849, %v851
    %v853 = vrot.slane %v831, %v852
    %v855 = vunpack.c.l.s4 1966171168
    %v856 = vunpack.c.0.s8 %v855
    %v857 = vlaneseq
    %v858 = vshrl.u32 %v857, 7
    %v859 = vsub.s32 %v856, %v858
    %v860 = vrot.slane %v832, %v859
    %v861 = vcombine.low %v839, %v846
    %v862 = vcombine.low %v853, %v860
    %v864 = vunpack.c.l.s4 1966171168
    %v865 = vunpack.c.0.s8 %v864
    %v866 = vlaneseq
    %v867 = vshrl.u32 %v866, 7
    %v868 = vsub.s32 %v865, %v867
    %v869 = vrot.slane %v861, %v868
    %v871 = vunpack.c.l.s4 1966171168
    %v872 = vunpack.c.0.s8 %v871
    %v873 = vlaneseq
    %v874 = vshrl.u32 %v873, 7
    %v875 = vsub.s32 %v872, %v874
    %v876 = vrot.slane %v862, %v875
    %v877 = vcombine.low %v869, %v876
    %v878 = vcombine.low %v405, %v407
    %v879 = vcombine.low %v432, %v446
    %v880 = vcombine.low %v454, %v456
    %v881 = vcombine.low %v439, %v453
    %v883 = vunpack.c.l.s4 1966171168
    %v884 = vunpack.c.0.s8 %v883
    %v885 = vlaneseq
    %v886 = vshrl.u32 %v885, 7
    %v887 = vsub.s32 %v884, %v886
    %v888 = vrot.slane %v878, %v887
    %v890 = vunpack.c.l.s4 1966171168
    %v891 = vunpack.c.0.s8 %v890
    %v892 = vlaneseq
    %v893 = vshrl.u32 %v892, 7
    %v894 = vsub.s32 %v891, %v893
    %v895 = vrot.slane %v879, %v894
    %v897 = vunpack.c.l.s4 1966171168
    %v898 = vunpack.c.0.s8 %v897
    %v899 = vlaneseq
    %v900 = vshrl.u32 %v899, 7
    %v901 = vsub.s32 %v898, %v900
    %v902 = vrot.slane %v880, %v901
    %v904 = vunpack.c.l.s4 1966171168
    %v905 = vunpack.c.0.s8 %v904
    %v906 = vlaneseq
    %v907 = vshrl.u32 %v906, 7
    %v908 = vsub.s32 %v905, %v907
    %v909 = vrot.slane %v881, %v908
    %v910 = vcombine.low %v888, %v895
    %v911 = vcombine.low %v902, %v909
    %v913 = vunpack.c.l.s4 1966171168
    %v914 = vunpack.c.0.s8 %v913
    %v915 = vlaneseq
    %v916 = vshrl.u32 %v915, 7
    %v917 = vsub.s32 %v914, %v916
    %v918 = vrot.slane %v910, %v917
    %v920 = vunpack.c.l.s4 1966171168
    %v921 = vunpack.c.0.s8 %v920
    %v922 = vlaneseq
    %v923 = vshrl.u32 %v922, 7
    %v924 = vsub.s32 %v921, %v923
    %v925 = vrot.slane %v911, %v924
    %v926 = vcombine.low %v918, %v925
    %v927 = vcombine.low %v455, %v480
    %v928 = vcombine.low %v494, %v502
    %v929 = vcombine.low %v504, %v487
    %v930 = vcombine.low %v501, %v503
    %v932 = vunpack.c.l.s4 1966171168
    %v933 = vunpack.c.0.s8 %v932
    %v934 = vlaneseq
    %v935 = vshrl.u32 %v934, 7
    %v936 = vsub.s32 %v933, %v935
    %v937 = vrot.slane %v927, %v936
    %v939 = vunpack.c.l.s4 1966171168
    %v940 = vunpack.c.0.s8 %v939
    %v941 = vlaneseq
    %v942 = vshrl.u32 %v941, 7
    %v943 = vsub.s32 %v940, %v942
    %v944 = vrot.slane %v928, %v943
    %v946 = vunpack.c.l.s4 1966171168
    %v947 = vunpack.c.0.s8 %v946
    %v948 = vlaneseq
    %v949 = vshrl.u32 %v948, 7
    %v950 = vsub.s32 %v947, %v949
    %v951 = vrot.slane %v929, %v950
    %v953 = vunpack.c.l.s4 1966171168
    %v954 = vunpack.c.0.s8 %v953
    %v955 = vlaneseq
    %v956 = vshrl.u32 %v955, 7
    %v957 = vsub.s32 %v954, %v956
    %v958 = vrot.slane %v930, %v957
    %v959 = vcombine.low %v937, %v944
    %v960 = vcombine.low %v951, %v958
    %v962 = vunpack.c.l.s4 1966171168
    %v963 = vunpack.c.0.s8 %v962
    %v964 = vlaneseq
    %v965 = vshrl.u32 %v964, 7
    %v966 = vsub.s32 %v963, %v965
    %v967 = vrot.slane %v959, %v966
    %v969 = vunpack.c.l.s4 1966171168
    %v970 = vunpack.c.0.s8 %v969
    %v971 = vlaneseq
    %v972 = vshrl.u32 %v971, 7
    %v973 = vsub.s32 %v970, %v972
    %v974 = vrot.slane %v960, %v973
    %v975 = vcombine.low %v967, %v974
    %v983 = vcombine.low %v158, %v166
    %v984 = vcombine.low %v168, %v151
    %v985 = vcombine.low %v165, %v167
    %v986 = vcombine.low %v505, %v206
    %v988 = vunpack.c.l.s4 1966171168
    %v989 = vunpack.c.0.s8 %v988
    %v990 = vlaneseq
    %v991 = vshrl.u32 %v990, 7
    %v992 = vsub.s32 %v989, %v991
    %v993 = vrot.slane %v983, %v992
    %v995 = vunpack.c.l.s4 1966171168
    %v996 = vunpack.c.0.s8 %v995
    %v997 = vlaneseq
    %v998 = vshrl.u32 %v997, 7
    %v999 = vsub.s32 %v996, %v998
    %v1000 = vrot.slane %v984, %v999
    %v1002 = vunpack.c.l.s4 1966171168
    %v1003 = vunpack.c.0.s8 %v1002
    %v1004 = vlaneseq
    %v1005 = vshrl.u32 %v1004, 7
    %v1006 = vsub.s32 %v1003, %v1005
    %v1007 = vrot.slane %v985, %v1006
    %v1009 = vunpack.c.l.s4 1966171168
    %v1010 = vunpack.c.0.s8 %v1009
    %v1011 = vlaneseq
    %v1012 = vshrl.u32 %v1011, 7
    %v1013 = vsub.s32 %v1010, %v1012
    %v1014 = vrot.slane %v986, %v1013
    %v1015 = vcombine.low %v993, %v1000
    %v1016 = vcombine.low %v1007, %v1014
    %v1018 = vunpack.c.l.s4 1966171168
    %v1019 = vunpack.c.0.s8 %v1018
    %v1020 = vlaneseq
    %v1021 = vshrl.u32 %v1020, 7
    %v1022 = vsub.s32 %v1019, %v1021
    %v1023 = vrot.slane %v1015, %v1022
    %v1025 = vunpack.c.l.s4 1966171168
    %v1026 = vunpack.c.0.s8 %v1025
    %v1027 = vlaneseq
    %v1028 = vshrl.u32 %v1027, 7
    %v1029 = vsub.s32 %v1026, %v1028
    %v1030 = vrot.slane %v1016, %v1029
    %v1031 = vcombine.low %v1023, %v1030
    %v1032 = vcombine.low %v214, %v216
    %v1033 = vcombine.low %v199, %v213
    %v1034 = vcombine.low %v215, %v506
    %v1035 = vcombine.low %v254, %v262
    %v1037 = vunpack.c.l.s4 1966171168
    %v1038 = vunpack.c.0.s8 %v1037
    %v1039 = vlaneseq
    %v1040 = vshrl.u32 %v1039, 7
    %v1041 = vsub.s32 %v1038, %v1040
    %v1042 = vrot.slane %v1032, %v1041
    %v1044 = vunpack.c.l.s4 1966171168
    %v1045 = vunpack.c.0.s8 %v1044
    %v1046 = vlaneseq
    %v1047 = vshrl.u32 %v1046, 7
    %v1048 = vsub.s32 %v1045, %v1047
    %v1049 = vrot.slane %v1033, %v1048
    %v1051 = vunpack.c.l.s4 1966171168
    %v1052 = vunpack.c.0.s8 %v1051
    %v1053 = vlaneseq
    %v1054 = vshrl.u32 %v1053, 7
    %v1055 = vsub.s32 %v1052, %v1054
    %v1056 = vrot.slane %v1034, %v1055
    %v1058 = vunpack.c.l.s4 1966171168
    %v1059 = vunpack.c.0.s8 %v1058
    %v1060 = vlaneseq
    %v1061 = vshrl.u32 %v1060, 7
    %v1062 = vsub.s32 %v1059, %v1061
    %v1063 = vrot.slane %v1035, %v1062
    %v1064 = vcombine.low %v1042, %v1049
    %v1065 = vcombine.low %v1056, %v1063
    %v1067 = vunpack.c.l.s4 1966171168
    %v1068 = vunpack.c.0.s8 %v1067
    %v1069 = vlaneseq
    %v1070 = vshrl.u32 %v1069, 7
    %v1071 = vsub.s32 %v1068, %v1070
    %v1072 = vrot.slane %v1064, %v1071
    %v1074 = vunpack.c.l.s4 1966171168
    %v1075 = vunpack.c.0.s8 %v1074
    %v1076 = vlaneseq
    %v1077 = vshrl.u32 %v1076, 7
    %v1078 = vsub.s32 %v1075, %v1077
    %v1079 = vrot.slane %v1065, %v1078
    %v1080 = vcombine.low %v1072, %v1079
    %v1081 = vcombine.low %v264, %v247
    %v1082 = vcombine.low %v261, %v263
    %v1083 = vcombine.low %v507, %v302
    %v1084 = vcombine.low %v310, %v312
    %v1086 = vunpack.c.l.s4 1966171168
    %v1087 = vunpack.c.0.s8 %v1086
    %v1088 = vlaneseq
    %v1089 = vshrl.u32 %v1088, 7
    %v1090 = vsub.s32 %v1087, %v1089
    %v1091 = vrot.slane %v1081, %v1090
    %v1093 = vunpack.c.l.s4 1966171168
    %v1094 = vunpack.c.0.s8 %v1093
    %v1095 = vlaneseq
    %v1096 = vshrl.u32 %v1095, 7
    %v1097 = vsub.s32 %v1094, %v1096
    %v1098 = vrot.slane %v1082, %v1097
    %v1100 = vunpack.c.l.s4 1966171168
    %v1101 = vunpack.c.0.s8 %v1100
    %v1102 = vlaneseq
    %v1103 = vshrl.u32 %v1102, 7
    %v1104 = vsub.s32 %v1101, %v1103
    %v1105 = vrot.slane %v1083, %v1104
    %v1107 = vunpack.c.l.s4 1966171168
    %v1108 = vunpack.c.0.s8 %v1107
    %v1109 = vlaneseq
    %v1110 = vshrl.u32 %v1109, 7
    %v1111 = vsub.s32 %v1108, %v1110
    %v1112 = vrot.slane %v1084, %v1111
    %v1113 = vcombine.low %v1091, %v1098
    %v1114 = vcombine.low %v1105, %v1112
    %v1116 = vunpack.c.l.s4 1966171168
    %v1117 = vunpack.c.0.s8 %v1116
    %v1118 = vlaneseq
    %v1119 = vshrl.u32 %v1118, 7
    %v1120 = vsub.s32 %v1117, %v1119
    %v1121 = vrot.slane %v1113, %v1120
    %v1123 = vunpack.c.l.s4 1966171168
    %v1124 = vunpack.c.0.s8 %v1123
    %v1125 = vlaneseq
    %v1126 = vshrl.u32 %v1125, 7
    %v1127 = vsub.s32 %v1124, %v1126
    %v1128 = vrot.slane %v1114, %v1127
    %v1129 = vcombine.low %v1121, %v1128
    %v1130 = vcombine.low %v295, %v309
    %v1131 = vcombine.low %v311, %v508
    %v1132 = vcombine.low %v350, %v358
    %v1133 = vcombine.low %v360, %v343
    %v1135 = vunpack.c.l.s4 1966171168
    %v1136 = vunpack.c.0.s8 %v1135
    %v1137 = vlaneseq
    %v1138 = vshrl.u32 %v1137, 7
    %v1139 = vsub.s32 %v1136, %v1138
    %v1140 = vrot.slane %v1130, %v1139
    %v1142 = vunpack.c.l.s4 1966171168
    %v1143 = vunpack.c.0.s8 %v1142
    %v1144 = vlaneseq
    %v1145 = vshrl.u32 %v1144, 7
    %v1146 = vsub.s32 %v1143, %v1145
    %v1147 = vrot.slane %v1131, %v1146
    %v1149 = vunpack.c.l.s4 1966171168
    %v1150 = vunpack.c.0.s8 %v1149
    %v1151 = vlaneseq
    %v1152 = vshrl.u32 %v1151, 7
    %v1153 = vsub.s32 %v1150, %v1152
    %v1154 = vrot.slane %v1132, %v1153
    %v1156 = vunpack.c.l.s4 1966171168
    %v1157 = vunpack.c.0.s8 %v1156
    %v1158 = vlaneseq
    %v1159 = vshrl.u32 %v1158, 7
    %v1160 = vsub.s32 %v1157, %v1159
    %v1161 = vrot.slane %v1133, %v1160
    %v1162 = vcombine.low %v1140, %v1147
    %v1163 = vcombine.low %v1154, %v1161
    %v1165 = vunpack.c.l.s4 1966171168
    %v1166 = vunpack.c.0.s8 %v1165
    %v1167 = vlaneseq
    %v1168 = vshrl.u32 %v1167, 7
    %v1169 = vsub.s32 %v1166, %v1168
    %v1170 = vrot.slane %v1162, %v1169
    %v1172 = vunpack.c.l.s4 1966171168
    %v1173 = vunpack.c.0.s8 %v1172
    %v1174 = vlaneseq
    %v1175 = vshrl.u32 %v1174, 7
    %v1176 = vsub.s32 %v1173, %v1175
    %v1177 = vrot.slane %v1163, %v1176
    %v1178 = vcombine.low %v1170, %v1177
    %v1179 = vcombine.low %v357, %v359
    %v1180 = vcombine.low %v509, %v398
    %v1181 = vcombine.low %v406, %v408
    %v1182 = vcombine.low %v391, %v405
    %v1184 = vunpack.c.l.s4 1966171168
    %v1185 = vunpack.c.0.s8 %v1184
    %v1186 = vlaneseq
    %v1187 = vshrl.u32 %v1186, 7
    %v1188 = vsub.s32 %v1185, %v1187
    %v1189 = vrot.slane %v1179, %v1188
    %v1191 = vunpack.c.l.s4 1966171168
    %v1192 = vunpack.c.0.s8 %v1191
    %v1193 = vlaneseq
    %v1194 = vshrl.u32 %v1193, 7
    %v1195 = vsub.s32 %v1192, %v1194
    %v1196 = vrot.slane %v1180, %v1195
    %v1198 = vunpack.c.l.s4 1966171168
    %v1199 = vunpack.c.0.s8 %v1198
    %v1200 = vlaneseq
    %v1201 = vshrl.u32 %v1200, 7
    %v1202 = vsub.s32 %v1199, %v1201
    %v1203 = vrot.slane %v1181, %v1202
    %v1205 = vunpack.c.l.s4 1966171168
    %v1206 = vunpack.c.0.s8 %v1205
    %v1207 = vlaneseq
    %v1208 = vshrl.u32 %v1207, 7
    %v1209 = vsub.s32 %v1206, %v1208
    %v1210 = vrot.slane %v1182, %v1209
    %v1211 = vcombine.low %v1189, %v1196
    %v1212 = vcombine.low %v1203, %v1210
    %v1214 = vunpack.c.l.s4 1966171168
    %v1215 = vunpack.c.0.s8 %v1214
    %v1216 = vlaneseq
    %v1217 = vshrl.u32 %v1216, 7
    %v1218 = vsub.s32 %v1215, %v1217
    %v1219 = vrot.slane %v1211, %v1218
    %v1221 = vunpack.c.l.s4 1966171168
    %v1222 = vunpack.c.0.s8 %v1221
    %v1223 = vlaneseq
    %v1224 = vshrl.u32 %v1223, 7
    %v1225 = vsub.s32 %v1222, %v1224
    %v1226 = vrot.slane %v1212, %v1225
    %v1227 = vcombine.low %v1219, %v1226
    %v1228 = vcombine.low %v407, %v510
    %v1229 = vcombine.low %v446, %v454
    %v1230 = vcombine.low %v456, %v439
    %v1231 = vcombine.low %v453, %v455
    %v1233 = vunpack.c.l.s4 1966171168
    %v1234 = vunpack.c.0.s8 %v1233
    %v1235 = vlaneseq
    %v1236 = vshrl.u32 %v1235, 7
    %v1237 = vsub.s32 %v1234, %v1236
    %v1238 = vrot.slane %v1228, %v1237
    %v1240 = vunpack.c.l.s4 1966171168
    %v1241 = vunpack.c.0.s8 %v1240
    %v1242 = vlaneseq
    %v1243 = vshrl.u32 %v1242, 7
    %v1244 = vsub.s32 %v1241, %v1243
    %v1245 = vrot.slane %v1229, %v1244
    %v1247 = vunpack.c.l.s4 1966171168
    %v1248 = vunpack.c.0.s8 %v1247
    %v1249 = vlaneseq
    %v1250 = vshrl.u32 %v1249, 7
    %v1251 = vsub.s32 %v1248, %v1250
    %v1252 = vrot.slane %v1230, %v1251
    %v1254 = vunpack.c.l.s4 1966171168
    %v1255 = vunpack.c.0.s8 %v1254
    %v1256 = vlaneseq
    %v1257 = vshrl.u32 %v1256, 7
    %v1258 = vsub.s32 %v1255, %v1257
    %v1259 = vrot.slane %v1231, %v1258
    %v1260 = vcombine.low %v1238, %v1245
    %v1261 = vcombine.low %v1252, %v1259
    %v1263 = vunpack.c.l.s4 1966171168
    %v1264 = vunpack.c.0.s8 %v1263
    %v1265 = vlaneseq
    %v1266 = vshrl.u32 %v1265, 7
    %v1267 = vsub.s32 %v1264, %v1266
    %v1268 = vrot.slane %v1260, %v1267
    %v1270 = vunpack.c.l.s4 1966171168
    %v1271 = vunpack.c.0.s8 %v1270
    %v1272 = vlaneseq
    %v1273 = vshrl.u32 %v1272, 7
    %v1274 = vsub.s32 %v1271, %v1273
    %v1275 = vrot.slane %v1261, %v1274
    %v1276 = vcombine.low %v1268, %v1275
    %v1277 = vcombine.low %v511, %v494
    %v1278 = vcombine.low %v502, %v504
    %v1279 = vcombine.low %v487, %v501
    %v1280 = vcombine.low %v503, %v512
    %v1282 = vunpack.c.l.s4 1966171168
    %v1283 = vunpack.c.0.s8 %v1282
    %v1284 = vlaneseq
    %v1285 = vshrl.u32 %v1284, 7
    %v1286 = vsub.s32 %v1283, %v1285
    %v1287 = vrot.slane %v1277, %v1286
    %v1289 = vunpack.c.l.s4 1966171168
    %v1290 = vunpack.c.0.s8 %v1289
    %v1291 = vlaneseq
    %v1292 = vshrl.u32 %v1291, 7
    %v1293 = vsub.s32 %v1290, %v1292
    %v1294 = vrot.slane %v1278, %v1293
    %v1296 = vunpack.c.l.s4 1966171168
    %v1297 = vunpack.c.0.s8 %v1296
    %v1298 = vlaneseq
    %v1299 = vshrl.u32 %v1298, 7
    %v1300 = vsub.s32 %v1297, %v1299
    %v1301 = vrot.slane %v1279, %v1300
    %v1303 = vunpack.c.l.s4 1966171168
    %v1304 = vunpack.c.0.s8 %v1303
    %v1305 = vlaneseq
    %v1306 = vshrl.u32 %v1305, 7
    %v1307 = vsub.s32 %v1304, %v1306
    %v1308 = vrot.slane %v1280, %v1307
    %v1309 = vcombine.low %v1287, %v1294
    %v1310 = vcombine.low %v1301, %v1308
    %v1312 = vunpack.c.l.s4 1966171168
    %v1313 = vunpack.c.0.s8 %v1312
    %v1314 = vlaneseq
    %v1315 = vshrl.u32 %v1314, 7
    %v1316 = vsub.s32 %v1313, %v1315
    %v1317 = vrot.slane %v1309, %v1316
    %v1319 = vunpack.c.l.s4 1966171168
    %v1320 = vunpack.c.0.s8 %v1319
    %v1321 = vlaneseq
    %v1322 = vshrl.u32 %v1321, 7
    %v1323 = vsub.s32 %v1320, %v1322
    %v1324 = vrot.slane %v1310, %v1323
    %v1325 = vcombine.low %v1317, %v1324
    %1326 = vrot.lane.b32.xlu0 %v1031, 32
    %v1327 = vpop.permute.xlu0 %1326
    %1328 = vrot.lane.b32.xlu0 %v1080, 32
    %v1329 = vpop.permute.xlu0 %1328
    %1330 = vrot.lane.b32.xlu0 %v1129, 32
    %v1331 = vpop.permute.xlu0 %1330
    %1332 = vrot.lane.b32.xlu0 %v1178, 32
    %v1333 = vpop.permute.xlu0 %1332
    %1334 = vrot.lane.b32.xlu0 %v1227, 32
    %v1335 = vpop.permute.xlu0 %1334
    %1336 = vrot.lane.b32.xlu0 %v1276, 32
    %v1337 = vpop.permute.xlu0 %1336
    %1338 = vrot.lane.b32.xlu0 %v1325, 32
    %v1339 = vpop.permute.xlu0 %1338
    %v1347 = vcombine.low %v167, %v505
    %v1348 = vcombine.low %v534, %v214
    %v1350 = vunpack.c.l.s4 1966171168
    %v1351 = vunpack.c.0.s8 %v1350
    %v1352 = vlaneseq
    %v1353 = vshrl.u32 %v1352, 7
    %v1354 = vsub.s32 %v1351, %v1353
    %v1355 = vrot.slane %v1347, %v1354
    %v1357 = vunpack.c.l.s4 1966171168
    %v1358 = vunpack.c.0.s8 %v1357
    %v1359 = vlaneseq
    %v1360 = vshrl.u32 %v1359, 7
    %v1361 = vsub.s32 %v1358, %v1360
    %v1362 = vrot.slane %v1348, %v1361
    %v1363 = vcombine.low %v650, %v657
    %v1364 = vcombine.low %v1355, %v1362
    %v1366 = vunpack.c.l.s4 1966171168
    %v1367 = vunpack.c.0.s8 %v1366
    %v1368 = vlaneseq
    %v1369 = vshrl.u32 %v1368, 7
    %v1370 = vsub.s32 %v1367, %v1369
    %v1371 = vrot.slane %v1363, %v1370
    %v1373 = vunpack.c.l.s4 1966171168
    %v1374 = vunpack.c.0.s8 %v1373
    %v1375 = vlaneseq
    %v1376 = vshrl.u32 %v1375, 7
    %v1377 = vsub.s32 %v1374, %v1376
    %v1378 = vrot.slane %v1364, %v1377
    %v1379 = vcombine.low %v1371, %v1378
    %v1380 = vcombine.low %v506, %v548
    %v1382 = vunpack.c.l.s4 1966171168
    %v1383 = vunpack.c.0.s8 %v1382
    %v1384 = vlaneseq
    %v1385 = vshrl.u32 %v1384, 7
    %v1386 = vsub.s32 %v1383, %v1385
    %v1387 = vrot.slane %v1380, %v1386
    %v1388 = vcombine.low %v699, %v706
    %v1389 = vcombine.low %v1387, %v741
    %v1391 = vunpack.c.l.s4 1966171168
    %v1392 = vunpack.c.0.s8 %v1391
    %v1393 = vlaneseq
    %v1394 = vshrl.u32 %v1393, 7
    %v1395 = vsub.s32 %v1392, %v1394
    %v1396 = vrot.slane %v1388, %v1395
    %v1398 = vunpack.c.l.s4 1966171168
    %v1399 = vunpack.c.0.s8 %v1398
    %v1400 = vlaneseq
    %v1401 = vshrl.u32 %v1400, 7
    %v1402 = vsub.s32 %v1399, %v1401
    %v1403 = vrot.slane %v1389, %v1402
    %v1404 = vcombine.low %v1396, %v1403
    %v1405 = vcombine.low %v263, %v507
    %v1406 = vcombine.low %v562, %v310
    %v1408 = vunpack.c.l.s4 1966171168
    %v1409 = vunpack.c.0.s8 %v1408
    %v1410 = vlaneseq
    %v1411 = vshrl.u32 %v1410, 7
    %v1412 = vsub.s32 %v1409, %v1411
    %v1413 = vrot.slane %v1405, %v1412
    %v1415 = vunpack.c.l.s4 1966171168
    %v1416 = vunpack.c.0.s8 %v1415
    %v1417 = vlaneseq
    %v1418 = vshrl.u32 %v1417, 7
    %v1419 = vsub.s32 %v1416, %v1418
    %v1420 = vrot.slane %v1406, %v1419
    %v1421 = vcombine.low %v748, %v1413
    %v1422 = vcombine.low %v1420, %v790
    %v1424 = vunpack.c.l.s4 1966171168
    %v1425 = vunpack.c.0.s8 %v1424
    %v1426 = vlaneseq
    %v1427 = vshrl.u32 %v1426, 7
    %v1428 = vsub.s32 %v1425, %v1427
    %v1429 = vrot.slane %v1421, %v1428
    %v1431 = vunpack.c.l.s4 1966171168
    %v1432 = vunpack.c.0.s8 %v1431
    %v1433 = vlaneseq
    %v1434 = vshrl.u32 %v1433, 7
    %v1435 = vsub.s32 %v1432, %v1434
    %v1436 = vrot.slane %v1422, %v1435
    %v1437 = vcombine.low %v1429, %v1436
    %v1438 = vcombine.low %v508, %v576
    %v1440 = vunpack.c.l.s4 1966171168
    %v1441 = vunpack.c.0.s8 %v1440
    %v1442 = vlaneseq
    %v1443 = vshrl.u32 %v1442, 7
    %v1444 = vsub.s32 %v1441, %v1443
    %v1445 = vrot.slane %v1438, %v1444
    %v1446 = vcombine.low %v797, %v1445
    %v1447 = vcombine.low %v811, %v839
    %v1449 = vunpack.c.l.s4 1966171168
    %v1450 = vunpack.c.0.s8 %v1449
    %v1451 = vlaneseq
    %v1452 = vshrl.u32 %v1451, 7
    %v1453 = vsub.s32 %v1450, %v1452
    %v1454 = vrot.slane %v1446, %v1453
    %v1456 = vunpack.c.l.s4 1966171168
    %v1457 = vunpack.c.0.s8 %v1456
    %v1458 = vlaneseq
    %v1459 = vshrl.u32 %v1458, 7
    %v1460 = vsub.s32 %v1457, %v1459
    %v1461 = vrot.slane %v1447, %v1460
    %v1462 = vcombine.low %v1454, %v1461
    %v1463 = vcombine.low %v359, %v509
    %v1464 = vcombine.low %v590, %v406
    %v1466 = vunpack.c.l.s4 1966171168
    %v1467 = vunpack.c.0.s8 %v1466
    %v1468 = vlaneseq
    %v1469 = vshrl.u32 %v1468, 7
    %v1470 = vsub.s32 %v1467, %v1469
    %v1471 = vrot.slane %v1463, %v1470
    %v1473 = vunpack.c.l.s4 1966171168
    %v1474 = vunpack.c.0.s8 %v1473
    %v1475 = vlaneseq
    %v1476 = vshrl.u32 %v1475, 7
    %v1477 = vsub.s32 %v1474, %v1476
    %v1478 = vrot.slane %v1464, %v1477
    %v1479 = vcombine.low %v1471, %v1478
    %v1480 = vcombine.low %v860, %v888
    %v1482 = vunpack.c.l.s4 1966171168
    %v1483 = vunpack.c.0.s8 %v1482
    %v1484 = vlaneseq
    %v1485 = vshrl.u32 %v1484, 7
    %v1486 = vsub.s32 %v1483, %v1485
    %v1487 = vrot.slane %v1479, %v1486
    %v1489 = vunpack.c.l.s4 1966171168
    %v1490 = vunpack.c.0.s8 %v1489
    %v1491 = vlaneseq
    %v1492 = vshrl.u32 %v1491, 7
    %v1493 = vsub.s32 %v1490, %v1492
    %v1494 = vrot.slane %v1480, %v1493
    %v1495 = vcombine.low %v1487, %v1494
    %v1496 = vcombine.low %v510, %v604
    %v1497 = vcombine.low %v455, %v511
    %v1499 = vunpack.c.l.s4 1966171168
    %v1500 = vunpack.c.0.s8 %v1499
    %v1501 = vlaneseq
    %v1502 = vshrl.u32 %v1501, 7
    %v1503 = vsub.s32 %v1500, %v1502
    %v1504 = vrot.slane %v1496, %v1503
    %v1506 = vunpack.c.l.s4 1966171168
    %v1507 = vunpack.c.0.s8 %v1506
    %v1508 = vlaneseq
    %v1509 = vshrl.u32 %v1508, 7
    %v1510 = vsub.s32 %v1507, %v1509
    %v1511 = vrot.slane %v1497, %v1510
    %v1512 = vcombine.low %v1504, %v902
    %v1513 = vcombine.low %v909, %v1511
    %v1515 = vunpack.c.l.s4 1966171168
    %v1516 = vunpack.c.0.s8 %v1515
    %v1517 = vlaneseq
    %v1518 = vshrl.u32 %v1517, 7
    %v1519 = vsub.s32 %v1516, %v1518
    %v1520 = vrot.slane %v1512, %v1519
    %v1522 = vunpack.c.l.s4 1966171168
    %v1523 = vunpack.c.0.s8 %v1522
    %v1524 = vlaneseq
    %v1525 = vshrl.u32 %v1524, 7
    %v1526 = vsub.s32 %v1523, %v1525
    %v1527 = vrot.slane %v1513, %v1526
    %v1528 = vcombine.low %v1520, %v1527
    %v1529 = vcombine.low %v618, %v502
    %v1530 = vcombine.low %v512, %v632
    %v1532 = vunpack.c.l.s4 1966171168
    %v1533 = vunpack.c.0.s8 %v1532
    %v1534 = vlaneseq
    %v1535 = vshrl.u32 %v1534, 7
    %v1536 = vsub.s32 %v1533, %v1535
    %v1537 = vrot.slane %v1529, %v1536
    %v1539 = vunpack.c.l.s4 1966171168
    %v1540 = vunpack.c.0.s8 %v1539
    %v1541 = vlaneseq
    %v1542 = vshrl.u32 %v1541, 7
    %v1543 = vsub.s32 %v1540, %v1542
    %v1544 = vrot.slane %v1530, %v1543
    %v1545 = vcombine.low %v1537, %v951
    %v1546 = vcombine.low %v958, %v1544
    %v1548 = vunpack.c.l.s4 1966171168
    %v1549 = vunpack.c.0.s8 %v1548
    %v1550 = vlaneseq
    %v1551 = vshrl.u32 %v1550, 7
    %v1552 = vsub.s32 %v1549, %v1551
    %v1553 = vrot.slane %v1545, %v1552
    %v1555 = vunpack.c.l.s4 1966171168
    %v1556 = vunpack.c.0.s8 %v1555
    %v1557 = vlaneseq
    %v1558 = vshrl.u32 %v1557, 7
    %v1559 = vsub.s32 %v1556, %v1558
    %v1560 = vrot.slane %v1546, %v1559
    %v1561 = vcombine.low %v1553, %v1560
    %1562 = vrot.lane.b32.xlu0 %v1379, 64
    %v1563 = vpop.permute.xlu0 %1562
    %1564 = vrot.lane.b32.xlu0 %v1404, 64
    %v1565 = vpop.permute.xlu0 %1564
    %1566 = vrot.lane.b32.xlu0 %v1437, 64
    %v1567 = vpop.permute.xlu0 %1566
    %1568 = vrot.lane.b32.xlu0 %v1462, 64
    %v1569 = vpop.permute.xlu0 %1568
    %1570 = vrot.lane.b32.xlu0 %v1495, 64
    %v1571 = vpop.permute.xlu0 %1570
    %1572 = vrot.lane.b32.xlu0 %v1528, 64
    %v1573 = vpop.permute.xlu0 %1572
    %1574 = vrot.lane.b32.xlu0 %v1561, 64
    %v1575 = vpop.permute.xlu0 %1574
    %vm1583 = vcmask 261120
    %v1584 = vsel %vm1583, %v681, %v1327
    %v1585 = vsel %vm1583, %v730, %v1329
    %v1586 = vsel %vm1583, %v779, %v1331
    %v1587 = vsel %vm1583, %v828, %v1333
    %v1588 = vsel %vm1583, %v877, %v1335
    %v1589 = vsel %vm1583, %v926, %v1337
    %v1590 = vsel %vm1583, %v975, %v1339
    %vm1591 = vcmask 523264
    %v1592 = vsel %vm1591, %v1584, %v1563
    %v1593 = vsel %vm1591, %v1585, %v1565
    %v1594 = vsel %vm1591, %v1586, %v1567
    %v1595 = vsel %vm1591, %v1587, %v1569
    %v1596 = vsel %vm1591, %v1588, %v1571
    %v1597 = vsel %vm1591, %v1589, %v1573
    %v1598 = vsel %vm1591, %v1590, %v1575
    %v1599 = vld [vmem:[%s2] sm:$0xff]
    %v1600 = vld [vmem:[%s2 + $0x8] sm:$0xff]
    %v1601 = vld [vmem:[%s2 + $0x10] sm:$0xff]
    %v1602 = vld [vmem:[%s2 + $0x18] sm:$0xff]
    %v1603 = vld [vmem:[%s2 + $0x20] sm:$0xff]
    %v1604 = vld [vmem:[%s2 + $0x28] sm:$0xff]
    %v1605 = vld [vmem:[%s2 + $0x30] sm:$0xff]
    %v1606 = vld [vmem:[%s2 + $0x38] sm:$0xff]
    %v1607 = vld [vmem:[%s2 + $0x40] sm:$0xff]
    %v1608 = vld [vmem:[%s2 + $0x48] sm:$0xff]
    %v1609 = vld [vmem:[%s2 + $0x50] sm:$0xff]
    %v1610 = vld [vmem:[%s2 + $0x58] sm:$0xff]
    %v1611 = vld [vmem:[%s3] sm:$0x1]
    %v1613 = vlaneseq
    %v1614 = vshrl.u32 %v1613, 7
    %v1615 = vsub.s32 0, %v1614
    %v1616 = vrot.slane %v1611, %v1615
    %vm1618 = vcmask 785408
    %v1620 = vsel %vm1618, %v1592, 0
    %v1623 = vsel %vm1618, %v1593, 0
    %v1626 = vsel %vm1618, %v1594, 0
    %v1629 = vsel %vm1618, %v1595, 0
    %v1632 = vsel %vm1618, %v1596, 0
    %v1635 = vsel %vm1618, %v1597, 0
    %v1638 = vsel %vm1618, %v1598, 0
    %1640 = vmatprep.subr.mxu0 0.0
    %1641 = vmatpush1.msra.mxu0 %v1599
    %1642 = vmatprep.subr.mxu0 0.0
    %1643 = vmatpush1.msra.mxu0 %v1600
    %1644 = vmatprep.subr.mxu0 0.0
    %1645 = vmatpush1.msra.mxu0 %v1601
    %1646 = vmatprep.subr.mxu0 0.0
    %1647 = vmatpush1.msra.mxu0 %v1602
    %1648 = vmatprep.subr.mxu0 0.0
    %1649 = vmatpush1.msra.mxu0 %v1603
    %1650 = vmatprep.subr.mxu0 0.0
    %1651 = vmatpush1.msra.mxu0 %v1604
    %1652 = vmatprep.subr.mxu0 0.0
    %1653 = vmatpush1.msra.mxu0 %v1605
    %1654 = vmatprep.subr.mxu0 0.0
    %1655 = vmatpush1.msra.mxu0 %v1606
    %1656 = vmatprep.subr.mxu0 0.0
    %1657 = vmatpush1.msra.mxu0 %v1607
    %1658 = vmatprep.subr.mxu0 0.0
    %1659 = vmatpush1.msra.mxu0 %v1608
    %1660 = vmatprep.subr.mxu0 0.0
    %1661 = vmatpush1.msra.mxu0 %v1609
    %1662 = vmatprep.subr.mxu0 0.0
    %1663 = vmatpush1.msra.mxu0 %v1610
    %1664 = vmatprep.subr.mxu0 0.0
    %1665 = vmatpush1.msra.mxu0 0.0
    %1666 = vmatprep.subr.mxu0 0.0
    %1667 = vmatpush1.msra.mxu0 0.0
    %1668 = vmatprep.subr.mxu0 0.0
    %1669 = vmatpush1.msra.mxu0 0.0
    %1670 = vmatprep.subr.mxu0 0.0
    %1671 = vmatpush1.msra.mxu0 0.0
    %1672 = vmatprep.subr.mxu0 0.0
    %1673 = vmatpush1.msra.mxu0 0.0
    %1674 = vmatprep.subr.mxu0 0.0
    %1675 = vmatpush1.msra.mxu0 0.0
    %1676 = vmatprep.subr.mxu0 0.0
    %1677 = vmatpush1.msra.mxu0 0.0
    %1678 = vmatprep.subr.mxu0 0.0
    %1679 = vmatpush1.msra.mxu0 0.0
    %1680 = vmatprep.subr.mxu0 0.0
    %1681 = vmatpush1.msra.mxu0 0.0
    %1682 = vmatprep.subr.mxu0 0.0
    %1683 = vmatpush1.msra.mxu0 0.0
    %1684 = vmatprep.subr.mxu0 0.0
    %1685 = vmatpush1.msra.mxu0 0.0
    %1686 = vmatprep.subr.mxu0 0.0
    %1687 = vmatpush1.msra.mxu0 0.0
    %1688 = vmatprep.subr.mxu0 0.0
    %1689 = vmatpush1.msra.mxu0 0.0
    %1690 = vmatprep.subr.mxu0 0.0
    %1691 = vmatpush1.msra.mxu0 0.0
    %1692 = vmatprep.subr.mxu0 0.0
    %1693 = vmatpush1.msra.mxu0 0.0
    %1694 = vmatprep.subr.mxu0 0.0
    %1695 = vmatpush1.msra.mxu0 0.0
    %1696 = vmatprep.subr.mxu0 0.0
    %1697 = vmatpush1.msra.mxu0 0.0
    %1698 = vmatprep.subr.mxu0 0.0
    %1699 = vmatpush1.msra.mxu0 0.0
    %1700 = vmatprep.subr.mxu0 0.0
    %1701 = vmatpush1.msra.mxu0 0.0
    %1702 = vmatprep.subr.mxu0 0.0
    %1703 = vmatpush1.msra.mxu0 0.0
    %1704 = vmatprep.mubr.f32.mxu0 0.0
    %1705 = vmatmul.mubr.f32.gmra.mrb[0].mxu0 %v1620
    %v1706 = vpop.f32.mrb[0].mxu0
    %v1707 = vadd.f32 %v1616, %v1706
    %v1708 = vpop.f32.mrb[0].mxu0
    %1709 = vmatprep.mubr.f32.mxu0 0.0
    %1710 = vmatmul.mubr.f32.gmra.mrb[0].mxu0 %v1623
    %v1711 = vpop.f32.mrb[0].mxu0
    %v1712 = vadd.f32 %v1616, %v1711
    %v1713 = vpop.f32.mrb[0].mxu0
    %1714 = vmatprep.mubr.f32.mxu0 0.0
    %1715 = vmatmul.mubr.f32.gmra.mrb[0].mxu0 %v1626
    %v1716 = vpop.f32.mrb[0].mxu0
    %v1717 = vadd.f32 %v1616, %v1716
    %v1718 = vpop.f32.mrb[0].mxu0
    %1719 = vmatprep.mubr.f32.mxu0 0.0
    %1720 = vmatmul.mubr.f32.gmra.mrb[0].mxu0 %v1629
    %v1721 = vpop.f32.mrb[0].mxu0
    %v1722 = vadd.f32 %v1616, %v1721
    %v1723 = vpop.f32.mrb[0].mxu0
    %1724 = vmatprep.mubr.f32.mxu0 0.0
    %1725 = vmatmul.mubr.f32.gmra.mrb[0].mxu0 %v1632
    %v1726 = vpop.f32.mrb[0].mxu0
    %v1727 = vadd.f32 %v1616, %v1726
    %v1728 = vpop.f32.mrb[0].mxu0
    %1729 = vmatprep.mubr.f32.mxu0 0.0
    %1730 = vmatmul.mubr.f32.gmra.mrb[0].mxu0 %v1635
    %v1731 = vpop.f32.mrb[0].mxu0
    %v1732 = vadd.f32 %v1616, %v1731
    %v1733 = vpop.f32.mrb[0].mxu0
    %1734 = vmatprep.mubr.f32.mxu0 0.0
    %1735 = vmatmul.mubr.f32.gmra.mrb[0].mxu0 %v1638
    %v1736 = vpop.f32.mrb[0].mxu0
    %v1737 = vadd.f32 %v1616, %v1736
    %v1738 = vpop.f32.mrb[0].mxu0
    %1739 = vdwg.mxu0
    %v1747 = vcombine.high %v1707, %v1707
    %v1749 = vunpack.c.l.s4 1966171168
    %v1750 = vunpack.c.0.s8 %v1749
    %v1751 = vlaneseq
    %v1752 = vshrl.u32 %v1751, 7
    %v1753 = vsub.s32 %v1750, %v1752
    %v1754 = vrot.slane %v1707, %v1753
    %v1756 = vunpack.c.l.s4 1966171168
    %v1757 = vunpack.c.0.s8 %v1756
    %v1758 = vlaneseq
    %v1759 = vshrl.u32 %v1758, 7
    %v1760 = vsub.s32 %v1757, %v1759
    %v1761 = vrot.slane %v1747, %v1760
    %v1762 = vcombine.high %v1754, %v1754
    %v1763 = vcombine.high %v1761, %v1761
    %v1765 = vunpack.c.l.s4 1966171168
    %v1766 = vunpack.c.0.s8 %v1765
    %v1767 = vlaneseq
    %v1768 = vshrl.u32 %v1767, 7
    %v1769 = vsub.s32 %v1766, %v1768
    %v1770 = vrot.slane %v1754, %v1769
    %v1772 = vunpack.c.l.s4 1966171168
    %v1773 = vunpack.c.0.s8 %v1772
    %v1774 = vlaneseq
    %v1775 = vshrl.u32 %v1774, 7
    %v1776 = vsub.s32 %v1773, %v1775
    %v1777 = vrot.slane %v1761, %v1776
    %v1779 = vunpack.c.l.s4 1966171168
    %v1780 = vunpack.c.0.s8 %v1779
    %v1781 = vlaneseq
    %v1782 = vshrl.u32 %v1781, 7
    %v1783 = vsub.s32 %v1780, %v1782
    %v1784 = vrot.slane %v1762, %v1783
    %v1786 = vunpack.c.l.s4 1966171168
    %v1787 = vunpack.c.0.s8 %v1786
    %v1788 = vlaneseq
    %v1789 = vshrl.u32 %v1788, 7
    %v1790 = vsub.s32 %v1787, %v1789
    %v1791 = vrot.slane %v1763, %v1790
    %v1792 = vcombine.high %v1770, %v1770
    %v1793 = vcombine.high %v1777, %v1777
    %v1794 = vcombine.high %v1784, %v1784
    %v1795 = vcombine.high %v1791, %v1791
    %v1796 = vcombine.high %v1712, %v1712
    %v1798 = vunpack.c.l.s4 1966171168
    %v1799 = vunpack.c.0.s8 %v1798
    %v1800 = vlaneseq
    %v1801 = vshrl.u32 %v1800, 7
    %v1802 = vsub.s32 %v1799, %v1801
    %v1803 = vrot.slane %v1712, %v1802
    %v1805 = vunpack.c.l.s4 1966171168
    %v1806 = vunpack.c.0.s8 %v1805
    %v1807 = vlaneseq
    %v1808 = vshrl.u32 %v1807, 7
    %v1809 = vsub.s32 %v1806, %v1808
    %v1810 = vrot.slane %v1796, %v1809
    %v1811 = vcombine.high %v1803, %v1803
    %v1812 = vcombine.high %v1810, %v1810
    %v1814 = vunpack.c.l.s4 1966171168
    %v1815 = vunpack.c.0.s8 %v1814
    %v1816 = vlaneseq
    %v1817 = vshrl.u32 %v1816, 7
    %v1818 = vsub.s32 %v1815, %v1817
    %v1819 = vrot.slane %v1803, %v1818
    %v1821 = vunpack.c.l.s4 1966171168
    %v1822 = vunpack.c.0.s8 %v1821
    %v1823 = vlaneseq
    %v1824 = vshrl.u32 %v1823, 7
    %v1825 = vsub.s32 %v1822, %v1824
    %v1826 = vrot.slane %v1810, %v1825
    %v1828 = vunpack.c.l.s4 1966171168
    %v1829 = vunpack.c.0.s8 %v1828
    %v1830 = vlaneseq
    %v1831 = vshrl.u32 %v1830, 7
    %v1832 = vsub.s32 %v1829, %v1831
    %v1833 = vrot.slane %v1811, %v1832
    %v1835 = vunpack.c.l.s4 1966171168
    %v1836 = vunpack.c.0.s8 %v1835
    %v1837 = vlaneseq
    %v1838 = vshrl.u32 %v1837, 7
    %v1839 = vsub.s32 %v1836, %v1838
    %v1840 = vrot.slane %v1812, %v1839
    %v1841 = vcombine.high %v1819, %v1819
    %v1842 = vcombine.high %v1826, %v1826
    %v1843 = vcombine.high %v1833, %v1833
    %v1844 = vcombine.high %v1840, %v1840
    %v1845 = vcombine.high %v1717, %v1717
    %v1847 = vunpack.c.l.s4 1966171168
    %v1848 = vunpack.c.0.s8 %v1847
    %v1849 = vlaneseq
    %v1850 = vshrl.u32 %v1849, 7
    %v1851 = vsub.s32 %v1848, %v1850
    %v1852 = vrot.slane %v1717, %v1851
    %v1854 = vunpack.c.l.s4 1966171168
    %v1855 = vunpack.c.0.s8 %v1854
    %v1856 = vlaneseq
    %v1857 = vshrl.u32 %v1856, 7
    %v1858 = vsub.s32 %v1855, %v1857
    %v1859 = vrot.slane %v1845, %v1858
    %v1860 = vcombine.high %v1852, %v1852
    %v1861 = vcombine.high %v1859, %v1859
    %v1863 = vunpack.c.l.s4 1966171168
    %v1864 = vunpack.c.0.s8 %v1863
    %v1865 = vlaneseq
    %v1866 = vshrl.u32 %v1865, 7
    %v1867 = vsub.s32 %v1864, %v1866
    %v1868 = vrot.slane %v1852, %v1867
    %v1870 = vunpack.c.l.s4 1966171168
    %v1871 = vunpack.c.0.s8 %v1870
    %v1872 = vlaneseq
    %v1873 = vshrl.u32 %v1872, 7
    %v1874 = vsub.s32 %v1871, %v1873
    %v1875 = vrot.slane %v1859, %v1874
    %v1877 = vunpack.c.l.s4 1966171168
    %v1878 = vunpack.c.0.s8 %v1877
    %v1879 = vlaneseq
    %v1880 = vshrl.u32 %v1879, 7
    %v1881 = vsub.s32 %v1878, %v1880
    %v1882 = vrot.slane %v1860, %v1881
    %v1884 = vunpack.c.l.s4 1966171168
    %v1885 = vunpack.c.0.s8 %v1884
    %v1886 = vlaneseq
    %v1887 = vshrl.u32 %v1886, 7
    %v1888 = vsub.s32 %v1885, %v1887
    %v1889 = vrot.slane %v1861, %v1888
    %v1890 = vcombine.high %v1868, %v1868
    %v1891 = vcombine.high %v1875, %v1875
    %v1892 = vcombine.high %v1882, %v1882
    %v1893 = vcombine.high %v1889, %v1889
    %v1894 = vcombine.high %v1722, %v1722
    %v1896 = vunpack.c.l.s4 1966171168
    %v1897 = vunpack.c.0.s8 %v1896
    %v1898 = vlaneseq
    %v1899 = vshrl.u32 %v1898, 7
    %v1900 = vsub.s32 %v1897, %v1899
    %v1901 = vrot.slane %v1722, %v1900
    %v1903 = vunpack.c.l.s4 1966171168
    %v1904 = vunpack.c.0.s8 %v1903
    %v1905 = vlaneseq
    %v1906 = vshrl.u32 %v1905, 7
    %v1907 = vsub.s32 %v1904, %v1906
    %v1908 = vrot.slane %v1894, %v1907
    %v1909 = vcombine.high %v1901, %v1901
    %v1910 = vcombine.high %v1908, %v1908
    %v1912 = vunpack.c.l.s4 1966171168
    %v1913 = vunpack.c.0.s8 %v1912
    %v1914 = vlaneseq
    %v1915 = vshrl.u32 %v1914, 7
    %v1916 = vsub.s32 %v1913, %v1915
    %v1917 = vrot.slane %v1901, %v1916
    %v1919 = vunpack.c.l.s4 1966171168
    %v1920 = vunpack.c.0.s8 %v1919
    %v1921 = vlaneseq
    %v1922 = vshrl.u32 %v1921, 7
    %v1923 = vsub.s32 %v1920, %v1922
    %v1924 = vrot.slane %v1908, %v1923
    %v1926 = vunpack.c.l.s4 1966171168
    %v1927 = vunpack.c.0.s8 %v1926
    %v1928 = vlaneseq
    %v1929 = vshrl.u32 %v1928, 7
    %v1930 = vsub.s32 %v1927, %v1929
    %v1931 = vrot.slane %v1909, %v1930
    %v1933 = vunpack.c.l.s4 1966171168
    %v1934 = vunpack.c.0.s8 %v1933
    %v1935 = vlaneseq
    %v1936 = vshrl.u32 %v1935, 7
    %v1937 = vsub.s32 %v1934, %v1936
    %v1938 = vrot.slane %v1910, %v1937
    %v1939 = vcombine.high %v1917, %v1917
    %v1940 = vcombine.high %v1924, %v1924
    %v1941 = vcombine.high %v1931, %v1931
    %v1942 = vcombine.high %v1938, %v1938
    %v1943 = vcombine.high %v1727, %v1727
    %v1945 = vunpack.c.l.s4 1966171168
    %v1946 = vunpack.c.0.s8 %v1945
    %v1947 = vlaneseq
    %v1948 = vshrl.u32 %v1947, 7
    %v1949 = vsub.s32 %v1946, %v1948
    %v1950 = vrot.slane %v1727, %v1949
    %v1952 = vunpack.c.l.s4 1966171168
    %v1953 = vunpack.c.0.s8 %v1952
    %v1954 = vlaneseq
    %v1955 = vshrl.u32 %v1954, 7
    %v1956 = vsub.s32 %v1953, %v1955
    %v1957 = vrot.slane %v1943, %v1956
    %v1958 = vcombine.high %v1950, %v1950
    %v1959 = vcombine.high %v1957, %v1957
    %v1961 = vunpack.c.l.s4 1966171168
    %v1962 = vunpack.c.0.s8 %v1961
    %v1963 = vlaneseq
    %v1964 = vshrl.u32 %v1963, 7
    %v1965 = vsub.s32 %v1962, %v1964
    %v1966 = vrot.slane %v1950, %v1965
    %v1968 = vunpack.c.l.s4 1966171168
    %v1969 = vunpack.c.0.s8 %v1968
    %v1970 = vlaneseq
    %v1971 = vshrl.u32 %v1970, 7
    %v1972 = vsub.s32 %v1969, %v1971
    %v1973 = vrot.slane %v1957, %v1972
    %v1975 = vunpack.c.l.s4 1966171168
    %v1976 = vunpack.c.0.s8 %v1975
    %v1977 = vlaneseq
    %v1978 = vshrl.u32 %v1977, 7
    %v1979 = vsub.s32 %v1976, %v1978
    %v1980 = vrot.slane %v1958, %v1979
    %v1982 = vunpack.c.l.s4 1966171168
    %v1983 = vunpack.c.0.s8 %v1982
    %v1984 = vlaneseq
    %v1985 = vshrl.u32 %v1984, 7
    %v1986 = vsub.s32 %v1983, %v1985
    %v1987 = vrot.slane %v1959, %v1986
    %v1988 = vcombine.high %v1966, %v1966
    %v1989 = vcombine.high %v1973, %v1973
    %v1990 = vcombine.high %v1980, %v1980
    %v1991 = vcombine.high %v1987, %v1987
    %v1992 = vcombine.high %v1732, %v1732
    %v1994 = vunpack.c.l.s4 1966171168
    %v1995 = vunpack.c.0.s8 %v1994
    %v1996 = vlaneseq
    %v1997 = vshrl.u32 %v1996, 7
    %v1998 = vsub.s32 %v1995, %v1997
    %v1999 = vrot.slane %v1732, %v1998
    %v2001 = vunpack.c.l.s4 1966171168
    %v2002 = vunpack.c.0.s8 %v2001
    %v2003 = vlaneseq
    %v2004 = vshrl.u32 %v2003, 7
    %v2005 = vsub.s32 %v2002, %v2004
    %v2006 = vrot.slane %v1992, %v2005
    %v2007 = vcombine.high %v1999, %v1999
    %v2008 = vcombine.high %v2006, %v2006
    %v2010 = vunpack.c.l.s4 1966171168
    %v2011 = vunpack.c.0.s8 %v2010
    %v2012 = vlaneseq
    %v2013 = vshrl.u32 %v2012, 7
    %v2014 = vsub.s32 %v2011, %v2013
    %v2015 = vrot.slane %v1999, %v2014
    %v2017 = vunpack.c.l.s4 1966171168
    %v2018 = vunpack.c.0.s8 %v2017
    %v2019 = vlaneseq
    %v2020 = vshrl.u32 %v2019, 7
    %v2021 = vsub.s32 %v2018, %v2020
    %v2022 = vrot.slane %v2006, %v2021
    %v2024 = vunpack.c.l.s4 1966171168
    %v2025 = vunpack.c.0.s8 %v2024
    %v2026 = vlaneseq
    %v2027 = vshrl.u32 %v2026, 7
    %v2028 = vsub.s32 %v2025, %v2027
    %v2029 = vrot.slane %v2007, %v2028
    %v2031 = vunpack.c.l.s4 1966171168
    %v2032 = vunpack.c.0.s8 %v2031
    %v2033 = vlaneseq
    %v2034 = vshrl.u32 %v2033, 7
    %v2035 = vsub.s32 %v2032, %v2034
    %v2036 = vrot.slane %v2008, %v2035
    %v2037 = vcombine.high %v2015, %v2015
    %v2038 = vcombine.high %v2022, %v2022
    %v2039 = vcombine.high %v2029, %v2029
    %v2040 = vcombine.high %v2036, %v2036
    %v2041 = vcombine.high %v1737, %v1737
    %v2043 = vunpack.c.l.s4 1966171168
    %v2044 = vunpack.c.0.s8 %v2043
    %v2045 = vlaneseq
    %v2046 = vshrl.u32 %v2045, 7
    %v2047 = vsub.s32 %v2044, %v2046
    %v2048 = vrot.slane %v1737, %v2047
    %v2050 = vunpack.c.l.s4 1966171168
    %v2051 = vunpack.c.0.s8 %v2050
    %v2052 = vlaneseq
    %v2053 = vshrl.u32 %v2052, 7
    %v2054 = vsub.s32 %v2051, %v2053
    %v2055 = vrot.slane %v2041, %v2054
    %v2056 = vcombine.high %v2048, %v2048
    %v2057 = vcombine.high %v2055, %v2055
    %v2059 = vunpack.c.l.s4 1966171168
    %v2060 = vunpack.c.0.s8 %v2059
    %v2061 = vlaneseq
    %v2062 = vshrl.u32 %v2061, 7
    %v2063 = vsub.s32 %v2060, %v2062
    %v2064 = vrot.slane %v2048, %v2063
    %v2066 = vunpack.c.l.s4 1966171168
    %v2067 = vunpack.c.0.s8 %v2066
    %v2068 = vlaneseq
    %v2069 = vshrl.u32 %v2068, 7
    %v2070 = vsub.s32 %v2067, %v2069
    %v2071 = vrot.slane %v2055, %v2070
    %v2073 = vunpack.c.l.s4 1966171168
    %v2074 = vunpack.c.0.s8 %v2073
    %v2075 = vlaneseq
    %v2076 = vshrl.u32 %v2075, 7
    %v2077 = vsub.s32 %v2074, %v2076
    %v2078 = vrot.slane %v2056, %v2077
    %v2080 = vunpack.c.l.s4 1966171168
    %v2081 = vunpack.c.0.s8 %v2080
    %v2082 = vlaneseq
    %v2083 = vshrl.u32 %v2082, 7
    %v2084 = vsub.s32 %v2081, %v2083
    %v2085 = vrot.slane %v2057, %v2084
    %v2086 = vcombine.high %v2064, %v2064
    %v2087 = vcombine.high %v2071, %v2071
    %v2088 = vcombine.high %v2078, %v2078
    %v2089 = vcombine.high %v2085, %v2085
    %v2090 = vcombine.low %v1770, %v1784
    %v2091 = vcombine.low %v1792, %v1794
    %v2092 = vcombine.low %v1777, %v1791
    %v2094 = vunpack.c.l.s4 1966171168
    %v2095 = vunpack.c.0.s8 %v2094
    %v2096 = vlaneseq
    %v2097 = vshrl.u32 %v2096, 7
    %v2098 = vsub.s32 %v2095, %v2097
    %v2099 = vrot.slane %v2090, %v2098
    %v2101 = vunpack.c.l.s4 1966171168
    %v2102 = vunpack.c.0.s8 %v2101
    %v2103 = vlaneseq
    %v2104 = vshrl.u32 %v2103, 7
    %v2105 = vsub.s32 %v2102, %v2104
    %v2106 = vrot.slane %v2091, %v2105
    %v2108 = vunpack.c.l.s4 1966171168
    %v2109 = vunpack.c.0.s8 %v2108
    %v2110 = vlaneseq
    %v2111 = vshrl.u32 %v2110, 7
    %v2112 = vsub.s32 %v2109, %v2111
    %v2113 = vrot.slane %v2092, %v2112
    %v2115 = vunpack.c.l.s4 1966171168
    %v2116 = vunpack.c.0.s8 %v2115
    %v2117 = vlaneseq
    %v2118 = vshrl.u32 %v2117, 7
    %v2119 = vsub.s32 %v2116, %v2118
    %v2120 = vrot.slane %v1793, %v2119
    %v2121 = vcombine.low %v2099, %v2106
    %v2122 = vcombine.low %v2113, %v2120
    %v2124 = vunpack.c.l.s4 1966171168
    %v2125 = vunpack.c.0.s8 %v2124
    %v2126 = vlaneseq
    %v2127 = vshrl.u32 %v2126, 7
    %v2128 = vsub.s32 %v2125, %v2127
    %v2129 = vrot.slane %v2121, %v2128
    %v2131 = vunpack.c.l.s4 1966171168
    %v2132 = vunpack.c.0.s8 %v2131
    %v2133 = vlaneseq
    %v2134 = vshrl.u32 %v2133, 7
    %v2135 = vsub.s32 %v2132, %v2134
    %v2136 = vrot.slane %v2122, %v2135
    %v2137 = vcombine.low %v2129, %v2136
    %v2138 = vcombine.low %v1795, %v1819
    %v2139 = vcombine.low %v1833, %v1841
    %v2140 = vcombine.low %v1843, %v1826
    %v2142 = vunpack.c.l.s4 1966171168
    %v2143 = vunpack.c.0.s8 %v2142
    %v2144 = vlaneseq
    %v2145 = vshrl.u32 %v2144, 7
    %v2146 = vsub.s32 %v2143, %v2145
    %v2147 = vrot.slane %v2138, %v2146
    %v2149 = vunpack.c.l.s4 1966171168
    %v2150 = vunpack.c.0.s8 %v2149
    %v2151 = vlaneseq
    %v2152 = vshrl.u32 %v2151, 7
    %v2153 = vsub.s32 %v2150, %v2152
    %v2154 = vrot.slane %v2139, %v2153
    %v2156 = vunpack.c.l.s4 1966171168
    %v2157 = vunpack.c.0.s8 %v2156
    %v2158 = vlaneseq
    %v2159 = vshrl.u32 %v2158, 7
    %v2160 = vsub.s32 %v2157, %v2159
    %v2161 = vrot.slane %v2140, %v2160
    %v2163 = vunpack.c.l.s4 1966171168
    %v2164 = vunpack.c.0.s8 %v2163
    %v2165 = vlaneseq
    %v2166 = vshrl.u32 %v2165, 7
    %v2167 = vsub.s32 %v2164, %v2166
    %v2168 = vrot.slane %v1840, %v2167
    %v2169 = vcombine.low %v2147, %v2154
    %v2170 = vcombine.low %v2161, %v2168
    %v2172 = vunpack.c.l.s4 1966171168
    %v2173 = vunpack.c.0.s8 %v2172
    %v2174 = vlaneseq
    %v2175 = vshrl.u32 %v2174, 7
    %v2176 = vsub.s32 %v2173, %v2175
    %v2177 = vrot.slane %v2169, %v2176
    %v2179 = vunpack.c.l.s4 1966171168
    %v2180 = vunpack.c.0.s8 %v2179
    %v2181 = vlaneseq
    %v2182 = vshrl.u32 %v2181, 7
    %v2183 = vsub.s32 %v2180, %v2182
    %v2184 = vrot.slane %v2170, %v2183
    %v2185 = vcombine.low %v2177, %v2184
    %v2186 = vcombine.low %v1842, %v1844
    %v2187 = vcombine.low %v1868, %v1882
    %v2188 = vcombine.low %v1890, %v1892
    %v2190 = vunpack.c.l.s4 1966171168
    %v2191 = vunpack.c.0.s8 %v2190
    %v2192 = vlaneseq
    %v2193 = vshrl.u32 %v2192, 7
    %v2194 = vsub.s32 %v2191, %v2193
    %v2195 = vrot.slane %v2186, %v2194
    %v2197 = vunpack.c.l.s4 1966171168
    %v2198 = vunpack.c.0.s8 %v2197
    %v2199 = vlaneseq
    %v2200 = vshrl.u32 %v2199, 7
    %v2201 = vsub.s32 %v2198, %v2200
    %v2202 = vrot.slane %v2187, %v2201
    %v2204 = vunpack.c.l.s4 1966171168
    %v2205 = vunpack.c.0.s8 %v2204
    %v2206 = vlaneseq
    %v2207 = vshrl.u32 %v2206, 7
    %v2208 = vsub.s32 %v2205, %v2207
    %v2209 = vrot.slane %v2188, %v2208
    %v2211 = vunpack.c.l.s4 1966171168
    %v2212 = vunpack.c.0.s8 %v2211
    %v2213 = vlaneseq
    %v2214 = vshrl.u32 %v2213, 7
    %v2215 = vsub.s32 %v2212, %v2214
    %v2216 = vrot.slane %v1875, %v2215
    %v2217 = vcombine.low %v2195, %v2202
    %v2218 = vcombine.low %v2209, %v2216
    %v2220 = vunpack.c.l.s4 1966171168
    %v2221 = vunpack.c.0.s8 %v2220
    %v2222 = vlaneseq
    %v2223 = vshrl.u32 %v2222, 7
    %v2224 = vsub.s32 %v2221, %v2223
    %v2225 = vrot.slane %v2217, %v2224
    %v2227 = vunpack.c.l.s4 1966171168
    %v2228 = vunpack.c.0.s8 %v2227
    %v2229 = vlaneseq
    %v2230 = vshrl.u32 %v2229, 7
    %v2231 = vsub.s32 %v2228, %v2230
    %v2232 = vrot.slane %v2218, %v2231
    %v2233 = vcombine.low %v2225, %v2232
    %v2234 = vcombine.low %v1889, %v1891
    %v2235 = vcombine.low %v1893, %v1917
    %v2236 = vcombine.low %v1931, %v1939
    %v2238 = vunpack.c.l.s4 1966171168
    %v2239 = vunpack.c.0.s8 %v2238
    %v2240 = vlaneseq
    %v2241 = vshrl.u32 %v2240, 7
    %v2242 = vsub.s32 %v2239, %v2241
    %v2243 = vrot.slane %v2234, %v2242
    %v2245 = vunpack.c.l.s4 1966171168
    %v2246 = vunpack.c.0.s8 %v2245
    %v2247 = vlaneseq
    %v2248 = vshrl.u32 %v2247, 7
    %v2249 = vsub.s32 %v2246, %v2248
    %v2250 = vrot.slane %v2235, %v2249
    %v2252 = vunpack.c.l.s4 1966171168
    %v2253 = vunpack.c.0.s8 %v2252
    %v2254 = vlaneseq
    %v2255 = vshrl.u32 %v2254, 7
    %v2256 = vsub.s32 %v2253, %v2255
    %v2257 = vrot.slane %v2236, %v2256
    %v2259 = vunpack.c.l.s4 1966171168
    %v2260 = vunpack.c.0.s8 %v2259
    %v2261 = vlaneseq
    %v2262 = vshrl.u32 %v2261, 7
    %v2263 = vsub.s32 %v2260, %v2262
    %v2264 = vrot.slane %v1941, %v2263
    %v2265 = vcombine.low %v2243, %v2250
    %v2266 = vcombine.low %v2257, %v2264
    %v2268 = vunpack.c.l.s4 1966171168
    %v2269 = vunpack.c.0.s8 %v2268
    %v2270 = vlaneseq
    %v2271 = vshrl.u32 %v2270, 7
    %v2272 = vsub.s32 %v2269, %v2271
    %v2273 = vrot.slane %v2265, %v2272
    %v2275 = vunpack.c.l.s4 1966171168
    %v2276 = vunpack.c.0.s8 %v2275
    %v2277 = vlaneseq
    %v2278 = vshrl.u32 %v2277, 7
    %v2279 = vsub.s32 %v2276, %v2278
    %v2280 = vrot.slane %v2266, %v2279
    %v2281 = vcombine.low %v2273, %v2280
    %v2282 = vcombine.low %v1924, %v1938
    %v2283 = vcombine.low %v1940, %v1942
    %v2284 = vcombine.low %v1966, %v1980
    %v2286 = vunpack.c.l.s4 1966171168
    %v2287 = vunpack.c.0.s8 %v2286
    %v2288 = vlaneseq
    %v2289 = vshrl.u32 %v2288, 7
    %v2290 = vsub.s32 %v2287, %v2289
    %v2291 = vrot.slane %v2282, %v2290
    %v2293 = vunpack.c.l.s4 1966171168
    %v2294 = vunpack.c.0.s8 %v2293
    %v2295 = vlaneseq
    %v2296 = vshrl.u32 %v2295, 7
    %v2297 = vsub.s32 %v2294, %v2296
    %v2298 = vrot.slane %v2283, %v2297
    %v2300 = vunpack.c.l.s4 1966171168
    %v2301 = vunpack.c.0.s8 %v2300
    %v2302 = vlaneseq
    %v2303 = vshrl.u32 %v2302, 7
    %v2304 = vsub.s32 %v2301, %v2303
    %v2305 = vrot.slane %v2284, %v2304
    %v2307 = vunpack.c.l.s4 1966171168
    %v2308 = vunpack.c.0.s8 %v2307
    %v2309 = vlaneseq
    %v2310 = vshrl.u32 %v2309, 7
    %v2311 = vsub.s32 %v2308, %v2310
    %v2312 = vrot.slane %v1988, %v2311
    %v2313 = vcombine.low %v2291, %v2298
    %v2314 = vcombine.low %v2305, %v2312
    %v2316 = vunpack.c.l.s4 1966171168
    %v2317 = vunpack.c.0.s8 %v2316
    %v2318 = vlaneseq
    %v2319 = vshrl.u32 %v2318, 7
    %v2320 = vsub.s32 %v2317, %v2319
    %v2321 = vrot.slane %v2313, %v2320
    %v2323 = vunpack.c.l.s4 1966171168
    %v2324 = vunpack.c.0.s8 %v2323
    %v2325 = vlaneseq
    %v2326 = vshrl.u32 %v2325, 7
    %v2327 = vsub.s32 %v2324, %v2326
    %v2328 = vrot.slane %v2314, %v2327
    %v2329 = vcombine.low %v2321, %v2328
    %v2330 = vcombine.low %v1990, %v1973
    %v2331 = vcombine.low %v1987, %v1989
    %v2332 = vcombine.low %v1991, %v2015
    %v2334 = vunpack.c.l.s4 1966171168
    %v2335 = vunpack.c.0.s8 %v2334
    %v2336 = vlaneseq
    %v2337 = vshrl.u32 %v2336, 7
    %v2338 = vsub.s32 %v2335, %v2337
    %v2339 = vrot.slane %v2330, %v2338
    %v2341 = vunpack.c.l.s4 1966171168
    %v2342 = vunpack.c.0.s8 %v2341
    %v2343 = vlaneseq
    %v2344 = vshrl.u32 %v2343, 7
    %v2345 = vsub.s32 %v2342, %v2344
    %v2346 = vrot.slane %v2331, %v2345
    %v2348 = vunpack.c.l.s4 1966171168
    %v2349 = vunpack.c.0.s8 %v2348
    %v2350 = vlaneseq
    %v2351 = vshrl.u32 %v2350, 7
    %v2352 = vsub.s32 %v2349, %v2351
    %v2353 = vrot.slane %v2332, %v2352
    %v2355 = vunpack.c.l.s4 1966171168
    %v2356 = vunpack.c.0.s8 %v2355
    %v2357 = vlaneseq
    %v2358 = vshrl.u32 %v2357, 7
    %v2359 = vsub.s32 %v2356, %v2358
    %v2360 = vrot.slane %v2029, %v2359
    %v2361 = vcombine.low %v2339, %v2346
    %v2362 = vcombine.low %v2353, %v2360
    %v2364 = vunpack.c.l.s4 1966171168
    %v2365 = vunpack.c.0.s8 %v2364
    %v2366 = vlaneseq
    %v2367 = vshrl.u32 %v2366, 7
    %v2368 = vsub.s32 %v2365, %v2367
    %v2369 = vrot.slane %v2361, %v2368
    %v2371 = vunpack.c.l.s4 1966171168
    %v2372 = vunpack.c.0.s8 %v2371
    %v2373 = vlaneseq
    %v2374 = vshrl.u32 %v2373, 7
    %v2375 = vsub.s32 %v2372, %v2374
    %v2376 = vrot.slane %v2362, %v2375
    %v2377 = vcombine.low %v2369, %v2376
    %v2378 = vcombine.low %v2037, %v2039
    %v2379 = vcombine.low %v2022, %v2036
    %v2380 = vcombine.low %v2038, %v2040
    %v2382 = vunpack.c.l.s4 1966171168
    %v2383 = vunpack.c.0.s8 %v2382
    %v2384 = vlaneseq
    %v2385 = vshrl.u32 %v2384, 7
    %v2386 = vsub.s32 %v2383, %v2385
    %v2387 = vrot.slane %v2378, %v2386
    %v2389 = vunpack.c.l.s4 1966171168
    %v2390 = vunpack.c.0.s8 %v2389
    %v2391 = vlaneseq
    %v2392 = vshrl.u32 %v2391, 7
    %v2393 = vsub.s32 %v2390, %v2392
    %v2394 = vrot.slane %v2379, %v2393
    %v2396 = vunpack.c.l.s4 1966171168
    %v2397 = vunpack.c.0.s8 %v2396
    %v2398 = vlaneseq
    %v2399 = vshrl.u32 %v2398, 7
    %v2400 = vsub.s32 %v2397, %v2399
    %v2401 = vrot.slane %v2380, %v2400
    %v2403 = vunpack.c.l.s4 1966171168
    %v2404 = vunpack.c.0.s8 %v2403
    %v2405 = vlaneseq
    %v2406 = vshrl.u32 %v2405, 7
    %v2407 = vsub.s32 %v2404, %v2406
    %v2408 = vrot.slane %v2064, %v2407
    %v2409 = vcombine.low %v2387, %v2394
    %v2410 = vcombine.low %v2401, %v2408
    %v2412 = vunpack.c.l.s4 1966171168
    %v2413 = vunpack.c.0.s8 %v2412
    %v2414 = vlaneseq
    %v2415 = vshrl.u32 %v2414, 7
    %v2416 = vsub.s32 %v2413, %v2415
    %v2417 = vrot.slane %v2409, %v2416
    %v2419 = vunpack.c.l.s4 1966171168
    %v2420 = vunpack.c.0.s8 %v2419
    %v2421 = vlaneseq
    %v2422 = vshrl.u32 %v2421, 7
    %v2423 = vsub.s32 %v2420, %v2422
    %v2424 = vrot.slane %v2410, %v2423
    %v2425 = vcombine.low %v2417, %v2424
    %v2426 = vcombine.low %v2078, %v2086
    %v2427 = vcombine.low %v2088, %v2071
    %v2428 = vcombine.low %v2085, %v2087
    %v2430 = vunpack.c.l.s4 1966171168
    %v2431 = vunpack.c.0.s8 %v2430
    %v2432 = vlaneseq
    %v2433 = vshrl.u32 %v2432, 7
    %v2434 = vsub.s32 %v2431, %v2433
    %v2435 = vrot.slane %v2426, %v2434
    %v2437 = vunpack.c.l.s4 1966171168
    %v2438 = vunpack.c.0.s8 %v2437
    %v2439 = vlaneseq
    %v2440 = vshrl.u32 %v2439, 7
    %v2441 = vsub.s32 %v2438, %v2440
    %v2442 = vrot.slane %v2427, %v2441
    %v2444 = vunpack.c.l.s4 1966171168
    %v2445 = vunpack.c.0.s8 %v2444
    %v2446 = vlaneseq
    %v2447 = vshrl.u32 %v2446, 7
    %v2448 = vsub.s32 %v2445, %v2447
    %v2449 = vrot.slane %v2428, %v2448
    %v2451 = vunpack.c.l.s4 1966171168
    %v2452 = vunpack.c.0.s8 %v2451
    %v2453 = vlaneseq
    %v2454 = vshrl.u32 %v2453, 7
    %v2455 = vsub.s32 %v2452, %v2454
    %v2456 = vrot.slane %v2089, %v2455
    %v2457 = vcombine.low %v2435, %v2442
    %v2458 = vcombine.low %v2449, %v2456
    %v2460 = vunpack.c.l.s4 1966171168
    %v2461 = vunpack.c.0.s8 %v2460
    %v2462 = vlaneseq
    %v2463 = vshrl.u32 %v2462, 7
    %v2464 = vsub.s32 %v2461, %v2463
    %v2465 = vrot.slane %v2457, %v2464
    %v2467 = vunpack.c.l.s4 1966171168
    %v2468 = vunpack.c.0.s8 %v2467
    %v2469 = vlaneseq
    %v2470 = vshrl.u32 %v2469, 7
    %v2471 = vsub.s32 %v2468, %v2470
    %v2472 = vrot.slane %v2458, %v2471
    %v2473 = vcombine.low %v2465, %v2472
    %vm2482 = vcmask 260096
    %v2483 = vsel %vm2482, %v2137, -inf
    %v2484 = vrot.slane %v2483, 4
    %v2485 = vmax.f32 %v2483, %v2484
    %v2486 = vrot.slane %v2485, 2
    %v2487 = vmax.f32 %v2485, %v2486
    %v2488 = vrot.slane %v2487, 1
    %v2489 = vmax.f32 %v2487, %v2488
    %v2490 = vsel %vm2482, %v2185, -inf
    %v2491 = vrot.slane %v2490, 4
    %v2492 = vmax.f32 %v2490, %v2491
    %v2493 = vrot.slane %v2492, 2
    %v2494 = vmax.f32 %v2492, %v2493
    %v2495 = vrot.slane %v2494, 1
    %v2496 = vmax.f32 %v2494, %v2495
    %v2497 = vsel %vm2482, %v2233, -inf
    %v2498 = vrot.slane %v2497, 4
    %v2499 = vmax.f32 %v2497, %v2498
    %v2500 = vrot.slane %v2499, 2
    %v2501 = vmax.f32 %v2499, %v2500
    %v2502 = vrot.slane %v2501, 1
    %v2503 = vmax.f32 %v2501, %v2502
    %v2504 = vsel %vm2482, %v2281, -inf
    %v2505 = vrot.slane %v2504, 4
    %v2506 = vmax.f32 %v2504, %v2505
    %v2507 = vrot.slane %v2506, 2
    %v2508 = vmax.f32 %v2506, %v2507
    %v2509 = vrot.slane %v2508, 1
    %v2510 = vmax.f32 %v2508, %v2509
    %v2511 = vsel %vm2482, %v2329, -inf
    %v2512 = vrot.slane %v2511, 4
    %v2513 = vmax.f32 %v2511, %v2512
    %v2514 = vrot.slane %v2513, 2
    %v2515 = vmax.f32 %v2513, %v2514
    %v2516 = vrot.slane %v2515, 1
    %v2517 = vmax.f32 %v2515, %v2516
    %v2518 = vsel %vm2482, %v2377, -inf
    %v2519 = vrot.slane %v2518, 4
    %v2520 = vmax.f32 %v2518, %v2519
    %v2521 = vrot.slane %v2520, 2
    %v2522 = vmax.f32 %v2520, %v2521
    %v2523 = vrot.slane %v2522, 1
    %v2524 = vmax.f32 %v2522, %v2523
    %v2525 = vsel %vm2482, %v2425, -inf
    %v2526 = vrot.slane %v2525, 4
    %v2527 = vmax.f32 %v2525, %v2526
    %v2528 = vrot.slane %v2527, 2
    %v2529 = vmax.f32 %v2527, %v2528
    %v2530 = vrot.slane %v2529, 1
    %v2531 = vmax.f32 %v2529, %v2530
    %v2532 = vsel %vm2482, %v2473, -inf
    %v2533 = vrot.slane %v2532, 4
    %v2534 = vmax.f32 %v2532, %v2533
    %v2535 = vrot.slane %v2534, 2
    %v2536 = vmax.f32 %v2534, %v2535
    %v2537 = vrot.slane %v2536, 1
    %v2538 = vmax.f32 %v2536, %v2537
    %v2539 = vld [vmem:[%s0] sm:$0xff]
    %v2540 = vld [vmem:[%s4] sm:$0xff]
    %v2541 = vld [vmem:[%s4 + $0x8] sm:$0xff]
    %v2542 = vld [vmem:[%s4 + $0x10] sm:$0xff]
    %v2543 = vld [vmem:[%s4 + $0x18] sm:$0xff]
    %v2544 = vld [vmem:[%s4 + $0x20] sm:$0xff]
    %v2545 = vld [vmem:[%s4 + $0x28] sm:$0xff]
    %v2546 = vld [vmem:[%s4 + $0x30] sm:$0xff]
    %v2547 = vld [vmem:[%s4 + $0x38] sm:$0xff]
    %v2548 = vld [vmem:[%s4 + $0x40] sm:$0xff]
    %v2549 = vld [vmem:[%s4 + $0x48] sm:$0xff]
    %v2550 = vld [vmem:[%s4 + $0x50] sm:$0xff]
    %v2551 = vld [vmem:[%s4 + $0x58] sm:$0xff]
    %v2552 = vld [vmem:[%s4 + $0x60] sm:$0xff]
    %v2553 = vld [vmem:[%s4 + $0x68] sm:$0xff]
    %v2554 = vld [vmem:[%s4 + $0x70] sm:$0xff]
    %v2555 = vld [vmem:[%s4 + $0x78] sm:$0xff]
    %v2556 = vld [vmem:[%s4 + $0x80] sm:$0xff]
    %v2557 = vld [vmem:[%s4 + $0x88] sm:$0xff]
    %v2558 = vld [vmem:[%s4 + $0x90] sm:$0xff]
    %v2559 = vld [vmem:[%s4 + $0x98] sm:$0xff]
    %v2560 = vld [vmem:[%s4 + $0xa0] sm:$0xff]
    %v2561 = vld [vmem:[%s4 + $0xa8] sm:$0xff]
    %v2562 = vld [vmem:[%s4 + $0xb0] sm:$0xff]
    %v2563 = vld [vmem:[%s4 + $0xb8] sm:$0xff]
    %v2564 = vld [vmem:[%s4 + $0xc0] sm:$0xff]
    %v2565 = vld [vmem:[%s4 + $0xc8] sm:$0xff]
    %v2566 = vld [vmem:[%s4 + $0xd0] sm:$0xff]
    %v2567 = vld [vmem:[%s4 + $0xd8] sm:$0xff]
    %v2568 = vld [vmem:[%s4 + $0xe0] sm:$0xff]
    %v2569 = vld [vmem:[%s4 + $0xe8] sm:$0xff]
    %v2570 = vld [vmem:[%s4 + $0xf0] sm:$0xff]
    %v2571 = vld [vmem:[%s4 + $0xf8] sm:$0xff]
    %v2572 = vld [vmem:[%s4 + $0x100] sm:$0xff]
    %v2573 = vld [vmem:[%s4 + $0x108] sm:$0xff]
    %v2574 = vld [vmem:[%s4 + $0x110] sm:$0xff]
    %v2575 = vld [vmem:[%s4 + $0x118] sm:$0xff]
    %v2576 = vld [vmem:[%s4 + $0x120] sm:$0xff]
    %v2577 = vld [vmem:[%s4 + $0x128] sm:$0xff]
    %v2578 = vld [vmem:[%s4 + $0x130] sm:$0xff]
    %v2579 = vld [vmem:[%s4 + $0x138] sm:$0xff]
    %v2580 = vld [vmem:[%s4 + $0x140] sm:$0xff]
    %v2581 = vld [vmem:[%s4 + $0x148] sm:$0xff]
    %v2582 = vld [vmem:[%s4 + $0x150] sm:$0xff]
    %v2583 = vld [vmem:[%s4 + $0x158] sm:$0xff]
    %v2584 = vld [vmem:[%s4 + $0x160] sm:$0xff]
    %v2585 = vld [vmem:[%s4 + $0x168] sm:$0xff]
    %v2586 = vld [vmem:[%s4 + $0x170] sm:$0xff]
    %v2587 = vld [vmem:[%s4 + $0x178] sm:$0xff]
    %v2588 = vld [vmem:[%s4 + $0x180] sm:$0xff]
    %v2589 = vld [vmem:[%s4 + $0x188] sm:$0xff]
    %v2590 = vld [vmem:[%s4 + $0x190] sm:$0xff]
    %v2591 = vld [vmem:[%s4 + $0x198] sm:$0xff]
    %v2592 = vld [vmem:[%s4 + $0x1a0] sm:$0xff]
    %v2593 = vld [vmem:[%s4 + $0x1a8] sm:$0xff]
    %v2594 = vld [vmem:[%s4 + $0x1b0] sm:$0xff]
    %v2595 = vld [vmem:[%s4 + $0x1b8] sm:$0xff]
    %v2596 = vld [vmem:[%s4 + $0x1c0] sm:$0xff]
    %v2597 = vld [vmem:[%s4 + $0x1c8] sm:$0xff]
    %v2598 = vld [vmem:[%s4 + $0x1d0] sm:$0xff]
    %v2599 = vld [vmem:[%s4 + $0x1d8] sm:$0xff]
    %v2600 = vld [vmem:[%s4 + $0x1e0] sm:$0xff]
    %v2601 = vld [vmem:[%s4 + $0x1e8] sm:$0xff]
    %v2602 = vld [vmem:[%s4 + $0x1f0] sm:$0xff]
    %v2603 = vld [vmem:[%s4 + $0x1f8] sm:$0xff]
    %v2604 = vld [vmem:[%s4 + $0x200] sm:$0xff]
    %v2605 = vld [vmem:[%s4 + $0x208] sm:$0xff]
    %v2606 = vld [vmem:[%s4 + $0x210] sm:$0xff]
    %v2607 = vld [vmem:[%s4 + $0x218] sm:$0xff]
    %v2608 = vld [vmem:[%s4 + $0x220] sm:$0xff]
    %v2609 = vld [vmem:[%s4 + $0x228] sm:$0xff]
    %v2610 = vld [vmem:[%s4 + $0x230] sm:$0xff]
    %v2611 = vld [vmem:[%s4 + $0x238] sm:$0xff]
    %v2612 = vld [vmem:[%s4 + $0x240] sm:$0xff]
    %v2613 = vld [vmem:[%s4 + $0x248] sm:$0xff]
    %v2614 = vld [vmem:[%s4 + $0x250] sm:$0xff]
    %v2615 = vld [vmem:[%s4 + $0x258] sm:$0xff]
    %v2616 = vld [vmem:[%s4 + $0x260] sm:$0xff]
    %v2617 = vld [vmem:[%s4 + $0x268] sm:$0xff]
    %v2618 = vld [vmem:[%s4 + $0x270] sm:$0xff]
    %v2619 = vld [vmem:[%s4 + $0x278] sm:$0xff]
    %v2620 = vld [vmem:[%s4 + $0x280] sm:$0xff]
    %v2621 = vld [vmem:[%s4 + $0x288] sm:$0xff]
    %v2622 = vld [vmem:[%s4 + $0x290] sm:$0xff]
    %v2623 = vld [vmem:[%s4 + $0x298] sm:$0xff]
    %v2624 = vld [vmem:[%s4 + $0x2a0] sm:$0xff]
    %v2625 = vld [vmem:[%s4 + $0x2a8] sm:$0xff]
    %v2626 = vld [vmem:[%s4 + $0x2b0] sm:$0xff]
    %v2627 = vld [vmem:[%s4 + $0x2b8] sm:$0xff]
    %v2628 = vld [vmem:[%s4 + $0x2c0] sm:$0xff]
    %v2629 = vld [vmem:[%s4 + $0x2c8] sm:$0xff]
    %v2630 = vld [vmem:[%s4 + $0x2d0] sm:$0xff]
    %v2631 = vld [vmem:[%s4 + $0x2d8] sm:$0xff]
    %v2632 = vld [vmem:[%s4 + $0x2e0] sm:$0xff]
    %v2633 = vld [vmem:[%s4 + $0x2e8] sm:$0xff]
    %v2634 = vld [vmem:[%s4 + $0x2f0] sm:$0xff]
    %v2635 = vld [vmem:[%s4 + $0x2f8] sm:$0xff]
    %v2636 = vld [vmem:[%s4 + $0x300] sm:$0xff]
    %v2637 = vld [vmem:[%s4 + $0x308] sm:$0xff]
    %v2638 = vld [vmem:[%s4 + $0x310] sm:$0xff]
    %v2639 = vld [vmem:[%s4 + $0x318] sm:$0xff]
    %v2640 = vld [vmem:[%s4 + $0x320] sm:$0xff]
    %v2641 = vld [vmem:[%s4 + $0x328] sm:$0xff]
    %v2642 = vld [vmem:[%s4 + $0x330] sm:$0xff]
    %v2643 = vld [vmem:[%s4 + $0x338] sm:$0xff]
    %v2644 = vld [vmem:[%s4 + $0x340] sm:$0xff]
    %v2645 = vld [vmem:[%s4 + $0x348] sm:$0xff]
    %v2646 = vld [vmem:[%s4 + $0x350] sm:$0xff]
    %v2647 = vld [vmem:[%s4 + $0x358] sm:$0xff]
    %v2648 = vld [vmem:[%s4 + $0x360] sm:$0xff]
    %v2649 = vld [vmem:[%s4 + $0x368] sm:$0xff]
    %v2650 = vld [vmem:[%s4 + $0x370] sm:$0xff]
    %v2651 = vld [vmem:[%s4 + $0x378] sm:$0xff]
    %v2652 = vld [vmem:[%s4 + $0x380] sm:$0xff]
    %v2653 = vld [vmem:[%s4 + $0x388] sm:$0xff]
    %v2654 = vld [vmem:[%s4 + $0x390] sm:$0xff]
    %v2655 = vld [vmem:[%s4 + $0x398] sm:$0xff]
    %v2656 = vld [vmem:[%s4 + $0x3a0] sm:$0xff]
    %v2657 = vld [vmem:[%s4 + $0x3a8] sm:$0xff]
    %v2658 = vld [vmem:[%s4 + $0x3b0] sm:$0xff]
    %v2659 = vld [vmem:[%s4 + $0x3b8] sm:$0xff]
    %v2660 = vld [vmem:[%s4 + $0x3c0] sm:$0xff]
    %v2661 = vld [vmem:[%s4 + $0x3c8] sm:$0xff]
    %v2662 = vld [vmem:[%s4 + $0x3d0] sm:$0xff]
    %v2663 = vld [vmem:[%s4 + $0x3d8] sm:$0xff]
    %v2664 = vld [vmem:[%s4 + $0x3e0] sm:$0xff]
    %v2665 = vld [vmem:[%s4 + $0x3e8] sm:$0xff]
    %v2666 = vld [vmem:[%s4 + $0x3f0] sm:$0xff]
    %v2667 = vld [vmem:[%s4 + $0x3f8] sm:$0xff]
    %v2668 = vld [vmem:[#allocation5] sm:$0xff]
    %v2669 = vld [vmem:[#allocation5 + $0x8] sm:$0xff]
    %v2670 = vld [vmem:[#allocation5 + $0x10] sm:$0xff]
    %v2671 = vld [vmem:[#allocation5 + $0x18] sm:$0xff]
    %v2672 = vld [vmem:[#allocation5 + $0x20] sm:$0xff]
    %v2673 = vld [vmem:[#allocation5 + $0x28] sm:$0xff]
    %v2674 = vld [vmem:[#allocation5 + $0x30] sm:$0xff]
    %v2675 = vld [vmem:[#allocation5 + $0x38] sm:$0xff]
    %v2676 = vld [vmem:[#allocation5 + $0x40] sm:$0xff]
    %v2677 = vld [vmem:[#allocation5 + $0x48] sm:$0xff]
    %v2678 = vld [vmem:[#allocation5 + $0x50] sm:$0xff]
    %v2679 = vld [vmem:[#allocation5 + $0x58] sm:$0xff]
    %v2680 = vld [vmem:[#allocation5 + $0x60] sm:$0xff]
    %v2681 = vld [vmem:[#allocation5 + $0x68] sm:$0xff]
    %v2682 = vld [vmem:[#allocation5 + $0x70] sm:$0xff]
    %v2683 = vld [vmem:[#allocation5 + $0x78] sm:$0xff]
    %v2684 = vld [vmem:[#allocation5 + $0x80] sm:$0xff]
    %v2685 = vld [vmem:[#allocation5 + $0x88] sm:$0xff]
    %v2686 = vld [vmem:[#allocation5 + $0x90] sm:$0xff]
    %v2687 = vld [vmem:[#allocation5 + $0x98] sm:$0xff]
    %v2688 = vld [vmem:[#allocation5 + $0xa0] sm:$0xff]
    %v2689 = vld [vmem:[#allocation5 + $0xa8] sm:$0xff]
    %v2690 = vld [vmem:[#allocation5 + $0xb0] sm:$0xff]
    %v2691 = vld [vmem:[#allocation5 + $0xb8] sm:$0xff]
    %v2692 = vld [vmem:[#allocation5 + $0xc0] sm:$0xff]
    %v2693 = vld [vmem:[#allocation5 + $0xc8] sm:$0xff]
    %v2694 = vld [vmem:[#allocation5 + $0xd0] sm:$0xff]
    %v2695 = vld [vmem:[#allocation5 + $0xd8] sm:$0xff]
    %v2696 = vld [vmem:[#allocation5 + $0xe0] sm:$0xff]
    %v2697 = vld [vmem:[#allocation5 + $0xe8] sm:$0xff]
    %v2698 = vld [vmem:[#allocation5 + $0xf0] sm:$0xff]
    %v2699 = vld [vmem:[#allocation5 + $0xf8] sm:$0xff]
    %vm2708 = vcmask 1041409
    %v2709 = vsel %vm2708, %v2496, %v2489
    %vm2710 = vcmask 1042434
    %v2711 = vsel %vm2710, %v2503, %v2709
    %vm2712 = vcmask 1043459
    %v2713 = vsel %vm2712, %v2510, %v2711
    %vm2714 = vcmask 1044484
    %v2715 = vsel %vm2714, %v2517, %v2713
    %vm2716 = vcmask 1045509
    %v2717 = vsel %vm2716, %v2524, %v2715
    %vm2718 = vcmask 1046534
    %v2719 = vsel %vm2718, %v2531, %v2717
    %vm2720 = vcmask 1047559
    %v2721 = vsel %vm2720, %v2538, %v2719
    %v2722 = vsel %vm1583, %v2721, 0
    %2724 = vmatprep.subr.mxu0 %v2669
    %2725 = vmatpush1.msra.mxu0 %v2668
    %2726 = vmatprep.subr.mxu0 %v2677
    %2727 = vmatpush1.msra.mxu0 %v2676
    %2728 = vmatprep.subr.mxu0 %v2685
    %2729 = vmatpush1.msra.mxu0 %v2684
    %2730 = vmatprep.subr.mxu0 %v2693
    %2731 = vmatpush1.msra.mxu0 %v2692
    %2732 = vmatprep.subr.mxu0 0.0
    %2733 = vmatpush1.msra.mxu0 0.0
    %2734 = vmatprep.subr.mxu0 0.0
    %2735 = vmatpush1.msra.mxu0 0.0
    %2736 = vmatprep.subr.mxu0 0.0
    %2737 = vmatpush1.msra.mxu0 0.0
    %2738 = vmatprep.subr.mxu0 0.0
    %2739 = vmatpush1.msra.mxu0 0.0
    %2740 = vmatprep.subr.mxu0 0.0
    %2741 = vmatpush1.msra.mxu0 0.0
    %2742 = vmatprep.subr.mxu0 0.0
    %2743 = vmatpush1.msra.mxu0 0.0
    %2744 = vmatprep.subr.mxu0 0.0
    %2745 = vmatpush1.msra.mxu0 0.0
    %2746 = vmatprep.subr.mxu0 0.0
    %2747 = vmatpush1.msra.mxu0 0.0
    %2748 = vmatprep.subr.mxu0 0.0
    %2749 = vmatpush1.msra.mxu0 0.0
    %2750 = vmatprep.subr.mxu0 0.0
    %2751 = vmatpush1.msra.mxu0 0.0
    %2752 = vmatprep.subr.mxu0 0.0
    %2753 = vmatpush1.msra.mxu0 0.0
    %2754 = vmatprep.subr.mxu0 0.0
    %2755 = vmatpush1.msra.mxu0 0.0
    %2756 = vmatprep.subr.mxu0 0.0
    %2757 = vmatpush1.msra.mxu0 0.0
    %2758 = vmatprep.subr.mxu0 0.0
    %2759 = vmatpush1.msra.mxu0 0.0
    %2760 = vmatprep.subr.mxu0 0.0
    %2761 = vmatpush1.msra.mxu0 0.0
    %2762 = vmatprep.subr.mxu0 0.0
    %2763 = vmatpush1.msra.mxu0 0.0
    %2764 = vmatprep.subr.mxu0 0.0
    %2765 = vmatpush1.msra.mxu0 0.0
    %2766 = vmatprep.subr.mxu0 0.0
    %2767 = vmatpush1.msra.mxu0 0.0
    %2768 = vmatprep.subr.mxu0 0.0
    %2769 = vmatpush1.msra.mxu0 0.0
    %2770 = vmatprep.subr.mxu0 0.0
    %2771 = vmatpush1.msra.mxu0 0.0
    %2772 = vmatprep.subr.mxu0 0.0
    %2773 = vmatpush1.msra.mxu0 0.0
    %2774 = vmatprep.subr.mxu0 0.0
    %2775 = vmatpush1.msra.mxu0 0.0
    %2776 = vmatprep.subr.mxu0 0.0
    %2777 = vmatpush1.msra.mxu0 0.0
    %2778 = vmatprep.subr.mxu0 0.0
    %2779 = vmatpush1.msra.mxu0 0.0
    %2780 = vmatprep.subr.mxu0 0.0
    %2781 = vmatpush1.msra.mxu0 0.0
    %2782 = vmatprep.subr.mxu0 0.0
    %2783 = vmatpush1.msra.mxu0 0.0
    %2784 = vmatprep.subr.mxu0 0.0
    %2785 = vmatpush1.msra.mxu0 0.0
    %2786 = vmatprep.subr.mxu0 0.0
    %2787 = vmatpush1.msra.mxu0 0.0
    %2788 = vmatprep.mubr.f32.mxu0 0.0
    %2789 = vmatmul.mubr.f32.gmra.mrb[0].mxu0 %v2722
    %v2790 = vpop.f32.mrb[0].mxu0
    %v2791 = vadd.f32 0.0, %v2790
    %v2792 = vpop.f32.mrb[0].mxu0
    %v2793 = vadd.f32 0.0, %v2792
    %2794 = vdwg.mxu0
    %2795 = vmatprep.subr.mxu0 %v2671
    %2796 = vmatpush1.msra.mxu0 %v2670
    %2797 = vmatprep.subr.mxu0 %v2679
    %2798 = vmatpush1.msra.mxu0 %v2678
    %2799 = vmatprep.subr.mxu0 %v2687
    %2800 = vmatpush1.msra.mxu0 %v2686
    %2801 = vmatprep.subr.mxu0 %v2695
    %2802 = vmatpush1.msra.mxu0 %v2694
    %2803 = vmatprep.subr.mxu0 0.0
    %2804 = vmatpush1.msra.mxu0 0.0
    %2805 = vmatprep.subr.mxu0 0.0
    %2806 = vmatpush1.msra.mxu0 0.0
    %2807 = vmatprep.subr.mxu0 0.0
    %2808 = vmatpush1.msra.mxu0 0.0
    %2809 = vmatprep.subr.mxu0 0.0
    %2810 = vmatpush1.msra.mxu0 0.0
    %2811 = vmatprep.subr.mxu0 0.0
    %2812 = vmatpush1.msra.mxu0 0.0
    %2813 = vmatprep.subr.mxu0 0.0
    %2814 = vmatpush1.msra.mxu0 0.0
    %2815 = vmatprep.subr.mxu0 0.0
    %2816 = vmatpush1.msra.mxu0 0.0
    %2817 = vmatprep.subr.mxu0 0.0
    %2818 = vmatpush1.msra.mxu0 0.0
    %2819 = vmatprep.subr.mxu0 0.0
    %2820 = vmatpush1.msra.mxu0 0.0
    %2821 = vmatprep.subr.mxu0 0.0
    %2822 = vmatpush1.msra.mxu0 0.0
    %2823 = vmatprep.subr.mxu0 0.0
    %2824 = vmatpush1.msra.mxu0 0.0
    %2825 = vmatprep.subr.mxu0 0.0
    %2826 = vmatpush1.msra.mxu0 0.0
    %2827 = vmatprep.subr.mxu0 0.0
    %2828 = vmatpush1.msra.mxu0 0.0
    %2829 = vmatprep.subr.mxu0 0.0
    %2830 = vmatpush1.msra.mxu0 0.0
    %2831 = vmatprep.subr.mxu0 0.0
    %2832 = vmatpush1.msra.mxu0 0.0
    %2833 = vmatprep.subr.mxu0 0.0
    %2834 = vmatpush1.msra.mxu0 0.0
    %2835 = vmatprep.subr.mxu0 0.0
    %2836 = vmatpush1.msra.mxu0 0.0
    %2837 = vmatprep.subr.mxu0 0.0
    %2838 = vmatpush1.msra.mxu0 0.0
    %2839 = vmatprep.subr.mxu0 0.0
    %2840 = vmatpush1.msra.mxu0 0.0
    %2841 = vmatprep.subr.mxu0 0.0
    %2842 = vmatpush1.msra.mxu0 0.0
    %2843 = vmatprep.subr.mxu0 0.0
    %2844 = vmatpush1.msra.mxu0 0.0
    %2845 = vmatprep.subr.mxu0 0.0
    %2846 = vmatpush1.msra.mxu0 0.0
    %2847 = vmatprep.subr.mxu0 0.0
    %2848 = vmatpush1.msra.mxu0 0.0
    %2849 = vmatprep.subr.mxu0 0.0
    %2850 = vmatpush1.msra.mxu0 0.0
    %2851 = vmatprep.subr.mxu0 0.0
    %2852 = vmatpush1.msra.mxu0 0.0
    %2853 = vmatprep.subr.mxu0 0.0
    %2854 = vmatpush1.msra.mxu0 0.0
    %2855 = vmatprep.subr.mxu0 0.0
    %2856 = vmatpush1.msra.mxu0 0.0
    %2857 = vmatprep.subr.mxu0 0.0
    %2858 = vmatpush1.msra.mxu0 0.0
    %2859 = vmatprep.mubr.f32.mxu0 0.0
    %2860 = vmatmul.mubr.f32.gmra.mrb[0].mxu0 %v2722
    %v2861 = vpop.f32.mrb[0].mxu0
    %v2862 = vadd.f32 0.0, %v2861
    %v2863 = vpop.f32.mrb[0].mxu0
    %v2864 = vadd.f32 0.0, %v2863
    %2865 = vdwg.mxu0
    %2866 = vmatprep.subr.mxu0 %v2673
    %2867 = vmatpush1.msra.mxu0 %v2672
    %2868 = vmatprep.subr.mxu0 %v2681
    %2869 = vmatpush1.msra.mxu0 %v2680
    %2870 = vmatprep.subr.mxu0 %v2689
    %2871 = vmatpush1.msra.mxu0 %v2688
    %2872 = vmatprep.subr.mxu0 %v2697
    %2873 = vmatpush1.msra.mxu0 %v2696
    %2874 = vmatprep.subr.mxu0 0.0
    %2875 = vmatpush1.msra.mxu0 0.0
    %2876 = vmatprep.subr.mxu0 0.0
    %2877 = vmatpush1.msra.mxu0 0.0
    %2878 = vmatprep.subr.mxu0 0.0
    %2879 = vmatpush1.msra.mxu0 0.0
    %2880 = vmatprep.subr.mxu0 0.0
    %2881 = vmatpush1.msra.mxu0 0.0
    %2882 = vmatprep.subr.mxu0 0.0
    %2883 = vmatpush1.msra.mxu0 0.0
    %2884 = vmatprep.subr.mxu0 0.0
    %2885 = vmatpush1.msra.mxu0 0.0
    %2886 = vmatprep.subr.mxu0 0.0
    %2887 = vmatpush1.msra.mxu0 0.0
    %2888 = vmatprep.subr.mxu0 0.0
    %2889 = vmatpush1.msra.mxu0 0.0
    %2890 = vmatprep.subr.mxu0 0.0
    %2891 = vmatpush1.msra.mxu0 0.0
    %2892 = vmatprep.subr.mxu0 0.0
    %2893 = vmatpush1.msra.mxu0 0.0
    %2894 = vmatprep.subr.mxu0 0.0
    %2895 = vmatpush1.msra.mxu0 0.0
    %2896 = vmatprep.subr.mxu0 0.0
    %2897 = vmatpush1.msra.mxu0 0.0
    %2898 = vmatprep.subr.mxu0 0.0
    %2899 = vmatpush1.msra.mxu0 0.0
    %2900 = vmatprep.subr.mxu0 0.0
    %2901 = vmatpush1.msra.mxu0 0.0
    %2902 = vmatprep.subr.mxu0 0.0
    %2903 = vmatpush1.msra.mxu0 0.0
    %2904 = vmatprep.subr.mxu0 0.0
    %2905 = vmatpush1.msra.mxu0 0.0
    %2906 = vmatprep.subr.mxu0 0.0
    %2907 = vmatpush1.msra.mxu0 0.0
    %2908 = vmatprep.subr.mxu0 0.0
    %2909 = vmatpush1.msra.mxu0 0.0
    %2910 = vmatprep.subr.mxu0 0.0
    %2911 = vmatpush1.msra.mxu0 0.0
    %2912 = vmatprep.subr.mxu0 0.0
    %2913 = vmatpush1.msra.mxu0 0.0
    %2914 = vmatprep.subr.mxu0 0.0
    %2915 = vmatpush1.msra.mxu0 0.0
    %2916 = vmatprep.subr.mxu0 0.0
    %2917 = vmatpush1.msra.mxu0 0.0
    %2918 = vmatprep.subr.mxu0 0.0
    %2919 = vmatpush1.msra.mxu0 0.0
    %2920 = vmatprep.subr.mxu0 0.0
    %2921 = vmatpush1.msra.mxu0 0.0
    %2922 = vmatprep.subr.mxu0 0.0
    %2923 = vmatpush1.msra.mxu0 0.0
    %2924 = vmatprep.subr.mxu0 0.0
    %2925 = vmatpush1.msra.mxu0 0.0
    %2926 = vmatprep.subr.mxu0 0.0
    %2927 = vmatpush1.msra.mxu0 0.0
    %2928 = vmatprep.subr.mxu0 0.0
    %2929 = vmatpush1.msra.mxu0 0.0
    %2930 = vmatprep.mubr.f32.mxu0 0.0
    %2931 = vmatmul.mubr.f32.gmra.mrb[0].mxu0 %v2722
    %v2932 = vpop.f32.mrb[0].mxu0
    %v2933 = vadd.f32 0.0, %v2932
    %v2934 = vpop.f32.mrb[0].mxu0
    %v2935 = vadd.f32 0.0, %v2934
    %2936 = vdwg.mxu0
    %2937 = vmatprep.subr.mxu0 %v2675
    %2938 = vmatpush1.msra.mxu0 %v2674
    %2939 = vmatprep.subr.mxu0 %v2683
    %2940 = vmatpush1.msra.mxu0 %v2682
    %2941 = vmatprep.subr.mxu0 %v2691
    %2942 = vmatpush1.msra.mxu0 %v2690
    %2943 = vmatprep.subr.mxu0 %v2699
    %2944 = vmatpush1.msra.mxu0 %v2698
    %2945 = vmatprep.subr.mxu0 0.0
    %2946 = vmatpush1.msra.mxu0 0.0
    %2947 = vmatprep.subr.mxu0 0.0
    %2948 = vmatpush1.msra.mxu0 0.0
    %2949 = vmatprep.subr.mxu0 0.0
    %2950 = vmatpush1.msra.mxu0 0.0
    %2951 = vmatprep.subr.mxu0 0.0
    %2952 = vmatpush1.msra.mxu0 0.0
    %2953 = vmatprep.subr.mxu0 0.0
    %2954 = vmatpush1.msra.mxu0 0.0
    %2955 = vmatprep.subr.mxu0 0.0
    %2956 = vmatpush1.msra.mxu0 0.0
    %2957 = vmatprep.subr.mxu0 0.0
    %2958 = vmatpush1.msra.mxu0 0.0
    %2959 = vmatprep.subr.mxu0 0.0
    %2960 = vmatpush1.msra.mxu0 0.0
    %2961 = vmatprep.subr.mxu0 0.0
    %2962 = vmatpush1.msra.mxu0 0.0
    %2963 = vmatprep.subr.mxu0 0.0
    %2964 = vmatpush1.msra.mxu0 0.0
    %2965 = vmatprep.subr.mxu0 0.0
    %2966 = vmatpush1.msra.mxu0 0.0
    %2967 = vmatprep.subr.mxu0 0.0
    %2968 = vmatpush1.msra.mxu0 0.0
    %2969 = vmatprep.subr.mxu0 0.0
    %2970 = vmatpush1.msra.mxu0 0.0
    %2971 = vmatprep.subr.mxu0 0.0
    %2972 = vmatpush1.msra.mxu0 0.0
    %2973 = vmatprep.subr.mxu0 0.0
    %2974 = vmatpush1.msra.mxu0 0.0
    %2975 = vmatprep.subr.mxu0 0.0
    %2976 = vmatpush1.msra.mxu0 0.0
    %2977 = vmatprep.subr.mxu0 0.0
    %2978 = vmatpush1.msra.mxu0 0.0
    %2979 = vmatprep.subr.mxu0 0.0
    %2980 = vmatpush1.msra.mxu0 0.0
    %2981 = vmatprep.subr.mxu0 0.0
    %2982 = vmatpush1.msra.mxu0 0.0
    %2983 = vmatprep.subr.mxu0 0.0
    %2984 = vmatpush1.msra.mxu0 0.0
    %2985 = vmatprep.subr.mxu0 0.0
    %2986 = vmatpush1.msra.mxu0 0.0
    %2987 = vmatprep.subr.mxu0 0.0
    %2988 = vmatpush1.msra.mxu0 0.0
    %2989 = vmatprep.subr.mxu0 0.0
    %2990 = vmatpush1.msra.mxu0 0.0
    %2991 = vmatprep.subr.mxu0 0.0
    %2992 = vmatpush1.msra.mxu0 0.0
    %2993 = vmatprep.subr.mxu0 0.0
    %2994 = vmatpush1.msra.mxu0 0.0
    %2995 = vmatprep.subr.mxu0 0.0
    %2996 = vmatpush1.msra.mxu0 0.0
    %2997 = vmatprep.subr.mxu0 0.0
    %2998 = vmatpush1.msra.mxu0 0.0
    %2999 = vmatprep.subr.mxu0 0.0
    %3000 = vmatpush1.msra.mxu0 0.0
    %3001 = vmatprep.mubr.f32.mxu0 0.0
    %3002 = vmatmul.mubr.f32.gmra.mrb[0].mxu0 %v2722
    %v3003 = vpop.f32.mrb[0].mxu0
    %v3004 = vadd.f32 0.0, %v3003
    %v3005 = vpop.f32.mrb[0].mxu0
    %v3006 = vadd.f32 0.0, %v3005
    %3007 = vdwg.mxu0
    %3008 = vmatprep.subr.mxu0 %v2541
    %3009 = vmatpush1.msra.mxu0 %v2540
    %3010 = vmatprep.subr.mxu0 %v2549
    %3011 = vmatpush1.msra.mxu0 %v2548
    %3012 = vmatprep.subr.mxu0 %v2557
    %3013 = vmatpush1.msra.mxu0 %v2556
    %3014 = vmatprep.subr.mxu0 %v2565
    %3015 = vmatpush1.msra.mxu0 %v2564
    %3016 = vmatprep.subr.mxu0 %v2573
    %3017 = vmatpush1.msra.mxu0 %v2572
    %3018 = vmatprep.subr.mxu0 %v2581
    %3019 = vmatpush1.msra.mxu0 %v2580
    %3020 = vmatprep.subr.mxu0 %v2589
    %3021 = vmatpush1.msra.mxu0 %v2588
    %3022 = vmatprep.subr.mxu0 %v2597
    %3023 = vmatpush1.msra.mxu0 %v2596
    %3024 = vmatprep.subr.mxu0 %v2605
    %3025 = vmatpush1.msra.mxu0 %v2604
    %3026 = vmatprep.subr.mxu0 %v2613
    %3027 = vmatpush1.msra.mxu0 %v2612
    %3028 = vmatprep.subr.mxu0 %v2621
    %3029 = vmatpush1.msra.mxu0 %v2620
    %3030 = vmatprep.subr.mxu0 %v2629
    %3031 = vmatpush1.msra.mxu0 %v2628
    %3032 = vmatprep.subr.mxu0 %v2637
    %3033 = vmatpush1.msra.mxu0 %v2636
    %3034 = vmatprep.subr.mxu0 %v2645
    %3035 = vmatpush1.msra.mxu0 %v2644
    %3036 = vmatprep.subr.mxu0 %v2653
    %3037 = vmatpush1.msra.mxu0 %v2652
    %3038 = vmatprep.subr.mxu0 %v2661
    %3039 = vmatpush1.msra.mxu0 %v2660
    %3040 = vmatprep.subr.mxu0 0.0
    %3041 = vmatpush1.msra.mxu0 0.0
    %3042 = vmatprep.subr.mxu0 0.0
    %3043 = vmatpush1.msra.mxu0 0.0
    %3044 = vmatprep.subr.mxu0 0.0
    %3045 = vmatpush1.msra.mxu0 0.0
    %3046 = vmatprep.subr.mxu0 0.0
    %3047 = vmatpush1.msra.mxu0 0.0
    %3048 = vmatprep.subr.mxu0 0.0
    %3049 = vmatpush1.msra.mxu0 0.0
    %3050 = vmatprep.subr.mxu0 0.0
    %3051 = vmatpush1.msra.mxu0 0.0
    %3052 = vmatprep.subr.mxu0 0.0
    %3053 = vmatpush1.msra.mxu0 0.0
    %3054 = vmatprep.subr.mxu0 0.0
    %3055 = vmatpush1.msra.mxu0 0.0
    %3056 = vmatprep.subr.mxu0 0.0
    %3057 = vmatpush1.msra.mxu0 0.0
    %3058 = vmatprep.subr.mxu0 0.0
    %3059 = vmatpush1.msra.mxu0 0.0
    %3060 = vmatprep.subr.mxu0 0.0
    %3061 = vmatpush1.msra.mxu0 0.0
    %3062 = vmatprep.subr.mxu0 0.0
    %3063 = vmatpush1.msra.mxu0 0.0
    %3064 = vmatprep.subr.mxu0 0.0
    %3065 = vmatpush1.msra.mxu0 0.0
    %3066 = vmatprep.subr.mxu0 0.0
    %3067 = vmatpush1.msra.mxu0 0.0
    %3068 = vmatprep.subr.mxu0 0.0
    %3069 = vmatpush1.msra.mxu0 0.0
    %3070 = vmatprep.subr.mxu0 0.0
    %3071 = vmatpush1.msra.mxu0 0.0
    %3072 = vmatprep.mubr.f32.mxu0 0.0
    %3073 = vmatmul.mubr.f32.gmra.mrb[0].mxu0 %v2539
    %v3074 = vpop.f32.mrb[0].mxu0
    %v3075 = vadd.f32 %v2791, %v3074
    %v3076 = vpop.f32.mrb[0].mxu0
    %v3077 = vadd.f32 %v2793, %v3076
    %3078 = vdwg.mxu0
    %3079 = vmatprep.subr.mxu0 %v2543
    %3080 = vmatpush1.msra.mxu0 %v2542
    %3081 = vmatprep.subr.mxu0 %v2551
    %3082 = vmatpush1.msra.mxu0 %v2550
    %3083 = vmatprep.subr.mxu0 %v2559
    %3084 = vmatpush1.msra.mxu0 %v2558
    %3085 = vmatprep.subr.mxu0 %v2567
    %3086 = vmatpush1.msra.mxu0 %v2566
    %3087 = vmatprep.subr.mxu0 %v2575
    %3088 = vmatpush1.msra.mxu0 %v2574
    %3089 = vmatprep.subr.mxu0 %v2583
    %3090 = vmatpush1.msra.mxu0 %v2582
    %3091 = vmatprep.subr.mxu0 %v2591
    %3092 = vmatpush1.msra.mxu0 %v2590
    %3093 = vmatprep.subr.mxu0 %v2599
    %3094 = vmatpush1.msra.mxu0 %v2598
    %3095 = vmatprep.subr.mxu0 %v2607
    %3096 = vmatpush1.msra.mxu0 %v2606
    %3097 = vmatprep.subr.mxu0 %v2615
    %3098 = vmatpush1.msra.mxu0 %v2614
    %3099 = vmatprep.subr.mxu0 %v2623
    %3100 = vmatpush1.msra.mxu0 %v2622
    %3101 = vmatprep.subr.mxu0 %v2631
    %3102 = vmatpush1.msra.mxu0 %v2630
    %3103 = vmatprep.subr.mxu0 %v2639
    %3104 = vmatpush1.msra.mxu0 %v2638
    %3105 = vmatprep.subr.mxu0 %v2647
    %3106 = vmatpush1.msra.mxu0 %v2646
    %3107 = vmatprep.subr.mxu0 %v2655
    %3108 = vmatpush1.msra.mxu0 %v2654
    %3109 = vmatprep.subr.mxu0 %v2663
    %3110 = vmatpush1.msra.mxu0 %v2662
    %3111 = vmatprep.subr.mxu0 0.0
    %3112 = vmatpush1.msra.mxu0 0.0
    %3113 = vmatprep.subr.mxu0 0.0
    %3114 = vmatpush1.msra.mxu0 0.0
    %3115 = vmatprep.subr.mxu0 0.0
    %3116 = vmatpush1.msra.mxu0 0.0
    %3117 = vmatprep.subr.mxu0 0.0
    %3118 = vmatpush1.msra.mxu0 0.0
    %3119 = vmatprep.subr.mxu0 0.0
    %3120 = vmatpush1.msra.mxu0 0.0
    %3121 = vmatprep.subr.mxu0 0.0
    %3122 = vmatpush1.msra.mxu0 0.0
    %3123 = vmatprep.subr.mxu0 0.0
    %3124 = vmatpush1.msra.mxu0 0.0
    %3125 = vmatprep.subr.mxu0 0.0
    %3126 = vmatpush1.msra.mxu0 0.0
    %3127 = vmatprep.subr.mxu0 0.0
    %3128 = vmatpush1.msra.mxu0 0.0
    %3129 = vmatprep.subr.mxu0 0.0
    %3130 = vmatpush1.msra.mxu0 0.0
    %3131 = vmatprep.subr.mxu0 0.0
    %3132 = vmatpush1.msra.mxu0 0.0
    %3133 = vmatprep.subr.mxu0 0.0
    %3134 = vmatpush1.msra.mxu0 0.0
    %3135 = vmatprep.subr.mxu0 0.0
    %3136 = vmatpush1.msra.mxu0 0.0
    %3137 = vmatprep.subr.mxu0 0.0
    %3138 = vmatpush1.msra.mxu0 0.0
    %3139 = vmatprep.subr.mxu0 0.0
    %3140 = vmatpush1.msra.mxu0 0.0
    %3141 = vmatprep.subr.mxu0 0.0
    %3142 = vmatpush1.msra.mxu0 0.0
    %3143 = vmatprep.mubr.f32.mxu0 0.0
    %3144 = vmatmul.mubr.f32.gmra.mrb[0].mxu0 %v2539
    %v3145 = vpop.f32.mrb[0].mxu0
    %v3146 = vadd.f32 %v2862, %v3145
    %v3147 = vpop.f32.mrb[0].mxu0
    %v3148 = vadd.f32 %v2864, %v3147
    %3149 = vdwg.mxu0
    %3150 = vmatprep.subr.mxu0 %v2545
    %3151 = vmatpush1.msra.mxu0 %v2544
    %3152 = vmatprep.subr.mxu0 %v2553
    %3153 = vmatpush1.msra.mxu0 %v2552
    %3154 = vmatprep.subr.mxu0 %v2561
    %3155 = vmatpush1.msra.mxu0 %v2560
    %3156 = vmatprep.subr.mxu0 %v2569
    %3157 = vmatpush1.msra.mxu0 %v2568
    %3158 = vmatprep.subr.mxu0 %v2577
    %3159 = vmatpush1.msra.mxu0 %v2576
    %3160 = vmatprep.subr.mxu0 %v2585
    %3161 = vmatpush1.msra.mxu0 %v2584
    %3162 = vmatprep.subr.mxu0 %v2593
    %3163 = vmatpush1.msra.mxu0 %v2592
    %3164 = vmatprep.subr.mxu0 %v2601
    %3165 = vmatpush1.msra.mxu0 %v2600
    %3166 = vmatprep.subr.mxu0 %v2609
    %3167 = vmatpush1.msra.mxu0 %v2608
    %3168 = vmatprep.subr.mxu0 %v2617
    %3169 = vmatpush1.msra.mxu0 %v2616
    %3170 = vmatprep.subr.mxu0 %v2625
    %3171 = vmatpush1.msra.mxu0 %v2624
    %3172 = vmatprep.subr.mxu0 %v2633
    %3173 = vmatpush1.msra.mxu0 %v2632
    %3174 = vmatprep.subr.mxu0 %v2641
    %3175 = vmatpush1.msra.mxu0 %v2640
    %3176 = vmatprep.subr.mxu0 %v2649
    %3177 = vmatpush1.msra.mxu0 %v2648
    %3178 = vmatprep.subr.mxu0 %v2657
    %3179 = vmatpush1.msra.mxu0 %v2656
    %3180 = vmatprep.subr.mxu0 %v2665
    %3181 = vmatpush1.msra.mxu0 %v2664
    %3182 = vmatprep.subr.mxu0 0.0
    %3183 = vmatpush1.msra.mxu0 0.0
    %3184 = vmatprep.subr.mxu0 0.0
    %3185 = vmatpush1.msra.mxu0 0.0
    %3186 = vmatprep.subr.mxu0 0.0
    %3187 = vmatpush1.msra.mxu0 0.0
    %3188 = vmatprep.subr.mxu0 0.0
    %3189 = vmatpush1.msra.mxu0 0.0
    %3190 = vmatprep.subr.mxu0 0.0
    %3191 = vmatpush1.msra.mxu0 0.0
    %3192 = vmatprep.subr.mxu0 0.0
    %3193 = vmatpush1.msra.mxu0 0.0
    %3194 = vmatprep.subr.mxu0 0.0
    %3195 = vmatpush1.msra.mxu0 0.0
    %3196 = vmatprep.subr.mxu0 0.0
    %3197 = vmatpush1.msra.mxu0 0.0
    %3198 = vmatprep.subr.mxu0 0.0
    %3199 = vmatpush1.msra.mxu0 0.0
    %3200 = vmatprep.subr.mxu0 0.0
    %3201 = vmatpush1.msra.mxu0 0.0
    %3202 = vmatprep.subr.mxu0 0.0
    %3203 = vmatpush1.msra.mxu0 0.0
    %3204 = vmatprep.subr.mxu0 0.0
    %3205 = vmatpush1.msra.mxu0 0.0
    %3206 = vmatprep.subr.mxu0 0.0
    %3207 = vmatpush1.msra.mxu0 0.0
    %3208 = vmatprep.subr.mxu0 0.0
    %3209 = vmatpush1.msra.mxu0 0.0
    %3210 = vmatprep.subr.mxu0 0.0
    %3211 = vmatpush1.msra.mxu0 0.0
    %3212 = vmatprep.subr.mxu0 0.0
    %3213 = vmatpush1.msra.mxu0 0.0
    %3214 = vmatprep.mubr.f32.mxu0 0.0
    %3215 = vmatmul.mubr.f32.gmra.mrb[0].mxu0 %v2539
    %v3216 = vpop.f32.mrb[0].mxu0
    %v3217 = vadd.f32 %v2933, %v3216
    %v3218 = vpop.f32.mrb[0].mxu0
    %v3219 = vadd.f32 %v2935, %v3218
    %3220 = vdwg.mxu0
    %3221 = vmatprep.subr.mxu0 %v2547
    %3222 = vmatpush1.msra.mxu0 %v2546
    %3223 = vmatprep.subr.mxu0 %v2555
    %3224 = vmatpush1.msra.mxu0 %v2554
    %3225 = vmatprep.subr.mxu0 %v2563
    %3226 = vmatpush1.msra.mxu0 %v2562
    %3227 = vmatprep.subr.mxu0 %v2571
    %3228 = vmatpush1.msra.mxu0 %v2570
    %3229 = vmatprep.subr.mxu0 %v2579
    %3230 = vmatpush1.msra.mxu0 %v2578
    %3231 = vmatprep.subr.mxu0 %v2587
    %3232 = vmatpush1.msra.mxu0 %v2586
    %3233 = vmatprep.subr.mxu0 %v2595
    %3234 = vmatpush1.msra.mxu0 %v2594
    %3235 = vmatprep.subr.mxu0 %v2603
    %3236 = vmatpush1.msra.mxu0 %v2602
    %3237 = vmatprep.subr.mxu0 %v2611
    %3238 = vmatpush1.msra.mxu0 %v2610
    %3239 = vmatprep.subr.mxu0 %v2619
    %3240 = vmatpush1.msra.mxu0 %v2618
    %3241 = vmatprep.subr.mxu0 %v2627
    %3242 = vmatpush1.msra.mxu0 %v2626
    %3243 = vmatprep.subr.mxu0 %v2635
    %3244 = vmatpush1.msra.mxu0 %v2634
    %3245 = vmatprep.subr.mxu0 %v2643
    %3246 = vmatpush1.msra.mxu0 %v2642
    %3247 = vmatprep.subr.mxu0 %v2651
    %3248 = vmatpush1.msra.mxu0 %v2650
    %3249 = vmatprep.subr.mxu0 %v2659
    %3250 = vmatpush1.msra.mxu0 %v2658
    %3251 = vmatprep.subr.mxu0 %v2667
    %3252 = vmatpush1.msra.mxu0 %v2666
    %3253 = vmatprep.subr.mxu0 0.0
    %3254 = vmatpush1.msra.mxu0 0.0
    %3255 = vmatprep.subr.mxu0 0.0
    %3256 = vmatpush1.msra.mxu0 0.0
    %3257 = vmatprep.subr.mxu0 0.0
    %3258 = vmatpush1.msra.mxu0 0.0
    %3259 = vmatprep.subr.mxu0 0.0
    %3260 = vmatpush1.msra.mxu0 0.0
    %3261 = vmatprep.subr.mxu0 0.0
    %3262 = vmatpush1.msra.mxu0 0.0
    %3263 = vmatprep.subr.mxu0 0.0
    %3264 = vmatpush1.msra.mxu0 0.0
    %3265 = vmatprep.subr.mxu0 0.0
    %3266 = vmatpush1.msra.mxu0 0.0
    %3267 = vmatprep.subr.mxu0 0.0
    %3268 = vmatpush1.msra.mxu0 0.0
    %3269 = vmatprep.subr.mxu0 0.0
    %3270 = vmatpush1.msra.mxu0 0.0
    %3271 = vmatprep.subr.mxu0 0.0
    %3272 = vmatpush1.msra.mxu0 0.0
    %3273 = vmatprep.subr.mxu0 0.0
    %3274 = vmatpush1.msra.mxu0 0.0
    %3275 = vmatprep.subr.mxu0 0.0
    %3276 = vmatpush1.msra.mxu0 0.0
    %3277 = vmatprep.subr.mxu0 0.0
    %3278 = vmatpush1.msra.mxu0 0.0
    %3279 = vmatprep.subr.mxu0 0.0
    %3280 = vmatpush1.msra.mxu0 0.0
    %3281 = vmatprep.subr.mxu0 0.0
    %3282 = vmatpush1.msra.mxu0 0.0
    %3283 = vmatprep.subr.mxu0 0.0
    %3284 = vmatpush1.msra.mxu0 0.0
    %3285 = vmatprep.mubr.f32.mxu0 0.0
    %3286 = vmatmul.mubr.f32.gmra.mrb[0].mxu0 %v2539
    %v3287 = vpop.f32.mrb[0].mxu0
    %v3288 = vadd.f32 %v3004, %v3287
    %v3289 = vpop.f32.mrb[0].mxu0
    %v3290 = vadd.f32 %v3006, %v3289
    %3291 = vdwg.mxu0
    %v3292 = vld [vmem:[%s6] sm:$0xff]
    %v3294 = vlaneseq
    %v3295 = vshrl.u32 %v3294, 7
    %v3296 = vsub.s32 0, %v3295
    %v3297 = vrot.slane %v3292, %v3296
    %v3298 = vlaneseq
    %v3299 = vshrl.u32 %v3298, 7
    %v3300 = vsub.s32 1, %v3299
    %v3301 = vrot.slane %v3292, %v3300
    %v3302 = vlaneseq
    %v3303 = vshrl.u32 %v3302, 7
    %v3304 = vsub.s32 2, %v3303
    %v3305 = vrot.slane %v3292, %v3304
    %v3306 = vlaneseq
    %v3307 = vshrl.u32 %v3306, 7
    %v3308 = vsub.s32 3, %v3307
    %v3309 = vrot.slane %v3292, %v3308
    %v3310 = vlaneseq
    %v3311 = vshrl.u32 %v3310, 7
    %v3312 = vsub.s32 4, %v3311
    %v3313 = vrot.slane %v3292, %v3312
    %v3314 = vlaneseq
    %v3315 = vshrl.u32 %v3314, 7
    %v3316 = vsub.s32 5, %v3315
    %v3317 = vrot.slane %v3292, %v3316
    %v3318 = vlaneseq
    %v3319 = vshrl.u32 %v3318, 7
    %v3320 = vsub.s32 6, %v3319
    %v3321 = vrot.slane %v3292, %v3320
    %v3322 = vlaneseq
    %v3323 = vshrl.u32 %v3322, 7
    %v3324 = vsub.s32 7, %v3323
    %v3325 = vrot.slane %v3292, %v3324
    %v3334 = vadd.f32 %v3075, %v3297
    %v3335 = vadd.f32 %v3077, %v3301
    %v3336 = vadd.f32 %v3146, %v3305
    %v3337 = vadd.f32 %v3148, %v3309
    %v3338 = vadd.f32 %v3217, %v3313
    %v3339 = vadd.f32 %v3219, %v3317
    %v3340 = vadd.f32 %v3288, %v3321
    %v3341 = vadd.f32 %v3290, %v3325
    %3342 = vst [vmem:[#allocation2] sm:$0xff] %v3334
    %3343 = vst [vmem:[#allocation2 + $0x8] sm:$0xff] %v3335
    %3344 = vst [vmem:[#allocation2 + $0x10] sm:$0xff] %v3336
    %3345 = vst [vmem:[#allocation2 + $0x18] sm:$0xff] %v3337
    %3346 = vst [vmem:[#allocation2 + $0x20] sm:$0xff] %v3338
    %3347 = vst [vmem:[#allocation2 + $0x28] sm:$0xff] %v3339
    %3348 = vst [vmem:[#allocation2 + $0x30] sm:$0xff] %v3340
    %3349 = vst [vmem:[#allocation2 + $0x38] sm:$0xff] %v3341
    %v3350 = vld [vmem:[#allocation8] sm:$0xff]
    %v3351 = vld [vmem:[#allocation8 + $0x8] sm:$0xff]
    %v3352 = vld [vmem:[#allocation8 + $0x10] sm:$0xff]
    %v3353 = vld [vmem:[#allocation8 + $0x18] sm:$0xff]
    %v3354 = vld [vmem:[#allocation8 + $0x20] sm:$0xff]
    %v3355 = vld [vmem:[#allocation8 + $0x28] sm:$0xff]
    %v3356 = vld [vmem:[#allocation8 + $0x30] sm:$0xff]
    %v3357 = vld [vmem:[#allocation8 + $0x38] sm:$0xff]
    %v3358 = vld [vmem:[#allocation8 + $0x40] sm:$0xff]
    %v3359 = vld [vmem:[#allocation8 + $0x48] sm:$0xff]
    %v3360 = vld [vmem:[#allocation8 + $0x50] sm:$0xff]
    %v3361 = vld [vmem:[#allocation8 + $0x58] sm:$0xff]
    %v3362 = vld [vmem:[#allocation8 + $0x60] sm:$0xff]
    %v3363 = vld [vmem:[#allocation8 + $0x68] sm:$0xff]
    %v3364 = vld [vmem:[#allocation8 + $0x70] sm:$0xff]
    %v3365 = vld [vmem:[#allocation8 + $0x78] sm:$0xff]
    %v3366 = vld [vmem:[#allocation8 + $0x80] sm:$0xff]
    %v3367 = vld [vmem:[#allocation8 + $0x88] sm:$0xff]
    %v3368 = vld [vmem:[#allocation8 + $0x90] sm:$0xff]
    %v3369 = vld [vmem:[#allocation8 + $0x98] sm:$0xff]
    %v3370 = vld [vmem:[#allocation8 + $0xa0] sm:$0xff]
    %v3371 = vld [vmem:[#allocation8 + $0xa8] sm:$0xff]
    %v3372 = vld [vmem:[#allocation8 + $0xb0] sm:$0xff]
    %v3373 = vld [vmem:[#allocation8 + $0xb8] sm:$0xff]
    %v3374 = vld [vmem:[#allocation8 + $0xc0] sm:$0xff]
    %v3375 = vld [vmem:[#allocation8 + $0xc8] sm:$0xff]
    %v3376 = vld [vmem:[#allocation8 + $0xd0] sm:$0xff]
    %v3377 = vld [vmem:[#allocation8 + $0xd8] sm:$0xff]
    %v3378 = vld [vmem:[#allocation8 + $0xe0] sm:$0xff]
    %v3379 = vld [vmem:[#allocation8 + $0xe8] sm:$0xff]
    %v3380 = vld [vmem:[#allocation8 + $0xf0] sm:$0xff]
    %v3381 = vld [vmem:[#allocation8 + $0xf8] sm:$0xff]
    %v3382 = vld [vmem:[#allocation8 + $0x100] sm:$0xff]
    %v3383 = vld [vmem:[#allocation8 + $0x108] sm:$0xff]
    %v3384 = vld [vmem:[#allocation8 + $0x110] sm:$0xff]
    %v3385 = vld [vmem:[#allocation8 + $0x118] sm:$0xff]
    %v3386 = vld [vmem:[#allocation8 + $0x120] sm:$0xff]
    %v3387 = vld [vmem:[#allocation8 + $0x128] sm:$0xff]
    %v3388 = vld [vmem:[#allocation8 + $0x130] sm:$0xff]
    %v3389 = vld [vmem:[#allocation8 + $0x138] sm:$0xff]
    %v3390 = vld [vmem:[#allocation8 + $0x140] sm:$0xff]
    %v3391 = vld [vmem:[#allocation8 + $0x148] sm:$0xff]
    %v3392 = vld [vmem:[#allocation8 + $0x150] sm:$0xff]
    %v3393 = vld [vmem:[#allocation8 + $0x158] sm:$0xff]
    %v3394 = vld [vmem:[#allocation8 + $0x160] sm:$0xff]
    %v3395 = vld [vmem:[#allocation8 + $0x168] sm:$0xff]
    %v3396 = vld [vmem:[#allocation8 + $0x170] sm:$0xff]
    %v3397 = vld [vmem:[#allocation8 + $0x178] sm:$0xff]
    %v3398 = vld [vmem:[#allocation8 + $0x180] sm:$0xff]
    %v3399 = vld [vmem:[#allocation8 + $0x188] sm:$0xff]
    %v3400 = vld [vmem:[#allocation8 + $0x190] sm:$0xff]
    %v3401 = vld [vmem:[#allocation8 + $0x198] sm:$0xff]
    %v3402 = vld [vmem:[#allocation8 + $0x1a0] sm:$0xff]
    %v3403 = vld [vmem:[#allocation8 + $0x1a8] sm:$0xff]
    %v3404 = vld [vmem:[#allocation8 + $0x1b0] sm:$0xff]
    %v3405 = vld [vmem:[#allocation8 + $0x1b8] sm:$0xff]
    %v3406 = vld [vmem:[#allocation8 + $0x1c0] sm:$0xff]
    %v3407 = vld [vmem:[#allocation8 + $0x1c8] sm:$0xff]
    %v3408 = vld [vmem:[#allocation8 + $0x1d0] sm:$0xff]
    %v3409 = vld [vmem:[#allocation8 + $0x1d8] sm:$0xff]
    %v3410 = vld [vmem:[#allocation8 + $0x1e0] sm:$0xff]
    %v3411 = vld [vmem:[#allocation8 + $0x1e8] sm:$0xff]
    %v3412 = vld [vmem:[#allocation8 + $0x1f0] sm:$0xff]
    %v3413 = vld [vmem:[#allocation8 + $0x1f8] sm:$0xff]
    %v3414 = vld [vmem:[#allocation10] sm:$0xff]
    %v3415 = vld [vmem:[#allocation10 + $0x8] sm:$0xff]
    %v3416 = vld [vmem:[#allocation10 + $0x10] sm:$0xff]
    %v3417 = vld [vmem:[#allocation10 + $0x18] sm:$0xff]
    %v3418 = vld [vmem:[#allocation10 + $0x20] sm:$0xff]
    %v3419 = vld [vmem:[#allocation10 + $0x28] sm:$0xff]
    %v3420 = vld [vmem:[#allocation10 + $0x30] sm:$0xff]
    %v3421 = vld [vmem:[#allocation10 + $0x38] sm:$0xff]
    %v3422 = vld [vmem:[#allocation10 + $0x40] sm:$0xff]
    %v3423 = vld [vmem:[#allocation10 + $0x48] sm:$0xff]
    %v3424 = vld [vmem:[#allocation10 + $0x50] sm:$0xff]
    %v3425 = vld [vmem:[#allocation10 + $0x58] sm:$0xff]
    %v3426 = vld [vmem:[#allocation10 + $0x60] sm:$0xff]
    %v3427 = vld [vmem:[#allocation10 + $0x68] sm:$0xff]
    %v3428 = vld [vmem:[#allocation10 + $0x70] sm:$0xff]
    %v3429 = vld [vmem:[#allocation10 + $0x78] sm:$0xff]
    %v3430 = vld [vmem:[#allocation10 + $0x80] sm:$0xff]
    %v3431 = vld [vmem:[#allocation10 + $0x88] sm:$0xff]
    %v3432 = vld [vmem:[#allocation10 + $0x90] sm:$0xff]
    %v3433 = vld [vmem:[#allocation10 + $0x98] sm:$0xff]
    %v3434 = vld [vmem:[#allocation10 + $0xa0] sm:$0xff]
    %v3435 = vld [vmem:[#allocation10 + $0xa8] sm:$0xff]
    %v3436 = vld [vmem:[#allocation10 + $0xb0] sm:$0xff]
    %v3437 = vld [vmem:[#allocation10 + $0xb8] sm:$0xff]
    %v3438 = vld [vmem:[#allocation10 + $0xc0] sm:$0xff]
    %v3439 = vld [vmem:[#allocation10 + $0xc8] sm:$0xff]
    %v3440 = vld [vmem:[#allocation10 + $0xd0] sm:$0xff]
    %v3441 = vld [vmem:[#allocation10 + $0xd8] sm:$0xff]
    %v3442 = vld [vmem:[#allocation10 + $0xe0] sm:$0xff]
    %v3443 = vld [vmem:[#allocation10 + $0xe8] sm:$0xff]
    %v3444 = vld [vmem:[#allocation10 + $0xf0] sm:$0xff]
    %v3445 = vld [vmem:[#allocation10 + $0xf8] sm:$0xff]
    %v3446 = vld [vmem:[#allocation10 + $0x100] sm:$0xff]
    %v3447 = vld [vmem:[#allocation10 + $0x108] sm:$0xff]
    %v3448 = vld [vmem:[#allocation10 + $0x110] sm:$0xff]
    %v3449 = vld [vmem:[#allocation10 + $0x118] sm:$0xff]
    %v3450 = vld [vmem:[#allocation10 + $0x120] sm:$0xff]
    %v3451 = vld [vmem:[#allocation10 + $0x128] sm:$0xff]
    %v3452 = vld [vmem:[#allocation10 + $0x130] sm:$0xff]
    %v3453 = vld [vmem:[#allocation10 + $0x138] sm:$0xff]
    %v3454 = vld [vmem:[#allocation10 + $0x140] sm:$0xff]
    %v3455 = vld [vmem:[#allocation10 + $0x148] sm:$0xff]
    %v3456 = vld [vmem:[#allocation10 + $0x150] sm:$0xff]
    %v3457 = vld [vmem:[#allocation10 + $0x158] sm:$0xff]
    %v3458 = vld [vmem:[#allocation10 + $0x160] sm:$0xff]
    %v3459 = vld [vmem:[#allocation10 + $0x168] sm:$0xff]
    %v3460 = vld [vmem:[#allocation10 + $0x170] sm:$0xff]
    %v3461 = vld [vmem:[#allocation10 + $0x178] sm:$0xff]
    %v3462 = vld [vmem:[#allocation10 + $0x180] sm:$0xff]
    %v3463 = vld [vmem:[#allocation10 + $0x188] sm:$0xff]
    %v3464 = vld [vmem:[#allocation10 + $0x190] sm:$0xff]
    %v3465 = vld [vmem:[#allocation10 + $0x198] sm:$0xff]
    %v3466 = vld [vmem:[#allocation10 + $0x1a0] sm:$0xff]
    %v3467 = vld [vmem:[#allocation10 + $0x1a8] sm:$0xff]
    %v3468 = vld [vmem:[#allocation10 + $0x1b0] sm:$0xff]
    %v3469 = vld [vmem:[#allocation10 + $0x1b8] sm:$0xff]
    %v3470 = vld [vmem:[#allocation10 + $0x1c0] sm:$0xff]
    %v3471 = vld [vmem:[#allocation10 + $0x1c8] sm:$0xff]
    %v3472 = vld [vmem:[#allocation10 + $0x1d0] sm:$0xff]
    %v3473 = vld [vmem:[#allocation10 + $0x1d8] sm:$0xff]
    %v3474 = vld [vmem:[#allocation10 + $0x1e0] sm:$0xff]
    %v3475 = vld [vmem:[#allocation10 + $0x1e8] sm:$0xff]
    %v3476 = vld [vmem:[#allocation10 + $0x1f0] sm:$0xff]
    %v3477 = vld [vmem:[#allocation10 + $0x1f8] sm:$0xff]
    %v3478 = vld [vmem:[#allocation2] ss:$8 sm:$0xf]
    %3479 = vmatprep.subr.mxu0 %v3351
    %3480 = vmatpush1.msra.mxu0 %v3350
    %3481 = vmatprep.subr.mxu0 %v3355
    %3482 = vmatpush1.msra.mxu0 %v3354
    %3483 = vmatprep.subr.mxu0 %v3359
    %3484 = vmatpush1.msra.mxu0 %v3358
    %3485 = vmatprep.subr.mxu0 %v3363
    %3486 = vmatpush1.msra.mxu0 %v3362
    %3487 = vmatprep.subr.mxu0 %v3367
    %3488 = vmatpush1.msra.mxu0 %v3366
    %3489 = vmatprep.subr.mxu0 %v3371
    %3490 = vmatpush1.msra.mxu0 %v3370
    %3491 = vmatprep.subr.mxu0 %v3375
    %3492 = vmatpush1.msra.mxu0 %v3374
    %3493 = vmatprep.subr.mxu0 %v3379
    %3494 = vmatpush1.msra.mxu0 %v3378
    %3495 = vmatprep.subr.mxu0 %v3383
    %3496 = vmatpush1.msra.mxu0 %v3382
    %3497 = vmatprep.subr.mxu0 %v3387
    %3498 = vmatpush1.msra.mxu0 %v3386
    %3499 = vmatprep.subr.mxu0 %v3391
    %3500 = vmatpush1.msra.mxu0 %v3390
    %3501 = vmatprep.subr.mxu0 %v3395
    %3502 = vmatpush1.msra.mxu0 %v3394
    %3503 = vmatprep.subr.mxu0 %v3399
    %3504 = vmatpush1.msra.mxu0 %v3398
    %3505 = vmatprep.subr.mxu0 %v3403
    %3506 = vmatpush1.msra.mxu0 %v3402
    %3507 = vmatprep.subr.mxu0 %v3407
    %3508 = vmatpush1.msra.mxu0 %v3406
    %3509 = vmatprep.subr.mxu0 %v3411
    %3510 = vmatpush1.msra.mxu0 %v3410
    %3511 = vmatprep.subr.mxu0 0.0
    %3512 = vmatpush1.msra.mxu0 0.0
    %3513 = vmatprep.subr.mxu0 0.0
    %3514 = vmatpush1.msra.mxu0 0.0
    %3515 = vmatprep.subr.mxu0 0.0
    %3516 = vmatpush1.msra.mxu0 0.0
    %3517 = vmatprep.subr.mxu0 0.0
    %3518 = vmatpush1.msra.mxu0 0.0
    %3519 = vmatprep.subr.mxu0 0.0
    %3520 = vmatpush1.msra.mxu0 0.0
    %3521 = vmatprep.subr.mxu0 0.0
    %3522 = vmatpush1.msra.mxu0 0.0
    %3523 = vmatprep.subr.mxu0 0.0
    %3524 = vmatpush1.msra.mxu0 0.0
    %3525 = vmatprep.subr.mxu0 0.0
    %3526 = vmatpush1.msra.mxu0 0.0
    %3527 = vmatprep.subr.mxu0 0.0
    %3528 = vmatpush1.msra.mxu0 0.0
    %3529 = vmatprep.subr.mxu0 0.0
    %3530 = vmatpush1.msra.mxu0 0.0
    %3531 = vmatprep.subr.mxu0 0.0
    %3532 = vmatpush1.msra.mxu0 0.0
    %3533 = vmatprep.subr.mxu0 0.0
    %3534 = vmatpush1.msra.mxu0 0.0
    %3535 = vmatprep.subr.mxu0 0.0
    %3536 = vmatpush1.msra.mxu0 0.0
    %3537 = vmatprep.subr.mxu0 0.0
    %3538 = vmatpush1.msra.mxu0 0.0
    %3539 = vmatprep.subr.mxu0 0.0
    %3540 = vmatpush1.msra.mxu0 0.0
    %3541 = vmatprep.subr.mxu0 0.0
    %3542 = vmatpush1.msra.mxu0 0.0
    %3543 = vmatprep.mubr.f32.mxu0 0.0
    %3544 = vmatmul.mubr.f32.gmra.mrb[0].mxu0 0.0
    %v3545 = vpop.f32.mrb[0].mxu0
    %v3546 = vadd.f32 0.0, %v3545
    %v3547 = vpop.f32.mrb[0].mxu0
    %v3548 = vadd.f32 0.0, %v3547
    %3549 = vdwg.mxu0
    %3550 = vmatprep.subr.mxu0 %v3353
    %3551 = vmatpush1.msra.mxu0 %v3352
    %3552 = vmatprep.subr.mxu0 %v3357
    %3553 = vmatpush1.msra.mxu0 %v3356
    %3554 = vmatprep.subr.mxu0 %v3361
    %3555 = vmatpush1.msra.mxu0 %v3360
    %3556 = vmatprep.subr.mxu0 %v3365
    %3557 = vmatpush1.msra.mxu0 %v3364
    %3558 = vmatprep.subr.mxu0 %v3369
    %3559 = vmatpush1.msra.mxu0 %v3368
    %3560 = vmatprep.subr.mxu0 %v3373
    %3561 = vmatpush1.msra.mxu0 %v3372
    %3562 = vmatprep.subr.mxu0 %v3377
    %3563 = vmatpush1.msra.mxu0 %v3376
    %3564 = vmatprep.subr.mxu0 %v3381
    %3565 = vmatpush1.msra.mxu0 %v3380
    %3566 = vmatprep.subr.mxu0 %v3385
    %3567 = vmatpush1.msra.mxu0 %v3384
    %3568 = vmatprep.subr.mxu0 %v3389
    %3569 = vmatpush1.msra.mxu0 %v3388
    %3570 = vmatprep.subr.mxu0 %v3393
    %3571 = vmatpush1.msra.mxu0 %v3392
    %3572 = vmatprep.subr.mxu0 %v3397
    %3573 = vmatpush1.msra.mxu0 %v3396
    %3574 = vmatprep.subr.mxu0 %v3401
    %3575 = vmatpush1.msra.mxu0 %v3400
    %3576 = vmatprep.subr.mxu0 %v3405
    %3577 = vmatpush1.msra.mxu0 %v3404
    %3578 = vmatprep.subr.mxu0 %v3409
    %3579 = vmatpush1.msra.mxu0 %v3408
    %3580 = vmatprep.subr.mxu0 %v3413
    %3581 = vmatpush1.msra.mxu0 %v3412
    %3582 = vmatprep.subr.mxu0 0.0
    %3583 = vmatpush1.msra.mxu0 0.0
    %3584 = vmatprep.subr.mxu0 0.0
    %3585 = vmatpush1.msra.mxu0 0.0
    %3586 = vmatprep.subr.mxu0 0.0
    %3587 = vmatpush1.msra.mxu0 0.0
    %3588 = vmatprep.subr.mxu0 0.0
    %3589 = vmatpush1.msra.mxu0 0.0
    %3590 = vmatprep.subr.mxu0 0.0
    %3591 = vmatpush1.msra.mxu0 0.0
    %3592 = vmatprep.subr.mxu0 0.0
    %3593 = vmatpush1.msra.mxu0 0.0
    %3594 = vmatprep.subr.mxu0 0.0
    %3595 = vmatpush1.msra.mxu0 0.0
    %3596 = vmatprep.subr.mxu0 0.0
    %3597 = vmatpush1.msra.mxu0 0.0
    %3598 = vmatprep.subr.mxu0 0.0
    %3599 = vmatpush1.msra.mxu0 0.0
    %3600 = vmatprep.subr.mxu0 0.0
    %3601 = vmatpush1.msra.mxu0 0.0
    %3602 = vmatprep.subr.mxu0 0.0
    %3603 = vmatpush1.msra.mxu0 0.0
    %3604 = vmatprep.subr.mxu0 0.0
    %3605 = vmatpush1.msra.mxu0 0.0
    %3606 = vmatprep.subr.mxu0 0.0
    %3607 = vmatpush1.msra.mxu0 0.0
    %3608 = vmatprep.subr.mxu0 0.0
    %3609 = vmatpush1.msra.mxu0 0.0
    %3610 = vmatprep.subr.mxu0 0.0
    %3611 = vmatpush1.msra.mxu0 0.0
    %3612 = vmatprep.subr.mxu0 0.0
    %3613 = vmatpush1.msra.mxu0 0.0
    %3614 = vmatprep.mubr.f32.mxu0 0.0
    %3615 = vmatmul.mubr.f32.gmra.mrb[0].mxu0 0.0
    %v3616 = vpop.f32.mrb[0].mxu0
    %v3617 = vadd.f32 0.0, %v3616
    %v3618 = vpop.f32.mrb[0].mxu0
    %v3619 = vadd.f32 0.0, %v3618
    %3620 = vdwg.mxu0
    %v3625 = vcombine.low %v3546, %v3548
    %v3626 = vcombine.low %v3617, %v3619
    %v3628 = vunpack.c.l.s4 1966171168
    %v3629 = vunpack.c.0.s8 %v3628
    %v3630 = vlaneseq
    %v3631 = vshrl.u32 %v3630, 7
    %v3632 = vsub.s32 %v3629, %v3631
    %v3633 = vrot.slane %v3625, %v3632
    %v3635 = vunpack.c.l.s4 1966171168
    %v3636 = vunpack.c.0.s8 %v3635
    %v3637 = vlaneseq
    %v3638 = vshrl.u32 %v3637, 7
    %v3639 = vsub.s32 %v3636, %v3638
    %v3640 = vrot.slane %v3626, %v3639
    %v3641 = vcombine.low %v3633, %v3640
    %v3643 = vunpack.c.l.s4 1966171168
    %v3644 = vunpack.c.0.s8 %v3643
    %v3645 = vlaneseq
    %v3646 = vshrl.u32 %v3645, 7
    %v3647 = vsub.s32 %v3644, %v3646
    %v3648 = vrot.slane %v3641, %v3647
    %v3650 = vadd.f32 %v3478, %v3648
    %v3651 = vxor.u32 %v3650, 2147483648
    %v3652 = vmul.f32 %v3651, 1.442695
    %v3653 = vpow.pop %v3652
    %v3654 = vadd.f32 %v3653, 1.0
    %v3655 = vrcp.pop %v3654
    %v3656 = vmul.f32 1.0, %v3655
    %v3658 = vrot.slane %v3650, 1
    %v3660 = vxor.u32 %v3658, 2147483648
    %v3661 = vmul.f32 %v3660, 1.442695
    %v3662 = vpow.pop %v3661
    %v3663 = vadd.f32 %v3662, 1.0
    %v3664 = vrcp.pop %v3663
    %v3665 = vmul.f32 1.0, %v3664
    %v3666 = vrot.slane %v3650, 2
    %v3668 = vtanh.pop %v3666
    %v3669 = vrot.slane %v3650, 3
    %v3671 = vxor.u32 %v3669, 2147483648
    %v3672 = vmul.f32 %v3671, 1.442695
    %v3673 = vpow.pop %v3672
    %v3674 = vadd.f32 %v3673, 1.0
    %v3675 = vrcp.pop %v3674
    %v3676 = vmul.f32 1.0, %v3675
    %v3677 = vmul.f32 %v3665, 0.0
    %v3678 = vmul.f32 %v3656, %v3668
    %v3679 = vadd.f32 %v3677, %v3678
    %v3680 = vtanh.pop %v3679
    %v3681 = vmul.f32 %v3676, %v3680
    %3682 = vst [vmem:[#allocation3] sm:$0x1] %v3681
    %s3683 = scalar_lea.vmem [#allocation2], 39
    %v3684 = vld [vmem:[%s3683] ss:$8 sm:$0xf]
    %3685 = vmatprep.subr.mxu0 %v3415
    %3686 = vmatpush1.msra.mxu0 %v3414
    %3687 = vmatprep.subr.mxu0 %v3419
    %3688 = vmatpush1.msra.mxu0 %v3418
    %3689 = vmatprep.subr.mxu0 %v3423
    %3690 = vmatpush1.msra.mxu0 %v3422
    %3691 = vmatprep.subr.mxu0 %v3427
    %3692 = vmatpush1.msra.mxu0 %v3426
    %3693 = vmatprep.subr.mxu0 %v3431
    %3694 = vmatpush1.msra.mxu0 %v3430
    %3695 = vmatprep.subr.mxu0 %v3435
    %3696 = vmatpush1.msra.mxu0 %v3434
    %3697 = vmatprep.subr.mxu0 %v3439
    %3698 = vmatpush1.msra.mxu0 %v3438
    %3699 = vmatprep.subr.mxu0 %v3443
    %3700 = vmatpush1.msra.mxu0 %v3442
    %3701 = vmatprep.subr.mxu0 %v3447
    %3702 = vmatpush1.msra.mxu0 %v3446
    %3703 = vmatprep.subr.mxu0 %v3451
    %3704 = vmatpush1.msra.mxu0 %v3450
    %3705 = vmatprep.subr.mxu0 %v3455
    %3706 = vmatpush1.msra.mxu0 %v3454
    %3707 = vmatprep.subr.mxu0 %v3459
    %3708 = vmatpush1.msra.mxu0 %v3458
    %3709 = vmatprep.subr.mxu0 %v3463
    %3710 = vmatpush1.msra.mxu0 %v3462
    %3711 = vmatprep.subr.mxu0 %v3467
    %3712 = vmatpush1.msra.mxu0 %v3466
    %3713 = vmatprep.subr.mxu0 %v3471
    %3714 = vmatpush1.msra.mxu0 %v3470
    %3715 = vmatprep.subr.mxu0 %v3475
    %3716 = vmatpush1.msra.mxu0 %v3474
    %3717 = vmatprep.subr.mxu0 0.0
    %3718 = vmatpush1.msra.mxu0 0.0
    %3719 = vmatprep.subr.mxu0 0.0
    %3720 = vmatpush1.msra.mxu0 0.0
    %3721 = vmatprep.subr.mxu0 0.0
    %3722 = vmatpush1.msra.mxu0 0.0
    %3723 = vmatprep.subr.mxu0 0.0
    %3724 = vmatpush1.msra.mxu0 0.0
    %3725 = vmatprep.subr.mxu0 0.0
    %3726 = vmatpush1.msra.mxu0 0.0
    %3727 = vmatprep.subr.mxu0 0.0
    %3728 = vmatpush1.msra.mxu0 0.0
    %3729 = vmatprep.subr.mxu0 0.0
    %3730 = vmatpush1.msra.mxu0 0.0
    %3731 = vmatprep.subr.mxu0 0.0
    %3732 = vmatpush1.msra.mxu0 0.0
    %3733 = vmatprep.subr.mxu0 0.0
    %3734 = vmatpush1.msra.mxu0 0.0
    %3735 = vmatprep.subr.mxu0 0.0
    %3736 = vmatpush1.msra.mxu0 0.0
    %3737 = vmatprep.subr.mxu0 0.0
    %3738 = vmatpush1.msra.mxu0 0.0
    %3739 = vmatprep.subr.mxu0 0.0
    %3740 = vmatpush1.msra.mxu0 0.0
    %3741 = vmatprep.subr.mxu0 0.0
    %3742 = vmatpush1.msra.mxu0 0.0
    %3743 = vmatprep.subr.mxu0 0.0
    %3744 = vmatpush1.msra.mxu0 0.0
    %3745 = vmatprep.subr.mxu0 0.0
    %3746 = vmatpush1.msra.mxu0 0.0
    %3747 = vmatprep.subr.mxu0 0.0
    %3748 = vmatpush1.msra.mxu0 0.0
    %3749 = vmatprep.mubr.f32.mxu0 0.0
    %3750 = vmatmul.mubr.f32.gmra.mrb[0].mxu0 0.0
    %v3751 = vpop.f32.mrb[0].mxu0
    %v3752 = vadd.f32 0.0, %v3751
    %v3753 = vpop.f32.mrb[0].mxu0
    %v3754 = vadd.f32 0.0, %v3753
    %3755 = vdwg.mxu0
    %3756 = vmatprep.subr.mxu0 %v3417
    %3757 = vmatpush1.msra.mxu0 %v3416
    %3758 = vmatprep.subr.mxu0 %v3421
    %3759 = vmatpush1.msra.mxu0 %v3420
    %3760 = vmatprep.subr.mxu0 %v3425
    %3761 = vmatpush1.msra.mxu0 %v3424
    %3762 = vmatprep.subr.mxu0 %v3429
    %3763 = vmatpush1.msra.mxu0 %v3428
    %3764 = vmatprep.subr.mxu0 %v3433
    %3765 = vmatpush1.msra.mxu0 %v3432
    %3766 = vmatprep.subr.mxu0 %v3437
    %3767 = vmatpush1.msra.mxu0 %v3436
    %3768 = vmatprep.subr.mxu0 %v3441
    %3769 = vmatpush1.msra.mxu0 %v3440
    %3770 = vmatprep.subr.mxu0 %v3445
    %3771 = vmatpush1.msra.mxu0 %v3444
    %3772 = vmatprep.subr.mxu0 %v3449
    %3773 = vmatpush1.msra.mxu0 %v3448
    %3774 = vmatprep.subr.mxu0 %v3453
    %3775 = vmatpush1.msra.mxu0 %v3452
    %3776 = vmatprep.subr.mxu0 %v3457
    %3777 = vmatpush1.msra.mxu0 %v3456
    %3778 = vmatprep.subr.mxu0 %v3461
    %3779 = vmatpush1.msra.mxu0 %v3460
    %3780 = vmatprep.subr.mxu0 %v3465
    %3781 = vmatpush1.msra.mxu0 %v3464
    %3782 = vmatprep.subr.mxu0 %v3469
    %3783 = vmatpush1.msra.mxu0 %v3468
    %3784 = vmatprep.subr.mxu0 %v3473
    %3785 = vmatpush1.msra.mxu0 %v3472
    %3786 = vmatprep.subr.mxu0 %v3477
    %3787 = vmatpush1.msra.mxu0 %v3476
    %3788 = vmatprep.subr.mxu0 0.0
    %3789 = vmatpush1.msra.mxu0 0.0
    %3790 = vmatprep.subr.mxu0 0.0
    %3791 = vmatpush1.msra.mxu0 0.0
    %3792 = vmatprep.subr.mxu0 0.0
    %3793 = vmatpush1.msra.mxu0 0.0
    %3794 = vmatprep.subr.mxu0 0.0
    %3795 = vmatpush1.msra.mxu0 0.0
    %3796 = vmatprep.subr.mxu0 0.0
    %3797 = vmatpush1.msra.mxu0 0.0
    %3798 = vmatprep.subr.mxu0 0.0
    %3799 = vmatpush1.msra.mxu0 0.0
    %3800 = vmatprep.subr.mxu0 0.0
    %3801 = vmatpush1.msra.mxu0 0.0
    %3802 = vmatprep.subr.mxu0 0.0
    %3803 = vmatpush1.msra.mxu0 0.0
    %3804 = vmatprep.subr.mxu0 0.0
    %3805 = vmatpush1.msra.mxu0 0.0
    %3806 = vmatprep.subr.mxu0 0.0
    %3807 = vmatpush1.msra.mxu0 0.0
    %3808 = vmatprep.subr.mxu0 0.0
    %3809 = vmatpush1.msra.mxu0 0.0
    %3810 = vmatprep.subr.mxu0 0.0
    %3811 = vmatpush1.msra.mxu0 0.0
    %3812 = vmatprep.subr.mxu0 0.0
    %3813 = vmatpush1.msra.mxu0 0.0
    %3814 = vmatprep.subr.mxu0 0.0
    %3815 = vmatpush1.msra.mxu0 0.0
    %3816 = vmatprep.subr.mxu0 0.0
    %3817 = vmatpush1.msra.mxu0 0.0
    %3818 = vmatprep.subr.mxu0 0.0
    %3819 = vmatpush1.msra.mxu0 0.0
    %3820 = vmatprep.mubr.f32.mxu0 0.0
    %3821 = vmatmul.mubr.f32.gmra.mrb[0].mxu0 0.0
    %v3822 = vpop.f32.mrb[0].mxu0
    %v3823 = vadd.f32 0.0, %v3822
    %v3824 = vpop.f32.mrb[0].mxu0
    %v3825 = vadd.f32 0.0, %v3824
    %3826 = vdwg.mxu0
    %v3831 = vcombine.low %v3752, %v3754
    %v3832 = vcombine.low %v3823, %v3825
    %v3834 = vunpack.c.l.s4 1966171168
    %v3835 = vunpack.c.0.s8 %v3834
    %v3836 = vlaneseq
    %v3837 = vshrl.u32 %v3836, 7
    %v3838 = vsub.s32 %v3835, %v3837
    %v3839 = vrot.slane %v3831, %v3838
    %v3841 = vunpack.c.l.s4 1966171168
    %v3842 = vunpack.c.0.s8 %v3841
    %v3843 = vlaneseq
    %v3844 = vshrl.u32 %v3843, 7
    %v3845 = vsub.s32 %v3842, %v3844
    %v3846 = vrot.slane %v3832, %v3845
    %v3847 = vcombine.low %v3839, %v3846
    %v3849 = vunpack.c.l.s4 1966171168
    %v3850 = vunpack.c.0.s8 %v3849
    %v3851 = vlaneseq
    %v3852 = vshrl.u32 %v3851, 7
    %v3853 = vsub.s32 %v3850, %v3852
    %v3854 = vrot.slane %v3847, %v3853
    %v3856 = vadd.f32 %v3684, %v3854
    %v3857 = vxor.u32 %v3856, 2147483648
    %v3858 = vmul.f32 %v3857, 1.442695
    %v3859 = vpow.pop %v3858
    %v3860 = vadd.f32 %v3859, 1.0
    %v3861 = vrcp.pop %v3860
    %v3862 = vmul.f32 1.0, %v3861
    %v3864 = vrot.slane %v3856, 1
    %v3866 = vxor.u32 %v3864, 2147483648
    %v3867 = vmul.f32 %v3866, 1.442695
    %v3868 = vpow.pop %v3867
    %v3869 = vadd.f32 %v3868, 1.0
    %v3870 = vrcp.pop %v3869
    %v3871 = vmul.f32 1.0, %v3870
    %v3872 = vrot.slane %v3856, 2
    %v3874 = vtanh.pop %v3872
    %v3875 = vrot.slane %v3856, 3
    %v3877 = vxor.u32 %v3875, 2147483648
    %v3878 = vmul.f32 %v3877, 1.442695
    %v3879 = vpow.pop %v3878
    %v3880 = vadd.f32 %v3879, 1.0
    %v3881 = vrcp.pop %v3880
    %v3882 = vmul.f32 1.0, %v3881
    %v3883 = vmul.f32 %v3871, 0.0
    %v3884 = vmul.f32 %v3862, %v3874
    %v3885 = vadd.f32 %v3883, %v3884
    %v3886 = vtanh.pop %v3885
    %v3887 = vmul.f32 %v3882, %v3886
    %3888 = vst [vmem:[#allocation4 + $0x7] sm:$0x1] %v3887
    %s3889 = scalar_lea.vmem [#allocation2], 1
    %v3890 = vld [vmem:[%s3889] ss:$8 sm:$0xf]
    %3891 = vmatprep.subr.mxu0 %v3351
    %3892 = vmatpush1.msra.mxu0 %v3350
    %3893 = vmatprep.subr.mxu0 %v3355
    %3894 = vmatpush1.msra.mxu0 %v3354
    %3895 = vmatprep.subr.mxu0 %v3359
    %3896 = vmatpush1.msra.mxu0 %v3358
    %3897 = vmatprep.subr.mxu0 %v3363
    %3898 = vmatpush1.msra.mxu0 %v3362
    %3899 = vmatprep.subr.mxu0 %v3367
    %3900 = vmatpush1.msra.mxu0 %v3366
    %3901 = vmatprep.subr.mxu0 %v3371
    %3902 = vmatpush1.msra.mxu0 %v3370
    %3903 = vmatprep.subr.mxu0 %v3375
    %3904 = vmatpush1.msra.mxu0 %v3374
    %3905 = vmatprep.subr.mxu0 %v3379
    %3906 = vmatpush1.msra.mxu0 %v3378
    %3907 = vmatprep.subr.mxu0 %v3383
    %3908 = vmatpush1.msra.mxu0 %v3382
    %3909 = vmatprep.subr.mxu0 %v3387
    %3910 = vmatpush1.msra.mxu0 %v3386
    %3911 = vmatprep.subr.mxu0 %v3391
    %3912 = vmatpush1.msra.mxu0 %v3390
    %3913 = vmatprep.subr.mxu0 %v3395
    %3914 = vmatpush1.msra.mxu0 %v3394
    %3915 = vmatprep.subr.mxu0 %v3399
    %3916 = vmatpush1.msra.mxu0 %v3398
    %3917 = vmatprep.subr.mxu0 %v3403
    %3918 = vmatpush1.msra.mxu0 %v3402
    %3919 = vmatprep.subr.mxu0 %v3407
    %3920 = vmatpush1.msra.mxu0 %v3406
    %3921 = vmatprep.subr.mxu0 %v3411
    %3922 = vmatpush1.msra.mxu0 %v3410
    %3923 = vmatprep.subr.mxu0 0.0
    %3924 = vmatpush1.msra.mxu0 0.0
    %3925 = vmatprep.subr.mxu0 0.0
    %3926 = vmatpush1.msra.mxu0 0.0
    %3927 = vmatprep.subr.mxu0 0.0
    %3928 = vmatpush1.msra.mxu0 0.0
    %3929 = vmatprep.subr.mxu0 0.0
    %3930 = vmatpush1.msra.mxu0 0.0
    %3931 = vmatprep.subr.mxu0 0.0
    %3932 = vmatpush1.msra.mxu0 0.0
    %3933 = vmatprep.subr.mxu0 0.0
    %3934 = vmatpush1.msra.mxu0 0.0
    %3935 = vmatprep.subr.mxu0 0.0
    %3936 = vmatpush1.msra.mxu0 0.0
    %3937 = vmatprep.subr.mxu0 0.0
    %3938 = vmatpush1.msra.mxu0 0.0
    %3939 = vmatprep.subr.mxu0 0.0
    %3940 = vmatpush1.msra.mxu0 0.0
    %3941 = vmatprep.subr.mxu0 0.0
    %3942 = vmatpush1.msra.mxu0 0.0
    %3943 = vmatprep.subr.mxu0 0.0
    %3944 = vmatpush1.msra.mxu0 0.0
    %3945 = vmatprep.subr.mxu0 0.0
    %3946 = vmatpush1.msra.mxu0 0.0
    %3947 = vmatprep.subr.mxu0 0.0
    %3948 = vmatpush1.msra.mxu0 0.0
    %3949 = vmatprep.subr.mxu0 0.0
    %3950 = vmatpush1.msra.mxu0 0.0
    %3951 = vmatprep.subr.mxu0 0.0
    %3952 = vmatpush1.msra.mxu0 0.0
    %3953 = vmatprep.subr.mxu0 0.0
    %3954 = vmatpush1.msra.mxu0 0.0
    %3955 = vmatprep.mubr.f32.mxu0 0.0
    %3956 = vmatmul.mubr.f32.gmra.mrb[0].mxu0 %v3681
    %v3957 = vpop.f32.mrb[0].mxu0
    %v3958 = vadd.f32 0.0, %v3957
    %v3959 = vpop.f32.mrb[0].mxu0
    %v3960 = vadd.f32 0.0, %v3959
    %3961 = vdwg.mxu0
    %3962 = vmatprep.subr.mxu0 %v3353
    %3963 = vmatpush1.msra.mxu0 %v3352
    %3964 = vmatprep.subr.mxu0 %v3357
    %3965 = vmatpush1.msra.mxu0 %v3356
    %3966 = vmatprep.subr.mxu0 %v3361
    %3967 = vmatpush1.msra.mxu0 %v3360
    %3968 = vmatprep.subr.mxu0 %v3365
    %3969 = vmatpush1.msra.mxu0 %v3364
    %3970 = vmatprep.subr.mxu0 %v3369
    %3971 = vmatpush1.msra.mxu0 %v3368
    %3972 = vmatprep.subr.mxu0 %v3373
    %3973 = vmatpush1.msra.mxu0 %v3372
    %3974 = vmatprep.subr.mxu0 %v3377
    %3975 = vmatpush1.msra.mxu0 %v3376
    %3976 = vmatprep.subr.mxu0 %v3381
    %3977 = vmatpush1.msra.mxu0 %v3380
    %3978 = vmatprep.subr.mxu0 %v3385
    %3979 = vmatpush1.msra.mxu0 %v3384
    %3980 = vmatprep.subr.mxu0 %v3389
    %3981 = vmatpush1.msra.mxu0 %v3388
    %3982 = vmatprep.subr.mxu0 %v3393
    %3983 = vmatpush1.msra.mxu0 %v3392
    %3984 = vmatprep.subr.mxu0 %v3397
    %3985 = vmatpush1.msra.mxu0 %v3396
    %3986 = vmatprep.subr.mxu0 %v3401
    %3987 = vmatpush1.msra.mxu0 %v3400
    %3988 = vmatprep.subr.mxu0 %v3405
    %3989 = vmatpush1.msra.mxu0 %v3404
    %3990 = vmatprep.subr.mxu0 %v3409
    %3991 = vmatpush1.msra.mxu0 %v3408
    %3992 = vmatprep.subr.mxu0 %v3413
    %3993 = vmatpush1.msra.mxu0 %v3412
    %3994 = vmatprep.subr.mxu0 0.0
    %3995 = vmatpush1.msra.mxu0 0.0
    %3996 = vmatprep.subr.mxu0 0.0
    %3997 = vmatpush1.msra.mxu0 0.0
    %3998 = vmatprep.subr.mxu0 0.0
    %3999 = vmatpush1.msra.mxu0 0.0
    %4000 = vmatprep.subr.mxu0 0.0
    %4001 = vmatpush1.msra.mxu0 0.0
    %4002 = vmatprep.subr.mxu0 0.0
    %4003 = vmatpush1.msra.mxu0 0.0
    %4004 = vmatprep.subr.mxu0 0.0
    %4005 = vmatpush1.msra.mxu0 0.0
    %4006 = vmatprep.subr.mxu0 0.0
    %4007 = vmatpush1.msra.mxu0 0.0
    %4008 = vmatprep.subr.mxu0 0.0
    %4009 = vmatpush1.msra.mxu0 0.0
    %4010 = vmatprep.subr.mxu0 0.0
    %4011 = vmatpush1.msra.mxu0 0.0
    %4012 = vmatprep.subr.mxu0 0.0
    %4013 = vmatpush1.msra.mxu0 0.0
    %4014 = vmatprep.subr.mxu0 0.0
    %4015 = vmatpush1.msra.mxu0 0.0
    %4016 = vmatprep.subr.mxu0 0.0
    %4017 = vmatpush1.msra.mxu0 0.0
    %4018 = vmatprep.subr.mxu0 0.0
    %4019 = vmatpush1.msra.mxu0 0.0
    %4020 = vmatprep.subr.mxu0 0.0
    %4021 = vmatpush1.msra.mxu0 0.0
    %4022 = vmatprep.subr.mxu0 0.0
    %4023 = vmatpush1.msra.mxu0 0.0
    %4024 = vmatprep.subr.mxu0 0.0
    %4025 = vmatpush1.msra.mxu0 0.0
    %4026 = vmatprep.mubr.f32.mxu0 0.0
    %4027 = vmatmul.mubr.f32.gmra.mrb[0].mxu0 %v3681
    %v4028 = vpop.f32.mrb[0].mxu0
    %v4029 = vadd.f32 0.0, %v4028
    %v4030 = vpop.f32.mrb[0].mxu0
    %v4031 = vadd.f32 0.0, %v4030
    %4032 = vdwg.mxu0
    %v4037 = vcombine.low %v3958, %v3960
    %v4038 = vcombine.low %v4029, %v4031
    %v4040 = vunpack.c.l.s4 1966171168
    %v4041 = vunpack.c.0.s8 %v4040
    %v4042 = vlaneseq
    %v4043 = vshrl.u32 %v4042, 7
    %v4044 = vsub.s32 %v4041, %v4043
    %v4045 = vrot.slane %v4037, %v4044
    %v4047 = vunpack.c.l.s4 1966171168
    %v4048 = vunpack.c.0.s8 %v4047
    %v4049 = vlaneseq
    %v4050 = vshrl.u32 %v4049, 7
    %v4051 = vsub.s32 %v4048, %v4050
    %v4052 = vrot.slane %v4038, %v4051
    %v4053 = vcombine.low %v4045, %v4052
    %v4055 = vunpack.c.l.s4 1966171168
    %v4056 = vunpack.c.0.s8 %v4055
    %v4057 = vlaneseq
    %v4058 = vshrl.u32 %v4057, 7
    %v4059 = vsub.s32 %v4056, %v4058
    %v4060 = vrot.slane %v4053, %v4059
    %v4062 = vadd.f32 %v3890, %v4060
    %v4063 = vxor.u32 %v4062, 2147483648
    %v4064 = vmul.f32 %v4063, 1.442695
    %v4065 = vpow.pop %v4064
    %v4066 = vadd.f32 %v4065, 1.0
    %v4067 = vrcp.pop %v4066
    %v4068 = vmul.f32 1.0, %v4067
    %v4070 = vrot.slane %v4062, 1
    %v4072 = vxor.u32 %v4070, 2147483648
    %v4073 = vmul.f32 %v4072, 1.442695
    %v4074 = vpow.pop %v4073
    %v4075 = vadd.f32 %v4074, 1.0
    %v4076 = vrcp.pop %v4075
    %v4077 = vmul.f32 1.0, %v4076
    %v4078 = vrot.slane %v4062, 2
    %v4080 = vtanh.pop %v4078
    %v4081 = vrot.slane %v4062, 3
    %v4083 = vxor.u32 %v4081, 2147483648
    %v4084 = vmul.f32 %v4083, 1.442695
    %v4085 = vpow.pop %v4084
    %v4086 = vadd.f32 %v4085, 1.0
    %v4087 = vrcp.pop %v4086
    %v4088 = vmul.f32 1.0, %v4087
    %v4089 = vmul.f32 %v4077, %v3679
    %v4090 = vmul.f32 %v4068, %v4080
    %v4091 = vadd.f32 %v4089, %v4090
    %v4092 = vtanh.pop %v4091
    %v4093 = vmul.f32 %v4088, %v4092
    %4094 = vst [vmem:[#allocation3 + $0x1] sm:$0x1] %v4093
    %s4095 = scalar_lea.vmem [#allocation2], 38
    %v4096 = vld [vmem:[%s4095] ss:$8 sm:$0xf]
    %4097 = vmatprep.subr.mxu0 %v3415
    %4098 = vmatpush1.msra.mxu0 %v3414
    %4099 = vmatprep.subr.mxu0 %v3419
    %4100 = vmatpush1.msra.mxu0 %v3418
    %4101 = vmatprep.subr.mxu0 %v3423
    %4102 = vmatpush1.msra.mxu0 %v3422
    %4103 = vmatprep.subr.mxu0 %v3427
    %4104 = vmatpush1.msra.mxu0 %v3426
    %4105 = vmatprep.subr.mxu0 %v3431
    %4106 = vmatpush1.msra.mxu0 %v3430
    %4107 = vmatprep.subr.mxu0 %v3435
    %4108 = vmatpush1.msra.mxu0 %v3434
    %4109 = vmatprep.subr.mxu0 %v3439
    %4110 = vmatpush1.msra.mxu0 %v3438
    %4111 = vmatprep.subr.mxu0 %v3443
    %4112 = vmatpush1.msra.mxu0 %v3442
    %4113 = vmatprep.subr.mxu0 %v3447
    %4114 = vmatpush1.msra.mxu0 %v3446
    %4115 = vmatprep.subr.mxu0 %v3451
    %4116 = vmatpush1.msra.mxu0 %v3450
    %4117 = vmatprep.subr.mxu0 %v3455
    %4118 = vmatpush1.msra.mxu0 %v3454
    %4119 = vmatprep.subr.mxu0 %v3459
    %4120 = vmatpush1.msra.mxu0 %v3458
    %4121 = vmatprep.subr.mxu0 %v3463
    %4122 = vmatpush1.msra.mxu0 %v3462
    %4123 = vmatprep.subr.mxu0 %v3467
    %4124 = vmatpush1.msra.mxu0 %v3466
    %4125 = vmatprep.subr.mxu0 %v3471
    %4126 = vmatpush1.msra.mxu0 %v3470
    %4127 = vmatprep.subr.mxu0 %v3475
    %4128 = vmatpush1.msra.mxu0 %v3474
    %4129 = vmatprep.subr.mxu0 0.0
    %4130 = vmatpush1.msra.mxu0 0.0
    %4131 = vmatprep.subr.mxu0 0.0
    %4132 = vmatpush1.msra.mxu0 0.0
    %4133 = vmatprep.subr.mxu0 0.0
    %4134 = vmatpush1.msra.mxu0 0.0
    %4135 = vmatprep.subr.mxu0 0.0
    %4136 = vmatpush1.msra.mxu0 0.0
    %4137 = vmatprep.subr.mxu0 0.0
    %4138 = vmatpush1.msra.mxu0 0.0
    %4139 = vmatprep.subr.mxu0 0.0
    %4140 = vmatpush1.msra.mxu0 0.0
    %4141 = vmatprep.subr.mxu0 0.0
    %4142 = vmatpush1.msra.mxu0 0.0
    %4143 = vmatprep.subr.mxu0 0.0
    %4144 = vmatpush1.msra.mxu0 0.0
    %4145 = vmatprep.subr.mxu0 0.0
    %4146 = vmatpush1.msra.mxu0 0.0
    %4147 = vmatprep.subr.mxu0 0.0
    %4148 = vmatpush1.msra.mxu0 0.0
    %4149 = vmatprep.subr.mxu0 0.0
    %4150 = vmatpush1.msra.mxu0 0.0
    %4151 = vmatprep.subr.mxu0 0.0
    %4152 = vmatpush1.msra.mxu0 0.0
    %4153 = vmatprep.subr.mxu0 0.0
    %4154 = vmatpush1.msra.mxu0 0.0
    %4155 = vmatprep.subr.mxu0 0.0
    %4156 = vmatpush1.msra.mxu0 0.0
    %4157 = vmatprep.subr.mxu0 0.0
    %4158 = vmatpush1.msra.mxu0 0.0
    %4159 = vmatprep.subr.mxu0 0.0
    %4160 = vmatpush1.msra.mxu0 0.0
    %4161 = vmatprep.mubr.f32.mxu0 0.0
    %4162 = vmatmul.mubr.f32.gmra.mrb[0].mxu0 %v3887
    %v4163 = vpop.f32.mrb[0].mxu0
    %v4164 = vadd.f32 0.0, %v4163
    %v4165 = vpop.f32.mrb[0].mxu0
    %v4166 = vadd.f32 0.0, %v4165
    %4167 = vdwg.mxu0
    %4168 = vmatprep.subr.mxu0 %v3417
    %4169 = vmatpush1.msra.mxu0 %v3416
    %4170 = vmatprep.subr.mxu0 %v3421
    %4171 = vmatpush1.msra.mxu0 %v3420
    %4172 = vmatprep.subr.mxu0 %v3425
    %4173 = vmatpush1.msra.mxu0 %v3424
    %4174 = vmatprep.subr.mxu0 %v3429
    %4175 = vmatpush1.msra.mxu0 %v3428
    %4176 = vmatprep.subr.mxu0 %v3433
    %4177 = vmatpush1.msra.mxu0 %v3432
    %4178 = vmatprep.subr.mxu0 %v3437
    %4179 = vmatpush1.msra.mxu0 %v3436
    %4180 = vmatprep.subr.mxu0 %v3441
    %4181 = vmatpush1.msra.mxu0 %v3440
    %4182 = vmatprep.subr.mxu0 %v3445
    %4183 = vmatpush1.msra.mxu0 %v3444
    %4184 = vmatprep.subr.mxu0 %v3449
    %4185 = vmatpush1.msra.mxu0 %v3448
    %4186 = vmatprep.subr.mxu0 %v3453
    %4187 = vmatpush1.msra.mxu0 %v3452
    %4188 = vmatprep.subr.mxu0 %v3457
    %4189 = vmatpush1.msra.mxu0 %v3456
    %4190 = vmatprep.subr.mxu0 %v3461
    %4191 = vmatpush1.msra.mxu0 %v3460
    %4192 = vmatprep.subr.mxu0 %v3465
    %4193 = vmatpush1.msra.mxu0 %v3464
    %4194 = vmatprep.subr.mxu0 %v3469
    %4195 = vmatpush1.msra.mxu0 %v3468
    %4196 = vmatprep.subr.mxu0 %v3473
    %4197 = vmatpush1.msra.mxu0 %v3472
    %4198 = vmatprep.subr.mxu0 %v3477
    %4199 = vmatpush1.msra.mxu0 %v3476
    %4200 = vmatprep.subr.mxu0 0.0
    %4201 = vmatpush1.msra.mxu0 0.0
    %4202 = vmatprep.subr.mxu0 0.0
    %4203 = vmatpush1.msra.mxu0 0.0
    %4204 = vmatprep.subr.mxu0 0.0
    %4205 = vmatpush1.msra.mxu0 0.0
    %4206 = vmatprep.subr.mxu0 0.0
    %4207 = vmatpush1.msra.mxu0 0.0
    %4208 = vmatprep.subr.mxu0 0.0
    %4209 = vmatpush1.msra.mxu0 0.0
    %4210 = vmatprep.subr.mxu0 0.0
    %4211 = vmatpush1.msra.mxu0 0.0
    %4212 = vmatprep.subr.mxu0 0.0
    %4213 = vmatpush1.msra.mxu0 0.0
    %4214 = vmatprep.subr.mxu0 0.0
    %4215 = vmatpush1.msra.mxu0 0.0
    %4216 = vmatprep.subr.mxu0 0.0
    %4217 = vmatpush1.msra.mxu0 0.0
    %4218 = vmatprep.subr.mxu0 0.0
    %4219 = vmatpush1.msra.mxu0 0.0
    %4220 = vmatprep.subr.mxu0 0.0
    %4221 = vmatpush1.msra.mxu0 0.0
    %4222 = vmatprep.subr.mxu0 0.0
    %4223 = vmatpush1.msra.mxu0 0.0
    %4224 = vmatprep.subr.mxu0 0.0
    %4225 = vmatpush1.msra.mxu0 0.0
    %4226 = vmatprep.subr.mxu0 0.0
    %4227 = vmatpush1.msra.mxu0 0.0
    %4228 = vmatprep.subr.mxu0 0.0
    %4229 = vmatpush1.msra.mxu0 0.0
    %4230 = vmatprep.subr.mxu0 0.0
    %4231 = vmatpush1.msra.mxu0 0.0
    %4232 = vmatprep.mubr.f32.mxu0 0.0
    %4233 = vmatmul.mubr.f32.gmra.mrb[0].mxu0 %v3887
    %v4234 = vpop.f32.mrb[0].mxu0
    %v4235 = vadd.f32 0.0, %v4234
    %v4236 = vpop.f32.mrb[0].mxu0
    %v4237 = vadd.f32 0.0, %v4236
    %4238 = vdwg.mxu0
    %v4243 = vcombine.low %v4164, %v4166
    %v4244 = vcombine.low %v4235, %v4237
    %v4246 = vunpack.c.l.s4 1966171168
    %v4247 = vunpack.c.0.s8 %v4246
    %v4248 = vlaneseq
    %v4249 = vshrl.u32 %v4248, 7
    %v4250 = vsub.s32 %v4247, %v4249
    %v4251 = vrot.slane %v4243, %v4250
    %v4253 = vunpack.c.l.s4 1966171168
    %v4254 = vunpack.c.0.s8 %v4253
    %v4255 = vlaneseq
    %v4256 = vshrl.u32 %v4255, 7
    %v4257 = vsub.s32 %v4254, %v4256
    %v4258 = vrot.slane %v4244, %v4257
    %v4259 = vcombine.low %v4251, %v4258
    %v4261 = vunpack.c.l.s4 1966171168
    %v4262 = vunpack.c.0.s8 %v4261
    %v4263 = vlaneseq
    %v4264 = vshrl.u32 %v4263, 7
    %v4265 = vsub.s32 %v4262, %v4264
    %v4266 = vrot.slane %v4259, %v4265
    %v4268 = vadd.f32 %v4096, %v4266
    %v4269 = vxor.u32 %v4268, 2147483648
    %v4270 = vmul.f32 %v4269, 1.442695
    %v4271 = vpow.pop %v4270
    %v4272 = vadd.f32 %v4271, 1.0
    %v4273 = vrcp.pop %v4272
    %v4274 = vmul.f32 1.0, %v4273
    %v4276 = vrot.slane %v4268, 1
    %v4278 = vxor.u32 %v4276, 2147483648
    %v4279 = vmul.f32 %v4278, 1.442695
    %v4280 = vpow.pop %v4279
    %v4281 = vadd.f32 %v4280, 1.0
    %v4282 = vrcp.pop %v4281
    %v4283 = vmul.f32 1.0, %v4282
    %v4284 = vrot.slane %v4268, 2
    %v4286 = vtanh.pop %v4284
    %v4287 = vrot.slane %v4268, 3
    %v4289 = vxor.u32 %v4287, 2147483648
    %v4290 = vmul.f32 %v4289, 1.442695
    %v4291 = vpow.pop %v4290
    %v4292 = vadd.f32 %v4291, 1.0
    %v4293 = vrcp.pop %v4292
    %v4294 = vmul.f32 1.0, %v4293
    %v4295 = vmul.f32 %v4283, %v3885
    %v4296 = vmul.f32 %v4274, %v4286
    %v4297 = vadd.f32 %v4295, %v4296
    %v4298 = vtanh.pop %v4297
    %v4299 = vmul.f32 %v4294, %v4298
    %4300 = vst [vmem:[#allocation4 + $0x6] sm:$0x1] %v4299
    %s4301 = scalar_lea.vmem [#allocation2], 2
    %v4302 = vld [vmem:[%s4301] ss:$8 sm:$0xf]
    %4303 = vmatprep.subr.mxu0 %v3351
    %4304 = vmatpush1.msra.mxu0 %v3350
    %4305 = vmatprep.subr.mxu0 %v3355
    %4306 = vmatpush1.msra.mxu0 %v3354
    %4307 = vmatprep.subr.mxu0 %v3359
    %4308 = vmatpush1.msra.mxu0 %v3358
    %4309 = vmatprep.subr.mxu0 %v3363
    %4310 = vmatpush1.msra.mxu0 %v3362
    %4311 = vmatprep.subr.mxu0 %v3367
    %4312 = vmatpush1.msra.mxu0 %v3366
    %4313 = vmatprep.subr.mxu0 %v3371
    %4314 = vmatpush1.msra.mxu0 %v3370
    %4315 = vmatprep.subr.mxu0 %v3375
    %4316 = vmatpush1.msra.mxu0 %v3374
    %4317 = vmatprep.subr.mxu0 %v3379
    %4318 = vmatpush1.msra.mxu0 %v3378
    %4319 = vmatprep.subr.mxu0 %v3383
    %4320 = vmatpush1.msra.mxu0 %v3382
    %4321 = vmatprep.subr.mxu0 %v3387
    %4322 = vmatpush1.msra.mxu0 %v3386
    %4323 = vmatprep.subr.mxu0 %v3391
    %4324 = vmatpush1.msra.mxu0 %v3390
    %4325 = vmatprep.subr.mxu0 %v3395
    %4326 = vmatpush1.msra.mxu0 %v3394
    %4327 = vmatprep.subr.mxu0 %v3399
    %4328 = vmatpush1.msra.mxu0 %v3398
    %4329 = vmatprep.subr.mxu0 %v3403
    %4330 = vmatpush1.msra.mxu0 %v3402
    %4331 = vmatprep.subr.mxu0 %v3407
    %4332 = vmatpush1.msra.mxu0 %v3406
    %4333 = vmatprep.subr.mxu0 %v3411
    %4334 = vmatpush1.msra.mxu0 %v3410
    %4335 = vmatprep.subr.mxu0 0.0
    %4336 = vmatpush1.msra.mxu0 0.0
    %4337 = vmatprep.subr.mxu0 0.0
    %4338 = vmatpush1.msra.mxu0 0.0
    %4339 = vmatprep.subr.mxu0 0.0
    %4340 = vmatpush1.msra.mxu0 0.0
    %4341 = vmatprep.subr.mxu0 0.0
    %4342 = vmatpush1.msra.mxu0 0.0
    %4343 = vmatprep.subr.mxu0 0.0
    %4344 = vmatpush1.msra.mxu0 0.0
    %4345 = vmatprep.subr.mxu0 0.0
    %4346 = vmatpush1.msra.mxu0 0.0
    %4347 = vmatprep.subr.mxu0 0.0
    %4348 = vmatpush1.msra.mxu0 0.0
    %4349 = vmatprep.subr.mxu0 0.0
    %4350 = vmatpush1.msra.mxu0 0.0
    %4351 = vmatprep.subr.mxu0 0.0
    %4352 = vmatpush1.msra.mxu0 0.0
    %4353 = vmatprep.subr.mxu0 0.0
    %4354 = vmatpush1.msra.mxu0 0.0
    %4355 = vmatprep.subr.mxu0 0.0
    %4356 = vmatpush1.msra.mxu0 0.0
    %4357 = vmatprep.subr.mxu0 0.0
    %4358 = vmatpush1.msra.mxu0 0.0
    %4359 = vmatprep.subr.mxu0 0.0
    %4360 = vmatpush1.msra.mxu0 0.0
    %4361 = vmatprep.subr.mxu0 0.0
    %4362 = vmatpush1.msra.mxu0 0.0
    %4363 = vmatprep.subr.mxu0 0.0
    %4364 = vmatpush1.msra.mxu0 0.0
    %4365 = vmatprep.subr.mxu0 0.0
    %4366 = vmatpush1.msra.mxu0 0.0
    %4367 = vmatprep.mubr.f32.mxu0 0.0
    %4368 = vmatmul.mubr.f32.gmra.mrb[0].mxu0 %v4093
    %v4369 = vpop.f32.mrb[0].mxu0
    %v4370 = vadd.f32 0.0, %v4369
    %v4371 = vpop.f32.mrb[0].mxu0
    %v4372 = vadd.f32 0.0, %v4371
    %4373 = vdwg.mxu0
    %4374 = vmatprep.subr.mxu0 %v3353
    %4375 = vmatpush1.msra.mxu0 %v3352
    %4376 = vmatprep.subr.mxu0 %v3357
    %4377 = vmatpush1.msra.mxu0 %v3356
    %4378 = vmatprep.subr.mxu0 %v3361
    %4379 = vmatpush1.msra.mxu0 %v3360
    %4380 = vmatprep.subr.mxu0 %v3365
    %4381 = vmatpush1.msra.mxu0 %v3364
    %4382 = vmatprep.subr.mxu0 %v3369
    %4383 = vmatpush1.msra.mxu0 %v3368
    %4384 = vmatprep.subr.mxu0 %v3373
    %4385 = vmatpush1.msra.mxu0 %v3372
    %4386 = vmatprep.subr.mxu0 %v3377
    %4387 = vmatpush1.msra.mxu0 %v3376
    %4388 = vmatprep.subr.mxu0 %v3381
    %4389 = vmatpush1.msra.mxu0 %v3380
    %4390 = vmatprep.subr.mxu0 %v3385
    %4391 = vmatpush1.msra.mxu0 %v3384
    %4392 = vmatprep.subr.mxu0 %v3389
    %4393 = vmatpush1.msra.mxu0 %v3388
    %4394 = vmatprep.subr.mxu0 %v3393
    %4395 = vmatpush1.msra.mxu0 %v3392
    %4396 = vmatprep.subr.mxu0 %v3397
    %4397 = vmatpush1.msra.mxu0 %v3396
    %4398 = vmatprep.subr.mxu0 %v3401
    %4399 = vmatpush1.msra.mxu0 %v3400
    %4400 = vmatprep.subr.mxu0 %v3405
    %4401 = vmatpush1.msra.mxu0 %v3404
    %4402 = vmatprep.subr.mxu0 %v3409
    %4403 = vmatpush1.msra.mxu0 %v3408
    %4404 = vmatprep.subr.mxu0 %v3413
    %4405 = vmatpush1.msra.mxu0 %v3412
    %4406 = vmatprep.subr.mxu0 0.0
    %4407 = vmatpush1.msra.mxu0 0.0
    %4408 = vmatprep.subr.mxu0 0.0
    %4409 = vmatpush1.msra.mxu0 0.0
    %4410 = vmatprep.subr.mxu0 0.0
    %4411 = vmatpush1.msra.mxu0 0.0
    %4412 = vmatprep.subr.mxu0 0.0
    %4413 = vmatpush1.msra.mxu0 0.0
    %4414 = vmatprep.subr.mxu0 0.0
    %4415 = vmatpush1.msra.mxu0 0.0
    %4416 = vmatprep.subr.mxu0 0.0
    %4417 = vmatpush1.msra.mxu0 0.0
    %4418 = vmatprep.subr.mxu0 0.0
    %4419 = vmatpush1.msra.mxu0 0.0
    %4420 = vmatprep.subr.mxu0 0.0
    %4421 = vmatpush1.msra.mxu0 0.0
    %4422 = vmatprep.subr.mxu0 0.0
    %4423 = vmatpush1.msra.mxu0 0.0
    %4424 = vmatprep.subr.mxu0 0.0
    %4425 = vmatpush1.msra.mxu0 0.0
    %4426 = vmatprep.subr.mxu0 0.0
    %4427 = vmatpush1.msra.mxu0 0.0
    %4428 = vmatprep.subr.mxu0 0.0
    %4429 = vmatpush1.msra.mxu0 0.0
    %4430 = vmatprep.subr.mxu0 0.0
    %4431 = vmatpush1.msra.mxu0 0.0
    %4432 = vmatprep.subr.mxu0 0.0
    %4433 = vmatpush1.msra.mxu0 0.0
    %4434 = vmatprep.subr.mxu0 0.0
    %4435 = vmatpush1.msra.mxu0 0.0
    %4436 = vmatprep.subr.mxu0 0.0
    %4437 = vmatpush1.msra.mxu0 0.0
    %4438 = vmatprep.mubr.f32.mxu0 0.0
    %4439 = vmatmul.mubr.f32.gmra.mrb[0].mxu0 %v4093
    %v4440 = vpop.f32.mrb[0].mxu0
    %v4441 = vadd.f32 0.0, %v4440
    %v4442 = vpop.f32.mrb[0].mxu0
    %v4443 = vadd.f32 0.0, %v4442
    %4444 = vdwg.mxu0
    %v4449 = vcombine.low %v4370, %v4372
    %v4450 = vcombine.low %v4441, %v4443
    %v4452 = vunpack.c.l.s4 1966171168
    %v4453 = vunpack.c.0.s8 %v4452
    %v4454 = vlaneseq
    %v4455 = vshrl.u32 %v4454, 7
    %v4456 = vsub.s32 %v4453, %v4455
    %v4457 = vrot.slane %v4449, %v4456
    %v4459 = vunpack.c.l.s4 1966171168
    %v4460 = vunpack.c.0.s8 %v4459
    %v4461 = vlaneseq
    %v4462 = vshrl.u32 %v4461, 7
    %v4463 = vsub.s32 %v4460, %v4462
    %v4464 = vrot.slane %v4450, %v4463
    %v4465 = vcombine.low %v4457, %v4464
    %v4467 = vunpack.c.l.s4 1966171168
    %v4468 = vunpack.c.0.s8 %v4467
    %v4469 = vlaneseq
    %v4470 = vshrl.u32 %v4469, 7
    %v4471 = vsub.s32 %v4468, %v4470
    %v4472 = vrot.slane %v4465, %v4471
    %v4474 = vadd.f32 %v4302, %v4472
    %v4475 = vxor.u32 %v4474, 2147483648
    %v4476 = vmul.f32 %v4475, 1.442695
    %v4477 = vpow.pop %v4476
    %v4478 = vadd.f32 %v4477, 1.0
    %v4479 = vrcp.pop %v4478
    %v4480 = vmul.f32 1.0, %v4479
    %v4482 = vrot.slane %v4474, 1
    %v4484 = vxor.u32 %v4482, 2147483648
    %v4485 = vmul.f32 %v4484, 1.442695
    %v4486 = vpow.pop %v4485
    %v4487 = vadd.f32 %v4486, 1.0
    %v4488 = vrcp.pop %v4487
    %v4489 = vmul.f32 1.0, %v4488
    %v4490 = vrot.slane %v4474, 2
    %v4492 = vtanh.pop %v4490
    %v4493 = vrot.slane %v4474, 3
    %v4495 = vxor.u32 %v4493, 2147483648
    %v4496 = vmul.f32 %v4495, 1.442695
    %v4497 = vpow.pop %v4496
    %v4498 = vadd.f32 %v4497, 1.0
    %v4499 = vrcp.pop %v4498
    %v4500 = vmul.f32 1.0, %v4499
    %v4501 = vmul.f32 %v4489, %v4091
    %v4502 = vmul.f32 %v4480, %v4492
    %v4503 = vadd.f32 %v4501, %v4502
    %v4504 = vtanh.pop %v4503
    %v4505 = vmul.f32 %v4500, %v4504
    %4506 = vst [vmem:[#allocation3 + $0x2] sm:$0x1] %v4505
    %s4507 = scalar_lea.vmem [#allocation2], 37
    %v4508 = vld [vmem:[%s4507] ss:$8 sm:$0xf]
    %4509 = vmatprep.subr.mxu0 %v3415
    %4510 = vmatpush1.msra.mxu0 %v3414
    %4511 = vmatprep.subr.mxu0 %v3419
    %4512 = vmatpush1.msra.mxu0 %v3418
    %4513 = vmatprep.subr.mxu0 %v3423
    %4514 = vmatpush1.msra.mxu0 %v3422
    %4515 = vmatprep.subr.mxu0 %v3427
    %4516 = vmatpush1.msra.mxu0 %v3426
    %4517 = vmatprep.subr.mxu0 %v3431
    %4518 = vmatpush1.msra.mxu0 %v3430
    %4519 = vmatprep.subr.mxu0 %v3435
    %4520 = vmatpush1.msra.mxu0 %v3434
    %4521 = vmatprep.subr.mxu0 %v3439
    %4522 = vmatpush1.msra.mxu0 %v3438
    %4523 = vmatprep.subr.mxu0 %v3443
    %4524 = vmatpush1.msra.mxu0 %v3442
    %4525 = vmatprep.subr.mxu0 %v3447
    %4526 = vmatpush1.msra.mxu0 %v3446
    %4527 = vmatprep.subr.mxu0 %v3451
    %4528 = vmatpush1.msra.mxu0 %v3450
    %4529 = vmatprep.subr.mxu0 %v3455
    %4530 = vmatpush1.msra.mxu0 %v3454
    %4531 = vmatprep.subr.mxu0 %v3459
    %4532 = vmatpush1.msra.mxu0 %v3458
    %4533 = vmatprep.subr.mxu0 %v3463
    %4534 = vmatpush1.msra.mxu0 %v3462
    %4535 = vmatprep.subr.mxu0 %v3467
    %4536 = vmatpush1.msra.mxu0 %v3466
    %4537 = vmatprep.subr.mxu0 %v3471
    %4538 = vmatpush1.msra.mxu0 %v3470
    %4539 = vmatprep.subr.mxu0 %v3475
    %4540 = vmatpush1.msra.mxu0 %v3474
    %4541 = vmatprep.subr.mxu0 0.0
    %4542 = vmatpush1.msra.mxu0 0.0
    %4543 = vmatprep.subr.mxu0 0.0
    %4544 = vmatpush1.msra.mxu0 0.0
    %4545 = vmatprep.subr.mxu0 0.0
    %4546 = vmatpush1.msra.mxu0 0.0
    %4547 = vmatprep.subr.mxu0 0.0
    %4548 = vmatpush1.msra.mxu0 0.0
    %4549 = vmatprep.subr.mxu0 0.0
    %4550 = vmatpush1.msra.mxu0 0.0
    %4551 = vmatprep.subr.mxu0 0.0
    %4552 = vmatpush1.msra.mxu0 0.0
    %4553 = vmatprep.subr.mxu0 0.0
    %4554 = vmatpush1.msra.mxu0 0.0
    %4555 = vmatprep.subr.mxu0 0.0
    %4556 = vmatpush1.msra.mxu0 0.0
    %4557 = vmatprep.subr.mxu0 0.0
    %4558 = vmatpush1.msra.mxu0 0.0
    %4559 = vmatprep.subr.mxu0 0.0
    %4560 = vmatpush1.msra.mxu0 0.0
    %4561 = vmatprep.subr.mxu0 0.0
    %4562 = vmatpush1.msra.mxu0 0.0
    %4563 = vmatprep.subr.mxu0 0.0
    %4564 = vmatpush1.msra.mxu0 0.0
    %4565 = vmatprep.subr.mxu0 0.0
    %4566 = vmatpush1.msra.mxu0 0.0
    %4567 = vmatprep.subr.mxu0 0.0
    %4568 = vmatpush1.msra.mxu0 0.0
    %4569 = vmatprep.subr.mxu0 0.0
    %4570 = vmatpush1.msra.mxu0 0.0
    %4571 = vmatprep.subr.mxu0 0.0
    %4572 = vmatpush1.msra.mxu0 0.0
    %4573 = vmatprep.mubr.f32.mxu0 0.0
    %4574 = vmatmul.mubr.f32.gmra.mrb[0].mxu0 %v4299
    %v4575 = vpop.f32.mrb[0].mxu0
    %v4576 = vadd.f32 0.0, %v4575
    %v4577 = vpop.f32.mrb[0].mxu0
    %v4578 = vadd.f32 0.0, %v4577
    %4579 = vdwg.mxu0
    %4580 = vmatprep.subr.mxu0 %v3417
    %4581 = vmatpush1.msra.mxu0 %v3416
    %4582 = vmatprep.subr.mxu0 %v3421
    %4583 = vmatpush1.msra.mxu0 %v3420
    %4584 = vmatprep.subr.mxu0 %v3425
    %4585 = vmatpush1.msra.mxu0 %v3424
    %4586 = vmatprep.subr.mxu0 %v3429
    %4587 = vmatpush1.msra.mxu0 %v3428
    %4588 = vmatprep.subr.mxu0 %v3433
    %4589 = vmatpush1.msra.mxu0 %v3432
    %4590 = vmatprep.subr.mxu0 %v3437
    %4591 = vmatpush1.msra.mxu0 %v3436
    %4592 = vmatprep.subr.mxu0 %v3441
    %4593 = vmatpush1.msra.mxu0 %v3440
    %4594 = vmatprep.subr.mxu0 %v3445
    %4595 = vmatpush1.msra.mxu0 %v3444
    %4596 = vmatprep.subr.mxu0 %v3449
    %4597 = vmatpush1.msra.mxu0 %v3448
    %4598 = vmatprep.subr.mxu0 %v3453
    %4599 = vmatpush1.msra.mxu0 %v3452
    %4600 = vmatprep.subr.mxu0 %v3457
    %4601 = vmatpush1.msra.mxu0 %v3456
    %4602 = vmatprep.subr.mxu0 %v3461
    %4603 = vmatpush1.msra.mxu0 %v3460
    %4604 = vmatprep.subr.mxu0 %v3465
    %4605 = vmatpush1.msra.mxu0 %v3464
    %4606 = vmatprep.subr.mxu0 %v3469
    %4607 = vmatpush1.msra.mxu0 %v3468
    %4608 = vmatprep.subr.mxu0 %v3473
    %4609 = vmatpush1.msra.mxu0 %v3472
    %4610 = vmatprep.subr.mxu0 %v3477
    %4611 = vmatpush1.msra.mxu0 %v3476
    %4612 = vmatprep.subr.mxu0 0.0
    %4613 = vmatpush1.msra.mxu0 0.0
    %4614 = vmatprep.subr.mxu0 0.0
    %4615 = vmatpush1.msra.mxu0 0.0
    %4616 = vmatprep.subr.mxu0 0.0
    %4617 = vmatpush1.msra.mxu0 0.0
    %4618 = vmatprep.subr.mxu0 0.0
    %4619 = vmatpush1.msra.mxu0 0.0
    %4620 = vmatprep.subr.mxu0 0.0
    %4621 = vmatpush1.msra.mxu0 0.0
    %4622 = vmatprep.subr.mxu0 0.0
    %4623 = vmatpush1.msra.mxu0 0.0
    %4624 = vmatprep.subr.mxu0 0.0
    %4625 = vmatpush1.msra.mxu0 0.0
    %4626 = vmatprep.subr.mxu0 0.0
    %4627 = vmatpush1.msra.mxu0 0.0
    %4628 = vmatprep.subr.mxu0 0.0
    %4629 = vmatpush1.msra.mxu0 0.0
    %4630 = vmatprep.subr.mxu0 0.0
    %4631 = vmatpush1.msra.mxu0 0.0
    %4632 = vmatprep.subr.mxu0 0.0
    %4633 = vmatpush1.msra.mxu0 0.0
    %4634 = vmatprep.subr.mxu0 0.0
    %4635 = vmatpush1.msra.mxu0 0.0
    %4636 = vmatprep.subr.mxu0 0.0
    %4637 = vmatpush1.msra.mxu0 0.0
    %4638 = vmatprep.subr.mxu0 0.0
    %4639 = vmatpush1.msra.mxu0 0.0
    %4640 = vmatprep.subr.mxu0 0.0
    %4641 = vmatpush1.msra.mxu0 0.0
    %4642 = vmatprep.subr.mxu0 0.0
    %4643 = vmatpush1.msra.mxu0 0.0
    %4644 = vmatprep.mubr.f32.mxu0 0.0
    %4645 = vmatmul.mubr.f32.gmra.mrb[0].mxu0 %v4299
    %v4646 = vpop.f32.mrb[0].mxu0
    %v4647 = vadd.f32 0.0, %v4646
    %v4648 = vpop.f32.mrb[0].mxu0
    %v4649 = vadd.f32 0.0, %v4648
    %4650 = vdwg.mxu0
    %v4655 = vcombine.low %v4576, %v4578
    %v4656 = vcombine.low %v4647, %v4649
    %v4658 = vunpack.c.l.s4 1966171168
    %v4659 = vunpack.c.0.s8 %v4658
    %v4660 = vlaneseq
    %v4661 = vshrl.u32 %v4660, 7
    %v4662 = vsub.s32 %v4659, %v4661
    %v4663 = vrot.slane %v4655, %v4662
    %v4665 = vunpack.c.l.s4 1966171168
    %v4666 = vunpack.c.0.s8 %v4665
    %v4667 = vlaneseq
    %v4668 = vshrl.u32 %v4667, 7
    %v4669 = vsub.s32 %v4666, %v4668
    %v4670 = vrot.slane %v4656, %v4669
    %v4671 = vcombine.low %v4663, %v4670
    %v4673 = vunpack.c.l.s4 1966171168
    %v4674 = vunpack.c.0.s8 %v4673
    %v4675 = vlaneseq
    %v4676 = vshrl.u32 %v4675, 7
    %v4677 = vsub.s32 %v4674, %v4676
    %v4678 = vrot.slane %v4671, %v4677
    %v4680 = vadd.f32 %v4508, %v4678
    %v4681 = vxor.u32 %v4680, 2147483648
    %v4682 = vmul.f32 %v4681, 1.442695
    %v4683 = vpow.pop %v4682
    %v4684 = vadd.f32 %v4683, 1.0
    %v4685 = vrcp.pop %v4684
    %v4686 = vmul.f32 1.0, %v4685
    %v4688 = vrot.slane %v4680, 1
    %v4690 = vxor.u32 %v4688, 2147483648
    %v4691 = vmul.f32 %v4690, 1.442695
    %v4692 = vpow.pop %v4691
    %v4693 = vadd.f32 %v4692, 1.0
    %v4694 = vrcp.pop %v4693
    %v4695 = vmul.f32 1.0, %v4694
    %v4696 = vrot.slane %v4680, 2
    %v4698 = vtanh.pop %v4696
    %v4699 = vrot.slane %v4680, 3
    %v4701 = vxor.u32 %v4699, 2147483648
    %v4702 = vmul.f32 %v4701, 1.442695
    %v4703 = vpow.pop %v4702
    %v4704 = vadd.f32 %v4703, 1.0
    %v4705 = vrcp.pop %v4704
    %v4706 = vmul.f32 1.0, %v4705
    %v4707 = vmul.f32 %v4695, %v4297
    %v4708 = vmul.f32 %v4686, %v4698
    %v4709 = vadd.f32 %v4707, %v4708
    %v4710 = vtanh.pop %v4709
    %v4711 = vmul.f32 %v4706, %v4710
    %4712 = vst [vmem:[#allocation4 + $0x5] sm:$0x1] %v4711
    %s4713 = scalar_lea.vmem [#allocation2], 3
    %v4714 = vld [vmem:[%s4713] ss:$8 sm:$0xf]
    %4715 = vmatprep.subr.mxu0 %v3351
    %4716 = vmatpush1.msra.mxu0 %v3350
    %4717 = vmatprep.subr.mxu0 %v3355
    %4718 = vmatpush1.msra.mxu0 %v3354
    %4719 = vmatprep.subr.mxu0 %v3359
    %4720 = vmatpush1.msra.mxu0 %v3358
    %4721 = vmatprep.subr.mxu0 %v3363
    %4722 = vmatpush1.msra.mxu0 %v3362
    %4723 = vmatprep.subr.mxu0 %v3367
    %4724 = vmatpush1.msra.mxu0 %v3366
    %4725 = vmatprep.subr.mxu0 %v3371
    %4726 = vmatpush1.msra.mxu0 %v3370
    %4727 = vmatprep.subr.mxu0 %v3375
    %4728 = vmatpush1.msra.mxu0 %v3374
    %4729 = vmatprep.subr.mxu0 %v3379
    %4730 = vmatpush1.msra.mxu0 %v3378
    %4731 = vmatprep.subr.mxu0 %v3383
    %4732 = vmatpush1.msra.mxu0 %v3382
    %4733 = vmatprep.subr.mxu0 %v3387
    %4734 = vmatpush1.msra.mxu0 %v3386
    %4735 = vmatprep.subr.mxu0 %v3391
    %4736 = vmatpush1.msra.mxu0 %v3390
    %4737 = vmatprep.subr.mxu0 %v3395
    %4738 = vmatpush1.msra.mxu0 %v3394
    %4739 = vmatprep.subr.mxu0 %v3399
    %4740 = vmatpush1.msra.mxu0 %v3398
    %4741 = vmatprep.subr.mxu0 %v3403
    %4742 = vmatpush1.msra.mxu0 %v3402
    %4743 = vmatprep.subr.mxu0 %v3407
    %4744 = vmatpush1.msra.mxu0 %v3406
    %4745 = vmatprep.subr.mxu0 %v3411
    %4746 = vmatpush1.msra.mxu0 %v3410
    %4747 = vmatprep.subr.mxu0 0.0
    %4748 = vmatpush1.msra.mxu0 0.0
    %4749 = vmatprep.subr.mxu0 0.0
    %4750 = vmatpush1.msra.mxu0 0.0
    %4751 = vmatprep.subr.mxu0 0.0
    %4752 = vmatpush1.msra.mxu0 0.0
    %4753 = vmatprep.subr.mxu0 0.0
    %4754 = vmatpush1.msra.mxu0 0.0
    %4755 = vmatprep.subr.mxu0 0.0
    %4756 = vmatpush1.msra.mxu0 0.0
    %4757 = vmatprep.subr.mxu0 0.0
    %4758 = vmatpush1.msra.mxu0 0.0
    %4759 = vmatprep.subr.mxu0 0.0
    %4760 = vmatpush1.msra.mxu0 0.0
    %4761 = vmatprep.subr.mxu0 0.0
    %4762 = vmatpush1.msra.mxu0 0.0
    %4763 = vmatprep.subr.mxu0 0.0
    %4764 = vmatpush1.msra.mxu0 0.0
    %4765 = vmatprep.subr.mxu0 0.0
    %4766 = vmatpush1.msra.mxu0 0.0
    %4767 = vmatprep.subr.mxu0 0.0
    %4768 = vmatpush1.msra.mxu0 0.0
    %4769 = vmatprep.subr.mxu0 0.0
    %4770 = vmatpush1.msra.mxu0 0.0
    %4771 = vmatprep.subr.mxu0 0.0
    %4772 = vmatpush1.msra.mxu0 0.0
    %4773 = vmatprep.subr.mxu0 0.0
    %4774 = vmatpush1.msra.mxu0 0.0
    %4775 = vmatprep.subr.mxu0 0.0
    %4776 = vmatpush1.msra.mxu0 0.0
    %4777 = vmatprep.subr.mxu0 0.0
    %4778 = vmatpush1.msra.mxu0 0.0
    %4779 = vmatprep.mubr.f32.mxu0 0.0
    %4780 = vmatmul.mubr.f32.gmra.mrb[0].mxu0 %v4505
    %v4781 = vpop.f32.mrb[0].mxu0
    %v4782 = vadd.f32 0.0, %v4781
    %v4783 = vpop.f32.mrb[0].mxu0
    %v4784 = vadd.f32 0.0, %v4783
    %4785 = vdwg.mxu0
    %4786 = vmatprep.subr.mxu0 %v3353
    %4787 = vmatpush1.msra.mxu0 %v3352
    %4788 = vmatprep.subr.mxu0 %v3357
    %4789 = vmatpush1.msra.mxu0 %v3356
    %4790 = vmatprep.subr.mxu0 %v3361
    %4791 = vmatpush1.msra.mxu0 %v3360
    %4792 = vmatprep.subr.mxu0 %v3365
    %4793 = vmatpush1.msra.mxu0 %v3364
    %4794 = vmatprep.subr.mxu0 %v3369
    %4795 = vmatpush1.msra.mxu0 %v3368
    %4796 = vmatprep.subr.mxu0 %v3373
    %4797 = vmatpush1.msra.mxu0 %v3372
    %4798 = vmatprep.subr.mxu0 %v3377
    %4799 = vmatpush1.msra.mxu0 %v3376
    %4800 = vmatprep.subr.mxu0 %v3381
    %4801 = vmatpush1.msra.mxu0 %v3380
    %4802 = vmatprep.subr.mxu0 %v3385
    %4803 = vmatpush1.msra.mxu0 %v3384
    %4804 = vmatprep.subr.mxu0 %v3389
    %4805 = vmatpush1.msra.mxu0 %v3388
    %4806 = vmatprep.subr.mxu0 %v3393
    %4807 = vmatpush1.msra.mxu0 %v3392
    %4808 = vmatprep.subr.mxu0 %v3397
    %4809 = vmatpush1.msra.mxu0 %v3396
    %4810 = vmatprep.subr.mxu0 %v3401
    %4811 = vmatpush1.msra.mxu0 %v3400
    %4812 = vmatprep.subr.mxu0 %v3405
    %4813 = vmatpush1.msra.mxu0 %v3404
    %4814 = vmatprep.subr.mxu0 %v3409
    %4815 = vmatpush1.msra.mxu0 %v3408
    %4816 = vmatprep.subr.mxu0 %v3413
    %4817 = vmatpush1.msra.mxu0 %v3412
    %4818 = vmatprep.subr.mxu0 0.0
    %4819 = vmatpush1.msra.mxu0 0.0
    %4820 = vmatprep.subr.mxu0 0.0
    %4821 = vmatpush1.msra.mxu0 0.0
    %4822 = vmatprep.subr.mxu0 0.0
    %4823 = vmatpush1.msra.mxu0 0.0
    %4824 = vmatprep.subr.mxu0 0.0
    %4825 = vmatpush1.msra.mxu0 0.0
    %4826 = vmatprep.subr.mxu0 0.0
    %4827 = vmatpush1.msra.mxu0 0.0
    %4828 = vmatprep.subr.mxu0 0.0
    %4829 = vmatpush1.msra.mxu0 0.0
    %4830 = vmatprep.subr.mxu0 0.0
    %4831 = vmatpush1.msra.mxu0 0.0
    %4832 = vmatprep.subr.mxu0 0.0
    %4833 = vmatpush1.msra.mxu0 0.0
    %4834 = vmatprep.subr.mxu0 0.0
    %4835 = vmatpush1.msra.mxu0 0.0
    %4836 = vmatprep.subr.mxu0 0.0
    %4837 = vmatpush1.msra.mxu0 0.0
    %4838 = vmatprep.subr.mxu0 0.0
    %4839 = vmatpush1.msra.mxu0 0.0
    %4840 = vmatprep.subr.mxu0 0.0
    %4841 = vmatpush1.msra.mxu0 0.0
    %4842 = vmatprep.subr.mxu0 0.0
    %4843 = vmatpush1.msra.mxu0 0.0
    %4844 = vmatprep.subr.mxu0 0.0
    %4845 = vmatpush1.msra.mxu0 0.0
    %4846 = vmatprep.subr.mxu0 0.0
    %4847 = vmatpush1.msra.mxu0 0.0
    %4848 = vmatprep.subr.mxu0 0.0
    %4849 = vmatpush1.msra.mxu0 0.0
    %4850 = vmatprep.mubr.f32.mxu0 0.0
    %4851 = vmatmul.mubr.f32.gmra.mrb[0].mxu0 %v4505
    %v4852 = vpop.f32.mrb[0].mxu0
    %v4853 = vadd.f32 0.0, %v4852
    %v4854 = vpop.f32.mrb[0].mxu0
    %v4855 = vadd.f32 0.0, %v4854
    %4856 = vdwg.mxu0
    %v4861 = vcombine.low %v4782, %v4784
    %v4862 = vcombine.low %v4853, %v4855
    %v4864 = vunpack.c.l.s4 1966171168
    %v4865 = vunpack.c.0.s8 %v4864
    %v4866 = vlaneseq
    %v4867 = vshrl.u32 %v4866, 7
    %v4868 = vsub.s32 %v4865, %v4867
    %v4869 = vrot.slane %v4861, %v4868
    %v4871 = vunpack.c.l.s4 1966171168
    %v4872 = vunpack.c.0.s8 %v4871
    %v4873 = vlaneseq
    %v4874 = vshrl.u32 %v4873, 7
    %v4875 = vsub.s32 %v4872, %v4874
    %v4876 = vrot.slane %v4862, %v4875
    %v4877 = vcombine.low %v4869, %v4876
    %v4879 = vunpack.c.l.s4 1966171168
    %v4880 = vunpack.c.0.s8 %v4879
    %v4881 = vlaneseq
    %v4882 = vshrl.u32 %v4881, 7
    %v4883 = vsub.s32 %v4880, %v4882
    %v4884 = vrot.slane %v4877, %v4883
    %v4886 = vadd.f32 %v4714, %v4884
    %v4887 = vxor.u32 %v4886, 2147483648
    %v4888 = vmul.f32 %v4887, 1.442695
    %v4889 = vpow.pop %v4888
    %v4890 = vadd.f32 %v4889, 1.0
    %v4891 = vrcp.pop %v4890
    %v4892 = vmul.f32 1.0, %v4891
    %v4894 = vrot.slane %v4886, 1
    %v4896 = vxor.u32 %v4894, 2147483648
    %v4897 = vmul.f32 %v4896, 1.442695
    %v4898 = vpow.pop %v4897
    %v4899 = vadd.f32 %v4898, 1.0
    %v4900 = vrcp.pop %v4899
    %v4901 = vmul.f32 1.0, %v4900
    %v4902 = vrot.slane %v4886, 2
    %v4904 = vtanh.pop %v4902
    %v4905 = vrot.slane %v4886, 3
    %v4907 = vxor.u32 %v4905, 2147483648
    %v4908 = vmul.f32 %v4907, 1.442695
    %v4909 = vpow.pop %v4908
    %v4910 = vadd.f32 %v4909, 1.0
    %v4911 = vrcp.pop %v4910
    %v4912 = vmul.f32 1.0, %v4911
    %v4913 = vmul.f32 %v4901, %v4503
    %v4914 = vmul.f32 %v4892, %v4904
    %v4915 = vadd.f32 %v4913, %v4914
    %v4916 = vtanh.pop %v4915
    %v4917 = vmul.f32 %v4912, %v4916
    %4918 = vst [vmem:[#allocation3 + $0x3] sm:$0x1] %v4917
    %s4919 = scalar_lea.vmem [#allocation2], 36
    %v4920 = vld [vmem:[%s4919] ss:$8 sm:$0xf]
    %4921 = vmatprep.subr.mxu0 %v3415
    %4922 = vmatpush1.msra.mxu0 %v3414
    %4923 = vmatprep.subr.mxu0 %v3419
    %4924 = vmatpush1.msra.mxu0 %v3418
    %4925 = vmatprep.subr.mxu0 %v3423
    %4926 = vmatpush1.msra.mxu0 %v3422
    %4927 = vmatprep.subr.mxu0 %v3427
    %4928 = vmatpush1.msra.mxu0 %v3426
    %4929 = vmatprep.subr.mxu0 %v3431
    %4930 = vmatpush1.msra.mxu0 %v3430
    %4931 = vmatprep.subr.mxu0 %v3435
    %4932 = vmatpush1.msra.mxu0 %v3434
    %4933 = vmatprep.subr.mxu0 %v3439
    %4934 = vmatpush1.msra.mxu0 %v3438
    %4935 = vmatprep.subr.mxu0 %v3443
    %4936 = vmatpush1.msra.mxu0 %v3442
    %4937 = vmatprep.subr.mxu0 %v3447
    %4938 = vmatpush1.msra.mxu0 %v3446
    %4939 = vmatprep.subr.mxu0 %v3451
    %4940 = vmatpush1.msra.mxu0 %v3450
    %4941 = vmatprep.subr.mxu0 %v3455
    %4942 = vmatpush1.msra.mxu0 %v3454
    %4943 = vmatprep.subr.mxu0 %v3459
    %4944 = vmatpush1.msra.mxu0 %v3458
    %4945 = vmatprep.subr.mxu0 %v3463
    %4946 = vmatpush1.msra.mxu0 %v3462
    %4947 = vmatprep.subr.mxu0 %v3467
    %4948 = vmatpush1.msra.mxu0 %v3466
    %4949 = vmatprep.subr.mxu0 %v3471
    %4950 = vmatpush1.msra.mxu0 %v3470
    %4951 = vmatprep.subr.mxu0 %v3475
    %4952 = vmatpush1.msra.mxu0 %v3474
    %4953 = vmatprep.subr.mxu0 0.0
    %4954 = vmatpush1.msra.mxu0 0.0
    %4955 = vmatprep.subr.mxu0 0.0
    %4956 = vmatpush1.msra.mxu0 0.0
    %4957 = vmatprep.subr.mxu0 0.0
    %4958 = vmatpush1.msra.mxu0 0.0
    %4959 = vmatprep.subr.mxu0 0.0
    %4960 = vmatpush1.msra.mxu0 0.0
    %4961 = vmatprep.subr.mxu0 0.0
    %4962 = vmatpush1.msra.mxu0 0.0
    %4963 = vmatprep.subr.mxu0 0.0
    %4964 = vmatpush1.msra.mxu0 0.0
    %4965 = vmatprep.subr.mxu0 0.0
    %4966 = vmatpush1.msra.mxu0 0.0
    %4967 = vmatprep.subr.mxu0 0.0
    %4968 = vmatpush1.msra.mxu0 0.0
    %4969 = vmatprep.subr.mxu0 0.0
    %4970 = vmatpush1.msra.mxu0 0.0
    %4971 = vmatprep.subr.mxu0 0.0
    %4972 = vmatpush1.msra.mxu0 0.0
    %4973 = vmatprep.subr.mxu0 0.0
    %4974 = vmatpush1.msra.mxu0 0.0
    %4975 = vmatprep.subr.mxu0 0.0
    %4976 = vmatpush1.msra.mxu0 0.0
    %4977 = vmatprep.subr.mxu0 0.0
    %4978 = vmatpush1.msra.mxu0 0.0
    %4979 = vmatprep.subr.mxu0 0.0
    %4980 = vmatpush1.msra.mxu0 0.0
    %4981 = vmatprep.subr.mxu0 0.0
    %4982 = vmatpush1.msra.mxu0 0.0
    %4983 = vmatprep.subr.mxu0 0.0
    %4984 = vmatpush1.msra.mxu0 0.0
    %4985 = vmatprep.mubr.f32.mxu0 0.0
    %4986 = vmatmul.mubr.f32.gmra.mrb[0].mxu0 %v4711
    %v4987 = vpop.f32.mrb[0].mxu0
    %v4988 = vadd.f32 0.0, %v4987
    %v4989 = vpop.f32.mrb[0].mxu0
    %v4990 = vadd.f32 0.0, %v4989
    %4991 = vdwg.mxu0
    %4992 = vmatprep.subr.mxu0 %v3417
    %4993 = vmatpush1.msra.mxu0 %v3416
    %4994 = vmatprep.subr.mxu0 %v3421
    %4995 = vmatpush1.msra.mxu0 %v3420
    %4996 = vmatprep.subr.mxu0 %v3425
    %4997 = vmatpush1.msra.mxu0 %v3424
    %4998 = vmatprep.subr.mxu0 %v3429
    %4999 = vmatpush1.msra.mxu0 %v3428
    %5000 = vmatprep.subr.mxu0 %v3433
    %5001 = vmatpush1.msra.mxu0 %v3432
    %5002 = vmatprep.subr.mxu0 %v3437
    %5003 = vmatpush1.msra.mxu0 %v3436
    %5004 = vmatprep.subr.mxu0 %v3441
    %5005 = vmatpush1.msra.mxu0 %v3440
    %5006 = vmatprep.subr.mxu0 %v3445
    %5007 = vmatpush1.msra.mxu0 %v3444
    %5008 = vmatprep.subr.mxu0 %v3449
    %5009 = vmatpush1.msra.mxu0 %v3448
    %5010 = vmatprep.subr.mxu0 %v3453
    %5011 = vmatpush1.msra.mxu0 %v3452
    %5012 = vmatprep.subr.mxu0 %v3457
    %5013 = vmatpush1.msra.mxu0 %v3456
    %5014 = vmatprep.subr.mxu0 %v3461
    %5015 = vmatpush1.msra.mxu0 %v3460
    %5016 = vmatprep.subr.mxu0 %v3465
    %5017 = vmatpush1.msra.mxu0 %v3464
    %5018 = vmatprep.subr.mxu0 %v3469
    %5019 = vmatpush1.msra.mxu0 %v3468
    %5020 = vmatprep.subr.mxu0 %v3473
    %5021 = vmatpush1.msra.mxu0 %v3472
    %5022 = vmatprep.subr.mxu0 %v3477
    %5023 = vmatpush1.msra.mxu0 %v3476
    %5024 = vmatprep.subr.mxu0 0.0
    %5025 = vmatpush1.msra.mxu0 0.0
    %5026 = vmatprep.subr.mxu0 0.0
    %5027 = vmatpush1.msra.mxu0 0.0
    %5028 = vmatprep.subr.mxu0 0.0
    %5029 = vmatpush1.msra.mxu0 0.0
    %5030 = vmatprep.subr.mxu0 0.0
    %5031 = vmatpush1.msra.mxu0 0.0
    %5032 = vmatprep.subr.mxu0 0.0
    %5033 = vmatpush1.msra.mxu0 0.0
    %5034 = vmatprep.subr.mxu0 0.0
    %5035 = vmatpush1.msra.mxu0 0.0
    %5036 = vmatprep.subr.mxu0 0.0
    %5037 = vmatpush1.msra.mxu0 0.0
    %5038 = vmatprep.subr.mxu0 0.0
    %5039 = vmatpush1.msra.mxu0 0.0
    %5040 = vmatprep.subr.mxu0 0.0
    %5041 = vmatpush1.msra.mxu0 0.0
    %5042 = vmatprep.subr.mxu0 0.0
    %5043 = vmatpush1.msra.mxu0 0.0
    %5044 = vmatprep.subr.mxu0 0.0
    %5045 = vmatpush1.msra.mxu0 0.0
    %5046 = vmatprep.subr.mxu0 0.0
    %5047 = vmatpush1.msra.mxu0 0.0
    %5048 = vmatprep.subr.mxu0 0.0
    %5049 = vmatpush1.msra.mxu0 0.0
    %5050 = vmatprep.subr.mxu0 0.0
    %5051 = vmatpush1.msra.mxu0 0.0
    %5052 = vmatprep.subr.mxu0 0.0
    %5053 = vmatpush1.msra.mxu0 0.0
    %5054 = vmatprep.subr.mxu0 0.0
    %5055 = vmatpush1.msra.mxu0 0.0
    %5056 = vmatprep.mubr.f32.mxu0 0.0
    %5057 = vmatmul.mubr.f32.gmra.mrb[0].mxu0 %v4711
    %v5058 = vpop.f32.mrb[0].mxu0
    %v5059 = vadd.f32 0.0, %v5058
    %v5060 = vpop.f32.mrb[0].mxu0
    %v5061 = vadd.f32 0.0, %v5060
    %5062 = vdwg.mxu0
    %v5067 = vcombine.low %v4988, %v4990
    %v5068 = vcombine.low %v5059, %v5061
    %v5070 = vunpack.c.l.s4 1966171168
    %v5071 = vunpack.c.0.s8 %v5070
    %v5072 = vlaneseq
    %v5073 = vshrl.u32 %v5072, 7
    %v5074 = vsub.s32 %v5071, %v5073
    %v5075 = vrot.slane %v5067, %v5074
    %v5077 = vunpack.c.l.s4 1966171168
    %v5078 = vunpack.c.0.s8 %v5077
    %v5079 = vlaneseq
    %v5080 = vshrl.u32 %v5079, 7
    %v5081 = vsub.s32 %v5078, %v5080
    %v5082 = vrot.slane %v5068, %v5081
    %v5083 = vcombine.low %v5075, %v5082
    %v5085 = vunpack.c.l.s4 1966171168
    %v5086 = vunpack.c.0.s8 %v5085
    %v5087 = vlaneseq
    %v5088 = vshrl.u32 %v5087, 7
    %v5089 = vsub.s32 %v5086, %v5088
    %v5090 = vrot.slane %v5083, %v5089
    %v5092 = vadd.f32 %v4920, %v5090
    %v5093 = vxor.u32 %v5092, 2147483648
    %v5094 = vmul.f32 %v5093, 1.442695
    %v5095 = vpow.pop %v5094
    %v5096 = vadd.f32 %v5095, 1.0
    %v5097 = vrcp.pop %v5096
    %v5098 = vmul.f32 1.0, %v5097
    %v5100 = vrot.slane %v5092, 1
    %v5102 = vxor.u32 %v5100, 2147483648
    %v5103 = vmul.f32 %v5102, 1.442695
    %v5104 = vpow.pop %v5103
    %v5105 = vadd.f32 %v5104, 1.0
    %v5106 = vrcp.pop %v5105
    %v5107 = vmul.f32 1.0, %v5106
    %v5108 = vrot.slane %v5092, 2
    %v5110 = vtanh.pop %v5108
    %v5111 = vrot.slane %v5092, 3
    %v5113 = vxor.u32 %v5111, 2147483648
    %v5114 = vmul.f32 %v5113, 1.442695
    %v5115 = vpow.pop %v5114
    %v5116 = vadd.f32 %v5115, 1.0
    %v5117 = vrcp.pop %v5116
    %v5118 = vmul.f32 1.0, %v5117
    %v5119 = vmul.f32 %v5107, %v4709
    %v5120 = vmul.f32 %v5098, %v5110
    %v5121 = vadd.f32 %v5119, %v5120
    %v5122 = vtanh.pop %v5121
    %v5123 = vmul.f32 %v5118, %v5122
    %5124 = vst [vmem:[#allocation4 + $0x4] sm:$0x1] %v5123
    %s5125 = scalar_lea.vmem [#allocation2], 4
    %v5126 = vld [vmem:[%s5125] ss:$8 sm:$0xf]
    %5127 = vmatprep.subr.mxu0 %v3351
    %5128 = vmatpush1.msra.mxu0 %v3350
    %5129 = vmatprep.subr.mxu0 %v3355
    %5130 = vmatpush1.msra.mxu0 %v3354
    %5131 = vmatprep.subr.mxu0 %v3359
    %5132 = vmatpush1.msra.mxu0 %v3358
    %5133 = vmatprep.subr.mxu0 %v3363
    %5134 = vmatpush1.msra.mxu0 %v3362
    %5135 = vmatprep.subr.mxu0 %v3367
    %5136 = vmatpush1.msra.mxu0 %v3366
    %5137 = vmatprep.subr.mxu0 %v3371
    %5138 = vmatpush1.msra.mxu0 %v3370
    %5139 = vmatprep.subr.mxu0 %v3375
    %5140 = vmatpush1.msra.mxu0 %v3374
    %5141 = vmatprep.subr.mxu0 %v3379
    %5142 = vmatpush1.msra.mxu0 %v3378
    %5143 = vmatprep.subr.mxu0 %v3383
    %5144 = vmatpush1.msra.mxu0 %v3382
    %5145 = vmatprep.subr.mxu0 %v3387
    %5146 = vmatpush1.msra.mxu0 %v3386
    %5147 = vmatprep.subr.mxu0 %v3391
    %5148 = vmatpush1.msra.mxu0 %v3390
    %5149 = vmatprep.subr.mxu0 %v3395
    %5150 = vmatpush1.msra.mxu0 %v3394
    %5151 = vmatprep.subr.mxu0 %v3399
    %5152 = vmatpush1.msra.mxu0 %v3398
    %5153 = vmatprep.subr.mxu0 %v3403
    %5154 = vmatpush1.msra.mxu0 %v3402
    %5155 = vmatprep.subr.mxu0 %v3407
    %5156 = vmatpush1.msra.mxu0 %v3406
    %5157 = vmatprep.subr.mxu0 %v3411
    %5158 = vmatpush1.msra.mxu0 %v3410
    %5159 = vmatprep.subr.mxu0 0.0
    %5160 = vmatpush1.msra.mxu0 0.0
    %5161 = vmatprep.subr.mxu0 0.0
    %5162 = vmatpush1.msra.mxu0 0.0
    %5163 = vmatprep.subr.mxu0 0.0
    %5164 = vmatpush1.msra.mxu0 0.0
    %5165 = vmatprep.subr.mxu0 0.0
    %5166 = vmatpush1.msra.mxu0 0.0
    %5167 = vmatprep.subr.mxu0 0.0
    %5168 = vmatpush1.msra.mxu0 0.0
    %5169 = vmatprep.subr.mxu0 0.0
    %5170 = vmatpush1.msra.mxu0 0.0
    %5171 = vmatprep.subr.mxu0 0.0
    %5172 = vmatpush1.msra.mxu0 0.0
    %5173 = vmatprep.subr.mxu0 0.0
    %5174 = vmatpush1.msra.mxu0 0.0
    %5175 = vmatprep.subr.mxu0 0.0
    %5176 = vmatpush1.msra.mxu0 0.0
    %5177 = vmatprep.subr.mxu0 0.0
    %5178 = vmatpush1.msra.mxu0 0.0
    %5179 = vmatprep.subr.mxu0 0.0
    %5180 = vmatpush1.msra.mxu0 0.0
    %5181 = vmatprep.subr.mxu0 0.0
    %5182 = vmatpush1.msra.mxu0 0.0
    %5183 = vmatprep.subr.mxu0 0.0
    %5184 = vmatpush1.msra.mxu0 0.0
    %5185 = vmatprep.subr.mxu0 0.0
    %5186 = vmatpush1.msra.mxu0 0.0
    %5187 = vmatprep.subr.mxu0 0.0
    %5188 = vmatpush1.msra.mxu0 0.0
    %5189 = vmatprep.subr.mxu0 0.0
    %5190 = vmatpush1.msra.mxu0 0.0
    %5191 = vmatprep.mubr.f32.mxu0 0.0
    %5192 = vmatmul.mubr.f32.gmra.mrb[0].mxu0 %v4917
    %v5193 = vpop.f32.mrb[0].mxu0
    %v5194 = vadd.f32 0.0, %v5193
    %v5195 = vpop.f32.mrb[0].mxu0
    %v5196 = vadd.f32 0.0, %v5195
    %5197 = vdwg.mxu0
    %5198 = vmatprep.subr.mxu0 %v3353
    %5199 = vmatpush1.msra.mxu0 %v3352
    %5200 = vmatprep.subr.mxu0 %v3357
    %5201 = vmatpush1.msra.mxu0 %v3356
    %5202 = vmatprep.subr.mxu0 %v3361
    %5203 = vmatpush1.msra.mxu0 %v3360
    %5204 = vmatprep.subr.mxu0 %v3365
    %5205 = vmatpush1.msra.mxu0 %v3364
    %5206 = vmatprep.subr.mxu0 %v3369
    %5207 = vmatpush1.msra.mxu0 %v3368
    %5208 = vmatprep.subr.mxu0 %v3373
    %5209 = vmatpush1.msra.mxu0 %v3372
    %5210 = vmatprep.subr.mxu0 %v3377
    %5211 = vmatpush1.msra.mxu0 %v3376
    %5212 = vmatprep.subr.mxu0 %v3381
    %5213 = vmatpush1.msra.mxu0 %v3380
    %5214 = vmatprep.subr.mxu0 %v3385
    %5215 = vmatpush1.msra.mxu0 %v3384
    %5216 = vmatprep.subr.mxu0 %v3389
    %5217 = vmatpush1.msra.mxu0 %v3388
    %5218 = vmatprep.subr.mxu0 %v3393
    %5219 = vmatpush1.msra.mxu0 %v3392
    %5220 = vmatprep.subr.mxu0 %v3397
    %5221 = vmatpush1.msra.mxu0 %v3396
    %5222 = vmatprep.subr.mxu0 %v3401
    %5223 = vmatpush1.msra.mxu0 %v3400
    %5224 = vmatprep.subr.mxu0 %v3405
    %5225 = vmatpush1.msra.mxu0 %v3404
    %5226 = vmatprep.subr.mxu0 %v3409
    %5227 = vmatpush1.msra.mxu0 %v3408
    %5228 = vmatprep.subr.mxu0 %v3413
    %5229 = vmatpush1.msra.mxu0 %v3412
    %5230 = vmatprep.subr.mxu0 0.0
    %5231 = vmatpush1.msra.mxu0 0.0
    %5232 = vmatprep.subr.mxu0 0.0
    %5233 = vmatpush1.msra.mxu0 0.0
    %5234 = vmatprep.subr.mxu0 0.0
    %5235 = vmatpush1.msra.mxu0 0.0
    %5236 = vmatprep.subr.mxu0 0.0
    %5237 = vmatpush1.msra.mxu0 0.0
    %5238 = vmatprep.subr.mxu0 0.0
    %5239 = vmatpush1.msra.mxu0 0.0
    %5240 = vmatprep.subr.mxu0 0.0
    %5241 = vmatpush1.msra.mxu0 0.0
    %5242 = vmatprep.subr.mxu0 0.0
    %5243 = vmatpush1.msra.mxu0 0.0
    %5244 = vmatprep.subr.mxu0 0.0
    %5245 = vmatpush1.msra.mxu0 0.0
    %5246 = vmatprep.subr.mxu0 0.0
    %5247 = vmatpush1.msra.mxu0 0.0
    %5248 = vmatprep.subr.mxu0 0.0
    %5249 = vmatpush1.msra.mxu0 0.0
    %5250 = vmatprep.subr.mxu0 0.0
    %5251 = vmatpush1.msra.mxu0 0.0
    %5252 = vmatprep.subr.mxu0 0.0
    %5253 = vmatpush1.msra.mxu0 0.0
    %5254 = vmatprep.subr.mxu0 0.0
    %5255 = vmatpush1.msra.mxu0 0.0
    %5256 = vmatprep.subr.mxu0 0.0
    %5257 = vmatpush1.msra.mxu0 0.0
    %5258 = vmatprep.subr.mxu0 0.0
    %5259 = vmatpush1.msra.mxu0 0.0
    %5260 = vmatprep.subr.mxu0 0.0
    %5261 = vmatpush1.msra.mxu0 0.0
    %5262 = vmatprep.mubr.f32.mxu0 0.0
    %5263 = vmatmul.mubr.f32.gmra.mrb[0].mxu0 %v4917
    %v5264 = vpop.f32.mrb[0].mxu0
    %v5265 = vadd.f32 0.0, %v5264
    %v5266 = vpop.f32.mrb[0].mxu0
    %v5267 = vadd.f32 0.0, %v5266
    %5268 = vdwg.mxu0
    %v5273 = vcombine.low %v5194, %v5196
    %v5274 = vcombine.low %v5265, %v5267
    %v5276 = vunpack.c.l.s4 1966171168
    %v5277 = vunpack.c.0.s8 %v5276
    %v5278 = vlaneseq
    %v5279 = vshrl.u32 %v5278, 7
    %v5280 = vsub.s32 %v5277, %v5279
    %v5281 = vrot.slane %v5273, %v5280
    %v5283 = vunpack.c.l.s4 1966171168
    %v5284 = vunpack.c.0.s8 %v5283
    %v5285 = vlaneseq
    %v5286 = vshrl.u32 %v5285, 7
    %v5287 = vsub.s32 %v5284, %v5286
    %v5288 = vrot.slane %v5274, %v5287
    %v5289 = vcombine.low %v5281, %v5288
    %v5291 = vunpack.c.l.s4 1966171168
    %v5292 = vunpack.c.0.s8 %v5291
    %v5293 = vlaneseq
    %v5294 = vshrl.u32 %v5293, 7
    %v5295 = vsub.s32 %v5292, %v5294
    %v5296 = vrot.slane %v5289, %v5295
    %v5298 = vadd.f32 %v5126, %v5296
    %v5299 = vxor.u32 %v5298, 2147483648
    %v5300 = vmul.f32 %v5299, 1.442695
    %v5301 = vpow.pop %v5300
    %v5302 = vadd.f32 %v5301, 1.0
    %v5303 = vrcp.pop %v5302
    %v5304 = vmul.f32 1.0, %v5303
    %v5306 = vrot.slane %v5298, 1
    %v5308 = vxor.u32 %v5306, 2147483648
    %v5309 = vmul.f32 %v5308, 1.442695
    %v5310 = vpow.pop %v5309
    %v5311 = vadd.f32 %v5310, 1.0
    %v5312 = vrcp.pop %v5311
    %v5313 = vmul.f32 1.0, %v5312
    %v5314 = vrot.slane %v5298, 2
    %v5316 = vtanh.pop %v5314
    %v5317 = vrot.slane %v5298, 3
    %v5319 = vxor.u32 %v5317, 2147483648
    %v5320 = vmul.f32 %v5319, 1.442695
    %v5321 = vpow.pop %v5320
    %v5322 = vadd.f32 %v5321, 1.0
    %v5323 = vrcp.pop %v5322
    %v5324 = vmul.f32 1.0, %v5323
    %v5325 = vmul.f32 %v5313, %v4915
    %v5326 = vmul.f32 %v5304, %v5316
    %v5327 = vadd.f32 %v5325, %v5326
    %v5328 = vtanh.pop %v5327
    %v5329 = vmul.f32 %v5324, %v5328
    %5330 = vst [vmem:[#allocation3 + $0x4] sm:$0x1] %v5329
    %s5331 = scalar_lea.vmem [#allocation2], 35
    %v5332 = vld [vmem:[%s5331] ss:$8 sm:$0xf]
    %5333 = vmatprep.subr.mxu0 %v3415
    %5334 = vmatpush1.msra.mxu0 %v3414
    %5335 = vmatprep.subr.mxu0 %v3419
    %5336 = vmatpush1.msra.mxu0 %v3418
    %5337 = vmatprep.subr.mxu0 %v3423
    %5338 = vmatpush1.msra.mxu0 %v3422
    %5339 = vmatprep.subr.mxu0 %v3427
    %5340 = vmatpush1.msra.mxu0 %v3426
    %5341 = vmatprep.subr.mxu0 %v3431
    %5342 = vmatpush1.msra.mxu0 %v3430
    %5343 = vmatprep.subr.mxu0 %v3435
    %5344 = vmatpush1.msra.mxu0 %v3434
    %5345 = vmatprep.subr.mxu0 %v3439
    %5346 = vmatpush1.msra.mxu0 %v3438
    %5347 = vmatprep.subr.mxu0 %v3443
    %5348 = vmatpush1.msra.mxu0 %v3442
    %5349 = vmatprep.subr.mxu0 %v3447
    %5350 = vmatpush1.msra.mxu0 %v3446
    %5351 = vmatprep.subr.mxu0 %v3451
    %5352 = vmatpush1.msra.mxu0 %v3450
    %5353 = vmatprep.subr.mxu0 %v3455
    %5354 = vmatpush1.msra.mxu0 %v3454
    %5355 = vmatprep.subr.mxu0 %v3459
    %5356 = vmatpush1.msra.mxu0 %v3458
    %5357 = vmatprep.subr.mxu0 %v3463
    %5358 = vmatpush1.msra.mxu0 %v3462
    %5359 = vmatprep.subr.mxu0 %v3467
    %5360 = vmatpush1.msra.mxu0 %v3466
    %5361 = vmatprep.subr.mxu0 %v3471
    %5362 = vmatpush1.msra.mxu0 %v3470
    %5363 = vmatprep.subr.mxu0 %v3475
    %5364 = vmatpush1.msra.mxu0 %v3474
    %5365 = vmatprep.subr.mxu0 0.0
    %5366 = vmatpush1.msra.mxu0 0.0
    %5367 = vmatprep.subr.mxu0 0.0
    %5368 = vmatpush1.msra.mxu0 0.0
    %5369 = vmatprep.subr.mxu0 0.0
    %5370 = vmatpush1.msra.mxu0 0.0
    %5371 = vmatprep.subr.mxu0 0.0
    %5372 = vmatpush1.msra.mxu0 0.0
    %5373 = vmatprep.subr.mxu0 0.0
    %5374 = vmatpush1.msra.mxu0 0.0
    %5375 = vmatprep.subr.mxu0 0.0
    %5376 = vmatpush1.msra.mxu0 0.0
    %5377 = vmatprep.subr.mxu0 0.0
    %5378 = vmatpush1.msra.mxu0 0.0
    %5379 = vmatprep.subr.mxu0 0.0
    %5380 = vmatpush1.msra.mxu0 0.0
    %5381 = vmatprep.subr.mxu0 0.0
    %5382 = vmatpush1.msra.mxu0 0.0
    %5383 = vmatprep.subr.mxu0 0.0
    %5384 = vmatpush1.msra.mxu0 0.0
    %5385 = vmatprep.subr.mxu0 0.0
    %5386 = vmatpush1.msra.mxu0 0.0
    %5387 = vmatprep.subr.mxu0 0.0
    %5388 = vmatpush1.msra.mxu0 0.0
    %5389 = vmatprep.subr.mxu0 0.0
    %5390 = vmatpush1.msra.mxu0 0.0
    %5391 = vmatprep.subr.mxu0 0.0
    %5392 = vmatpush1.msra.mxu0 0.0
    %5393 = vmatprep.subr.mxu0 0.0
    %5394 = vmatpush1.msra.mxu0 0.0
    %5395 = vmatprep.subr.mxu0 0.0
    %5396 = vmatpush1.msra.mxu0 0.0
    %5397 = vmatprep.mubr.f32.mxu0 0.0
    %5398 = vmatmul.mubr.f32.gmra.mrb[0].mxu0 %v5123
    %v5399 = vpop.f32.mrb[0].mxu0
    %v5400 = vadd.f32 0.0, %v5399
    %v5401 = vpop.f32.mrb[0].mxu0
    %v5402 = vadd.f32 0.0, %v5401
    %5403 = vdwg.mxu0
    %5404 = vmatprep.subr.mxu0 %v3417
    %5405 = vmatpush1.msra.mxu0 %v3416
    %5406 = vmatprep.subr.mxu0 %v3421
    %5407 = vmatpush1.msra.mxu0 %v3420
    %5408 = vmatprep.subr.mxu0 %v3425
    %5409 = vmatpush1.msra.mxu0 %v3424
    %5410 = vmatprep.subr.mxu0 %v3429
    %5411 = vmatpush1.msra.mxu0 %v3428
    %5412 = vmatprep.subr.mxu0 %v3433
    %5413 = vmatpush1.msra.mxu0 %v3432
    %5414 = vmatprep.subr.mxu0 %v3437
    %5415 = vmatpush1.msra.mxu0 %v3436
    %5416 = vmatprep.subr.mxu0 %v3441
    %5417 = vmatpush1.msra.mxu0 %v3440
    %5418 = vmatprep.subr.mxu0 %v3445
    %5419 = vmatpush1.msra.mxu0 %v3444
    %5420 = vmatprep.subr.mxu0 %v3449
    %5421 = vmatpush1.msra.mxu0 %v3448
    %5422 = vmatprep.subr.mxu0 %v3453
    %5423 = vmatpush1.msra.mxu0 %v3452
    %5424 = vmatprep.subr.mxu0 %v3457
    %5425 = vmatpush1.msra.mxu0 %v3456
    %5426 = vmatprep.subr.mxu0 %v3461
    %5427 = vmatpush1.msra.mxu0 %v3460
    %5428 = vmatprep.subr.mxu0 %v3465
    %5429 = vmatpush1.msra.mxu0 %v3464
    %5430 = vmatprep.subr.mxu0 %v3469
    %5431 = vmatpush1.msra.mxu0 %v3468
    %5432 = vmatprep.subr.mxu0 %v3473
    %5433 = vmatpush1.msra.mxu0 %v3472
    %5434 = vmatprep.subr.mxu0 %v3477
    %5435 = vmatpush1.msra.mxu0 %v3476
    %5436 = vmatprep.subr.mxu0 0.0
    %5437 = vmatpush1.msra.mxu0 0.0
    %5438 = vmatprep.subr.mxu0 0.0
    %5439 = vmatpush1.msra.mxu0 0.0
    %5440 = vmatprep.subr.mxu0 0.0
    %5441 = vmatpush1.msra.mxu0 0.0
    %5442 = vmatprep.subr.mxu0 0.0
    %5443 = vmatpush1.msra.mxu0 0.0
    %5444 = vmatprep.subr.mxu0 0.0
    %5445 = vmatpush1.msra.mxu0 0.0
    %5446 = vmatprep.subr.mxu0 0.0
    %5447 = vmatpush1.msra.mxu0 0.0
    %5448 = vmatprep.subr.mxu0 0.0
    %5449 = vmatpush1.msra.mxu0 0.0
    %5450 = vmatprep.subr.mxu0 0.0
    %5451 = vmatpush1.msra.mxu0 0.0
    %5452 = vmatprep.subr.mxu0 0.0
    %5453 = vmatpush1.msra.mxu0 0.0
    %5454 = vmatprep.subr.mxu0 0.0
    %5455 = vmatpush1.msra.mxu0 0.0
    %5456 = vmatprep.subr.mxu0 0.0
    %5457 = vmatpush1.msra.mxu0 0.0
    %5458 = vmatprep.subr.mxu0 0.0
    %5459 = vmatpush1.msra.mxu0 0.0
    %5460 = vmatprep.subr.mxu0 0.0
    %5461 = vmatpush1.msra.mxu0 0.0
    %5462 = vmatprep.subr.mxu0 0.0
    %5463 = vmatpush1.msra.mxu0 0.0
    %5464 = vmatprep.subr.mxu0 0.0
    %5465 = vmatpush1.msra.mxu0 0.0
    %5466 = vmatprep.subr.mxu0 0.0
    %5467 = vmatpush1.msra.mxu0 0.0
    %5468 = vmatprep.mubr.f32.mxu0 0.0
    %5469 = vmatmul.mubr.f32.gmra.mrb[0].mxu0 %v5123
    %v5470 = vpop.f32.mrb[0].mxu0
    %v5471 = vadd.f32 0.0, %v5470
    %v5472 = vpop.f32.mrb[0].mxu0
    %v5473 = vadd.f32 0.0, %v5472
    %5474 = vdwg.mxu0
    %v5479 = vcombine.low %v5400, %v5402
    %v5480 = vcombine.low %v5471, %v5473
    %v5482 = vunpack.c.l.s4 1966171168
    %v5483 = vunpack.c.0.s8 %v5482
    %v5484 = vlaneseq
    %v5485 = vshrl.u32 %v5484, 7
    %v5486 = vsub.s32 %v5483, %v5485
    %v5487 = vrot.slane %v5479, %v5486
    %v5489 = vunpack.c.l.s4 1966171168
    %v5490 = vunpack.c.0.s8 %v5489
    %v5491 = vlaneseq
    %v5492 = vshrl.u32 %v5491, 7
    %v5493 = vsub.s32 %v5490, %v5492
    %v5494 = vrot.slane %v5480, %v5493
    %v5495 = vcombine.low %v5487, %v5494
    %v5497 = vunpack.c.l.s4 1966171168
    %v5498 = vunpack.c.0.s8 %v5497
    %v5499 = vlaneseq
    %v5500 = vshrl.u32 %v5499, 7
    %v5501 = vsub.s32 %v5498, %v5500
    %v5502 = vrot.slane %v5495, %v5501
    %v5504 = vadd.f32 %v5332, %v5502
    %v5505 = vxor.u32 %v5504, 2147483648
    %v5506 = vmul.f32 %v5505, 1.442695
    %v5507 = vpow.pop %v5506
    %v5508 = vadd.f32 %v5507, 1.0
    %v5509 = vrcp.pop %v5508
    %v5510 = vmul.f32 1.0, %v5509
    %v5512 = vrot.slane %v5504, 1
    %v5514 = vxor.u32 %v5512, 2147483648
    %v5515 = vmul.f32 %v5514, 1.442695
    %v5516 = vpow.pop %v5515
    %v5517 = vadd.f32 %v5516, 1.0
    %v5518 = vrcp.pop %v5517
    %v5519 = vmul.f32 1.0, %v5518
    %v5520 = vrot.slane %v5504, 2
    %v5522 = vtanh.pop %v5520
    %v5523 = vrot.slane %v5504, 3
    %v5525 = vxor.u32 %v5523, 2147483648
    %v5526 = vmul.f32 %v5525, 1.442695
    %v5527 = vpow.pop %v5526
    %v5528 = vadd.f32 %v5527, 1.0
    %v5529 = vrcp.pop %v5528
    %v5530 = vmul.f32 1.0, %v5529
    %v5531 = vmul.f32 %v5519, %v5121
    %v5532 = vmul.f32 %v5510, %v5522
    %v5533 = vadd.f32 %v5531, %v5532
    %v5534 = vtanh.pop %v5533
    %v5535 = vmul.f32 %v5530, %v5534
    %5536 = vst [vmem:[#allocation4 + $0x3] sm:$0x1] %v5535
    %s5537 = scalar_lea.vmem [#allocation2], 5
    %v5538 = vld [vmem:[%s5537] ss:$8 sm:$0xf]
    %5539 = vmatprep.subr.mxu0 %v3351
    %5540 = vmatpush1.msra.mxu0 %v3350
    %5541 = vmatprep.subr.mxu0 %v3355
    %5542 = vmatpush1.msra.mxu0 %v3354
    %5543 = vmatprep.subr.mxu0 %v3359
    %5544 = vmatpush1.msra.mxu0 %v3358
    %5545 = vmatprep.subr.mxu0 %v3363
    %5546 = vmatpush1.msra.mxu0 %v3362
    %5547 = vmatprep.subr.mxu0 %v3367
    %5548 = vmatpush1.msra.mxu0 %v3366
    %5549 = vmatprep.subr.mxu0 %v3371
    %5550 = vmatpush1.msra.mxu0 %v3370
    %5551 = vmatprep.subr.mxu0 %v3375
    %5552 = vmatpush1.msra.mxu0 %v3374
    %5553 = vmatprep.subr.mxu0 %v3379
    %5554 = vmatpush1.msra.mxu0 %v3378
    %5555 = vmatprep.subr.mxu0 %v3383
    %5556 = vmatpush1.msra.mxu0 %v3382
    %5557 = vmatprep.subr.mxu0 %v3387
    %5558 = vmatpush1.msra.mxu0 %v3386
    %5559 = vmatprep.subr.mxu0 %v3391
    %5560 = vmatpush1.msra.mxu0 %v3390
    %5561 = vmatprep.subr.mxu0 %v3395
    %5562 = vmatpush1.msra.mxu0 %v3394
    %5563 = vmatprep.subr.mxu0 %v3399
    %5564 = vmatpush1.msra.mxu0 %v3398
    %5565 = vmatprep.subr.mxu0 %v3403
    %5566 = vmatpush1.msra.mxu0 %v3402
    %5567 = vmatprep.subr.mxu0 %v3407
    %5568 = vmatpush1.msra.mxu0 %v3406
    %5569 = vmatprep.subr.mxu0 %v3411
    %5570 = vmatpush1.msra.mxu0 %v3410
    %5571 = vmatprep.subr.mxu0 0.0
    %5572 = vmatpush1.msra.mxu0 0.0
    %5573 = vmatprep.subr.mxu0 0.0
    %5574 = vmatpush1.msra.mxu0 0.0
    %5575 = vmatprep.subr.mxu0 0.0
    %5576 = vmatpush1.msra.mxu0 0.0
    %5577 = vmatprep.subr.mxu0 0.0
    %5578 = vmatpush1.msra.mxu0 0.0
    %5579 = vmatprep.subr.mxu0 0.0
    %5580 = vmatpush1.msra.mxu0 0.0
    %5581 = vmatprep.subr.mxu0 0.0
    %5582 = vmatpush1.msra.mxu0 0.0
    %5583 = vmatprep.subr.mxu0 0.0
    %5584 = vmatpush1.msra.mxu0 0.0
    %5585 = vmatprep.subr.mxu0 0.0
    %5586 = vmatpush1.msra.mxu0 0.0
    %5587 = vmatprep.subr.mxu0 0.0
    %5588 = vmatpush1.msra.mxu0 0.0
    %5589 = vmatprep.subr.mxu0 0.0
    %5590 = vmatpush1.msra.mxu0 0.0
    %5591 = vmatprep.subr.mxu0 0.0
    %5592 = vmatpush1.msra.mxu0 0.0
    %5593 = vmatprep.subr.mxu0 0.0
    %5594 = vmatpush1.msra.mxu0 0.0
    %5595 = vmatprep.subr.mxu0 0.0
    %5596 = vmatpush1.msra.mxu0 0.0
    %5597 = vmatprep.subr.mxu0 0.0
    %5598 = vmatpush1.msra.mxu0 0.0
    %5599 = vmatprep.subr.mxu0 0.0
    %5600 = vmatpush1.msra.mxu0 0.0
    %5601 = vmatprep.subr.mxu0 0.0
    %5602 = vmatpush1.msra.mxu0 0.0
    %5603 = vmatprep.mubr.f32.mxu0 0.0
    %5604 = vmatmul.mubr.f32.gmra.mrb[0].mxu0 %v5329
    %v5605 = vpop.f32.mrb[0].mxu0
    %v5606 = vadd.f32 0.0, %v5605
    %v5607 = vpop.f32.mrb[0].mxu0
    %v5608 = vadd.f32 0.0, %v5607
    %5609 = vdwg.mxu0
    %5610 = vmatprep.subr.mxu0 %v3353
    %5611 = vmatpush1.msra.mxu0 %v3352
    %5612 = vmatprep.subr.mxu0 %v3357
    %5613 = vmatpush1.msra.mxu0 %v3356
    %5614 = vmatprep.subr.mxu0 %v3361
    %5615 = vmatpush1.msra.mxu0 %v3360
    %5616 = vmatprep.subr.mxu0 %v3365
    %5617 = vmatpush1.msra.mxu0 %v3364
    %5618 = vmatprep.subr.mxu0 %v3369
    %5619 = vmatpush1.msra.mxu0 %v3368
    %5620 = vmatprep.subr.mxu0 %v3373
    %5621 = vmatpush1.msra.mxu0 %v3372
    %5622 = vmatprep.subr.mxu0 %v3377
    %5623 = vmatpush1.msra.mxu0 %v3376
    %5624 = vmatprep.subr.mxu0 %v3381
    %5625 = vmatpush1.msra.mxu0 %v3380
    %5626 = vmatprep.subr.mxu0 %v3385
    %5627 = vmatpush1.msra.mxu0 %v3384
    %5628 = vmatprep.subr.mxu0 %v3389
    %5629 = vmatpush1.msra.mxu0 %v3388
    %5630 = vmatprep.subr.mxu0 %v3393
    %5631 = vmatpush1.msra.mxu0 %v3392
    %5632 = vmatprep.subr.mxu0 %v3397
    %5633 = vmatpush1.msra.mxu0 %v3396
    %5634 = vmatprep.subr.mxu0 %v3401
    %5635 = vmatpush1.msra.mxu0 %v3400
    %5636 = vmatprep.subr.mxu0 %v3405
    %5637 = vmatpush1.msra.mxu0 %v3404
    %5638 = vmatprep.subr.mxu0 %v3409
    %5639 = vmatpush1.msra.mxu0 %v3408
    %5640 = vmatprep.subr.mxu0 %v3413
    %5641 = vmatpush1.msra.mxu0 %v3412
    %5642 = vmatprep.subr.mxu0 0.0
    %5643 = vmatpush1.msra.mxu0 0.0
    %5644 = vmatprep.subr.mxu0 0.0
    %5645 = vmatpush1.msra.mxu0 0.0
    %5646 = vmatprep.subr.mxu0 0.0
    %5647 = vmatpush1.msra.mxu0 0.0
    %5648 = vmatprep.subr.mxu0 0.0
    %5649 = vmatpush1.msra.mxu0 0.0
    %5650 = vmatprep.subr.mxu0 0.0
    %5651 = vmatpush1.msra.mxu0 0.0
    %5652 = vmatprep.subr.mxu0 0.0
    %5653 = vmatpush1.msra.mxu0 0.0
    %5654 = vmatprep.subr.mxu0 0.0
    %5655 = vmatpush1.msra.mxu0 0.0
    %5656 = vmatprep.subr.mxu0 0.0
    %5657 = vmatpush1.msra.mxu0 0.0
    %5658 = vmatprep.subr.mxu0 0.0
    %5659 = vmatpush1.msra.mxu0 0.0
    %5660 = vmatprep.subr.mxu0 0.0
    %5661 = vmatpush1.msra.mxu0 0.0
    %5662 = vmatprep.subr.mxu0 0.0
    %5663 = vmatpush1.msra.mxu0 0.0
    %5664 = vmatprep.subr.mxu0 0.0
    %5665 = vmatpush1.msra.mxu0 0.0
    %5666 = vmatprep.subr.mxu0 0.0
    %5667 = vmatpush1.msra.mxu0 0.0
    %5668 = vmatprep.subr.mxu0 0.0
    %5669 = vmatpush1.msra.mxu0 0.0
    %5670 = vmatprep.subr.mxu0 0.0
    %5671 = vmatpush1.msra.mxu0 0.0
    %5672 = vmatprep.subr.mxu0 0.0
    %5673 = vmatpush1.msra.mxu0 0.0
    %5674 = vmatprep.mubr.f32.mxu0 0.0
    %5675 = vmatmul.mubr.f32.gmra.mrb[0].mxu0 %v5329
    %v5676 = vpop.f32.mrb[0].mxu0
    %v5677 = vadd.f32 0.0, %v5676
    %v5678 = vpop.f32.mrb[0].mxu0
    %v5679 = vadd.f32 0.0, %v5678
    %5680 = vdwg.mxu0
    %v5685 = vcombine.low %v5606, %v5608
    %v5686 = vcombine.low %v5677, %v5679
    %v5688 = vunpack.c.l.s4 1966171168
    %v5689 = vunpack.c.0.s8 %v5688
    %v5690 = vlaneseq
    %v5691 = vshrl.u32 %v5690, 7
    %v5692 = vsub.s32 %v5689, %v5691
    %v5693 = vrot.slane %v5685, %v5692
    %v5695 = vunpack.c.l.s4 1966171168
    %v5696 = vunpack.c.0.s8 %v5695
    %v5697 = vlaneseq
    %v5698 = vshrl.u32 %v5697, 7
    %v5699 = vsub.s32 %v5696, %v5698
    %v5700 = vrot.slane %v5686, %v5699
    %v5701 = vcombine.low %v5693, %v5700
    %v5703 = vunpack.c.l.s4 1966171168
    %v5704 = vunpack.c.0.s8 %v5703
    %v5705 = vlaneseq
    %v5706 = vshrl.u32 %v5705, 7
    %v5707 = vsub.s32 %v5704, %v5706
    %v5708 = vrot.slane %v5701, %v5707
    %v5710 = vadd.f32 %v5538, %v5708
    %v5711 = vxor.u32 %v5710, 2147483648
    %v5712 = vmul.f32 %v5711, 1.442695
    %v5713 = vpow.pop %v5712
    %v5714 = vadd.f32 %v5713, 1.0
    %v5715 = vrcp.pop %v5714
    %v5716 = vmul.f32 1.0, %v5715
    %v5718 = vrot.slane %v5710, 1
    %v5720 = vxor.u32 %v5718, 2147483648
    %v5721 = vmul.f32 %v5720, 1.442695
    %v5722 = vpow.pop %v5721
    %v5723 = vadd.f32 %v5722, 1.0
    %v5724 = vrcp.pop %v5723
    %v5725 = vmul.f32 1.0, %v5724
    %v5726 = vrot.slane %v5710, 2
    %v5728 = vtanh.pop %v5726
    %v5729 = vrot.slane %v5710, 3
    %v5731 = vxor.u32 %v5729, 2147483648
    %v5732 = vmul.f32 %v5731, 1.442695
    %v5733 = vpow.pop %v5732
    %v5734 = vadd.f32 %v5733, 1.0
    %v5735 = vrcp.pop %v5734
    %v5736 = vmul.f32 1.0, %v5735
    %v5737 = vmul.f32 %v5725, %v5327
    %v5738 = vmul.f32 %v5716, %v5728
    %v5739 = vadd.f32 %v5737, %v5738
    %v5740 = vtanh.pop %v5739
    %v5741 = vmul.f32 %v5736, %v5740
    %5742 = vst [vmem:[#allocation3 + $0x5] sm:$0x1] %v5741
    %s5743 = scalar_lea.vmem [#allocation2], 34
    %v5744 = vld [vmem:[%s5743] ss:$8 sm:$0xf]
    %5745 = vmatprep.subr.mxu0 %v3415
    %5746 = vmatpush1.msra.mxu0 %v3414
    %5747 = vmatprep.subr.mxu0 %v3419
    %5748 = vmatpush1.msra.mxu0 %v3418
    %5749 = vmatprep.subr.mxu0 %v3423
    %5750 = vmatpush1.msra.mxu0 %v3422
    %5751 = vmatprep.subr.mxu0 %v3427
    %5752 = vmatpush1.msra.mxu0 %v3426
    %5753 = vmatprep.subr.mxu0 %v3431
    %5754 = vmatpush1.msra.mxu0 %v3430
    %5755 = vmatprep.subr.mxu0 %v3435
    %5756 = vmatpush1.msra.mxu0 %v3434
    %5757 = vmatprep.subr.mxu0 %v3439
    %5758 = vmatpush1.msra.mxu0 %v3438
    %5759 = vmatprep.subr.mxu0 %v3443
    %5760 = vmatpush1.msra.mxu0 %v3442
    %5761 = vmatprep.subr.mxu0 %v3447
    %5762 = vmatpush1.msra.mxu0 %v3446
    %5763 = vmatprep.subr.mxu0 %v3451
    %5764 = vmatpush1.msra.mxu0 %v3450
    %5765 = vmatprep.subr.mxu0 %v3455
    %5766 = vmatpush1.msra.mxu0 %v3454
    %5767 = vmatprep.subr.mxu0 %v3459
    %5768 = vmatpush1.msra.mxu0 %v3458
    %5769 = vmatprep.subr.mxu0 %v3463
    %5770 = vmatpush1.msra.mxu0 %v3462
    %5771 = vmatprep.subr.mxu0 %v3467
    %5772 = vmatpush1.msra.mxu0 %v3466
    %5773 = vmatprep.subr.mxu0 %v3471
    %5774 = vmatpush1.msra.mxu0 %v3470
    %5775 = vmatprep.subr.mxu0 %v3475
    %5776 = vmatpush1.msra.mxu0 %v3474
    %5777 = vmatprep.subr.mxu0 0.0
    %5778 = vmatpush1.msra.mxu0 0.0
    %5779 = vmatprep.subr.mxu0 0.0
    %5780 = vmatpush1.msra.mxu0 0.0
    %5781 = vmatprep.subr.mxu0 0.0
    %5782 = vmatpush1.msra.mxu0 0.0
    %5783 = vmatprep.subr.mxu0 0.0
    %5784 = vmatpush1.msra.mxu0 0.0
    %5785 = vmatprep.subr.mxu0 0.0
    %5786 = vmatpush1.msra.mxu0 0.0
    %5787 = vmatprep.subr.mxu0 0.0
    %5788 = vmatpush1.msra.mxu0 0.0
    %5789 = vmatprep.subr.mxu0 0.0
    %5790 = vmatpush1.msra.mxu0 0.0
    %5791 = vmatprep.subr.mxu0 0.0
    %5792 = vmatpush1.msra.mxu0 0.0
    %5793 = vmatprep.subr.mxu0 0.0
    %5794 = vmatpush1.msra.mxu0 0.0
    %5795 = vmatprep.subr.mxu0 0.0
    %5796 = vmatpush1.msra.mxu0 0.0
    %5797 = vmatprep.subr.mxu0 0.0
    %5798 = vmatpush1.msra.mxu0 0.0
    %5799 = vmatprep.subr.mxu0 0.0
    %5800 = vmatpush1.msra.mxu0 0.0
    %5801 = vmatprep.subr.mxu0 0.0
    %5802 = vmatpush1.msra.mxu0 0.0
    %5803 = vmatprep.subr.mxu0 0.0
    %5804 = vmatpush1.msra.mxu0 0.0
    %5805 = vmatprep.subr.mxu0 0.0
    %5806 = vmatpush1.msra.mxu0 0.0
    %5807 = vmatprep.subr.mxu0 0.0
    %5808 = vmatpush1.msra.mxu0 0.0
    %5809 = vmatprep.mubr.f32.mxu0 0.0
    %5810 = vmatmul.mubr.f32.gmra.mrb[0].mxu0 %v5535
    %v5811 = vpop.f32.mrb[0].mxu0
    %v5812 = vadd.f32 0.0, %v5811
    %v5813 = vpop.f32.mrb[0].mxu0
    %v5814 = vadd.f32 0.0, %v5813
    %5815 = vdwg.mxu0
    %5816 = vmatprep.subr.mxu0 %v3417
    %5817 = vmatpush1.msra.mxu0 %v3416
    %5818 = vmatprep.subr.mxu0 %v3421
    %5819 = vmatpush1.msra.mxu0 %v3420
    %5820 = vmatprep.subr.mxu0 %v3425
    %5821 = vmatpush1.msra.mxu0 %v3424
    %5822 = vmatprep.subr.mxu0 %v3429
    %5823 = vmatpush1.msra.mxu0 %v3428
    %5824 = vmatprep.subr.mxu0 %v3433
    %5825 = vmatpush1.msra.mxu0 %v3432
    %5826 = vmatprep.subr.mxu0 %v3437
    %5827 = vmatpush1.msra.mxu0 %v3436
    %5828 = vmatprep.subr.mxu0 %v3441
    %5829 = vmatpush1.msra.mxu0 %v3440
    %5830 = vmatprep.subr.mxu0 %v3445
    %5831 = vmatpush1.msra.mxu0 %v3444
    %5832 = vmatprep.subr.mxu0 %v3449
    %5833 = vmatpush1.msra.mxu0 %v3448
    %5834 = vmatprep.subr.mxu0 %v3453
    %5835 = vmatpush1.msra.mxu0 %v3452
    %5836 = vmatprep.subr.mxu0 %v3457
    %5837 = vmatpush1.msra.mxu0 %v3456
    %5838 = vmatprep.subr.mxu0 %v3461
    %5839 = vmatpush1.msra.mxu0 %v3460
    %5840 = vmatprep.subr.mxu0 %v3465
    %5841 = vmatpush1.msra.mxu0 %v3464
    %5842 = vmatprep.subr.mxu0 %v3469
    %5843 = vmatpush1.msra.mxu0 %v3468
    %5844 = vmatprep.subr.mxu0 %v3473
    %5845 = vmatpush1.msra.mxu0 %v3472
    %5846 = vmatprep.subr.mxu0 %v3477
    %5847 = vmatpush1.msra.mxu0 %v3476
    %5848 = vmatprep.subr.mxu0 0.0
    %5849 = vmatpush1.msra.mxu0 0.0
    %5850 = vmatprep.subr.mxu0 0.0
    %5851 = vmatpush1.msra.mxu0 0.0
    %5852 = vmatprep.subr.mxu0 0.0
    %5853 = vmatpush1.msra.mxu0 0.0
    %5854 = vmatprep.subr.mxu0 0.0
    %5855 = vmatpush1.msra.mxu0 0.0
    %5856 = vmatprep.subr.mxu0 0.0
    %5857 = vmatpush1.msra.mxu0 0.0
    %5858 = vmatprep.subr.mxu0 0.0
    %5859 = vmatpush1.msra.mxu0 0.0
    %5860 = vmatprep.subr.mxu0 0.0
    %5861 = vmatpush1.msra.mxu0 0.0
    %5862 = vmatprep.subr.mxu0 0.0
    %5863 = vmatpush1.msra.mxu0 0.0
    %5864 = vmatprep.subr.mxu0 0.0
    %5865 = vmatpush1.msra.mxu0 0.0
    %5866 = vmatprep.subr.mxu0 0.0
    %5867 = vmatpush1.msra.mxu0 0.0
    %5868 = vmatprep.subr.mxu0 0.0
    %5869 = vmatpush1.msra.mxu0 0.0
    %5870 = vmatprep.subr.mxu0 0.0
    %5871 = vmatpush1.msra.mxu0 0.0
    %5872 = vmatprep.subr.mxu0 0.0
    %5873 = vmatpush1.msra.mxu0 0.0
    %5874 = vmatprep.subr.mxu0 0.0
    %5875 = vmatpush1.msra.mxu0 0.0
    %5876 = vmatprep.subr.mxu0 0.0
    %5877 = vmatpush1.msra.mxu0 0.0
    %5878 = vmatprep.subr.mxu0 0.0
    %5879 = vmatpush1.msra.mxu0 0.0
    %5880 = vmatprep.mubr.f32.mxu0 0.0
    %5881 = vmatmul.mubr.f32.gmra.mrb[0].mxu0 %v5535
    %v5882 = vpop.f32.mrb[0].mxu0
    %v5883 = vadd.f32 0.0, %v5882
    %v5884 = vpop.f32.mrb[0].mxu0
    %v5885 = vadd.f32 0.0, %v5884
    %5886 = vdwg.mxu0
    %v5891 = vcombine.low %v5812, %v5814
    %v5892 = vcombine.low %v5883, %v5885
    %v5894 = vunpack.c.l.s4 1966171168
    %v5895 = vunpack.c.0.s8 %v5894
    %v5896 = vlaneseq
    %v5897 = vshrl.u32 %v5896, 7
    %v5898 = vsub.s32 %v5895, %v5897
    %v5899 = vrot.slane %v5891, %v5898
    %v5901 = vunpack.c.l.s4 1966171168
    %v5902 = vunpack.c.0.s8 %v5901
    %v5903 = vlaneseq
    %v5904 = vshrl.u32 %v5903, 7
    %v5905 = vsub.s32 %v5902, %v5904
    %v5906 = vrot.slane %v5892, %v5905
    %v5907 = vcombine.low %v5899, %v5906
    %v5909 = vunpack.c.l.s4 1966171168
    %v5910 = vunpack.c.0.s8 %v5909
    %v5911 = vlaneseq
    %v5912 = vshrl.u32 %v5911, 7
    %v5913 = vsub.s32 %v5910, %v5912
    %v5914 = vrot.slane %v5907, %v5913
    %v5916 = vadd.f32 %v5744, %v5914
    %v5917 = vxor.u32 %v5916, 2147483648
    %v5918 = vmul.f32 %v5917, 1.442695
    %v5919 = vpow.pop %v5918
    %v5920 = vadd.f32 %v5919, 1.0
    %v5921 = vrcp.pop %v5920
    %v5922 = vmul.f32 1.0, %v5921
    %v5924 = vrot.slane %v5916, 1
    %v5926 = vxor.u32 %v5924, 2147483648
    %v5927 = vmul.f32 %v5926, 1.442695
    %v5928 = vpow.pop %v5927
    %v5929 = vadd.f32 %v5928, 1.0
    %v5930 = vrcp.pop %v5929
    %v5931 = vmul.f32 1.0, %v5930
    %v5932 = vrot.slane %v5916, 2
    %v5934 = vtanh.pop %v5932
    %v5935 = vrot.slane %v5916, 3
    %v5937 = vxor.u32 %v5935, 2147483648
    %v5938 = vmul.f32 %v5937, 1.442695
    %v5939 = vpow.pop %v5938
    %v5940 = vadd.f32 %v5939, 1.0
    %v5941 = vrcp.pop %v5940
    %v5942 = vmul.f32 1.0, %v5941
    %v5943 = vmul.f32 %v5931, %v5533
    %v5944 = vmul.f32 %v5922, %v5934
    %v5945 = vadd.f32 %v5943, %v5944
    %v5946 = vtanh.pop %v5945
    %v5947 = vmul.f32 %v5942, %v5946
    %5948 = vst [vmem:[#allocation4 + $0x2] sm:$0x1] %v5947
    %s5949 = scalar_lea.vmem [#allocation2], 6
    %v5950 = vld [vmem:[%s5949] ss:$8 sm:$0xf]
    %5951 = vmatprep.subr.mxu0 %v3351
    %5952 = vmatpush1.msra.mxu0 %v3350
    %5953 = vmatprep.subr.mxu0 %v3355
    %5954 = vmatpush1.msra.mxu0 %v3354
    %5955 = vmatprep.subr.mxu0 %v3359
    %5956 = vmatpush1.msra.mxu0 %v3358
    %5957 = vmatprep.subr.mxu0 %v3363
    %5958 = vmatpush1.msra.mxu0 %v3362
    %5959 = vmatprep.subr.mxu0 %v3367
    %5960 = vmatpush1.msra.mxu0 %v3366
    %5961 = vmatprep.subr.mxu0 %v3371
    %5962 = vmatpush1.msra.mxu0 %v3370
    %5963 = vmatprep.subr.mxu0 %v3375
    %5964 = vmatpush1.msra.mxu0 %v3374
    %5965 = vmatprep.subr.mxu0 %v3379
    %5966 = vmatpush1.msra.mxu0 %v3378
    %5967 = vmatprep.subr.mxu0 %v3383
    %5968 = vmatpush1.msra.mxu0 %v3382
    %5969 = vmatprep.subr.mxu0 %v3387
    %5970 = vmatpush1.msra.mxu0 %v3386
    %5971 = vmatprep.subr.mxu0 %v3391
    %5972 = vmatpush1.msra.mxu0 %v3390
    %5973 = vmatprep.subr.mxu0 %v3395
    %5974 = vmatpush1.msra.mxu0 %v3394
    %5975 = vmatprep.subr.mxu0 %v3399
    %5976 = vmatpush1.msra.mxu0 %v3398
    %5977 = vmatprep.subr.mxu0 %v3403
    %5978 = vmatpush1.msra.mxu0 %v3402
    %5979 = vmatprep.subr.mxu0 %v3407
    %5980 = vmatpush1.msra.mxu0 %v3406
    %5981 = vmatprep.subr.mxu0 %v3411
    %5982 = vmatpush1.msra.mxu0 %v3410
    %5983 = vmatprep.subr.mxu0 0.0
    %5984 = vmatpush1.msra.mxu0 0.0
    %5985 = vmatprep.subr.mxu0 0.0
    %5986 = vmatpush1.msra.mxu0 0.0
    %5987 = vmatprep.subr.mxu0 0.0
    %5988 = vmatpush1.msra.mxu0 0.0
    %5989 = vmatprep.subr.mxu0 0.0
    %5990 = vmatpush1.msra.mxu0 0.0
    %5991 = vmatprep.subr.mxu0 0.0
    %5992 = vmatpush1.msra.mxu0 0.0
    %5993 = vmatprep.subr.mxu0 0.0
    %5994 = vmatpush1.msra.mxu0 0.0
    %5995 = vmatprep.subr.mxu0 0.0
    %5996 = vmatpush1.msra.mxu0 0.0
    %5997 = vmatprep.subr.mxu0 0.0
    %5998 = vmatpush1.msra.mxu0 0.0
    %5999 = vmatprep.subr.mxu0 0.0
    %6000 = vmatpush1.msra.mxu0 0.0
    %6001 = vmatprep.subr.mxu0 0.0
    %6002 = vmatpush1.msra.mxu0 0.0
    %6003 = vmatprep.subr.mxu0 0.0
    %6004 = vmatpush1.msra.mxu0 0.0
    %6005 = vmatprep.subr.mxu0 0.0
    %6006 = vmatpush1.msra.mxu0 0.0
    %6007 = vmatprep.subr.mxu0 0.0
    %6008 = vmatpush1.msra.mxu0 0.0
    %6009 = vmatprep.subr.mxu0 0.0
    %6010 = vmatpush1.msra.mxu0 0.0
    %6011 = vmatprep.subr.mxu0 0.0
    %6012 = vmatpush1.msra.mxu0 0.0
    %6013 = vmatprep.subr.mxu0 0.0
    %6014 = vmatpush1.msra.mxu0 0.0
    %6015 = vmatprep.mubr.f32.mxu0 0.0
    %6016 = vmatmul.mubr.f32.gmra.mrb[0].mxu0 %v5741
    %v6017 = vpop.f32.mrb[0].mxu0
    %v6018 = vadd.f32 0.0, %v6017
    %v6019 = vpop.f32.mrb[0].mxu0
    %v6020 = vadd.f32 0.0, %v6019
    %6021 = vdwg.mxu0
    %6022 = vmatprep.subr.mxu0 %v3353
    %6023 = vmatpush1.msra.mxu0 %v3352
    %6024 = vmatprep.subr.mxu0 %v3357
    %6025 = vmatpush1.msra.mxu0 %v3356
    %6026 = vmatprep.subr.mxu0 %v3361
    %6027 = vmatpush1.msra.mxu0 %v3360
    %6028 = vmatprep.subr.mxu0 %v3365
    %6029 = vmatpush1.msra.mxu0 %v3364
    %6030 = vmatprep.subr.mxu0 %v3369
    %6031 = vmatpush1.msra.mxu0 %v3368
    %6032 = vmatprep.subr.mxu0 %v3373
    %6033 = vmatpush1.msra.mxu0 %v3372
    %6034 = vmatprep.subr.mxu0 %v3377
    %6035 = vmatpush1.msra.mxu0 %v3376
    %6036 = vmatprep.subr.mxu0 %v3381
    %6037 = vmatpush1.msra.mxu0 %v3380
    %6038 = vmatprep.subr.mxu0 %v3385
    %6039 = vmatpush1.msra.mxu0 %v3384
    %6040 = vmatprep.subr.mxu0 %v3389
    %6041 = vmatpush1.msra.mxu0 %v3388
    %6042 = vmatprep.subr.mxu0 %v3393
    %6043 = vmatpush1.msra.mxu0 %v3392
    %6044 = vmatprep.subr.mxu0 %v3397
    %6045 = vmatpush1.msra.mxu0 %v3396
    %6046 = vmatprep.subr.mxu0 %v3401
    %6047 = vmatpush1.msra.mxu0 %v3400
    %6048 = vmatprep.subr.mxu0 %v3405
    %6049 = vmatpush1.msra.mxu0 %v3404
    %6050 = vmatprep.subr.mxu0 %v3409
    %6051 = vmatpush1.msra.mxu0 %v3408
    %6052 = vmatprep.subr.mxu0 %v3413
    %6053 = vmatpush1.msra.mxu0 %v3412
    %6054 = vmatprep.subr.mxu0 0.0
    %6055 = vmatpush1.msra.mxu0 0.0
    %6056 = vmatprep.subr.mxu0 0.0
    %6057 = vmatpush1.msra.mxu0 0.0
    %6058 = vmatprep.subr.mxu0 0.0
    %6059 = vmatpush1.msra.mxu0 0.0
    %6060 = vmatprep.subr.mxu0 0.0
    %6061 = vmatpush1.msra.mxu0 0.0
    %6062 = vmatprep.subr.mxu0 0.0
    %6063 = vmatpush1.msra.mxu0 0.0
    %6064 = vmatprep.subr.mxu0 0.0
    %6065 = vmatpush1.msra.mxu0 0.0
    %6066 = vmatprep.subr.mxu0 0.0
    %6067 = vmatpush1.msra.mxu0 0.0
    %6068 = vmatprep.subr.mxu0 0.0
    %6069 = vmatpush1.msra.mxu0 0.0
    %6070 = vmatprep.subr.mxu0 0.0
    %6071 = vmatpush1.msra.mxu0 0.0
    %6072 = vmatprep.subr.mxu0 0.0
    %6073 = vmatpush1.msra.mxu0 0.0
    %6074 = vmatprep.subr.mxu0 0.0
    %6075 = vmatpush1.msra.mxu0 0.0
    %6076 = vmatprep.subr.mxu0 0.0
    %6077 = vmatpush1.msra.mxu0 0.0
    %6078 = vmatprep.subr.mxu0 0.0
    %6079 = vmatpush1.msra.mxu0 0.0
    %6080 = vmatprep.subr.mxu0 0.0
    %6081 = vmatpush1.msra.mxu0 0.0
    %6082 = vmatprep.subr.mxu0 0.0
    %6083 = vmatpush1.msra.mxu0 0.0
    %6084 = vmatprep.subr.mxu0 0.0
    %6085 = vmatpush1.msra.mxu0 0.0
    %6086 = vmatprep.mubr.f32.mxu0 0.0
    %6087 = vmatmul.mubr.f32.gmra.mrb[0].mxu0 %v5741
    %v6088 = vpop.f32.mrb[0].mxu0
    %v6089 = vadd.f32 0.0, %v6088
    %v6090 = vpop.f32.mrb[0].mxu0
    %v6091 = vadd.f32 0.0, %v6090
    %6092 = vdwg.mxu0
    %v6097 = vcombine.low %v6018, %v6020
    %v6098 = vcombine.low %v6089, %v6091
    %v6100 = vunpack.c.l.s4 1966171168
    %v6101 = vunpack.c.0.s8 %v6100
    %v6102 = vlaneseq
    %v6103 = vshrl.u32 %v6102, 7
    %v6104 = vsub.s32 %v6101, %v6103
    %v6105 = vrot.slane %v6097, %v6104
    %v6107 = vunpack.c.l.s4 1966171168
    %v6108 = vunpack.c.0.s8 %v6107
    %v6109 = vlaneseq
    %v6110 = vshrl.u32 %v6109, 7
    %v6111 = vsub.s32 %v6108, %v6110
    %v6112 = vrot.slane %v6098, %v6111
    %v6113 = vcombine.low %v6105, %v6112
    %v6115 = vunpack.c.l.s4 1966171168
    %v6116 = vunpack.c.0.s8 %v6115
    %v6117 = vlaneseq
    %v6118 = vshrl.u32 %v6117, 7
    %v6119 = vsub.s32 %v6116, %v6118
    %v6120 = vrot.slane %v6113, %v6119
    %v6122 = vadd.f32 %v5950, %v6120
    %v6123 = vxor.u32 %v6122, 2147483648
    %v6124 = vmul.f32 %v6123, 1.442695
    %v6125 = vpow.pop %v6124
    %v6126 = vadd.f32 %v6125, 1.0
    %v6127 = vrcp.pop %v6126
    %v6128 = vmul.f32 1.0, %v6127
    %v6130 = vrot.slane %v6122, 1
    %v6132 = vxor.u32 %v6130, 2147483648
    %v6133 = vmul.f32 %v6132, 1.442695
    %v6134 = vpow.pop %v6133
    %v6135 = vadd.f32 %v6134, 1.0
    %v6136 = vrcp.pop %v6135
    %v6137 = vmul.f32 1.0, %v6136
    %v6138 = vrot.slane %v6122, 2
    %v6140 = vtanh.pop %v6138
    %v6141 = vrot.slane %v6122, 3
    %v6143 = vxor.u32 %v6141, 2147483648
    %v6144 = vmul.f32 %v6143, 1.442695
    %v6145 = vpow.pop %v6144
    %v6146 = vadd.f32 %v6145, 1.0
    %v6147 = vrcp.pop %v6146
    %v6148 = vmul.f32 1.0, %v6147
    %v6149 = vmul.f32 %v6137, %v5739
    %v6150 = vmul.f32 %v6128, %v6140
    %v6151 = vadd.f32 %v6149, %v6150
    %v6152 = vtanh.pop %v6151
    %v6153 = vmul.f32 %v6148, %v6152
    %6154 = vst [vmem:[#allocation3 + $0x6] sm:$0x1] %v6153
    %s6155 = scalar_lea.vmem [#allocation2], 33
    %v6156 = vld [vmem:[%s6155] ss:$8 sm:$0xf]
    %6157 = vmatprep.subr.mxu0 %v3415
    %6158 = vmatpush1.msra.mxu0 %v3414
    %6159 = vmatprep.subr.mxu0 %v3419
    %6160 = vmatpush1.msra.mxu0 %v3418
    %6161 = vmatprep.subr.mxu0 %v3423
    %6162 = vmatpush1.msra.mxu0 %v3422
    %6163 = vmatprep.subr.mxu0 %v3427
    %6164 = vmatpush1.msra.mxu0 %v3426
    %6165 = vmatprep.subr.mxu0 %v3431
    %6166 = vmatpush1.msra.mxu0 %v3430
    %6167 = vmatprep.subr.mxu0 %v3435
    %6168 = vmatpush1.msra.mxu0 %v3434
    %6169 = vmatprep.subr.mxu0 %v3439
    %6170 = vmatpush1.msra.mxu0 %v3438
    %6171 = vmatprep.subr.mxu0 %v3443
    %6172 = vmatpush1.msra.mxu0 %v3442
    %6173 = vmatprep.subr.mxu0 %v3447
    %6174 = vmatpush1.msra.mxu0 %v3446
    %6175 = vmatprep.subr.mxu0 %v3451
    %6176 = vmatpush1.msra.mxu0 %v3450
    %6177 = vmatprep.subr.mxu0 %v3455
    %6178 = vmatpush1.msra.mxu0 %v3454
    %6179 = vmatprep.subr.mxu0 %v3459
    %6180 = vmatpush1.msra.mxu0 %v3458
    %6181 = vmatprep.subr.mxu0 %v3463
    %6182 = vmatpush1.msra.mxu0 %v3462
    %6183 = vmatprep.subr.mxu0 %v3467
    %6184 = vmatpush1.msra.mxu0 %v3466
    %6185 = vmatprep.subr.mxu0 %v3471
    %6186 = vmatpush1.msra.mxu0 %v3470
    %6187 = vmatprep.subr.mxu0 %v3475
    %6188 = vmatpush1.msra.mxu0 %v3474
    %6189 = vmatprep.subr.mxu0 0.0
    %6190 = vmatpush1.msra.mxu0 0.0
    %6191 = vmatprep.subr.mxu0 0.0
    %6192 = vmatpush1.msra.mxu0 0.0
    %6193 = vmatprep.subr.mxu0 0.0
    %6194 = vmatpush1.msra.mxu0 0.0
    %6195 = vmatprep.subr.mxu0 0.0
    %6196 = vmatpush1.msra.mxu0 0.0
    %6197 = vmatprep.subr.mxu0 0.0
    %6198 = vmatpush1.msra.mxu0 0.0
    %6199 = vmatprep.subr.mxu0 0.0
    %6200 = vmatpush1.msra.mxu0 0.0
    %6201 = vmatprep.subr.mxu0 0.0
    %6202 = vmatpush1.msra.mxu0 0.0
    %6203 = vmatprep.subr.mxu0 0.0
    %6204 = vmatpush1.msra.mxu0 0.0
    %6205 = vmatprep.subr.mxu0 0.0
    %6206 = vmatpush1.msra.mxu0 0.0
    %6207 = vmatprep.subr.mxu0 0.0
    %6208 = vmatpush1.msra.mxu0 0.0
    %6209 = vmatprep.subr.mxu0 0.0
    %6210 = vmatpush1.msra.mxu0 0.0
    %6211 = vmatprep.subr.mxu0 0.0
    %6212 = vmatpush1.msra.mxu0 0.0
    %6213 = vmatprep.subr.mxu0 0.0
    %6214 = vmatpush1.msra.mxu0 0.0
    %6215 = vmatprep.subr.mxu0 0.0
    %6216 = vmatpush1.msra.mxu0 0.0
    %6217 = vmatprep.subr.mxu0 0.0
    %6218 = vmatpush1.msra.mxu0 0.0
    %6219 = vmatprep.subr.mxu0 0.0
    %6220 = vmatpush1.msra.mxu0 0.0
    %6221 = vmatprep.mubr.f32.mxu0 0.0
    %6222 = vmatmul.mubr.f32.gmra.mrb[0].mxu0 %v5947
    %v6223 = vpop.f32.mrb[0].mxu0
    %v6224 = vadd.f32 0.0, %v6223
    %v6225 = vpop.f32.mrb[0].mxu0
    %v6226 = vadd.f32 0.0, %v6225
    %6227 = vdwg.mxu0
    %6228 = vmatprep.subr.mxu0 %v3417
    %6229 = vmatpush1.msra.mxu0 %v3416
    %6230 = vmatprep.subr.mxu0 %v3421
    %6231 = vmatpush1.msra.mxu0 %v3420
    %6232 = vmatprep.subr.mxu0 %v3425
    %6233 = vmatpush1.msra.mxu0 %v3424
    %6234 = vmatprep.subr.mxu0 %v3429
    %6235 = vmatpush1.msra.mxu0 %v3428
    %6236 = vmatprep.subr.mxu0 %v3433
    %6237 = vmatpush1.msra.mxu0 %v3432
    %6238 = vmatprep.subr.mxu0 %v3437
    %6239 = vmatpush1.msra.mxu0 %v3436
    %6240 = vmatprep.subr.mxu0 %v3441
    %6241 = vmatpush1.msra.mxu0 %v3440
    %6242 = vmatprep.subr.mxu0 %v3445
    %6243 = vmatpush1.msra.mxu0 %v3444
    %6244 = vmatprep.subr.mxu0 %v3449
    %6245 = vmatpush1.msra.mxu0 %v3448
    %6246 = vmatprep.subr.mxu0 %v3453
    %6247 = vmatpush1.msra.mxu0 %v3452
    %6248 = vmatprep.subr.mxu0 %v3457
    %6249 = vmatpush1.msra.mxu0 %v3456
    %6250 = vmatprep.subr.mxu0 %v3461
    %6251 = vmatpush1.msra.mxu0 %v3460
    %6252 = vmatprep.subr.mxu0 %v3465
    %6253 = vmatpush1.msra.mxu0 %v3464
    %6254 = vmatprep.subr.mxu0 %v3469
    %6255 = vmatpush1.msra.mxu0 %v3468
    %6256 = vmatprep.subr.mxu0 %v3473
    %6257 = vmatpush1.msra.mxu0 %v3472
    %6258 = vmatprep.subr.mxu0 %v3477
    %6259 = vmatpush1.msra.mxu0 %v3476
    %6260 = vmatprep.subr.mxu0 0.0
    %6261 = vmatpush1.msra.mxu0 0.0
    %6262 = vmatprep.subr.mxu0 0.0
    %6263 = vmatpush1.msra.mxu0 0.0
    %6264 = vmatprep.subr.mxu0 0.0
    %6265 = vmatpush1.msra.mxu0 0.0
    %6266 = vmatprep.subr.mxu0 0.0
    %6267 = vmatpush1.msra.mxu0 0.0
    %6268 = vmatprep.subr.mxu0 0.0
    %6269 = vmatpush1.msra.mxu0 0.0
    %6270 = vmatprep.subr.mxu0 0.0
    %6271 = vmatpush1.msra.mxu0 0.0
    %6272 = vmatprep.subr.mxu0 0.0
    %6273 = vmatpush1.msra.mxu0 0.0
    %6274 = vmatprep.subr.mxu0 0.0
    %6275 = vmatpush1.msra.mxu0 0.0
    %6276 = vmatprep.subr.mxu0 0.0
    %6277 = vmatpush1.msra.mxu0 0.0
    %6278 = vmatprep.subr.mxu0 0.0
    %6279 = vmatpush1.msra.mxu0 0.0
    %6280 = vmatprep.subr.mxu0 0.0
    %6281 = vmatpush1.msra.mxu0 0.0
    %6282 = vmatprep.subr.mxu0 0.0
    %6283 = vmatpush1.msra.mxu0 0.0
    %6284 = vmatprep.subr.mxu0 0.0
    %6285 = vmatpush1.msra.mxu0 0.0
    %6286 = vmatprep.subr.mxu0 0.0
    %6287 = vmatpush1.msra.mxu0 0.0
    %6288 = vmatprep.subr.mxu0 0.0
    %6289 = vmatpush1.msra.mxu0 0.0
    %6290 = vmatprep.subr.mxu0 0.0
    %6291 = vmatpush1.msra.mxu0 0.0
    %6292 = vmatprep.mubr.f32.mxu0 0.0
    %6293 = vmatmul.mubr.f32.gmra.mrb[0].mxu0 %v5947
    %v6294 = vpop.f32.mrb[0].mxu0
    %v6295 = vadd.f32 0.0, %v6294
    %v6296 = vpop.f32.mrb[0].mxu0
    %v6297 = vadd.f32 0.0, %v6296
    %6298 = vdwg.mxu0
    %v6303 = vcombine.low %v6224, %v6226
    %v6304 = vcombine.low %v6295, %v6297
    %v6306 = vunpack.c.l.s4 1966171168
    %v6307 = vunpack.c.0.s8 %v6306
    %v6308 = vlaneseq
    %v6309 = vshrl.u32 %v6308, 7
    %v6310 = vsub.s32 %v6307, %v6309
    %v6311 = vrot.slane %v6303, %v6310
    %v6313 = vunpack.c.l.s4 1966171168
    %v6314 = vunpack.c.0.s8 %v6313
    %v6315 = vlaneseq
    %v6316 = vshrl.u32 %v6315, 7
    %v6317 = vsub.s32 %v6314, %v6316
    %v6318 = vrot.slane %v6304, %v6317
    %v6319 = vcombine.low %v6311, %v6318
    %v6321 = vunpack.c.l.s4 1966171168
    %v6322 = vunpack.c.0.s8 %v6321
    %v6323 = vlaneseq
    %v6324 = vshrl.u32 %v6323, 7
    %v6325 = vsub.s32 %v6322, %v6324
    %v6326 = vrot.slane %v6319, %v6325
    %v6328 = vadd.f32 %v6156, %v6326
    %v6329 = vxor.u32 %v6328, 2147483648
    %v6330 = vmul.f32 %v6329, 1.442695
    %v6331 = vpow.pop %v6330
    %v6332 = vadd.f32 %v6331, 1.0
    %v6333 = vrcp.pop %v6332
    %v6334 = vmul.f32 1.0, %v6333
    %v6336 = vrot.slane %v6328, 1
    %v6338 = vxor.u32 %v6336, 2147483648
    %v6339 = vmul.f32 %v6338, 1.442695
    %v6340 = vpow.pop %v6339
    %v6341 = vadd.f32 %v6340, 1.0
    %v6342 = vrcp.pop %v6341
    %v6343 = vmul.f32 1.0, %v6342
    %v6344 = vrot.slane %v6328, 2
    %v6346 = vtanh.pop %v6344
    %v6347 = vrot.slane %v6328, 3
    %v6349 = vxor.u32 %v6347, 2147483648
    %v6350 = vmul.f32 %v6349, 1.442695
    %v6351 = vpow.pop %v6350
    %v6352 = vadd.f32 %v6351, 1.0
    %v6353 = vrcp.pop %v6352
    %v6354 = vmul.f32 1.0, %v6353
    %v6355 = vmul.f32 %v6343, %v5945
    %v6356 = vmul.f32 %v6334, %v6346
    %v6357 = vadd.f32 %v6355, %v6356
    %v6358 = vtanh.pop %v6357
    %v6359 = vmul.f32 %v6354, %v6358
    %6360 = vst [vmem:[#allocation4 + $0x1] sm:$0x1] %v6359
    %s6361 = scalar_lea.vmem [#allocation2], 7
    %v6362 = vld [vmem:[%s6361] ss:$8 sm:$0xf]
    %6363 = vmatprep.subr.mxu0 %v3351
    %6364 = vmatpush1.msra.mxu0 %v3350
    %6365 = vmatprep.subr.mxu0 %v3355
    %6366 = vmatpush1.msra.mxu0 %v3354
    %6367 = vmatprep.subr.mxu0 %v3359
    %6368 = vmatpush1.msra.mxu0 %v3358
    %6369 = vmatprep.subr.mxu0 %v3363
    %6370 = vmatpush1.msra.mxu0 %v3362
    %6371 = vmatprep.subr.mxu0 %v3367
    %6372 = vmatpush1.msra.mxu0 %v3366
    %6373 = vmatprep.subr.mxu0 %v3371
    %6374 = vmatpush1.msra.mxu0 %v3370
    %6375 = vmatprep.subr.mxu0 %v3375
    %6376 = vmatpush1.msra.mxu0 %v3374
    %6377 = vmatprep.subr.mxu0 %v3379
    %6378 = vmatpush1.msra.mxu0 %v3378
    %6379 = vmatprep.subr.mxu0 %v3383
    %6380 = vmatpush1.msra.mxu0 %v3382
    %6381 = vmatprep.subr.mxu0 %v3387
    %6382 = vmatpush1.msra.mxu0 %v3386
    %6383 = vmatprep.subr.mxu0 %v3391
    %6384 = vmatpush1.msra.mxu0 %v3390
    %6385 = vmatprep.subr.mxu0 %v3395
    %6386 = vmatpush1.msra.mxu0 %v3394
    %6387 = vmatprep.subr.mxu0 %v3399
    %6388 = vmatpush1.msra.mxu0 %v3398
    %6389 = vmatprep.subr.mxu0 %v3403
    %6390 = vmatpush1.msra.mxu0 %v3402
    %6391 = vmatprep.subr.mxu0 %v3407
    %6392 = vmatpush1.msra.mxu0 %v3406
    %6393 = vmatprep.subr.mxu0 %v3411
    %6394 = vmatpush1.msra.mxu0 %v3410
    %6395 = vmatprep.subr.mxu0 0.0
    %6396 = vmatpush1.msra.mxu0 0.0
    %6397 = vmatprep.subr.mxu0 0.0
    %6398 = vmatpush1.msra.mxu0 0.0
    %6399 = vmatprep.subr.mxu0 0.0
    %6400 = vmatpush1.msra.mxu0 0.0
    %6401 = vmatprep.subr.mxu0 0.0
    %6402 = vmatpush1.msra.mxu0 0.0
    %6403 = vmatprep.subr.mxu0 0.0
    %6404 = vmatpush1.msra.mxu0 0.0
    %6405 = vmatprep.subr.mxu0 0.0
    %6406 = vmatpush1.msra.mxu0 0.0
    %6407 = vmatprep.subr.mxu0 0.0
    %6408 = vmatpush1.msra.mxu0 0.0
    %6409 = vmatprep.subr.mxu0 0.0
    %6410 = vmatpush1.msra.mxu0 0.0
    %6411 = vmatprep.subr.mxu0 0.0
    %6412 = vmatpush1.msra.mxu0 0.0
    %6413 = vmatprep.subr.mxu0 0.0
    %6414 = vmatpush1.msra.mxu0 0.0
    %6415 = vmatprep.subr.mxu0 0.0
    %6416 = vmatpush1.msra.mxu0 0.0
    %6417 = vmatprep.subr.mxu0 0.0
    %6418 = vmatpush1.msra.mxu0 0.0
    %6419 = vmatprep.subr.mxu0 0.0
    %6420 = vmatpush1.msra.mxu0 0.0
    %6421 = vmatprep.subr.mxu0 0.0
    %6422 = vmatpush1.msra.mxu0 0.0
    %6423 = vmatprep.subr.mxu0 0.0
    %6424 = vmatpush1.msra.mxu0 0.0
    %6425 = vmatprep.subr.mxu0 0.0
    %6426 = vmatpush1.msra.mxu0 0.0
    %6427 = vmatprep.mubr.f32.mxu0 0.0
    %6428 = vmatmul.mubr.f32.gmra.mrb[0].mxu0 %v6153
    %v6429 = vpop.f32.mrb[0].mxu0
    %v6430 = vadd.f32 0.0, %v6429
    %v6431 = vpop.f32.mrb[0].mxu0
    %v6432 = vadd.f32 0.0, %v6431
    %6433 = vdwg.mxu0
    %6434 = vmatprep.subr.mxu0 %v3353
    %6435 = vmatpush1.msra.mxu0 %v3352
    %6436 = vmatprep.subr.mxu0 %v3357
    %6437 = vmatpush1.msra.mxu0 %v3356
    %6438 = vmatprep.subr.mxu0 %v3361
    %6439 = vmatpush1.msra.mxu0 %v3360
    %6440 = vmatprep.subr.mxu0 %v3365
    %6441 = vmatpush1.msra.mxu0 %v3364
    %6442 = vmatprep.subr.mxu0 %v3369
    %6443 = vmatpush1.msra.mxu0 %v3368
    %6444 = vmatprep.subr.mxu0 %v3373
    %6445 = vmatpush1.msra.mxu0 %v3372
    %6446 = vmatprep.subr.mxu0 %v3377
    %6447 = vmatpush1.msra.mxu0 %v3376
    %6448 = vmatprep.subr.mxu0 %v3381
    %6449 = vmatpush1.msra.mxu0 %v3380
    %6450 = vmatprep.subr.mxu0 %v3385
    %6451 = vmatpush1.msra.mxu0 %v3384
    %6452 = vmatprep.subr.mxu0 %v3389
    %6453 = vmatpush1.msra.mxu0 %v3388
    %6454 = vmatprep.subr.mxu0 %v3393
    %6455 = vmatpush1.msra.mxu0 %v3392
    %6456 = vmatprep.subr.mxu0 %v3397
    %6457 = vmatpush1.msra.mxu0 %v3396
    %6458 = vmatprep.subr.mxu0 %v3401
    %6459 = vmatpush1.msra.mxu0 %v3400
    %6460 = vmatprep.subr.mxu0 %v3405
    %6461 = vmatpush1.msra.mxu0 %v3404
    %6462 = vmatprep.subr.mxu0 %v3409
    %6463 = vmatpush1.msra.mxu0 %v3408
    %6464 = vmatprep.subr.mxu0 %v3413
    %6465 = vmatpush1.msra.mxu0 %v3412
    %6466 = vmatprep.subr.mxu0 0.0
    %6467 = vmatpush1.msra.mxu0 0.0
    %6468 = vmatprep.subr.mxu0 0.0
    %6469 = vmatpush1.msra.mxu0 0.0
    %6470 = vmatprep.subr.mxu0 0.0
    %6471 = vmatpush1.msra.mxu0 0.0
    %6472 = vmatprep.subr.mxu0 0.0
    %6473 = vmatpush1.msra.mxu0 0.0
    %6474 = vmatprep.subr.mxu0 0.0
    %6475 = vmatpush1.msra.mxu0 0.0
    %6476 = vmatprep.subr.mxu0 0.0
    %6477 = vmatpush1.msra.mxu0 0.0
    %6478 = vmatprep.subr.mxu0 0.0
    %6479 = vmatpush1.msra.mxu0 0.0
    %6480 = vmatprep.subr.mxu0 0.0
    %6481 = vmatpush1.msra.mxu0 0.0
    %6482 = vmatprep.subr.mxu0 0.0
    %6483 = vmatpush1.msra.mxu0 0.0
    %6484 = vmatprep.subr.mxu0 0.0
    %6485 = vmatpush1.msra.mxu0 0.0
    %6486 = vmatprep.subr.mxu0 0.0
    %6487 = vmatpush1.msra.mxu0 0.0
    %6488 = vmatprep.subr.mxu0 0.0
    %6489 = vmatpush1.msra.mxu0 0.0
    %6490 = vmatprep.subr.mxu0 0.0
    %6491 = vmatpush1.msra.mxu0 0.0
    %6492 = vmatprep.subr.mxu0 0.0
    %6493 = vmatpush1.msra.mxu0 0.0
    %6494 = vmatprep.subr.mxu0 0.0
    %6495 = vmatpush1.msra.mxu0 0.0
    %6496 = vmatprep.subr.mxu0 0.0
    %6497 = vmatpush1.msra.mxu0 0.0
    %6498 = vmatprep.mubr.f32.mxu0 0.0
    %6499 = vmatmul.mubr.f32.gmra.mrb[0].mxu0 %v6153
    %v6500 = vpop.f32.mrb[0].mxu0
    %v6501 = vadd.f32 0.0, %v6500
    %v6502 = vpop.f32.mrb[0].mxu0
    %v6503 = vadd.f32 0.0, %v6502
    %6504 = vdwg.mxu0
    %v6509 = vcombine.low %v6430, %v6432
    %v6510 = vcombine.low %v6501, %v6503
    %v6512 = vunpack.c.l.s4 1966171168
    %v6513 = vunpack.c.0.s8 %v6512
    %v6514 = vlaneseq
    %v6515 = vshrl.u32 %v6514, 7
    %v6516 = vsub.s32 %v6513, %v6515
    %v6517 = vrot.slane %v6509, %v6516
    %v6519 = vunpack.c.l.s4 1966171168
    %v6520 = vunpack.c.0.s8 %v6519
    %v6521 = vlaneseq
    %v6522 = vshrl.u32 %v6521, 7
    %v6523 = vsub.s32 %v6520, %v6522
    %v6524 = vrot.slane %v6510, %v6523
    %v6525 = vcombine.low %v6517, %v6524
    %v6527 = vunpack.c.l.s4 1966171168
    %v6528 = vunpack.c.0.s8 %v6527
    %v6529 = vlaneseq
    %v6530 = vshrl.u32 %v6529, 7
    %v6531 = vsub.s32 %v6528, %v6530
    %v6532 = vrot.slane %v6525, %v6531
    %v6534 = vadd.f32 %v6362, %v6532
    %v6535 = vxor.u32 %v6534, 2147483648
    %v6536 = vmul.f32 %v6535, 1.442695
    %v6537 = vpow.pop %v6536
    %v6538 = vadd.f32 %v6537, 1.0
    %v6539 = vrcp.pop %v6538
    %v6540 = vmul.f32 1.0, %v6539
    %v6542 = vrot.slane %v6534, 1
    %v6544 = vxor.u32 %v6542, 2147483648
    %v6545 = vmul.f32 %v6544, 1.442695
    %v6546 = vpow.pop %v6545
    %v6547 = vadd.f32 %v6546, 1.0
    %v6548 = vrcp.pop %v6547
    %v6549 = vmul.f32 1.0, %v6548
    %v6550 = vrot.slane %v6534, 2
    %v6552 = vtanh.pop %v6550
    %v6553 = vrot.slane %v6534, 3
    %v6555 = vxor.u32 %v6553, 2147483648
    %v6556 = vmul.f32 %v6555, 1.442695
    %v6557 = vpow.pop %v6556
    %v6558 = vadd.f32 %v6557, 1.0
    %v6559 = vrcp.pop %v6558
    %v6560 = vmul.f32 1.0, %v6559
    %v6561 = vmul.f32 %v6549, %v6151
    %v6562 = vmul.f32 %v6540, %v6552
    %v6563 = vadd.f32 %v6561, %v6562
    %v6564 = vtanh.pop %v6563
    %v6565 = vmul.f32 %v6560, %v6564
    %6566 = vst [vmem:[#allocation3 + $0x7] sm:$0x1] %v6565
    %s6567 = scalar_lea.vmem [#allocation2], 32
    %v6568 = vld [vmem:[%s6567] ss:$8 sm:$0xf]
    %6569 = vmatprep.subr.mxu0 %v3415
    %6570 = vmatpush1.msra.mxu0 %v3414
    %6571 = vmatprep.subr.mxu0 %v3419
    %6572 = vmatpush1.msra.mxu0 %v3418
    %6573 = vmatprep.subr.mxu0 %v3423
    %6574 = vmatpush1.msra.mxu0 %v3422
    %6575 = vmatprep.subr.mxu0 %v3427
    %6576 = vmatpush1.msra.mxu0 %v3426
    %6577 = vmatprep.subr.mxu0 %v3431
    %6578 = vmatpush1.msra.mxu0 %v3430
    %6579 = vmatprep.subr.mxu0 %v3435
    %6580 = vmatpush1.msra.mxu0 %v3434
    %6581 = vmatprep.subr.mxu0 %v3439
    %6582 = vmatpush1.msra.mxu0 %v3438
    %6583 = vmatprep.subr.mxu0 %v3443
    %6584 = vmatpush1.msra.mxu0 %v3442
    %6585 = vmatprep.subr.mxu0 %v3447
    %6586 = vmatpush1.msra.mxu0 %v3446
    %6587 = vmatprep.subr.mxu0 %v3451
    %6588 = vmatpush1.msra.mxu0 %v3450
    %6589 = vmatprep.subr.mxu0 %v3455
    %6590 = vmatpush1.msra.mxu0 %v3454
    %6591 = vmatprep.subr.mxu0 %v3459
    %6592 = vmatpush1.msra.mxu0 %v3458
    %6593 = vmatprep.subr.mxu0 %v3463
    %6594 = vmatpush1.msra.mxu0 %v3462
    %6595 = vmatprep.subr.mxu0 %v3467
    %6596 = vmatpush1.msra.mxu0 %v3466
    %6597 = vmatprep.subr.mxu0 %v3471
    %6598 = vmatpush1.msra.mxu0 %v3470
    %6599 = vmatprep.subr.mxu0 %v3475
    %6600 = vmatpush1.msra.mxu0 %v3474
    %6601 = vmatprep.subr.mxu0 0.0
    %6602 = vmatpush1.msra.mxu0 0.0
    %6603 = vmatprep.subr.mxu0 0.0
    %6604 = vmatpush1.msra.mxu0 0.0
    %6605 = vmatprep.subr.mxu0 0.0
    %6606 = vmatpush1.msra.mxu0 0.0
    %6607 = vmatprep.subr.mxu0 0.0
    %6608 = vmatpush1.msra.mxu0 0.0
    %6609 = vmatprep.subr.mxu0 0.0
    %6610 = vmatpush1.msra.mxu0 0.0
    %6611 = vmatprep.subr.mxu0 0.0
    %6612 = vmatpush1.msra.mxu0 0.0
    %6613 = vmatprep.subr.mxu0 0.0
    %6614 = vmatpush1.msra.mxu0 0.0
    %6615 = vmatprep.subr.mxu0 0.0
    %6616 = vmatpush1.msra.mxu0 0.0
    %6617 = vmatprep.subr.mxu0 0.0
    %6618 = vmatpush1.msra.mxu0 0.0
    %6619 = vmatprep.subr.mxu0 0.0
    %6620 = vmatpush1.msra.mxu0 0.0
    %6621 = vmatprep.subr.mxu0 0.0
    %6622 = vmatpush1.msra.mxu0 0.0
    %6623 = vmatprep.subr.mxu0 0.0
    %6624 = vmatpush1.msra.mxu0 0.0
    %6625 = vmatprep.subr.mxu0 0.0
    %6626 = vmatpush1.msra.mxu0 0.0
    %6627 = vmatprep.subr.mxu0 0.0
    %6628 = vmatpush1.msra.mxu0 0.0
    %6629 = vmatprep.subr.mxu0 0.0
    %6630 = vmatpush1.msra.mxu0 0.0
    %6631 = vmatprep.subr.mxu0 0.0
    %6632 = vmatpush1.msra.mxu0 0.0
    %6633 = vmatprep.mubr.f32.mxu0 0.0
    %6634 = vmatmul.mubr.f32.gmra.mrb[0].mxu0 %v6359
    %v6635 = vpop.f32.mrb[0].mxu0
    %v6636 = vadd.f32 0.0, %v6635
    %v6637 = vpop.f32.mrb[0].mxu0
    %v6638 = vadd.f32 0.0, %v6637
    %6639 = vdwg.mxu0
    %6640 = vmatprep.subr.mxu0 %v3417
    %6641 = vmatpush1.msra.mxu0 %v3416
    %6642 = vmatprep.subr.mxu0 %v3421
    %6643 = vmatpush1.msra.mxu0 %v3420
    %6644 = vmatprep.subr.mxu0 %v3425
    %6645 = vmatpush1.msra.mxu0 %v3424
    %6646 = vmatprep.subr.mxu0 %v3429
    %6647 = vmatpush1.msra.mxu0 %v3428
    %6648 = vmatprep.subr.mxu0 %v3433
    %6649 = vmatpush1.msra.mxu0 %v3432
    %6650 = vmatprep.subr.mxu0 %v3437
    %6651 = vmatpush1.msra.mxu0 %v3436
    %6652 = vmatprep.subr.mxu0 %v3441
    %6653 = vmatpush1.msra.mxu0 %v3440
    %6654 = vmatprep.subr.mxu0 %v3445
    %6655 = vmatpush1.msra.mxu0 %v3444
    %6656 = vmatprep.subr.mxu0 %v3449
    %6657 = vmatpush1.msra.mxu0 %v3448
    %6658 = vmatprep.subr.mxu0 %v3453
    %6659 = vmatpush1.msra.mxu0 %v3452
    %6660 = vmatprep.subr.mxu0 %v3457
    %6661 = vmatpush1.msra.mxu0 %v3456
    %6662 = vmatprep.subr.mxu0 %v3461
    %6663 = vmatpush1.msra.mxu0 %v3460
    %6664 = vmatprep.subr.mxu0 %v3465
    %6665 = vmatpush1.msra.mxu0 %v3464
    %6666 = vmatprep.subr.mxu0 %v3469
    %6667 = vmatpush1.msra.mxu0 %v3468
    %6668 = vmatprep.subr.mxu0 %v3473
    %6669 = vmatpush1.msra.mxu0 %v3472
    %6670 = vmatprep.subr.mxu0 %v3477
    %6671 = vmatpush1.msra.mxu0 %v3476
    %6672 = vmatprep.subr.mxu0 0.0
    %6673 = vmatpush1.msra.mxu0 0.0
    %6674 = vmatprep.subr.mxu0 0.0
    %6675 = vmatpush1.msra.mxu0 0.0
    %6676 = vmatprep.subr.mxu0 0.0
    %6677 = vmatpush1.msra.mxu0 0.0
    %6678 = vmatprep.subr.mxu0 0.0
    %6679 = vmatpush1.msra.mxu0 0.0
    %6680 = vmatprep.subr.mxu0 0.0
    %6681 = vmatpush1.msra.mxu0 0.0
    %6682 = vmatprep.subr.mxu0 0.0
    %6683 = vmatpush1.msra.mxu0 0.0
    %6684 = vmatprep.subr.mxu0 0.0
    %6685 = vmatpush1.msra.mxu0 0.0
    %6686 = vmatprep.subr.mxu0 0.0
    %6687 = vmatpush1.msra.mxu0 0.0
    %6688 = vmatprep.subr.mxu0 0.0
    %6689 = vmatpush1.msra.mxu0 0.0
    %6690 = vmatprep.subr.mxu0 0.0
    %6691 = vmatpush1.msra.mxu0 0.0
    %6692 = vmatprep.subr.mxu0 0.0
    %6693 = vmatpush1.msra.mxu0 0.0
    %6694 = vmatprep.subr.mxu0 0.0
    %6695 = vmatpush1.msra.mxu0 0.0
    %6696 = vmatprep.subr.mxu0 0.0
    %6697 = vmatpush1.msra.mxu0 0.0
    %6698 = vmatprep.subr.mxu0 0.0
    %6699 = vmatpush1.msra.mxu0 0.0
    %6700 = vmatprep.subr.mxu0 0.0
    %6701 = vmatpush1.msra.mxu0 0.0
    %6702 = vmatprep.subr.mxu0 0.0
    %6703 = vmatpush1.msra.mxu0 0.0
    %6704 = vmatprep.mubr.f32.mxu0 0.0
    %6705 = vmatmul.mubr.f32.gmra.mrb[0].mxu0 %v6359
    %v6706 = vpop.f32.mrb[0].mxu0
    %v6707 = vadd.f32 0.0, %v6706
    %v6708 = vpop.f32.mrb[0].mxu0
    %v6709 = vadd.f32 0.0, %v6708
    %6710 = vdwg.mxu0
    %v6715 = vcombine.low %v6636, %v6638
    %v6716 = vcombine.low %v6707, %v6709
    %v6718 = vunpack.c.l.s4 1966171168
    %v6719 = vunpack.c.0.s8 %v6718
    %v6720 = vlaneseq
    %v6721 = vshrl.u32 %v6720, 7
    %v6722 = vsub.s32 %v6719, %v6721
    %v6723 = vrot.slane %v6715, %v6722
    %v6725 = vunpack.c.l.s4 1966171168
    %v6726 = vunpack.c.0.s8 %v6725
    %v6727 = vlaneseq
    %v6728 = vshrl.u32 %v6727, 7
    %v6729 = vsub.s32 %v6726, %v6728
    %v6730 = vrot.slane %v6716, %v6729
    %v6731 = vcombine.low %v6723, %v6730
    %v6733 = vunpack.c.l.s4 1966171168
    %v6734 = vunpack.c.0.s8 %v6733
    %v6735 = vlaneseq
    %v6736 = vshrl.u32 %v6735, 7
    %v6737 = vsub.s32 %v6734, %v6736
    %v6738 = vrot.slane %v6731, %v6737
    %v6740 = vadd.f32 %v6568, %v6738
    %v6741 = vxor.u32 %v6740, 2147483648
    %v6742 = vmul.f32 %v6741, 1.442695
    %v6743 = vpow.pop %v6742
    %v6744 = vadd.f32 %v6743, 1.0
    %v6745 = vrcp.pop %v6744
    %v6746 = vmul.f32 1.0, %v6745
    %v6748 = vrot.slane %v6740, 1
    %v6750 = vxor.u32 %v6748, 2147483648
    %v6751 = vmul.f32 %v6750, 1.442695
    %v6752 = vpow.pop %v6751
    %v6753 = vadd.f32 %v6752, 1.0
    %v6754 = vrcp.pop %v6753
    %v6755 = vmul.f32 1.0, %v6754
    %v6756 = vrot.slane %v6740, 2
    %v6758 = vtanh.pop %v6756
    %v6759 = vrot.slane %v6740, 3
    %v6761 = vxor.u32 %v6759, 2147483648
    %v6762 = vmul.f32 %v6761, 1.442695
    %v6763 = vpow.pop %v6762
    %v6764 = vadd.f32 %v6763, 1.0
    %v6765 = vrcp.pop %v6764
    %v6766 = vmul.f32 1.0, %v6765
    %v6767 = vmul.f32 %v6755, %v6357
    %v6768 = vmul.f32 %v6746, %v6758
    %v6769 = vadd.f32 %v6767, %v6768
    %v6770 = vtanh.pop %v6769
    %v6771 = vmul.f32 %v6766, %v6770
    %6772 = vst [vmem:[#allocation4] sm:$0x1] %v6771
    %v6773 = vld [vmem:[#allocation3] sm:$0xff]
    %v6774 = vld [vmem:[%s9] sm:$0xff]
    %v6775 = vld [vmem:[%s9 + $0x8] sm:$0xff]
    %v6776 = vld [vmem:[%s9 + $0x10] sm:$0xff]
    %v6777 = vld [vmem:[%s9 + $0x18] sm:$0xff]
    %v6778 = vld [vmem:[%s9 + $0x20] sm:$0xff]
    %v6779 = vld [vmem:[%s9 + $0x28] sm:$0xff]
    %v6780 = vld [vmem:[%s9 + $0x30] sm:$0xff]
    %v6781 = vld [vmem:[%s9 + $0x38] sm:$0xff]
    %v6782 = vld [vmem:[%s9 + $0x40] sm:$0xff]
    %v6783 = vld [vmem:[%s9 + $0x48] sm:$0xff]
    %v6784 = vld [vmem:[%s9 + $0x50] sm:$0xff]
    %v6785 = vld [vmem:[%s9 + $0x58] sm:$0xff]
    %v6786 = vld [vmem:[%s9 + $0x60] sm:$0xff]
    %v6787 = vld [vmem:[%s9 + $0x68] sm:$0xff]
    %v6788 = vld [vmem:[%s9 + $0x70] sm:$0xff]
    %v6789 = vld [vmem:[%s9 + $0x78] sm:$0xff]
    %v6790 = vld [vmem:[#allocation4] sm:$0xff]
    %v6791 = vld [vmem:[#allocation11] sm:$0xff]
    %v6792 = vld [vmem:[#allocation11 + $0x8] sm:$0xff]
    %v6793 = vld [vmem:[#allocation11 + $0x10] sm:$0xff]
    %v6794 = vld [vmem:[#allocation11 + $0x18] sm:$0xff]
    %v6795 = vld [vmem:[#allocation11 + $0x20] sm:$0xff]
    %v6796 = vld [vmem:[#allocation11 + $0x28] sm:$0xff]
    %v6797 = vld [vmem:[#allocation11 + $0x30] sm:$0xff]
    %v6798 = vld [vmem:[#allocation11 + $0x38] sm:$0xff]
    %v6799 = vld [vmem:[#allocation11 + $0x40] sm:$0xff]
    %v6800 = vld [vmem:[#allocation11 + $0x48] sm:$0xff]
    %v6801 = vld [vmem:[#allocation11 + $0x50] sm:$0xff]
    %v6802 = vld [vmem:[#allocation11 + $0x58] sm:$0xff]
    %v6803 = vld [vmem:[#allocation11 + $0x60] sm:$0xff]
    %v6804 = vld [vmem:[#allocation11 + $0x68] sm:$0xff]
    %v6805 = vld [vmem:[#allocation11 + $0x70] sm:$0xff]
    %v6806 = vld [vmem:[#allocation11 + $0x78] sm:$0xff]
    %6807 = vmatprep.subr.mxu0 0.0
    %6808 = vmatpush1.msra.mxu0 %v6791
    %6809 = vmatprep.subr.mxu0 0.0
    %6810 = vmatpush1.msra.mxu0 %v6792
    %6811 = vmatprep.subr.mxu0 0.0
    %6812 = vmatpush1.msra.mxu0 %v6793
    %6813 = vmatprep.subr.mxu0 0.0
    %6814 = vmatpush1.msra.mxu0 %v6794
    %6815 = vmatprep.subr.mxu0 0.0
    %6816 = vmatpush1.msra.mxu0 %v6795
    %6817 = vmatprep.subr.mxu0 0.0
    %6818 = vmatpush1.msra.mxu0 %v6796
    %6819 = vmatprep.subr.mxu0 0.0
    %6820 = vmatpush1.msra.mxu0 %v6797
    %6821 = vmatprep.subr.mxu0 0.0
    %6822 = vmatpush1.msra.mxu0 %v6798
    %6823 = vmatprep.subr.mxu0 0.0
    %6824 = vmatpush1.msra.mxu0 %v6799
    %6825 = vmatprep.subr.mxu0 0.0
    %6826 = vmatpush1.msra.mxu0 %v6800
    %6827 = vmatprep.subr.mxu0 0.0
    %6828 = vmatpush1.msra.mxu0 %v6801
    %6829 = vmatprep.subr.mxu0 0.0
    %6830 = vmatpush1.msra.mxu0 %v6802
    %6831 = vmatprep.subr.mxu0 0.0
    %6832 = vmatpush1.msra.mxu0 %v6803
    %6833 = vmatprep.subr.mxu0 0.0
    %6834 = vmatpush1.msra.mxu0 %v6804
    %6835 = vmatprep.subr.mxu0 0.0
    %6836 = vmatpush1.msra.mxu0 %v6805
    %6837 = vmatprep.subr.mxu0 0.0
    %6838 = vmatpush1.msra.mxu0 %v6806
    %6839 = vmatprep.subr.mxu0 0.0
    %6840 = vmatpush1.msra.mxu0 0.0
    %6841 = vmatprep.subr.mxu0 0.0
    %6842 = vmatpush1.msra.mxu0 0.0
    %6843 = vmatprep.subr.mxu0 0.0
    %6844 = vmatpush1.msra.mxu0 0.0
    %6845 = vmatprep.subr.mxu0 0.0
    %6846 = vmatpush1.msra.mxu0 0.0
    %6847 = vmatprep.subr.mxu0 0.0
    %6848 = vmatpush1.msra.mxu0 0.0
    %6849 = vmatprep.subr.mxu0 0.0
    %6850 = vmatpush1.msra.mxu0 0.0
    %6851 = vmatprep.subr.mxu0 0.0
    %6852 = vmatpush1.msra.mxu0 0.0
    %6853 = vmatprep.subr.mxu0 0.0
    %6854 = vmatpush1.msra.mxu0 0.0
    %6855 = vmatprep.subr.mxu0 0.0
    %6856 = vmatpush1.msra.mxu0 0.0
    %6857 = vmatprep.subr.mxu0 0.0
    %6858 = vmatpush1.msra.mxu0 0.0
    %6859 = vmatprep.subr.mxu0 0.0
    %6860 = vmatpush1.msra.mxu0 0.0
    %6861 = vmatprep.subr.mxu0 0.0
    %6862 = vmatpush1.msra.mxu0 0.0
    %6863 = vmatprep.subr.mxu0 0.0
    %6864 = vmatpush1.msra.mxu0 0.0
    %6865 = vmatprep.subr.mxu0 0.0
    %6866 = vmatpush1.msra.mxu0 0.0
    %6867 = vmatprep.subr.mxu0 0.0
    %6868 = vmatpush1.msra.mxu0 0.0
    %6869 = vmatprep.subr.mxu0 0.0
    %6870 = vmatpush1.msra.mxu0 0.0
    %6871 = vmatprep.mubr.f32.mxu0 0.0
    %6872 = vmatmul.mubr.f32.gmra.mrb[0].mxu0 %v6790
    %v6873 = vpop.f32.mrb[0].mxu0
    %v6874 = vadd.f32 0.0, %v6873
    %v6875 = vpop.f32.mrb[0].mxu0
    %6876 = vdwg.mxu0
    %6877 = vmatprep.subr.mxu0 0.0
    %6878 = vmatpush1.msra.mxu0 %v6774
    %6879 = vmatprep.subr.mxu0 0.0
    %6880 = vmatpush1.msra.mxu0 %v6775
    %6881 = vmatprep.subr.mxu0 0.0
    %6882 = vmatpush1.msra.mxu0 %v6776
    %6883 = vmatprep.subr.mxu0 0.0
    %6884 = vmatpush1.msra.mxu0 %v6777
    %6885 = vmatprep.subr.mxu0 0.0
    %6886 = vmatpush1.msra.mxu0 %v6778
    %6887 = vmatprep.subr.mxu0 0.0
    %6888 = vmatpush1.msra.mxu0 %v6779
    %6889 = vmatprep.subr.mxu0 0.0
    %6890 = vmatpush1.msra.mxu0 %v6780
    %6891 = vmatprep.subr.mxu0 0.0
    %6892 = vmatpush1.msra.mxu0 %v6781
    %6893 = vmatprep.subr.mxu0 0.0
    %6894 = vmatpush1.msra.mxu0 %v6782
    %6895 = vmatprep.subr.mxu0 0.0
    %6896 = vmatpush1.msra.mxu0 %v6783
    %6897 = vmatprep.subr.mxu0 0.0
    %6898 = vmatpush1.msra.mxu0 %v6784
    %6899 = vmatprep.subr.mxu0 0.0
    %6900 = vmatpush1.msra.mxu0 %v6785
    %6901 = vmatprep.subr.mxu0 0.0
    %6902 = vmatpush1.msra.mxu0 %v6786
    %6903 = vmatprep.subr.mxu0 0.0
    %6904 = vmatpush1.msra.mxu0 %v6787
    %6905 = vmatprep.subr.mxu0 0.0
    %6906 = vmatpush1.msra.mxu0 %v6788
    %6907 = vmatprep.subr.mxu0 0.0
    %6908 = vmatpush1.msra.mxu0 %v6789
    %6909 = vmatprep.subr.mxu0 0.0
    %6910 = vmatpush1.msra.mxu0 0.0
    %6911 = vmatprep.subr.mxu0 0.0
    %6912 = vmatpush1.msra.mxu0 0.0
    %6913 = vmatprep.subr.mxu0 0.0
    %6914 = vmatpush1.msra.mxu0 0.0
    %6915 = vmatprep.subr.mxu0 0.0
    %6916 = vmatpush1.msra.mxu0 0.0
    %6917 = vmatprep.subr.mxu0 0.0
    %6918 = vmatpush1.msra.mxu0 0.0
    %6919 = vmatprep.subr.mxu0 0.0
    %6920 = vmatpush1.msra.mxu0 0.0
    %6921 = vmatprep.subr.mxu0 0.0
    %6922 = vmatpush1.msra.mxu0 0.0
    %6923 = vmatprep.subr.mxu0 0.0
    %6924 = vmatpush1.msra.mxu0 0.0
    %6925 = vmatprep.subr.mxu0 0.0
    %6926 = vmatpush1.msra.mxu0 0.0
    %6927 = vmatprep.subr.mxu0 0.0
    %6928 = vmatpush1.msra.mxu0 0.0
    %6929 = vmatprep.subr.mxu0 0.0
    %6930 = vmatpush1.msra.mxu0 0.0
    %6931 = vmatprep.subr.mxu0 0.0
    %6932 = vmatpush1.msra.mxu0 0.0
    %6933 = vmatprep.subr.mxu0 0.0
    %6934 = vmatpush1.msra.mxu0 0.0
    %6935 = vmatprep.subr.mxu0 0.0
    %6936 = vmatpush1.msra.mxu0 0.0
    %6937 = vmatprep.subr.mxu0 0.0
    %6938 = vmatpush1.msra.mxu0 0.0
    %6939 = vmatprep.subr.mxu0 0.0
    %6940 = vmatpush1.msra.mxu0 0.0
    %6941 = vmatprep.mubr.f32.mxu0 0.0
    %6942 = vmatmul.mubr.f32.gmra.mrb[0].mxu0 %v6773
    %v6943 = vpop.f32.mrb[0].mxu0
    %v6944 = vadd.f32 %v6874, %v6943
    %v6945 = vpop.f32.mrb[0].mxu0
    %6946 = vdwg.mxu0
    %v6947 = vld [vmem:[%s11] sm:$0x1]
    %v6949 = vlaneseq
    %v6950 = vshrl.u32 %v6949, 7
    %v6951 = vsub.s32 0, %v6950
    %v6952 = vrot.slane %v6947, %v6951
    %v6954 = vadd.f32 %v6944, %v6952
    %6955 = vst [vmem:[#allocation13] sm:$0xff] %v6954
    // Predicated region
    $region66: #{pos_forward.1} parent=1 // pred_check
      _
    $region67: #{pos_forward.1} parent=1 // pred_check_branch
      %6957 = sbr.rel (0) target = $region69
    $region68: #{pos_forward.1} parent=1 // pred_region
      %s6959 = ssub.s32 128, 128
      %6960 = vsyncadd [#allocation7], %s6959
      %s6962 = sshll.u32 [#allocation13], 4
      %s6963 = int_to_ptr.vmem [resolvable:$true] %s6962
      %6965 = dma.vmem_to_hbm [thread:$0]  %s6963, 128, %s12, [#allocation7]
    $region69: #{pos_forward.1} parent=1 // pred_fallthru
      _
    // Predicated region
    $region70: #{pos_forward.1} parent=1 // pred_check
      _
    $region71: #{pos_forward.1} parent=1 // pred_check_branch
      %6967 = sbr.rel (0) target = $region73
    $region72: #{pos_forward.1} parent=1 // pred_region
      %6968 = dma.done [#allocation7], 128
    $region73: #{pos_forward.1} parent=1 // pred_fallthru
      _
    %6969 = vsyncpa [#allocation6], 1
    %6970 = vsyncpa [#allocation9], 1
    %6971 = vsyncpa [#allocation12], 1
    %6972 = vsyncpa [#allocation7], 1

</llo_original>
